<compile_context>
chip_gen: v6e
topology: v6e:2x2x1
jax: 0.10.0
libtpu: 0.0.40
codegen_flags: <defaults>
</compile_context>

<pallas_src>
import functools

import jax
import jax.numpy as jnp
from jax.experimental import pallas as pl
from jax.experimental.pallas import tpu as pltpu


# ----------------------------------------------------------------------------
# Pallas kernel: K-tiled (X @ W) with f32 accumulator, fused bias (+ ReLU).
# ----------------------------------------------------------------------------
def _mm_bias_act_kernel(x_ref, w_ref, b_ref, o_ref, acc_ref, *, relu):
    @pl.when(pl.program_id(1) == 0)
    def _init():
        acc_ref[...] = jnp.zeros_like(acc_ref)

    acc_ref[...] += jnp.dot(x_ref[...], w_ref[...],
                            preferred_element_type=jnp.float32)

    @pl.when(pl.program_id(1) == pl.num_programs(1) - 1)
    def _finalize():
        acc = acc_ref[...] + b_ref[...]          # (tm, Nout) + (1, Nout)
        if relu:
            acc = jnp.maximum(acc, 0.0)
        o_ref[...] = acc.astype(o_ref.dtype)


def _choose_tm(m, cap=512):
    """Row tile: prefer a multiple-of-8 divisor of M (no pad copy) <= cap."""
    if m <= cap:
        return m                                  # full extent is always legal
    t = (cap // 8) * 8
    while t >= 64:
        if m % t == 0:
            return t
        t -= 8
    return cap                                    # fallback: pad M up to k*cap


def _choose_tk(k, tm, itemsize, max_block_bytes=2 << 20):
    """Contraction tile: full K unless the X block would exceed ~2 MiB/buffer."""
    if k % 128 != 0 or tm * k * itemsize <= max_block_bytes:
        return k
    best = 128
    for d in range(128, k + 1, 128):
        if k % d == 0 and tm * d * itemsize <= max_block_bytes:
            best = d
    return best


def matmul_bias_act(x, w, b, *, relu, out_dtype):
    """x: [M, K], w: [K, Nout], b: [Nout] -> [M, Nout] (bias + optional ReLU).

    Operands are cast to bf16 for the MXU; accumulation is f32.
    """
    M, K = x.shape
    Kw, Nout = w.shape
    assert K == Kw, (K, Kw)

    x = x.astype(jnp.bfloat16)
    w = w.astype(jnp.bfloat16)
    b = b.astype(jnp.float32).reshape(1, Nout)

    tm = _choose_tm(M)
    m_pad = ((M + tm - 1) // tm) * tm
    if m_pad != M:
        x = jnp.pad(x, ((0, m_pad - M), (0, 0)))

    tk = _choose_tk(K, tm, x.dtype.itemsize)
    assert K % tk == 0
    n_k = K // tk

    out = pl.pallas_call(
        functools.partial(_mm_bias_act_kernel, relu=relu),
        out_shape=jax.ShapeDtypeStruct((m_pad, Nout), out_dtype),
        grid=(m_pad // tm, n_k),
        in_specs=[
            pl.BlockSpec((tm, tk), lambda i, k: (i, k)),
            pl.BlockSpec((tk, Nout), lambda i, k: (k, 0)),
            pl.BlockSpec((1, Nout), lambda i, k: (0, 0)),
        ],
        out_specs=pl.BlockSpec((tm, Nout), lambda i, k: (i, 0)),
        scratch_shapes=[pltpu.VMEM((tm, Nout), jnp.float32)],
        compiler_params=pltpu.CompilerParams(
            dimension_semantics=("parallel", "arbitrary")),
    )(x, w, b)
    return out[:M] if m_pad != M else out


# ----------------------------------------------------------------------------
# Glue: im2col patch extraction (NHWC in, feature order (kh, kw, C)).
# ----------------------------------------------------------------------------
def im2col(x, kh, kw, stride):
    N, H, W, C = x.shape
    OH = (H - kh) // stride + 1
    OW = (W - kw) // stride + 1
    cols = []
    for i in range(kh):
        for j in range(kw):
            sl = x[:, i:i + stride * (OH - 1) + 1:stride,
                      j:j + stride * (OW - 1) + 1:stride, :]      # [N,OH,OW,C]
            cols.append(sl)
    patches = jnp.stack(cols, axis=3)                             # [N,OH,OW,kh*kw,C]
    return patches.reshape(N * OH * OW, kh * kw * C), OH, OW


# ----------------------------------------------------------------------------
# Parameter init (PyTorch-default-style uniform fan-in scaling).
# Layout fixups (im2col feature order, NCHW flatten) are baked in here, once.
# ----------------------------------------------------------------------------
def _conv_params(key, c_in, c_out, k):
    fan_in = c_in * k * k
    bound = 1.0 / (fan_in ** 0.5)
    k1, k2 = jax.random.split(key)
    w = jax.random.uniform(k1, (c_out, c_in, k, k), jnp.float32, -bound, bound)
    b = jax.random.uniform(k2, (c_out,), jnp.float32, -bound, bound)
    # [C_out, C_in, kh, kw] -> [kh*kw*C_in, C_out], rows ordered (i, j, c)
    # to match the im2col feature order.
    w_mat = jnp.transpose(w, (2, 3, 1, 0)).reshape(k * k * c_in, c_out)
    return w_mat.astype(jnp.bfloat16), b


def _linear_params(key, f_in, f_out, *, hwc=None):
    bound = 1.0 / (f_in ** 0.5)
    k1, k2 = jax.random.split(key)
    w = jax.random.uniform(k1, (f_out, f_in), jnp.float32, -bound, bound)
    b = jax.random.uniform(k2, (f_out,), jnp.float32, -bound, bound)
    w_mat = w.T                                   # [f_in, f_out], torch CHW row order
    if hwc is not None:
        # Permute rows so an NHWC-flattened activation matches torch's
        # NCHW x.view(N, -1) ordering (removes a runtime transpose).
        H, W, C = hwc
        f = jnp.arange(H * W * C)
        h = f // (W * C)
        rem = f % (W * C)
        w_ = rem // C
        c = rem % C
        perm = c * (H * W) + h * W + w_           # NHWC index -> CHW index
        w_mat = w_mat[perm]
    return w_mat.astype(jnp.bfloat16), b


def init_brain_cnn_params(key, in_channels, output_shape):
    ks = jax.random.split(key, 4)
    w1, b1 = _conv_params(ks[0], in_channels, 64, 4)
    w2, b2 = _conv_params(ks[1], 64, 32, 4)
    w3, b3 = _conv_params(ks[2], 32, 32, 3)
    wo, bo = _linear_params(ks[3], 18 * 18 * 32, output_shape, hwc=(18, 18, 32))
    return dict(w1=w1, b1=b1, w2=w2, b2=b2, w3=w3, b3=b3, wo=wo, bo=bo)


# ----------------------------------------------------------------------------
# Forward pass (matches BrainCNN.forward).
# ----------------------------------------------------------------------------
def brain_cnn_forward(x_nchw, params):
    # torch.from_numpy(x).float(); compute in bf16 on the MXU, accumulate f32.
    x = jnp.transpose(x_nchw.astype(jnp.float32), (0, 2, 3, 1))   # NCHW -> NHWC
    x = x.astype(jnp.bfloat16)
    N = x.shape[0]

    # layer1: Conv(k=4, s=2, p=1) + ReLU : 84 -> 42
    xp = jnp.pad(x, ((0, 0), (1, 1), (1, 1), (0, 0)))
    p, OH, OW = im2col(xp, 4, 4, 2)
    y = matmul_bias_act(p, params["w1"], params["b1"], relu=True,
                        out_dtype=jnp.bfloat16)
    x = y.reshape(N, OH, OW, 64)

    # layer2: Conv(k=4, s=2, p=0) + ReLU : 42 -> 20
    p, OH, OW = im2col(x, 4, 4, 2)
    y = matmul_bias_act(p, params["w2"], params["b2"], relu=True,
                        out_dtype=jnp.bfloat16)
    x = y.reshape(N, OH, OW, 32)

    # layer3: Conv(k=3, s=1, p=0) + ReLU : 20 -> 18
    p, OH, OW = im2col(x, 3, 3, 1)
    y = matmul_bias_act(p, params["w3"], params["b3"], relu=True,
                        out_dtype=jnp.bfloat16)
    x = y.reshape(N, OH, OW, 32)

    # NHWC flatten; the Linear weight rows were permuted at init to match
    # torch's NCHW flatten, so no runtime transpose is needed.
    x = x.reshape(N, -1)                                          # [N, 18*18*32]
    return matmul_bias_act(x, params["wo"], params["bo"], relu=False,
                           out_dtype=jnp.float32)


if __name__ == "__main__":
    key = jax.random.PRNGKey(0)
    k_x, k_p = jax.random.split(key)

    # Spatial size 84x84 is forced by the hardcoded Linear(18*18*32, ...).
    batch, in_channels, output_shape = 2, 4, 6
    x = jax.random.normal(k_x, (batch, in_channels, 84, 84), jnp.float32)

    params = init_brain_cnn_params(k_p, in_channels, output_shape)

    fwd = jax.jit(brain_cnn_forward)
    out = jax.block_until_ready(fwd(x, params))

    assert out.shape == (batch, output_shape), out.shape
    assert out.dtype == jnp.float32
    print("KERNEL_OK")
</pallas_src>

<mosaic_0001>
module attributes {stable_mosaic.version = 11 : i64} {
  func.func @_mm_bias_act_kernel(%arg0: i32, %arg1: i32, %arg2: memref<504x64xbf16, #tpu.memory_space<vmem>>, %arg3: memref<64x64xbf16, #tpu.memory_space<vmem>>, %arg4: memref<1x64xf32, #tpu.memory_space<vmem>>, %arg5: memref<504x64xbf16, #tpu.memory_space<vmem>>, %arg6: memref<504x64xf32, #tpu.memory_space<vmem>>) attributes {dimension_semantics = [#tpu.dimension_semantics<parallel>, #tpu.dimension_semantics<arbitrary>], iteration_bounds = array<i64: 7, 1>, scalar_prefetch = 0 : i64, scratch_operands = 1 : i64, tpu.core_type = #tpu.core_type<tc>, window_params = [{transform_indices = @transform_0, window_bounds = array<i64: 504, 64>}, {transform_indices = @transform_1, window_bounds = array<i64: 64, 64>}, {pipeline_mode = #tpu.pipeline_mode<synchronous>, transform_indices = @transform_2, window_bounds = array<i64: 1, 64>}, {transform_indices = @transform_3, window_bounds = array<i64: 504, 64>}]} {
    %c0_i32 = arith.constant 0 : i32
    %0 = arith.cmpi eq, %arg1, %c0_i32 : i32
    %1 = arith.extui %0 : i1 to i32
    %c0_i32_0 = arith.constant 0 : i32
    %2 = arith.cmpi ne, %1, %c0_i32_0 : i32
    scf.if %2 {
      %cst_10 = arith.constant 0.000000e+00 : f32
      %12 = vector.broadcast %cst_10 : f32 to vector<504x64xf32>
      %c0_11 = arith.constant 0 : index
      %c0_12 = arith.constant 0 : index
      %13 = vector.load %arg6[%c0_11, %c0_12] : memref<504x64xf32, #tpu.memory_space<vmem>>, vector<504x64xf32>
      tpu.vector_store %arg6[%c0_11, %c0_12], %12 {strides = array<i32>} : memref<504x64xf32, #tpu.memory_space<vmem>>, vector<504x64xf32>,
    } else {
    }
    %c0 = arith.constant 0 : index
    %c0_1 = arith.constant 0 : index
    %3 = vector.load %arg6[%c0, %c0_1] : memref<504x64xf32, #tpu.memory_space<vmem>>, vector<504x64xf32>
    %c0_2 = arith.constant 0 : index
    %c0_3 = arith.constant 0 : index
    %4 = vector.load %arg2[%c0_2, %c0_3] : memref<504x64xbf16, #tpu.memory_space<vmem>>, vector<504x64xbf16>
    %c0_4 = arith.constant 0 : index
    %c0_5 = arith.constant 0 : index
    %5 = vector.load %arg3[%c0_4, %c0_5] : memref<64x64xbf16, #tpu.memory_space<vmem>>, vector<64x64xbf16>
    %cst = arith.constant dense<0.000000e+00> : vector<504x64xf32>
    %6 = tpu.matmul %4, %5, %cst {dimension_numbers = #tpu.dot_dimension_numbers<[1], [0], [0], [1], [0, 0, 1, 1], [], []>} : vector<504x64xbf16>, vector<64x64xbf16>, vector<504x64xf32> -> vector<504x64xf32>
    %7 = arith.addf %3, %6 : vector<504x64xf32>
    %c0_6 = arith.constant 0 : index
    %c0_7 = arith.constant 0 : index
    %8 = vector.load %arg6[%c0_6, %c0_7] : memref<504x64xf32, #tpu.memory_space<vmem>>, vector<504x64xf32>
    tpu.vector_store %arg6[%c0_6, %c0_7], %7 {strides = array<i32>} : memref<504x64xf32, #tpu.memory_space<vmem>>, vector<504x64xf32>,
    %c0_i32_8 = arith.constant 0 : i32
    %9 = arith.cmpi eq, %arg1, %c0_i32_8 : i32
    %10 = arith.extui %9 : i1 to i32
    %c0_i32_9 = arith.constant 0 : i32
    %11 = arith.cmpi ne, %10, %c0_i32_9 : i32
    scf.if %11 {
      %c0_10 = arith.constant 0 : index
      %c0_11 = arith.constant 0 : index
      %12 = vector.load %arg6[%c0_10, %c0_11] : memref<504x64xf32, #tpu.memory_space<vmem>>, vector<504x64xf32>
      %c0_12 = arith.constant 0 : index
      %c0_13 = arith.constant 0 : index
      %13 = vector.load %arg4[%c0_12, %c0_13] : memref<1x64xf32, #tpu.memory_space<vmem>>, vector<1x64xf32>
      %14 = vector.broadcast %13 : vector<1x64xf32> to vector<504x64xf32>
      %15 = arith.addf %12, %14 : vector<504x64xf32>
      %cst_14 = arith.constant 0.000000e+00 : f32
      %16 = vector.broadcast %cst_14 : f32 to vector<504x64xf32>
      %17 = arith.maximumf %15, %16 : vector<504x64xf32>
      %18 = arith.truncf %17 : vector<504x64xf32> to vector<504x64xbf16>
      %c0_15 = arith.constant 0 : index
      %c0_16 = arith.constant 0 : index
      %19 = vector.load %arg5[%c0_15, %c0_16] : memref<504x64xbf16, #tpu.memory_space<vmem>>, vector<504x64xbf16>
      tpu.vector_store %arg5[%c0_15, %c0_16], %18 {strides = array<i32>} : memref<504x64xbf16, #tpu.memory_space<vmem>>, vector<504x64xbf16>,
    } else {
    }
    return
  }
  func.func @transform_0(%arg0: i32, %arg1: i32) -> (i32, i32) {
    %c0_i32 = arith.constant 0 : i32
    return %arg0, %arg1 : i32, i32
  }
  func.func @transform_1(%arg0: i32, %arg1: i32) -> (i32, i32) {
    %c0_i32 = arith.constant 0 : i32
    %c0_i32_0 = arith.constant 0 : i32
    return %arg1, %c0_i32 : i32, i32
  }
  func.func @transform_2(%arg0: i32, %arg1: i32) -> (i32, i32) {
    %c0_i32 = arith.constant 0 : i32
    %c0_i32_0 = arith.constant 0 : i32
    %c0_i32_1 = arith.constant 0 : i32
    return %c0_i32, %c0_i32_0 : i32, i32
  }
  func.func @transform_3(%arg0: i32, %arg1: i32) -> (i32, i32) {
    %c0_i32 = arith.constant 0 : i32
    %c0_i32_0 = arith.constant 0 : i32
    return %arg0, %c0_i32 : i32, i32
  }
}

module attributes {stable_mosaic.version = 11 : i64} {
  func.func @_mm_bias_act_kernel(%arg0: i32, %arg1: i32, %arg2: memref<400x1024xbf16, #tpu.memory_space<vmem>>, %arg3: memref<1024x32xbf16, #tpu.memory_space<vmem>>, %arg4: memref<1x32xf32, #tpu.memory_space<vmem>>, %arg5: memref<400x32xbf16, #tpu.memory_space<vmem>>, %arg6: memref<400x32xf32, #tpu.memory_space<vmem>>) attributes {dimension_semantics = [#tpu.dimension_semantics<parallel>, #tpu.dimension_semantics<arbitrary>], iteration_bounds = array<i64: 2, 1>, scalar_prefetch = 0 : i64, scratch_operands = 1 : i64, tpu.core_type = #tpu.core_type<tc>, window_params = [{transform_indices = @transform_0, window_bounds = array<i64: 400, 1024>}, {transform_indices = @transform_1, window_bounds = array<i64: 1024, 32>}, {pipeline_mode = #tpu.pipeline_mode<synchronous>, transform_indices = @transform_2, window_bounds = array<i64: 1, 32>}, {transform_indices = @transform_3, window_bounds = array<i64: 400, 32>}]} {
    %c0_i32 = arith.constant 0 : i32
    %0 = arith.cmpi eq, %arg1, %c0_i32 : i32
    %1 = arith.extui %0 : i1 to i32
    %c0_i32_0 = arith.constant 0 : i32
    %2 = arith.cmpi ne, %1, %c0_i32_0 : i32
    scf.if %2 {
      %cst_10 = arith.constant 0.000000e+00 : f32
      %12 = vector.broadcast %cst_10 : f32 to vector<400x32xf32>
      %c0_11 = arith.constant 0 : index
      %c0_12 = arith.constant 0 : index
      %13 = vector.load %arg6[%c0_11, %c0_12] : memref<400x32xf32, #tpu.memory_space<vmem>>, vector<400x32xf32>
      tpu.vector_store %arg6[%c0_11, %c0_12], %12 {strides = array<i32>} : memref<400x32xf32, #tpu.memory_space<vmem>>, vector<400x32xf32>,
    } else {
    }
    %c0 = arith.constant 0 : index
    %c0_1 = arith.constant 0 : index
    %3 = vector.load %arg6[%c0, %c0_1] : memref<400x32xf32, #tpu.memory_space<vmem>>, vector<400x32xf32>
    %c0_2 = arith.constant 0 : index
    %c0_3 = arith.constant 0 : index
    %4 = vector.load %arg2[%c0_2, %c0_3] : memref<400x1024xbf16, #tpu.memory_space<vmem>>, vector<400x1024xbf16>
    %c0_4 = arith.constant 0 : index
    %c0_5 = arith.constant 0 : index
    %5 = vector.load %arg3[%c0_4, %c0_5] : memref<1024x32xbf16, #tpu.memory_space<vmem>>, vector<1024x32xbf16>
    %cst = arith.constant dense<0.000000e+00> : vector<400x32xf32>
    %6 = tpu.matmul %4, %5, %cst {dimension_numbers = #tpu.dot_dimension_numbers<[1], [0], [0], [1], [0, 0, 1, 1], [], []>} : vector<400x1024xbf16>, vector<1024x32xbf16>, vector<400x32xf32> -> vector<400x32xf32>
    %7 = arith.addf %3, %6 : vector<400x32xf32>
    %c0_6 = arith.constant 0 : index
    %c0_7 = arith.constant 0 : index
    %8 = vector.load %arg6[%c0_6, %c0_7] : memref<400x32xf32, #tpu.memory_space<vmem>>, vector<400x32xf32>
    tpu.vector_store %arg6[%c0_6, %c0_7], %7 {strides = array<i32>} : memref<400x32xf32, #tpu.memory_space<vmem>>, vector<400x32xf32>,
    %c0_i32_8 = arith.constant 0 : i32
    %9 = arith.cmpi eq, %arg1, %c0_i32_8 : i32
    %10 = arith.extui %9 : i1 to i32
    %c0_i32_9 = arith.constant 0 : i32
    %11 = arith.cmpi ne, %10, %c0_i32_9 : i32
    scf.if %11 {
      %c0_10 = arith.constant 0 : index
      %c0_11 = arith.constant 0 : index
      %12 = vector.load %arg6[%c0_10, %c0_11] : memref<400x32xf32, #tpu.memory_space<vmem>>, vector<400x32xf32>
      %c0_12 = arith.constant 0 : index
      %c0_13 = arith.constant 0 : index
      %13 = vector.load %arg4[%c0_12, %c0_13] : memref<1x32xf32, #tpu.memory_space<vmem>>, vector<1x32xf32>
      %14 = vector.broadcast %13 : vector<1x32xf32> to vector<400x32xf32>
      %15 = arith.addf %12, %14 : vector<400x32xf32>
      %cst_14 = arith.constant 0.000000e+00 : f32
      %16 = vector.broadcast %cst_14 : f32 to vector<400x32xf32>
      %17 = arith.maximumf %15, %16 : vector<400x32xf32>
      %18 = arith.truncf %17 : vector<400x32xf32> to vector<400x32xbf16>
      %c0_15 = arith.constant 0 : index
      %c0_16 = arith.constant 0 : index
      %19 = vector.load %arg5[%c0_15, %c0_16] : memref<400x32xbf16, #tpu.memory_space<vmem>>, vector<400x32xbf16>
      tpu.vector_store %arg5[%c0_15, %c0_16], %18 {strides = array<i32>} : memref<400x32xbf16, #tpu.memory_space<vmem>>, vector<400x32xbf16>,
    } else {
    }
    return
  }
  func.func @transform_0(%arg0: i32, %arg1: i32) -> (i32, i32) {
    %c0_i32 = arith.constant 0 : i32
    return %arg0, %arg1 : i32, i32
  }
  func.func @transform_1(%arg0: i32, %arg1: i32) -> (i32, i32) {
    %c0_i32 = arith.constant 0 : i32
    %c0_i32_0 = arith.constant 0 : i32
    return %arg1, %c0_i32 : i32, i32
  }
  func.func @transform_2(%arg0: i32, %arg1: i32) -> (i32, i32) {
    %c0_i32 = arith.constant 0 : i32
    %c0_i32_0 = arith.constant 0 : i32
    %c0_i32_1 = arith.constant 0 : i32
    return %c0_i32, %c0_i32_0 : i32, i32
  }
  func.func @transform_3(%arg0: i32, %arg1: i32) -> (i32, i32) {
    %c0_i32 = arith.constant 0 : i32
    %c0_i32_0 = arith.constant 0 : i32
    return %arg0, %c0_i32 : i32, i32
  }
}

module attributes {stable_mosaic.version = 11 : i64} {
  func.func @_mm_bias_act_kernel(%arg0: i32, %arg1: i32, %arg2: memref<216x288xbf16, #tpu.memory_space<vmem>>, %arg3: memref<288x32xbf16, #tpu.memory_space<vmem>>, %arg4: memref<1x32xf32, #tpu.memory_space<vmem>>, %arg5: memref<216x32xbf16, #tpu.memory_space<vmem>>, %arg6: memref<216x32xf32, #tpu.memory_space<vmem>>) attributes {dimension_semantics = [#tpu.dimension_semantics<parallel>, #tpu.dimension_semantics<arbitrary>], iteration_bounds = array<i64: 3, 1>, scalar_prefetch = 0 : i64, scratch_operands = 1 : i64, tpu.core_type = #tpu.core_type<tc>, window_params = [{transform_indices = @transform_0, window_bounds = array<i64: 216, 288>}, {transform_indices = @transform_1, window_bounds = array<i64: 288, 32>}, {pipeline_mode = #tpu.pipeline_mode<synchronous>, transform_indices = @transform_2, window_bounds = array<i64: 1, 32>}, {transform_indices = @transform_3, window_bounds = array<i64: 216, 32>}]} {
    %c0_i32 = arith.constant 0 : i32
    %0 = arith.cmpi eq, %arg1, %c0_i32 : i32
    %1 = arith.extui %0 : i1 to i32
    %c0_i32_0 = arith.constant 0 : i32
    %2 = arith.cmpi ne, %1, %c0_i32_0 : i32
    scf.if %2 {
      %cst_10 = arith.constant 0.000000e+00 : f32
      %12 = vector.broadcast %cst_10 : f32 to vector<216x32xf32>
      %c0_11 = arith.constant 0 : index
      %c0_12 = arith.constant 0 : index
      %13 = vector.load %arg6[%c0_11, %c0_12] : memref<216x32xf32, #tpu.memory_space<vmem>>, vector<216x32xf32>
      tpu.vector_store %arg6[%c0_11, %c0_12], %12 {strides = array<i32>} : memref<216x32xf32, #tpu.memory_space<vmem>>, vector<216x32xf32>,
    } else {
    }
    %c0 = arith.constant 0 : index
    %c0_1 = arith.constant 0 : index
    %3 = vector.load %arg6[%c0, %c0_1] : memref<216x32xf32, #tpu.memory_space<vmem>>, vector<216x32xf32>
    %c0_2 = arith.constant 0 : index
    %c0_3 = arith.constant 0 : index
    %4 = vector.load %arg2[%c0_2, %c0_3] : memref<216x288xbf16, #tpu.memory_space<vmem>>, vector<216x288xbf16>
    %c0_4 = arith.constant 0 : index
    %c0_5 = arith.constant 0 : index
    %5 = vector.load %arg3[%c0_4, %c0_5] : memref<288x32xbf16, #tpu.memory_space<vmem>>, vector<288x32xbf16>
    %cst = arith.constant dense<0.000000e+00> : vector<216x32xf32>
    %6 = tpu.matmul %4, %5, %cst {dimension_numbers = #tpu.dot_dimension_numbers<[1], [0], [0], [1], [0, 0, 1, 1], [], []>} : vector<216x288xbf16>, vector<288x32xbf16>, vector<216x32xf32> -> vector<216x32xf32>
    %7 = arith.addf %3, %6 : vector<216x32xf32>
    %c0_6 = arith.constant 0 : index
    %c0_7 = arith.constant 0 : index
    %8 = vector.load %arg6[%c0_6, %c0_7] : memref<216x32xf32, #tpu.memory_space<vmem>>, vector<216x32xf32>
    tpu.vector_store %arg6[%c0_6, %c0_7], %7 {strides = array<i32>} : memref<216x32xf32, #tpu.memory_space<vmem>>, vector<216x32xf32>,
    %c0_i32_8 = arith.constant 0 : i32
    %9 = arith.cmpi eq, %arg1, %c0_i32_8 : i32
    %10 = arith.extui %9 : i1 to i32
    %c0_i32_9 = arith.constant 0 : i32
    %11 = arith.cmpi ne, %10, %c0_i32_9 : i32
    scf.if %11 {
      %c0_10 = arith.constant 0 : index
      %c0_11 = arith.constant 0 : index
      %12 = vector.load %arg6[%c0_10, %c0_11] : memref<216x32xf32, #tpu.memory_space<vmem>>, vector<216x32xf32>
      %c0_12 = arith.constant 0 : index
      %c0_13 = arith.constant 0 : index
      %13 = vector.load %arg4[%c0_12, %c0_13] : memref<1x32xf32, #tpu.memory_space<vmem>>, vector<1x32xf32>
      %14 = vector.broadcast %13 : vector<1x32xf32> to vector<216x32xf32>
      %15 = arith.addf %12, %14 : vector<216x32xf32>
      %cst_14 = arith.constant 0.000000e+00 : f32
      %16 = vector.broadcast %cst_14 : f32 to vector<216x32xf32>
      %17 = arith.maximumf %15, %16 : vector<216x32xf32>
      %18 = arith.truncf %17 : vector<216x32xf32> to vector<216x32xbf16>
      %c0_15 = arith.constant 0 : index
      %c0_16 = arith.constant 0 : index
      %19 = vector.load %arg5[%c0_15, %c0_16] : memref<216x32xbf16, #tpu.memory_space<vmem>>, vector<216x32xbf16>
      tpu.vector_store %arg5[%c0_15, %c0_16], %18 {strides = array<i32>} : memref<216x32xbf16, #tpu.memory_space<vmem>>, vector<216x32xbf16>,
    } else {
    }
    return
  }
  func.func @transform_0(%arg0: i32, %arg1: i32) -> (i32, i32) {
    %c0_i32 = arith.constant 0 : i32
    return %arg0, %arg1 : i32, i32
  }
  func.func @transform_1(%arg0: i32, %arg1: i32) -> (i32, i32) {
    %c0_i32 = arith.constant 0 : i32
    %c0_i32_0 = arith.constant 0 : i32
    return %arg1, %c0_i32 : i32, i32
  }
  func.func @transform_2(%arg0: i32, %arg1: i32) -> (i32, i32) {
    %c0_i32 = arith.constant 0 : i32
    %c0_i32_0 = arith.constant 0 : i32
    %c0_i32_1 = arith.constant 0 : i32
    return %c0_i32, %c0_i32_0 : i32, i32
  }
  func.func @transform_3(%arg0: i32, %arg1: i32) -> (i32, i32) {
    %c0_i32 = arith.constant 0 : i32
    %c0_i32_0 = arith.constant 0 : i32
    return %arg0, %c0_i32 : i32, i32
  }
}

module attributes {stable_mosaic.version = 11 : i64} {
  func.func @_mm_bias_act_kernel(%arg0: i32, %arg1: i32, %arg2: memref<2x10368xbf16, #tpu.memory_space<vmem>>, %arg3: memref<10368x6xbf16, #tpu.memory_space<vmem>>, %arg4: memref<1x6xf32, #tpu.memory_space<vmem>>, %arg5: memref<2x6xf32, #tpu.memory_space<vmem>>, %arg6: memref<2x6xf32, #tpu.memory_space<vmem>>) attributes {dimension_semantics = [#tpu.dimension_semantics<parallel>, #tpu.dimension_semantics<arbitrary>], iteration_bounds = array<i64: 1, 1>, scalar_prefetch = 0 : i64, scratch_operands = 1 : i64, tpu.core_type = #tpu.core_type<tc>, window_params = [{transform_indices = @transform_0, window_bounds = array<i64: 2, 10368>}, {transform_indices = @transform_1, window_bounds = array<i64: 10368, 6>}, {pipeline_mode = #tpu.pipeline_mode<synchronous>, transform_indices = @transform_2, window_bounds = array<i64: 1, 6>}, {transform_indices = @transform_3, window_bounds = array<i64: 2, 6>}]} {
    %c0_i32 = arith.constant 0 : i32
    %0 = arith.cmpi eq, %arg1, %c0_i32 : i32
    %1 = arith.extui %0 : i1 to i32
    %c0_i32_0 = arith.constant 0 : i32
    %2 = arith.cmpi ne, %1, %c0_i32_0 : i32
    scf.if %2 {
      %cst_10 = arith.constant 0.000000e+00 : f32
      %12 = vector.broadcast %cst_10 : f32 to vector<2x6xf32>
      %c0_11 = arith.constant 0 : index
      %c0_12 = arith.constant 0 : index
      %13 = vector.load %arg6[%c0_11, %c0_12] : memref<2x6xf32, #tpu.memory_space<vmem>>, vector<2x6xf32>
      tpu.vector_store %arg6[%c0_11, %c0_12], %12 {strides = array<i32>} : memref<2x6xf32, #tpu.memory_space<vmem>>, vector<2x6xf32>,
    } else {
    }
    %c0 = arith.constant 0 : index
    %c0_1 = arith.constant 0 : index
    %3 = vector.load %arg6[%c0, %c0_1] : memref<2x6xf32, #tpu.memory_space<vmem>>, vector<2x6xf32>
    %c0_2 = arith.constant 0 : index
    %c0_3 = arith.constant 0 : index
    %4 = vector.load %arg2[%c0_2, %c0_3] : memref<2x10368xbf16, #tpu.memory_space<vmem>>, vector<2x10368xbf16>
    %c0_4 = arith.constant 0 : index
    %c0_5 = arith.constant 0 : index
    %5 = vector.load %arg3[%c0_4, %c0_5] : memref<10368x6xbf16, #tpu.memory_space<vmem>>, vector<10368x6xbf16>
    %cst = arith.constant dense<0.000000e+00> : vector<2x6xf32>
    %6 = tpu.matmul %4, %5, %cst {dimension_numbers = #tpu.dot_dimension_numbers<[1], [0], [0], [1], [0, 0, 1, 1], [], []>} : vector<2x10368xbf16>, vector<10368x6xbf16>, vector<2x6xf32> -> vector<2x6xf32>
    %7 = arith.addf %3, %6 : vector<2x6xf32>
    %c0_6 = arith.constant 0 : index
    %c0_7 = arith.constant 0 : index
    %8 = vector.load %arg6[%c0_6, %c0_7] : memref<2x6xf32, #tpu.memory_space<vmem>>, vector<2x6xf32>
    tpu.vector_store %arg6[%c0_6, %c0_7], %7 {strides = array<i32>} : memref<2x6xf32, #tpu.memory_space<vmem>>, vector<2x6xf32>,
    %c0_i32_8 = arith.constant 0 : i32
    %9 = arith.cmpi eq, %arg1, %c0_i32_8 : i32
    %10 = arith.extui %9 : i1 to i32
    %c0_i32_9 = arith.constant 0 : i32
    %11 = arith.cmpi ne, %10, %c0_i32_9 : i32
    scf.if %11 {
      %c0_10 = arith.constant 0 : index
      %c0_11 = arith.constant 0 : index
      %12 = vector.load %arg6[%c0_10, %c0_11] : memref<2x6xf32, #tpu.memory_space<vmem>>, vector<2x6xf32>
      %c0_12 = arith.constant 0 : index
      %c0_13 = arith.constant 0 : index
      %13 = vector.load %arg4[%c0_12, %c0_13] : memref<1x6xf32, #tpu.memory_space<vmem>>, vector<1x6xf32>
      %14 = vector.broadcast %13 : vector<1x6xf32> to vector<2x6xf32>
      %15 = arith.addf %12, %14 : vector<2x6xf32>
      %c0_14 = arith.constant 0 : index
      %c0_15 = arith.constant 0 : index
      %16 = vector.load %arg5[%c0_14, %c0_15] : memref<2x6xf32, #tpu.memory_space<vmem>>, vector<2x6xf32>
      tpu.vector_store %arg5[%c0_14, %c0_15], %15 {strides = array<i32>} : memref<2x6xf32, #tpu.memory_space<vmem>>, vector<2x6xf32>,
    } else {
    }
    return
  }
  func.func @transform_0(%arg0: i32, %arg1: i32) -> (i32, i32) {
    %c0_i32 = arith.constant 0 : i32
    return %arg0, %arg1 : i32, i32
  }
  func.func @transform_1(%arg0: i32, %arg1: i32) -> (i32, i32) {
    %c0_i32 = arith.constant 0 : i32
    %c0_i32_0 = arith.constant 0 : i32
    return %arg1, %c0_i32 : i32, i32
  }
  func.func @transform_2(%arg0: i32, %arg1: i32) -> (i32, i32) {
    %c0_i32 = arith.constant 0 : i32
    %c0_i32_0 = arith.constant 0 : i32
    %c0_i32_1 = arith.constant 0 : i32
    return %c0_i32, %c0_i32_0 : i32, i32
  }
  func.func @transform_3(%arg0: i32, %arg1: i32) -> (i32, i32) {
    %c0_i32 = arith.constant 0 : i32
    %c0_i32_0 = arith.constant 0 : i32
    return %arg0, %c0_i32 : i32, i32
  }
}

</mosaic_0001>

<llo_original>
// kernel: brain_cnn_forward.4
$region0: #{brain_cnn_forward.4}
  #allocation0 [shape = 'u32[]', space=smem, size = 0x4, offset = 0x4, fixed_abs, tag = 'smem constant byte address 0x4 - core index']
  #allocation1 [shape = 'u32[144,128]{1,0:T(1,128)}', space=vmem, size = 0x12000, scoped, tag = 'internal scratch']
  #allocation2 [shape = 'f32[504,64]{1,0:T(8,128)}', space=vmem, size = 0x3f000, scoped, tag = 'scratch operand']
  %s0 = inlined_call_operand.vmem [shape: bf16[3528,64], index: 0, kind: input, shape index: {}]
  %s1 = inlined_call_operand.vmem [shape: bf16[64,64], index: 1, kind: input, shape index: {}]
  %s2 = inlined_call_operand.vmem [shape: f32[1,64], index: 2, kind: input, shape index: {}]
  %s3 = inlined_call_operand.vmem [shape: bf16[3528,64], index: 3, kind: output, shape index: {}]
  %s4 = sld [smem:[#allocation0]]
  $region53: #{brain_cnn_forward.4} parent=0
    _
  %s6 = ssub.s32 1, %s4
  %s7 = scalar_select 0, %s6, %s4
  loop: start=0, step=1, limit=9
  $region2: #{brain_cnn_forward.4} parent=0 // loop_pre_header
    _
  $region3: #{brain_cnn_forward.4} parent=0 // loop_header
    %s9 = sphi 0, %s13
    %p10 = scmp.ge.s32.totalorder %s9, 9
    %s16 = sphi 0, %s28
    %s17 = sphi 0, %s24
    %s18 = sphi 0, %s16
    %s19 = sphi 0, %s17
    %s20 = sphi 0, %s18
    %s21 = sphi 0, %s19
    %s33 = sphi 0, %s35
    %s36 = sphi 0, %s33
    %s37 = sphi 0, %s36
    %s53 = sphi 0, %s37
    %s59 = sphi 0, %s61
    %s62 = sphi 0, %s59
    %s63 = sphi 0, %s62
    %s79 = sphi 0, %s63
    %s83 = sphi 0, %s83
    %s85 = sphi 0, %s83
    %s86 = sphi 0, %s85
    %s100 = sphi 0, %s86
    %s106 = sphi 0, %s108
    %s109 = sphi 0, %s106
    %s110 = sphi 0, %s109
    %s126 = sphi 0, %s110
  $region4: #{brain_cnn_forward.4} parent=0 // loop_header_branch
    %12 = sbr.rel (%p10) target = $region8
  $region5: #{brain_cnn_forward.4} parent=0 // loop_body
    %s14 = ssub.s32 %s9, 1
    %s15 = ssub.s32 %s9, 2
    %s22 = sadd.s32 1, %s17
    %p23 = scmp.ge.s32.totalorder %s22, 1
    %s24 = scalar_select %p23, 0, %s22
    %s25 = sadd.s32 1, %s16
    %s26 = scalar_select %p23, %s25, %s16
    %p27 = scmp.ge.s32.totalorder %s26, 7
    %s28 = scalar_select %p27, 0, %s26
    %s29 = ssub.s32 %s16, %s28
    %s30 = ssub.s32 %s17, %s24
    %s31 = sor.u32 %s29, %s30
    %p32 = scmp.eq.s32.totalorder %s31, 0
    %s34 = sadd.s32 %s33, 1
    %s35 = scalar_select %p32, %s33, %s34
    %p38 = pneg %p32
    %p39 = scmp.eq.s32.totalorder %s9, 6
    %p40 = por %p38, %p39
    %p41 = scmp.ne.s32.totalorder %s33, %s36
    %p42 = scmp.eq.s32.totalorder %s9, 0
    %p43 = por %p41, %p42
    %p44 = scmp.ne.s32.totalorder %s33, %s36
    %p45 = scmp.eq.s32.totalorder %s14, 6
    %p46 = por %p44, %p45
    %p47 = scmp.ne.s32.totalorder %s36, %s37
    %p48 = scmp.eq.s32.totalorder %s14, 0
    %p49 = por %p47, %p48
    %p50 = scmp.ne.s32.totalorder %s36, %s37
    %p51 = scmp.eq.s32.totalorder %s15, 6
    %p52 = por %p50, %p51
    %p54 = scmp.ne.s32.totalorder %s37, %s53
    %p55 = scmp.eq.s32.totalorder %s15, 0
    %p56 = por %p54, %p55
    %s57 = ssub.s32 %s17, %s24
    %p58 = scmp.eq.s32.totalorder %s57, 0
    %s60 = sadd.s32 %s59, 1
    %s61 = scalar_select %p58, %s59, %s60
    %p64 = pneg %p58
    %p65 = scmp.eq.s32.totalorder %s9, 6
    %p66 = por %p64, %p65
    %p67 = scmp.ne.s32.totalorder %s59, %s62
    %p68 = scmp.eq.s32.totalorder %s9, 0
    %p69 = por %p67, %p68
    %p70 = scmp.ne.s32.totalorder %s59, %s62
    %p71 = scmp.eq.s32.totalorder %s14, 6
    %p72 = por %p70, %p71
    %p73 = scmp.ne.s32.totalorder %s62, %s63
    %p74 = scmp.eq.s32.totalorder %s14, 0
    %p75 = por %p73, %p74
    %p76 = scmp.ne.s32.totalorder %s62, %s63
    %p77 = scmp.eq.s32.totalorder %s15, 6
    %p78 = por %p76, %p77
    %p80 = scmp.ne.s32.totalorder %s63, %s79
    %p81 = scmp.eq.s32.totalorder %s15, 0
    %p82 = por %p80, %p81
    %s84 = sadd.s32 %s83, 1
    %p87 = scmp.eq.s32.totalorder %s9, 6
    %p88 = scmp.ne.s32.totalorder %s83, %s85
    %p89 = scmp.eq.s32.totalorder %s9, 0
    %p90 = por %p88, %p89
    %p91 = scmp.ne.s32.totalorder %s83, %s85
    %p92 = scmp.eq.s32.totalorder %s14, 6
    %p93 = por %p91, %p92
    %p94 = scmp.ne.s32.totalorder %s85, %s86
    %p95 = scmp.eq.s32.totalorder %s14, 0
    %p96 = por %p94, %p95
    %p97 = scmp.ne.s32.totalorder %s85, %s86
    %p98 = scmp.eq.s32.totalorder %s15, 6
    %p99 = por %p97, %p98
    %p101 = scmp.ne.s32.totalorder %s86, %s100
    %p102 = scmp.eq.s32.totalorder %s15, 0
    %p103 = por %p101, %p102
    %s104 = ssub.s32 %s16, %s28
    %p105 = scmp.eq.s32.totalorder %s104, 0
    %s107 = sadd.s32 %s106, 1
    %s108 = scalar_select %p105, %s106, %s107
    %p111 = pneg %p105
    %p112 = scmp.eq.s32.totalorder %s9, 6
    %p113 = por %p111, %p112
    %p114 = scmp.ne.s32.totalorder %s106, %s109
    %p115 = scmp.eq.s32.totalorder %s9, 0
    %p116 = por %p114, %p115
    %p117 = scmp.ne.s32.totalorder %s106, %s109
    %p118 = scmp.eq.s32.totalorder %s14, 6
    %p119 = por %p117, %p118
    %p120 = scmp.ne.s32.totalorder %s109, %s110
    %p121 = scmp.eq.s32.totalorder %s14, 0
    %p122 = por %p120, %p121
    %p123 = scmp.ne.s32.totalorder %s109, %s110
    %p124 = scmp.eq.s32.totalorder %s15, 6
    %p125 = por %p123, %p124
    %p127 = scmp.ne.s32.totalorder %s110, %s126
    %p128 = scmp.eq.s32.totalorder %s15, 0
    %p129 = por %p127, %p128
    %p130 = scmp.le.s32.totalorder 1, %s9
    %p131 = scmp.lt.s32.totalorder %s9, 8
    %p132 = pnand %p130, %p131
    %p133 = pneg %p132
    // Predicated region
    $region9: #{brain_cnn_forward.4} parent=5 // pred_check
      _
    $region10: #{brain_cnn_forward.4} parent=5 // pred_check_branch
      %135 = sbr.rel (%p132) target = $region12
    $region11: #{brain_cnn_forward.4} parent=5 // pred_region
      %s136 = ssub.s32 %s9, 1
      // Predicated region
      $region13: #{brain_cnn_forward.4} parent=11 // pred_check
        %p137 = pneg %p75
      $region14: #{brain_cnn_forward.4} parent=11 // pred_check_branch
        %139 = sbr.rel (%p137) target = $region16
      $region15: #{brain_cnn_forward.4} parent=11 // pred_region
        %s140 = smul.u32 8, %s19
        %p141 = scmp.lt.s32.totalorder %s140, 7
        %s142 = scalar_select %p141, %s140, 7
        %s143 = smul.addr %s142, 4
        %s144 = scalar_lea.vmem %s1, %s143
        %s145 = smul.u32 8, %s19
      $region16: #{brain_cnn_forward.4} parent=11 // pred_fallthru
        _
      // Predicated region
      $region17: #{brain_cnn_forward.4} parent=11 // pred_check
        %p146 = pneg %p96
      $region18: #{brain_cnn_forward.4} parent=11 // pred_check_branch
        %148 = sbr.rel (%p146) target = $region20
      $region19: #{brain_cnn_forward.4} parent=11 // pred_region
        _
      $region20: #{brain_cnn_forward.4} parent=11 // pred_fallthru
        _
    $region12: #{brain_cnn_forward.4} parent=5 // pred_fallthru
      _
    %p149 = scmp.lt.s32.totalorder %s9, 7
    // Predicated region
    $region21: #{brain_cnn_forward.4} parent=5 // pred_check
      %p150 = pneg %p149
    $region22: #{brain_cnn_forward.4} parent=5 // pred_check_branch
      %152 = sbr.rel (%p150) target = $region24
    $region23: #{brain_cnn_forward.4} parent=5 // pred_region
      // Predicated region
      $region25: #{brain_cnn_forward.4} parent=23 // pred_check
        %p153 = pneg %p43
      $region26: #{brain_cnn_forward.4} parent=23 // pred_check_branch
        %155 = sbr.rel (%p153) target = $region28
      $region27: #{brain_cnn_forward.4} parent=23 // pred_region
        %s156 = smul.u32 63, %s16
        %p157 = scmp.lt.s32.totalorder %s156, 440
        %s158 = scalar_select %p157, %s156, 440
        %p159 = scmp.lt.s32.totalorder %s17, 0
        %s160 = scalar_select %p159, %s17, 0
        %s161 = sadd.s32 %s160, %s158
        %s162 = smul.addr %s161, 4
        %s163 = scalar_lea.vmem %s0, %s162
        %s164 = smul.u32 63, %s16
      $region28: #{brain_cnn_forward.4} parent=23 // pred_fallthru
        _
    $region24: #{brain_cnn_forward.4} parent=5 // pred_fallthru
      _
    %p165 = scmp.le.s32.totalorder 1, %s9
    %p166 = scmp.lt.s32.totalorder %s9, 8
    %p167 = pnand %p165, %p166
    %p168 = pneg %p167
    // Predicated region
    $region29: #{brain_cnn_forward.4} parent=5 // pred_check
      _
    $region30: #{brain_cnn_forward.4} parent=5 // pred_check_branch
      %170 = sbr.rel (%p167) target = $region32
    $region31: #{brain_cnn_forward.4} parent=5 // pred_region
      %s171 = ssub.s32 %s9, 1
      %s172 = smul.u32 63, %s18
      %p173 = scmp.lt.s32.totalorder %s172, 440
      %s174 = scalar_select %p173, %s172, 440
      %p175 = scmp.lt.s32.totalorder %s19, 0
      %s176 = scalar_select %p175, %s19, 0
      %s177 = sadd.s32 %s176, %s174
      %s178 = smul.addr %s177, 4
      %s179 = scalar_lea.vmem %s0, %s178
      %p180 = pneg %p49
      %p181 = pneg %p46
      %s182 = smul.u32 8, %s19
      %p183 = scmp.lt.s32.totalorder %s182, 7
      %s184 = scalar_select %p183, %s182, 7
      %s185 = smul.addr %s184, 4
      %s186 = scalar_lea.vmem %s1, %s185
      %p187 = pneg %p75
      %p188 = pneg %p72
      %p189 = pneg %p96
      %p190 = pneg %p93
      %p191 = pneg %p122
      %p192 = pneg %p119
      %s193 = smul.u32 63, %s18
      %p194 = scmp.lt.s32.totalorder %s193, 440
      %s195 = scalar_select %p194, %s193, 440
      %s196 = smul.addr %s195, 4
      %s197 = scalar_lea.vmem %s3, %s196
      %s198 = smul.u32 63, %s18
      %p199 = scmp.lt.s32.totalorder %s198, 440
      %s200 = scalar_select %p199, %s198, 440
      %p201 = scmp.lt.s32.totalorder %s19, 0
      %s202 = scalar_select %p201, %s19, 0
      %s203 = sadd.s32 %s202, %s200
      %s204 = smul.addr %s203, 4
      %s205 = scalar_lea.vmem %s0, %s204
      %s206 = smul.u32 63, %s18
      %s207 = smul.u32 8, %s19
      %p208 = scmp.lt.s32.totalorder %s207, 7
      %s209 = scalar_select %p208, %s207, 7
      %s210 = smul.addr %s209, 4
      %s211 = scalar_lea.vmem %s1, %s210
      %s212 = smul.u32 8, %s19
      %s213 = smul.u32 63, %s18
      %p214 = scmp.lt.s32.totalorder %s213, 440
      %s215 = scalar_select %p214, %s213, 440
      %s216 = smul.addr %s215, 4
      %s217 = scalar_lea.vmem %s3, %s216
      %s218 = smul.u32 63, %s18
      %p220 = scmp.eq.s32.totalorder %s19, 0
      // Predicated region
      $region33: #{brain_cnn_forward.4} parent=31 // pred_check
        %p221 = pneg %p220
      $region34: #{brain_cnn_forward.4} parent=31 // pred_check_branch
        %223 = sbr.rel (%p221) target = $region36
      $region35: #{brain_cnn_forward.4} parent=31 // pred_region
        %vm224 = vcmask 523264
        %225 = vst.msk [vmem:[#allocation2] sm:$0xff] %vm224, 0.0
        %226 = vst.msk [vmem:[#allocation2 + $0x8] sm:$0xff] %vm224, 0.0
        %227 = vst.msk [vmem:[#allocation2 + $0x10] sm:$0xff] %vm224, 0.0
        %228 = vst.msk [vmem:[#allocation2 + $0x18] sm:$0xff] %vm224, 0.0
        %229 = vst.msk [vmem:[#allocation2 + $0x20] sm:$0xff] %vm224, 0.0
        %230 = vst.msk [vmem:[#allocation2 + $0x28] sm:$0xff] %vm224, 0.0
        %231 = vst.msk [vmem:[#allocation2 + $0x30] sm:$0xff] %vm224, 0.0
        %232 = vst.msk [vmem:[#allocation2 + $0x38] sm:$0xff] %vm224, 0.0
        %233 = vst.msk [vmem:[#allocation2 + $0x40] sm:$0xff] %vm224, 0.0
        %234 = vst.msk [vmem:[#allocation2 + $0x48] sm:$0xff] %vm224, 0.0
        %235 = vst.msk [vmem:[#allocation2 + $0x50] sm:$0xff] %vm224, 0.0
        %236 = vst.msk [vmem:[#allocation2 + $0x58] sm:$0xff] %vm224, 0.0
        %237 = vst.msk [vmem:[#allocation2 + $0x60] sm:$0xff] %vm224, 0.0
        %238 = vst.msk [vmem:[#allocation2 + $0x68] sm:$0xff] %vm224, 0.0
        %239 = vst.msk [vmem:[#allocation2 + $0x70] sm:$0xff] %vm224, 0.0
        %240 = vst.msk [vmem:[#allocation2 + $0x78] sm:$0xff] %vm224, 0.0
        %241 = vst.msk [vmem:[#allocation2 + $0x80] sm:$0xff] %vm224, 0.0
        %242 = vst.msk [vmem:[#allocation2 + $0x88] sm:$0xff] %vm224, 0.0
        %243 = vst.msk [vmem:[#allocation2 + $0x90] sm:$0xff] %vm224, 0.0
        %244 = vst.msk [vmem:[#allocation2 + $0x98] sm:$0xff] %vm224, 0.0
        %245 = vst.msk [vmem:[#allocation2 + $0xa0] sm:$0xff] %vm224, 0.0
        %246 = vst.msk [vmem:[#allocation2 + $0xa8] sm:$0xff] %vm224, 0.0
        %247 = vst.msk [vmem:[#allocation2 + $0xb0] sm:$0xff] %vm224, 0.0
        %248 = vst.msk [vmem:[#allocation2 + $0xb8] sm:$0xff] %vm224, 0.0
        %249 = vst.msk [vmem:[#allocation2 + $0xc0] sm:$0xff] %vm224, 0.0
        %250 = vst.msk [vmem:[#allocation2 + $0xc8] sm:$0xff] %vm224, 0.0
        %251 = vst.msk [vmem:[#allocation2 + $0xd0] sm:$0xff] %vm224, 0.0
        %252 = vst.msk [vmem:[#allocation2 + $0xd8] sm:$0xff] %vm224, 0.0
        %253 = vst.msk [vmem:[#allocation2 + $0xe0] sm:$0xff] %vm224, 0.0
        %254 = vst.msk [vmem:[#allocation2 + $0xe8] sm:$0xff] %vm224, 0.0
        %255 = vst.msk [vmem:[#allocation2 + $0xf0] sm:$0xff] %vm224, 0.0
        %256 = vst.msk [vmem:[#allocation2 + $0xf8] sm:$0xff] %vm224, 0.0
        %257 = vst.msk [vmem:[#allocation2 + $0x100] sm:$0xff] %vm224, 0.0
        %258 = vst.msk [vmem:[#allocation2 + $0x108] sm:$0xff] %vm224, 0.0
        %259 = vst.msk [vmem:[#allocation2 + $0x110] sm:$0xff] %vm224, 0.0
        %260 = vst.msk [vmem:[#allocation2 + $0x118] sm:$0xff] %vm224, 0.0
        %261 = vst.msk [vmem:[#allocation2 + $0x120] sm:$0xff] %vm224, 0.0
        %262 = vst.msk [vmem:[#allocation2 + $0x128] sm:$0xff] %vm224, 0.0
        %263 = vst.msk [vmem:[#allocation2 + $0x130] sm:$0xff] %vm224, 0.0
        %264 = vst.msk [vmem:[#allocation2 + $0x138] sm:$0xff] %vm224, 0.0
        %265 = vst.msk [vmem:[#allocation2 + $0x140] sm:$0xff] %vm224, 0.0
        %266 = vst.msk [vmem:[#allocation2 + $0x148] sm:$0xff] %vm224, 0.0
        %267 = vst.msk [vmem:[#allocation2 + $0x150] sm:$0xff] %vm224, 0.0
        %268 = vst.msk [vmem:[#allocation2 + $0x158] sm:$0xff] %vm224, 0.0
        %269 = vst.msk [vmem:[#allocation2 + $0x160] sm:$0xff] %vm224, 0.0
        %270 = vst.msk [vmem:[#allocation2 + $0x168] sm:$0xff] %vm224, 0.0
        %271 = vst.msk [vmem:[#allocation2 + $0x170] sm:$0xff] %vm224, 0.0
        %272 = vst.msk [vmem:[#allocation2 + $0x178] sm:$0xff] %vm224, 0.0
        %273 = vst.msk [vmem:[#allocation2 + $0x180] sm:$0xff] %vm224, 0.0
        %274 = vst.msk [vmem:[#allocation2 + $0x188] sm:$0xff] %vm224, 0.0
        %275 = vst.msk [vmem:[#allocation2 + $0x190] sm:$0xff] %vm224, 0.0
        %276 = vst.msk [vmem:[#allocation2 + $0x198] sm:$0xff] %vm224, 0.0
        %277 = vst.msk [vmem:[#allocation2 + $0x1a0] sm:$0xff] %vm224, 0.0
        %278 = vst.msk [vmem:[#allocation2 + $0x1a8] sm:$0xff] %vm224, 0.0
        %279 = vst.msk [vmem:[#allocation2 + $0x1b0] sm:$0xff] %vm224, 0.0
        %280 = vst.msk [vmem:[#allocation2 + $0x1b8] sm:$0xff] %vm224, 0.0
        %281 = vst.msk [vmem:[#allocation2 + $0x1c0] sm:$0xff] %vm224, 0.0
        %282 = vst.msk [vmem:[#allocation2 + $0x1c8] sm:$0xff] %vm224, 0.0
        %283 = vst.msk [vmem:[#allocation2 + $0x1d0] sm:$0xff] %vm224, 0.0
        %284 = vst.msk [vmem:[#allocation2 + $0x1d8] sm:$0xff] %vm224, 0.0
        %285 = vst.msk [vmem:[#allocation2 + $0x1e0] sm:$0xff] %vm224, 0.0
        %286 = vst.msk [vmem:[#allocation2 + $0x1e8] sm:$0xff] %vm224, 0.0
        %287 = vst.msk [vmem:[#allocation2 + $0x1f0] sm:$0xff] %vm224, 0.0
      $region36: #{brain_cnn_forward.4} parent=31 // pred_fallthru
        _
      %v288 = vld [vmem:[#allocation2] sm:$0xff]
      %v289 = vld [vmem:[#allocation2 + $0x8] sm:$0xff]
      %v290 = vld [vmem:[#allocation2 + $0x10] sm:$0xff]
      %v291 = vld [vmem:[#allocation2 + $0x18] sm:$0xff]
      %v292 = vld [vmem:[#allocation2 + $0x20] sm:$0xff]
      %v293 = vld [vmem:[#allocation2 + $0x28] sm:$0xff]
      %v294 = vld [vmem:[#allocation2 + $0x30] sm:$0xff]
      %v295 = vld [vmem:[#allocation2 + $0x38] sm:$0xff]
      %v296 = vld [vmem:[#allocation2 + $0x40] sm:$0xff]
      %v297 = vld [vmem:[#allocation2 + $0x48] sm:$0xff]
      %v298 = vld [vmem:[#allocation2 + $0x50] sm:$0xff]
      %v299 = vld [vmem:[#allocation2 + $0x58] sm:$0xff]
      %v300 = vld [vmem:[#allocation2 + $0x60] sm:$0xff]
      %v301 = vld [vmem:[#allocation2 + $0x68] sm:$0xff]
      %v302 = vld [vmem:[#allocation2 + $0x70] sm:$0xff]
      %v303 = vld [vmem:[#allocation2 + $0x78] sm:$0xff]
      %v304 = vld [vmem:[#allocation2 + $0x80] sm:$0xff]
      %v305 = vld [vmem:[#allocation2 + $0x88] sm:$0xff]
      %v306 = vld [vmem:[#allocation2 + $0x90] sm:$0xff]
      %v307 = vld [vmem:[#allocation2 + $0x98] sm:$0xff]
      %v308 = vld [vmem:[#allocation2 + $0xa0] sm:$0xff]
      %v309 = vld [vmem:[#allocation2 + $0xa8] sm:$0xff]
      %v310 = vld [vmem:[#allocation2 + $0xb0] sm:$0xff]
      %v311 = vld [vmem:[#allocation2 + $0xb8] sm:$0xff]
      %v312 = vld [vmem:[#allocation2 + $0xc0] sm:$0xff]
      %v313 = vld [vmem:[#allocation2 + $0xc8] sm:$0xff]
      %v314 = vld [vmem:[#allocation2 + $0xd0] sm:$0xff]
      %v315 = vld [vmem:[#allocation2 + $0xd8] sm:$0xff]
      %v316 = vld [vmem:[#allocation2 + $0xe0] sm:$0xff]
      %v317 = vld [vmem:[#allocation2 + $0xe8] sm:$0xff]
      %v318 = vld [vmem:[#allocation2 + $0xf0] sm:$0xff]
      %v319 = vld [vmem:[#allocation2 + $0xf8] sm:$0xff]
      %v320 = vld [vmem:[#allocation2 + $0x100] sm:$0xff]
      %v321 = vld [vmem:[#allocation2 + $0x108] sm:$0xff]
      %v322 = vld [vmem:[#allocation2 + $0x110] sm:$0xff]
      %v323 = vld [vmem:[#allocation2 + $0x118] sm:$0xff]
      %v324 = vld [vmem:[#allocation2 + $0x120] sm:$0xff]
      %v325 = vld [vmem:[#allocation2 + $0x128] sm:$0xff]
      %v326 = vld [vmem:[#allocation2 + $0x130] sm:$0xff]
      %v327 = vld [vmem:[#allocation2 + $0x138] sm:$0xff]
      %v328 = vld [vmem:[#allocation2 + $0x140] sm:$0xff]
      %v329 = vld [vmem:[#allocation2 + $0x148] sm:$0xff]
      %v330 = vld [vmem:[#allocation2 + $0x150] sm:$0xff]
      %v331 = vld [vmem:[#allocation2 + $0x158] sm:$0xff]
      %v332 = vld [vmem:[#allocation2 + $0x160] sm:$0xff]
      %v333 = vld [vmem:[#allocation2 + $0x168] sm:$0xff]
      %v334 = vld [vmem:[#allocation2 + $0x170] sm:$0xff]
      %v335 = vld [vmem:[#allocation2 + $0x178] sm:$0xff]
      %v336 = vld [vmem:[#allocation2 + $0x180] sm:$0xff]
      %v337 = vld [vmem:[#allocation2 + $0x188] sm:$0xff]
      %v338 = vld [vmem:[#allocation2 + $0x190] sm:$0xff]
      %v339 = vld [vmem:[#allocation2 + $0x198] sm:$0xff]
      %v340 = vld [vmem:[#allocation2 + $0x1a0] sm:$0xff]
      %v341 = vld [vmem:[#allocation2 + $0x1a8] sm:$0xff]
      %v342 = vld [vmem:[#allocation2 + $0x1b0] sm:$0xff]
      %v343 = vld [vmem:[#allocation2 + $0x1b8] sm:$0xff]
      %v344 = vld [vmem:[#allocation2 + $0x1c0] sm:$0xff]
      %v345 = vld [vmem:[#allocation2 + $0x1c8] sm:$0xff]
      %v346 = vld [vmem:[#allocation2 + $0x1d0] sm:$0xff]
      %v347 = vld [vmem:[#allocation2 + $0x1d8] sm:$0xff]
      %v348 = vld [vmem:[#allocation2 + $0x1e0] sm:$0xff]
      %v349 = vld [vmem:[#allocation2 + $0x1e8] sm:$0xff]
      %v350 = vld [vmem:[#allocation2 + $0x1f0] sm:$0xff]
      %v351 = vld [vmem:[%s205] sm:$0xf]
      %v352 = vld [vmem:[%s205 + $0x4] sm:$0xf]
      %v353 = vld [vmem:[%s205 + $0x8] sm:$0xf]
      %v354 = vld [vmem:[%s205 + $0xc] sm:$0xf]
      %v355 = vld [vmem:[%s205 + $0x10] sm:$0xf]
      %v356 = vld [vmem:[%s205 + $0x14] sm:$0xf]
      %v357 = vld [vmem:[%s205 + $0x18] sm:$0xf]
      %v358 = vld [vmem:[%s205 + $0x1c] sm:$0xf]
      %v359 = vld [vmem:[%s205 + $0x20] sm:$0xf]
      %v360 = vld [vmem:[%s205 + $0x24] sm:$0xf]
      %v361 = vld [vmem:[%s205 + $0x28] sm:$0xf]
      %v362 = vld [vmem:[%s205 + $0x2c] sm:$0xf]
      %v363 = vld [vmem:[%s205 + $0x30] sm:$0xf]
      %v364 = vld [vmem:[%s205 + $0x34] sm:$0xf]
      %v365 = vld [vmem:[%s205 + $0x38] sm:$0xf]
      %v366 = vld [vmem:[%s205 + $0x3c] sm:$0xf]
      %v367 = vld [vmem:[%s205 + $0x40] sm:$0xf]
      %v368 = vld [vmem:[%s205 + $0x44] sm:$0xf]
      %v369 = vld [vmem:[%s205 + $0x48] sm:$0xf]
      %v370 = vld [vmem:[%s205 + $0x4c] sm:$0xf]
      %v371 = vld [vmem:[%s205 + $0x50] sm:$0xf]
      %v372 = vld [vmem:[%s205 + $0x54] sm:$0xf]
      %v373 = vld [vmem:[%s205 + $0x58] sm:$0xf]
      %v374 = vld [vmem:[%s205 + $0x5c] sm:$0xf]
      %v375 = vld [vmem:[%s205 + $0x60] sm:$0xf]
      %v376 = vld [vmem:[%s205 + $0x64] sm:$0xf]
      %v377 = vld [vmem:[%s205 + $0x68] sm:$0xf]
      %v378 = vld [vmem:[%s205 + $0x6c] sm:$0xf]
      %v379 = vld [vmem:[%s205 + $0x70] sm:$0xf]
      %v380 = vld [vmem:[%s205 + $0x74] sm:$0xf]
      %v381 = vld [vmem:[%s205 + $0x78] sm:$0xf]
      %v382 = vld [vmem:[%s205 + $0x7c] sm:$0xf]
      %v383 = vld [vmem:[%s205 + $0x80] sm:$0xf]
      %v384 = vld [vmem:[%s205 + $0x84] sm:$0xf]
      %v385 = vld [vmem:[%s205 + $0x88] sm:$0xf]
      %v386 = vld [vmem:[%s205 + $0x8c] sm:$0xf]
      %v387 = vld [vmem:[%s205 + $0x90] sm:$0xf]
      %v388 = vld [vmem:[%s205 + $0x94] sm:$0xf]
      %v389 = vld [vmem:[%s205 + $0x98] sm:$0xf]
      %v390 = vld [vmem:[%s205 + $0x9c] sm:$0xf]
      %v391 = vld [vmem:[%s205 + $0xa0] sm:$0xf]
      %v392 = vld [vmem:[%s205 + $0xa4] sm:$0xf]
      %v393 = vld [vmem:[%s205 + $0xa8] sm:$0xf]
      %v394 = vld [vmem:[%s205 + $0xac] sm:$0xf]
      %v395 = vld [vmem:[%s205 + $0xb0] sm:$0xf]
      %v396 = vld [vmem:[%s205 + $0xb4] sm:$0xf]
      %v397 = vld [vmem:[%s205 + $0xb8] sm:$0xf]
      %v398 = vld [vmem:[%s205 + $0xbc] sm:$0xf]
      %v399 = vld [vmem:[%s205 + $0xc0] sm:$0xf]
      %v400 = vld [vmem:[%s205 + $0xc4] sm:$0xf]
      %v401 = vld [vmem:[%s205 + $0xc8] sm:$0xf]
      %v402 = vld [vmem:[%s205 + $0xcc] sm:$0xf]
      %v403 = vld [vmem:[%s205 + $0xd0] sm:$0xf]
      %v404 = vld [vmem:[%s205 + $0xd4] sm:$0xf]
      %v405 = vld [vmem:[%s205 + $0xd8] sm:$0xf]
      %v406 = vld [vmem:[%s205 + $0xdc] sm:$0xf]
      %v407 = vld [vmem:[%s205 + $0xe0] sm:$0xf]
      %v408 = vld [vmem:[%s205 + $0xe4] sm:$0xf]
      %v409 = vld [vmem:[%s205 + $0xe8] sm:$0xf]
      %v410 = vld [vmem:[%s205 + $0xec] sm:$0xf]
      %v411 = vld [vmem:[%s205 + $0xf0] sm:$0xf]
      %v412 = vld [vmem:[%s205 + $0xf4] sm:$0xf]
      %v413 = vld [vmem:[%s205 + $0xf8] sm:$0xf]
      %v414 = vld [vmem:[%s211] sm:$0xf]
      %v415 = vld [vmem:[%s211 + $0x4] sm:$0xf]
      %v416 = vld [vmem:[%s211 + $0x8] sm:$0xf]
      %v417 = vld [vmem:[%s211 + $0xc] sm:$0xf]
      %v418 = vld [vmem:[%s211 + $0x10] sm:$0xf]
      %v419 = vld [vmem:[%s211 + $0x14] sm:$0xf]
      %v420 = vld [vmem:[%s211 + $0x18] sm:$0xf]
      %v421 = vld [vmem:[%s211 + $0x1c] sm:$0xf]
      %v485 = vunpack.c.l.b16 %v351
      %v486 = vunpack.c.l.b16 %v352
      %v487 = vunpack.c.l.b16 %v353
      %v488 = vunpack.c.l.b16 %v354
      %v489 = vunpack.c.l.b16 %v355
      %v490 = vunpack.c.l.b16 %v356
      %v491 = vunpack.c.l.b16 %v357
      %v492 = vunpack.c.l.b16 %v358
      %v493 = vunpack.c.l.b16 %v359
      %v494 = vunpack.c.l.b16 %v360
      %v495 = vunpack.c.l.b16 %v361
      %v496 = vunpack.c.l.b16 %v362
      %v497 = vunpack.c.l.b16 %v363
      %v498 = vunpack.c.l.b16 %v364
      %v499 = vunpack.c.l.b16 %v365
      %v500 = vunpack.c.l.b16 %v366
      %v501 = vunpack.c.l.b16 %v367
      %v502 = vunpack.c.l.b16 %v368
      %v503 = vunpack.c.l.b16 %v369
      %v504 = vunpack.c.l.b16 %v370
      %v505 = vunpack.c.l.b16 %v371
      %v506 = vunpack.c.l.b16 %v372
      %v507 = vunpack.c.l.b16 %v373
      %v508 = vunpack.c.l.b16 %v374
      %v509 = vunpack.c.l.b16 %v375
      %v510 = vunpack.c.l.b16 %v376
      %v511 = vunpack.c.l.b16 %v377
      %v512 = vunpack.c.l.b16 %v378
      %v513 = vunpack.c.l.b16 %v379
      %v514 = vunpack.c.l.b16 %v380
      %v515 = vunpack.c.l.b16 %v381
      %v516 = vunpack.c.l.b16 %v382
      %v517 = vunpack.c.l.b16 %v383
      %v518 = vunpack.c.l.b16 %v384
      %v519 = vunpack.c.l.b16 %v385
      %v520 = vunpack.c.l.b16 %v386
      %v521 = vunpack.c.l.b16 %v387
      %v522 = vunpack.c.l.b16 %v388
      %v523 = vunpack.c.l.b16 %v389
      %v524 = vunpack.c.l.b16 %v390
      %v525 = vunpack.c.l.b16 %v391
      %v526 = vunpack.c.l.b16 %v392
      %v527 = vunpack.c.l.b16 %v393
      %v528 = vunpack.c.l.b16 %v394
      %v529 = vunpack.c.l.b16 %v395
      %v530 = vunpack.c.l.b16 %v396
      %v531 = vunpack.c.l.b16 %v397
      %v532 = vunpack.c.l.b16 %v398
      %v533 = vunpack.c.l.b16 %v399
      %v534 = vunpack.c.l.b16 %v400
      %v535 = vunpack.c.l.b16 %v401
      %v536 = vunpack.c.l.b16 %v402
      %v537 = vunpack.c.l.b16 %v403
      %v538 = vunpack.c.l.b16 %v404
      %v539 = vunpack.c.l.b16 %v405
      %v540 = vunpack.c.l.b16 %v406
      %v541 = vunpack.c.l.b16 %v407
      %v542 = vunpack.c.l.b16 %v408
      %v543 = vunpack.c.l.b16 %v409
      %v544 = vunpack.c.l.b16 %v410
      %v545 = vunpack.c.l.b16 %v411
      %v546 = vunpack.c.l.b16 %v412
      %v547 = vunpack.c.l.b16 %v413
      %v548 = vpack.c.b16 %v486, %v485
      %v549 = vpack.c.b16 %v488, %v487
      %v550 = vpack.c.b16 %v490, %v489
      %v551 = vpack.c.b16 %v492, %v491
      %v552 = vpack.c.b16 %v494, %v493
      %v553 = vpack.c.b16 %v496, %v495
      %v554 = vpack.c.b16 %v498, %v497
      %v555 = vpack.c.b16 %v500, %v499
      %v556 = vpack.c.b16 %v502, %v501
      %v557 = vpack.c.b16 %v504, %v503
      %v558 = vpack.c.b16 %v506, %v505
      %v559 = vpack.c.b16 %v508, %v507
      %v560 = vpack.c.b16 %v510, %v509
      %v561 = vpack.c.b16 %v512, %v511
      %v562 = vpack.c.b16 %v514, %v513
      %v563 = vpack.c.b16 %v516, %v515
      %v564 = vpack.c.b16 %v518, %v517
      %v565 = vpack.c.b16 %v520, %v519
      %v566 = vpack.c.b16 %v522, %v521
      %v567 = vpack.c.b16 %v524, %v523
      %v568 = vpack.c.b16 %v526, %v525
      %v569 = vpack.c.b16 %v528, %v527
      %v570 = vpack.c.b16 %v530, %v529
      %v571 = vpack.c.b16 %v532, %v531
      %v572 = vpack.c.b16 %v534, %v533
      %v573 = vpack.c.b16 %v536, %v535
      %v574 = vpack.c.b16 %v538, %v537
      %v575 = vpack.c.b16 %v540, %v539
      %v576 = vpack.c.b16 %v542, %v541
      %v577 = vpack.c.b16 %v544, %v543
      %v578 = vpack.c.b16 %v546, %v545
      %v579 = vpack.c.b16 %v547, %v547
      %v588 = vunpack.c.l.b16 %v414
      %v589 = vunpack.c.l.b16 %v415
      %v590 = vunpack.c.l.b16 %v416
      %v591 = vunpack.c.l.b16 %v417
      %v592 = vunpack.c.l.b16 %v418
      %v593 = vunpack.c.l.b16 %v419
      %v594 = vunpack.c.l.b16 %v420
      %v595 = vunpack.c.l.b16 %v421
      %v596 = vpack.c.b16 %v589, %v588
      %v597 = vpack.c.b16 %v591, %v590
      %v598 = vpack.c.b16 %v593, %v592
      %v599 = vpack.c.b16 %v595, %v594
      %vm604 = vcmask 523264
      %v606 = vsel %vm604, %v548, 0
      %v609 = vsel %vm604, %v549, 0
      %v612 = vsel %vm604, %v550, 0
      %v615 = vsel %vm604, %v551, 0
      %v618 = vsel %vm604, %v552, 0
      %v621 = vsel %vm604, %v553, 0
      %v624 = vsel %vm604, %v554, 0
      %v627 = vsel %vm604, %v555, 0
      %v630 = vsel %vm604, %v556, 0
      %v633 = vsel %vm604, %v557, 0
      %v636 = vsel %vm604, %v558, 0
      %v639 = vsel %vm604, %v559, 0
      %v642 = vsel %vm604, %v560, 0
      %v645 = vsel %vm604, %v561, 0
      %v648 = vsel %vm604, %v562, 0
      %v651 = vsel %vm604, %v563, 0
      %v654 = vsel %vm604, %v564, 0
      %v657 = vsel %vm604, %v565, 0
      %v660 = vsel %vm604, %v566, 0
      %v663 = vsel %vm604, %v567, 0
      %v666 = vsel %vm604, %v568, 0
      %v669 = vsel %vm604, %v569, 0
      %v672 = vsel %vm604, %v570, 0
      %v675 = vsel %vm604, %v571, 0
      %v678 = vsel %vm604, %v572, 0
      %v681 = vsel %vm604, %v573, 0
      %v684 = vsel %vm604, %v574, 0
      %v687 = vsel %vm604, %v575, 0
      %v690 = vsel %vm604, %v576, 0
      %v693 = vsel %vm604, %v577, 0
      %v696 = vsel %vm604, %v578, 0
      %v699 = vsel %vm604, %v579, 0
      %701 = vmatprep.subr.bf16.mxu0 0
      %702 = vmatpush1.bf16.msra.mxu0 0
      %703 = vmatprep.subr.bf16.mxu0 0
      %704 = vmatpush1.bf16.msra.mxu0 0
      %705 = vmatprep.subr.bf16.mxu0 0
      %706 = vmatpush1.bf16.msra.mxu0 0
      %707 = vmatprep.subr.bf16.mxu0 0
      %708 = vmatpush1.bf16.msra.mxu0 0
      %709 = vmatprep.subr.bf16.mxu0 0
      %710 = vmatpush1.bf16.msra.mxu0 %v599
      %711 = vmatprep.subr.bf16.mxu0 0
      %712 = vmatpush1.bf16.msra.mxu0 %v598
      %713 = vmatprep.subr.bf16.mxu0 0
      %714 = vmatpush1.bf16.msra.mxu0 %v597
      %715 = vmatprep.subr.bf16.mxu0 0
      %716 = vmatpush1.bf16.msra.mxu0 %v596
      %717 = vmatprep.subr.bf16.mxu0 0
      %718 = vmatpush2.bf16.msra.mxu0 0
      %719 = vmatprep.subr.bf16.mxu0 0
      %720 = vmatpush2.bf16.msra.mxu0 0
      %721 = vmatprep.subr.bf16.mxu0 0
      %722 = vmatpush2.bf16.msra.mxu0 0
      %723 = vmatprep.subr.bf16.mxu0 0
      %724 = vmatpush2.bf16.msra.mxu0 0
      %725 = vmatprep.subr.bf16.mxu0 0
      %726 = vmatpush2.bf16.msra.mxu0 0
      %727 = vmatprep.subr.bf16.mxu0 0
      %728 = vmatpush2.bf16.msra.mxu0 0
      %729 = vmatprep.subr.bf16.mxu0 0
      %730 = vmatpush2.bf16.msra.mxu0 0
      %731 = vmatprep.subr.bf16.mxu0 0
      %732 = vmatpush2.bf16.msra.mxu0 0
      %733 = vmatprep.mubr.bf16.mxu0 0
      %734 = vmatmul.mubr.bf16.gmra.mxu0 %v606
      %v735 = vpop.f32.mrf.mxu0
      %v736 = vadd.f32 0.0, %v735
      %v737 = vpop.f32.mrf.mxu0
      %v738 = vpop.f32.mrf.mxu0
      %v739 = vadd.f32 0.0, %v738
      %v740 = vpop.f32.mrf.mxu0
      %741 = vmatprep.mubr.bf16.mxu0 0
      %742 = vmatmul.mubr.bf16.gmra.mxu0 %v609
      %v743 = vpop.f32.mrf.mxu0
      %v744 = vadd.f32 0.0, %v743
      %v745 = vpop.f32.mrf.mxu0
      %v746 = vpop.f32.mrf.mxu0
      %v747 = vadd.f32 0.0, %v746
      %v748 = vpop.f32.mrf.mxu0
      %749 = vmatprep.mubr.bf16.mxu0 0
      %750 = vmatmul.mubr.bf16.gmra.mxu0 %v612
      %v751 = vpop.f32.mrf.mxu0
      %v752 = vadd.f32 0.0, %v751
      %v753 = vpop.f32.mrf.mxu0
      %v754 = vpop.f32.mrf.mxu0
      %v755 = vadd.f32 0.0, %v754
      %v756 = vpop.f32.mrf.mxu0
      %757 = vmatprep.mubr.bf16.mxu0 0
      %758 = vmatmul.mubr.bf16.gmra.mxu0 %v615
      %v759 = vpop.f32.mrf.mxu0
      %v760 = vadd.f32 0.0, %v759
      %v761 = vpop.f32.mrf.mxu0
      %v762 = vpop.f32.mrf.mxu0
      %v763 = vadd.f32 0.0, %v762
      %v764 = vpop.f32.mrf.mxu0
      %765 = vmatprep.mubr.bf16.mxu0 0
      %766 = vmatmul.mubr.bf16.gmra.mxu0 %v618
      %v767 = vpop.f32.mrf.mxu0
      %v768 = vadd.f32 0.0, %v767
      %v769 = vpop.f32.mrf.mxu0
      %v770 = vpop.f32.mrf.mxu0
      %v771 = vadd.f32 0.0, %v770
      %v772 = vpop.f32.mrf.mxu0
      %773 = vmatprep.mubr.bf16.mxu0 0
      %774 = vmatmul.mubr.bf16.gmra.mxu0 %v621
      %v775 = vpop.f32.mrf.mxu0
      %v776 = vadd.f32 0.0, %v775
      %v777 = vpop.f32.mrf.mxu0
      %v778 = vpop.f32.mrf.mxu0
      %v779 = vadd.f32 0.0, %v778
      %v780 = vpop.f32.mrf.mxu0
      %781 = vmatprep.mubr.bf16.mxu0 0
      %782 = vmatmul.mubr.bf16.gmra.mxu0 %v624
      %v783 = vpop.f32.mrf.mxu0
      %v784 = vadd.f32 0.0, %v783
      %v785 = vpop.f32.mrf.mxu0
      %v786 = vpop.f32.mrf.mxu0
      %v787 = vadd.f32 0.0, %v786
      %v788 = vpop.f32.mrf.mxu0
      %789 = vmatprep.mubr.bf16.mxu0 0
      %790 = vmatmul.mubr.bf16.gmra.mxu0 %v627
      %v791 = vpop.f32.mrf.mxu0
      %v792 = vadd.f32 0.0, %v791
      %v793 = vpop.f32.mrf.mxu0
      %v794 = vpop.f32.mrf.mxu0
      %v795 = vadd.f32 0.0, %v794
      %v796 = vpop.f32.mrf.mxu0
      %797 = vmatprep.mubr.bf16.mxu0 0
      %798 = vmatmul.mubr.bf16.gmra.mxu0 %v630
      %v799 = vpop.f32.mrf.mxu0
      %v800 = vadd.f32 0.0, %v799
      %v801 = vpop.f32.mrf.mxu0
      %v802 = vpop.f32.mrf.mxu0
      %v803 = vadd.f32 0.0, %v802
      %v804 = vpop.f32.mrf.mxu0
      %805 = vmatprep.mubr.bf16.mxu0 0
      %806 = vmatmul.mubr.bf16.gmra.mxu0 %v633
      %v807 = vpop.f32.mrf.mxu0
      %v808 = vadd.f32 0.0, %v807
      %v809 = vpop.f32.mrf.mxu0
      %v810 = vpop.f32.mrf.mxu0
      %v811 = vadd.f32 0.0, %v810
      %v812 = vpop.f32.mrf.mxu0
      %813 = vmatprep.mubr.bf16.mxu0 0
      %814 = vmatmul.mubr.bf16.gmra.mxu0 %v636
      %v815 = vpop.f32.mrf.mxu0
      %v816 = vadd.f32 0.0, %v815
      %v817 = vpop.f32.mrf.mxu0
      %v818 = vpop.f32.mrf.mxu0
      %v819 = vadd.f32 0.0, %v818
      %v820 = vpop.f32.mrf.mxu0
      %821 = vmatprep.mubr.bf16.mxu0 0
      %822 = vmatmul.mubr.bf16.gmra.mxu0 %v639
      %v823 = vpop.f32.mrf.mxu0
      %v824 = vadd.f32 0.0, %v823
      %v825 = vpop.f32.mrf.mxu0
      %v826 = vpop.f32.mrf.mxu0
      %v827 = vadd.f32 0.0, %v826
      %v828 = vpop.f32.mrf.mxu0
      %829 = vmatprep.mubr.bf16.mxu0 0
      %830 = vmatmul.mubr.bf16.gmra.mxu0 %v642
      %v831 = vpop.f32.mrf.mxu0
      %v832 = vadd.f32 0.0, %v831
      %v833 = vpop.f32.mrf.mxu0
      %v834 = vpop.f32.mrf.mxu0
      %v835 = vadd.f32 0.0, %v834
      %v836 = vpop.f32.mrf.mxu0
      %837 = vmatprep.mubr.bf16.mxu0 0
      %838 = vmatmul.mubr.bf16.gmra.mxu0 %v645
      %v839 = vpop.f32.mrf.mxu0
      %v840 = vadd.f32 0.0, %v839
      %v841 = vpop.f32.mrf.mxu0
      %v842 = vpop.f32.mrf.mxu0
      %v843 = vadd.f32 0.0, %v842
      %v844 = vpop.f32.mrf.mxu0
      %845 = vmatprep.mubr.bf16.mxu0 0
      %846 = vmatmul.mubr.bf16.gmra.mxu0 %v648
      %v847 = vpop.f32.mrf.mxu0
      %v848 = vadd.f32 0.0, %v847
      %v849 = vpop.f32.mrf.mxu0
      %v850 = vpop.f32.mrf.mxu0
      %v851 = vadd.f32 0.0, %v850
      %v852 = vpop.f32.mrf.mxu0
      %853 = vmatprep.mubr.bf16.mxu0 0
      %854 = vmatmul.mubr.bf16.gmra.mxu0 %v651
      %v855 = vpop.f32.mrf.mxu0
      %v856 = vadd.f32 0.0, %v855
      %v857 = vpop.f32.mrf.mxu0
      %v858 = vpop.f32.mrf.mxu0
      %v859 = vadd.f32 0.0, %v858
      %v860 = vpop.f32.mrf.mxu0
      %861 = vmatprep.mubr.bf16.mxu0 0
      %862 = vmatmul.mubr.bf16.gmra.mxu0 %v654
      %v863 = vpop.f32.mrf.mxu0
      %v864 = vadd.f32 0.0, %v863
      %v865 = vpop.f32.mrf.mxu0
      %v866 = vpop.f32.mrf.mxu0
      %v867 = vadd.f32 0.0, %v866
      %v868 = vpop.f32.mrf.mxu0
      %869 = vmatprep.mubr.bf16.mxu0 0
      %870 = vmatmul.mubr.bf16.gmra.mxu0 %v657
      %v871 = vpop.f32.mrf.mxu0
      %v872 = vadd.f32 0.0, %v871
      %v873 = vpop.f32.mrf.mxu0
      %v874 = vpop.f32.mrf.mxu0
      %v875 = vadd.f32 0.0, %v874
      %v876 = vpop.f32.mrf.mxu0
      %877 = vmatprep.mubr.bf16.mxu0 0
      %878 = vmatmul.mubr.bf16.gmra.mxu0 %v660
      %v879 = vpop.f32.mrf.mxu0
      %v880 = vadd.f32 0.0, %v879
      %v881 = vpop.f32.mrf.mxu0
      %v882 = vpop.f32.mrf.mxu0
      %v883 = vadd.f32 0.0, %v882
      %v884 = vpop.f32.mrf.mxu0
      %885 = vmatprep.mubr.bf16.mxu0 0
      %886 = vmatmul.mubr.bf16.gmra.mxu0 %v663
      %v887 = vpop.f32.mrf.mxu0
      %v888 = vadd.f32 0.0, %v887
      %v889 = vpop.f32.mrf.mxu0
      %v890 = vpop.f32.mrf.mxu0
      %v891 = vadd.f32 0.0, %v890
      %v892 = vpop.f32.mrf.mxu0
      %893 = vmatprep.mubr.bf16.mxu0 0
      %894 = vmatmul.mubr.bf16.gmra.mxu0 %v666
      %v895 = vpop.f32.mrf.mxu0
      %v896 = vadd.f32 0.0, %v895
      %v897 = vpop.f32.mrf.mxu0
      %v898 = vpop.f32.mrf.mxu0
      %v899 = vadd.f32 0.0, %v898
      %v900 = vpop.f32.mrf.mxu0
      %901 = vmatprep.mubr.bf16.mxu0 0
      %902 = vmatmul.mubr.bf16.gmra.mxu0 %v669
      %v903 = vpop.f32.mrf.mxu0
      %v904 = vadd.f32 0.0, %v903
      %v905 = vpop.f32.mrf.mxu0
      %v906 = vpop.f32.mrf.mxu0
      %v907 = vadd.f32 0.0, %v906
      %v908 = vpop.f32.mrf.mxu0
      %909 = vmatprep.mubr.bf16.mxu0 0
      %910 = vmatmul.mubr.bf16.gmra.mxu0 %v672
      %v911 = vpop.f32.mrf.mxu0
      %v912 = vadd.f32 0.0, %v911
      %v913 = vpop.f32.mrf.mxu0
      %v914 = vpop.f32.mrf.mxu0
      %v915 = vadd.f32 0.0, %v914
      %v916 = vpop.f32.mrf.mxu0
      %917 = vmatprep.mubr.bf16.mxu0 0
      %918 = vmatmul.mubr.bf16.gmra.mxu0 %v675
      %v919 = vpop.f32.mrf.mxu0
      %v920 = vadd.f32 0.0, %v919
      %v921 = vpop.f32.mrf.mxu0
      %v922 = vpop.f32.mrf.mxu0
      %v923 = vadd.f32 0.0, %v922
      %v924 = vpop.f32.mrf.mxu0
      %925 = vmatprep.mubr.bf16.mxu0 0
      %926 = vmatmul.mubr.bf16.gmra.mxu0 %v678
      %v927 = vpop.f32.mrf.mxu0
      %v928 = vadd.f32 0.0, %v927
      %v929 = vpop.f32.mrf.mxu0
      %v930 = vpop.f32.mrf.mxu0
      %v931 = vadd.f32 0.0, %v930
      %v932 = vpop.f32.mrf.mxu0
      %933 = vmatprep.mubr.bf16.mxu0 0
      %934 = vmatmul.mubr.bf16.gmra.mxu0 %v681
      %v935 = vpop.f32.mrf.mxu0
      %v936 = vadd.f32 0.0, %v935
      %v937 = vpop.f32.mrf.mxu0
      %v938 = vpop.f32.mrf.mxu0
      %v939 = vadd.f32 0.0, %v938
      %v940 = vpop.f32.mrf.mxu0
      %941 = vmatprep.mubr.bf16.mxu0 0
      %942 = vmatmul.mubr.bf16.gmra.mxu0 %v684
      %v943 = vpop.f32.mrf.mxu0
      %v944 = vadd.f32 0.0, %v943
      %v945 = vpop.f32.mrf.mxu0
      %v946 = vpop.f32.mrf.mxu0
      %v947 = vadd.f32 0.0, %v946
      %v948 = vpop.f32.mrf.mxu0
      %949 = vmatprep.mubr.bf16.mxu0 0
      %950 = vmatmul.mubr.bf16.gmra.mxu0 %v687
      %v951 = vpop.f32.mrf.mxu0
      %v952 = vadd.f32 0.0, %v951
      %v953 = vpop.f32.mrf.mxu0
      %v954 = vpop.f32.mrf.mxu0
      %v955 = vadd.f32 0.0, %v954
      %v956 = vpop.f32.mrf.mxu0
      %957 = vmatprep.mubr.bf16.mxu0 0
      %958 = vmatmul.mubr.bf16.gmra.mxu0 %v690
      %v959 = vpop.f32.mrf.mxu0
      %v960 = vadd.f32 0.0, %v959
      %v961 = vpop.f32.mrf.mxu0
      %v962 = vpop.f32.mrf.mxu0
      %v963 = vadd.f32 0.0, %v962
      %v964 = vpop.f32.mrf.mxu0
      %965 = vmatprep.mubr.bf16.mxu0 0
      %966 = vmatmul.mubr.bf16.gmra.mxu0 %v693
      %v967 = vpop.f32.mrf.mxu0
      %v968 = vadd.f32 0.0, %v967
      %v969 = vpop.f32.mrf.mxu0
      %v970 = vpop.f32.mrf.mxu0
      %v971 = vadd.f32 0.0, %v970
      %v972 = vpop.f32.mrf.mxu0
      %973 = vmatprep.mubr.bf16.mxu0 0
      %974 = vmatmul.mubr.bf16.gmra.mxu0 %v696
      %v975 = vpop.f32.mrf.mxu0
      %v976 = vadd.f32 0.0, %v975
      %v977 = vpop.f32.mrf.mxu0
      %v978 = vpop.f32.mrf.mxu0
      %v979 = vadd.f32 0.0, %v978
      %v980 = vpop.f32.mrf.mxu0
      %981 = vmatprep.mubr.bf16.mxu0 0
      %982 = vmatmul.mubr.bf16.gmra.mxu0 %v699
      %v983 = vpop.f32.mrf.mxu0
      %v984 = vadd.f32 0.0, %v983
      %v985 = vpop.f32.mrf.mxu0
      %v986 = vpop.f32.mrf.mxu0
      %v987 = vpop.f32.mrf.mxu0
      %988 = vdwg.mxu0
      %v989 = vadd.f32 %v288, %v736
      %v990 = vadd.f32 %v289, %v739
      %v991 = vadd.f32 %v290, %v744
      %v992 = vadd.f32 %v291, %v747
      %v993 = vadd.f32 %v292, %v752
      %v994 = vadd.f32 %v293, %v755
      %v995 = vadd.f32 %v294, %v760
      %v996 = vadd.f32 %v295, %v763
      %v997 = vadd.f32 %v296, %v768
      %v998 = vadd.f32 %v297, %v771
      %v999 = vadd.f32 %v298, %v776
      %v1000 = vadd.f32 %v299, %v779
      %v1001 = vadd.f32 %v300, %v784
      %v1002 = vadd.f32 %v301, %v787
      %v1003 = vadd.f32 %v302, %v792
      %v1004 = vadd.f32 %v303, %v795
      %v1005 = vadd.f32 %v304, %v800
      %v1006 = vadd.f32 %v305, %v803
      %v1007 = vadd.f32 %v306, %v808
      %v1008 = vadd.f32 %v307, %v811
      %v1009 = vadd.f32 %v308, %v816
      %v1010 = vadd.f32 %v309, %v819
      %v1011 = vadd.f32 %v310, %v824
      %v1012 = vadd.f32 %v311, %v827
      %v1013 = vadd.f32 %v312, %v832
      %v1014 = vadd.f32 %v313, %v835
      %v1015 = vadd.f32 %v314, %v840
      %v1016 = vadd.f32 %v315, %v843
      %v1017 = vadd.f32 %v316, %v848
      %v1018 = vadd.f32 %v317, %v851
      %v1019 = vadd.f32 %v318, %v856
      %v1020 = vadd.f32 %v319, %v859
      %v1021 = vadd.f32 %v320, %v864
      %v1022 = vadd.f32 %v321, %v867
      %v1023 = vadd.f32 %v322, %v872
      %v1024 = vadd.f32 %v323, %v875
      %v1025 = vadd.f32 %v324, %v880
      %v1026 = vadd.f32 %v325, %v883
      %v1027 = vadd.f32 %v326, %v888
      %v1028 = vadd.f32 %v327, %v891
      %v1029 = vadd.f32 %v328, %v896
      %v1030 = vadd.f32 %v329, %v899
      %v1031 = vadd.f32 %v330, %v904
      %v1032 = vadd.f32 %v331, %v907
      %v1033 = vadd.f32 %v332, %v912
      %v1034 = vadd.f32 %v333, %v915
      %v1035 = vadd.f32 %v334, %v920
      %v1036 = vadd.f32 %v335, %v923
      %v1037 = vadd.f32 %v336, %v928
      %v1038 = vadd.f32 %v337, %v931
      %v1039 = vadd.f32 %v338, %v936
      %v1040 = vadd.f32 %v339, %v939
      %v1041 = vadd.f32 %v340, %v944
      %v1042 = vadd.f32 %v341, %v947
      %v1043 = vadd.f32 %v342, %v952
      %v1044 = vadd.f32 %v343, %v955
      %v1045 = vadd.f32 %v344, %v960
      %v1046 = vadd.f32 %v345, %v963
      %v1047 = vadd.f32 %v346, %v968
      %v1048 = vadd.f32 %v347, %v971
      %v1049 = vadd.f32 %v348, %v976
      %v1050 = vadd.f32 %v349, %v979
      %v1051 = vadd.f32 %v350, %v984
      %1052 = vst.msk [vmem:[#allocation2] sm:$0xff] %vm604, %v989
      %1053 = vst.msk [vmem:[#allocation2 + $0x8] sm:$0xff] %vm604, %v990
      %1054 = vst.msk [vmem:[#allocation2 + $0x10] sm:$0xff] %vm604, %v991
      %1055 = vst.msk [vmem:[#allocation2 + $0x18] sm:$0xff] %vm604, %v992
      %1056 = vst.msk [vmem:[#allocation2 + $0x20] sm:$0xff] %vm604, %v993
      %1057 = vst.msk [vmem:[#allocation2 + $0x28] sm:$0xff] %vm604, %v994
      %1058 = vst.msk [vmem:[#allocation2 + $0x30] sm:$0xff] %vm604, %v995
      %1059 = vst.msk [vmem:[#allocation2 + $0x38] sm:$0xff] %vm604, %v996
      %1060 = vst.msk [vmem:[#allocation2 + $0x40] sm:$0xff] %vm604, %v997
      %1061 = vst.msk [vmem:[#allocation2 + $0x48] sm:$0xff] %vm604, %v998
      %1062 = vst.msk [vmem:[#allocation2 + $0x50] sm:$0xff] %vm604, %v999
      %1063 = vst.msk [vmem:[#allocation2 + $0x58] sm:$0xff] %vm604, %v1000
      %1064 = vst.msk [vmem:[#allocation2 + $0x60] sm:$0xff] %vm604, %v1001
      %1065 = vst.msk [vmem:[#allocation2 + $0x68] sm:$0xff] %vm604, %v1002
      %1066 = vst.msk [vmem:[#allocation2 + $0x70] sm:$0xff] %vm604, %v1003
      %1067 = vst.msk [vmem:[#allocation2 + $0x78] sm:$0xff] %vm604, %v1004
      %1068 = vst.msk [vmem:[#allocation2 + $0x80] sm:$0xff] %vm604, %v1005
      %1069 = vst.msk [vmem:[#allocation2 + $0x88] sm:$0xff] %vm604, %v1006
      %1070 = vst.msk [vmem:[#allocation2 + $0x90] sm:$0xff] %vm604, %v1007
      %1071 = vst.msk [vmem:[#allocation2 + $0x98] sm:$0xff] %vm604, %v1008
      %1072 = vst.msk [vmem:[#allocation2 + $0xa0] sm:$0xff] %vm604, %v1009
      %1073 = vst.msk [vmem:[#allocation2 + $0xa8] sm:$0xff] %vm604, %v1010
      %1074 = vst.msk [vmem:[#allocation2 + $0xb0] sm:$0xff] %vm604, %v1011
      %1075 = vst.msk [vmem:[#allocation2 + $0xb8] sm:$0xff] %vm604, %v1012
      %1076 = vst.msk [vmem:[#allocation2 + $0xc0] sm:$0xff] %vm604, %v1013
      %1077 = vst.msk [vmem:[#allocation2 + $0xc8] sm:$0xff] %vm604, %v1014
      %1078 = vst.msk [vmem:[#allocation2 + $0xd0] sm:$0xff] %vm604, %v1015
      %1079 = vst.msk [vmem:[#allocation2 + $0xd8] sm:$0xff] %vm604, %v1016
      %1080 = vst.msk [vmem:[#allocation2 + $0xe0] sm:$0xff] %vm604, %v1017
      %1081 = vst.msk [vmem:[#allocation2 + $0xe8] sm:$0xff] %vm604, %v1018
      %1082 = vst.msk [vmem:[#allocation2 + $0xf0] sm:$0xff] %vm604, %v1019
      %1083 = vst.msk [vmem:[#allocation2 + $0xf8] sm:$0xff] %vm604, %v1020
      %1084 = vst.msk [vmem:[#allocation2 + $0x100] sm:$0xff] %vm604, %v1021
      %1085 = vst.msk [vmem:[#allocation2 + $0x108] sm:$0xff] %vm604, %v1022
      %1086 = vst.msk [vmem:[#allocation2 + $0x110] sm:$0xff] %vm604, %v1023
      %1087 = vst.msk [vmem:[#allocation2 + $0x118] sm:$0xff] %vm604, %v1024
      %1088 = vst.msk [vmem:[#allocation2 + $0x120] sm:$0xff] %vm604, %v1025
      %1089 = vst.msk [vmem:[#allocation2 + $0x128] sm:$0xff] %vm604, %v1026
      %1090 = vst.msk [vmem:[#allocation2 + $0x130] sm:$0xff] %vm604, %v1027
      %1091 = vst.msk [vmem:[#allocation2 + $0x138] sm:$0xff] %vm604, %v1028
      %1092 = vst.msk [vmem:[#allocation2 + $0x140] sm:$0xff] %vm604, %v1029
      %1093 = vst.msk [vmem:[#allocation2 + $0x148] sm:$0xff] %vm604, %v1030
      %1094 = vst.msk [vmem:[#allocation2 + $0x150] sm:$0xff] %vm604, %v1031
      %1095 = vst.msk [vmem:[#allocation2 + $0x158] sm:$0xff] %vm604, %v1032
      %1096 = vst.msk [vmem:[#allocation2 + $0x160] sm:$0xff] %vm604, %v1033
      %1097 = vst.msk [vmem:[#allocation2 + $0x168] sm:$0xff] %vm604, %v1034
      %1098 = vst.msk [vmem:[#allocation2 + $0x170] sm:$0xff] %vm604, %v1035
      %1099 = vst.msk [vmem:[#allocation2 + $0x178] sm:$0xff] %vm604, %v1036
      %1100 = vst.msk [vmem:[#allocation2 + $0x180] sm:$0xff] %vm604, %v1037
      %1101 = vst.msk [vmem:[#allocation2 + $0x188] sm:$0xff] %vm604, %v1038
      %1102 = vst.msk [vmem:[#allocation2 + $0x190] sm:$0xff] %vm604, %v1039
      %1103 = vst.msk [vmem:[#allocation2 + $0x198] sm:$0xff] %vm604, %v1040
      %1104 = vst.msk [vmem:[#allocation2 + $0x1a0] sm:$0xff] %vm604, %v1041
      %1105 = vst.msk [vmem:[#allocation2 + $0x1a8] sm:$0xff] %vm604, %v1042
      %1106 = vst.msk [vmem:[#allocation2 + $0x1b0] sm:$0xff] %vm604, %v1043
      %1107 = vst.msk [vmem:[#allocation2 + $0x1b8] sm:$0xff] %vm604, %v1044
      %1108 = vst.msk [vmem:[#allocation2 + $0x1c0] sm:$0xff] %vm604, %v1045
      %1109 = vst.msk [vmem:[#allocation2 + $0x1c8] sm:$0xff] %vm604, %v1046
      %1110 = vst.msk [vmem:[#allocation2 + $0x1d0] sm:$0xff] %vm604, %v1047
      %1111 = vst.msk [vmem:[#allocation2 + $0x1d8] sm:$0xff] %vm604, %v1048
      %1112 = vst.msk [vmem:[#allocation2 + $0x1e0] sm:$0xff] %vm604, %v1049
      %1113 = vst.msk [vmem:[#allocation2 + $0x1e8] sm:$0xff] %vm604, %v1050
      %1114 = vst.msk [vmem:[#allocation2 + $0x1f0] sm:$0xff] %vm604, %v1051
      // Predicated region
      $region37: #{brain_cnn_forward.4} parent=31 // pred_check
        %p1115 = pneg %p220
      $region38: #{brain_cnn_forward.4} parent=31 // pred_check_branch
        %1117 = sbr.rel (%p1115) target = $region40
      $region39: #{brain_cnn_forward.4} parent=31 // pred_region
        %v1118 = vld [vmem:[#allocation2] sm:$0xff]
        %v1119 = vld [vmem:[#allocation2 + $0x8] sm:$0xff]
        %v1120 = vld [vmem:[#allocation2 + $0x10] sm:$0xff]
        %v1121 = vld [vmem:[#allocation2 + $0x18] sm:$0xff]
        %v1122 = vld [vmem:[#allocation2 + $0x20] sm:$0xff]
        %v1123 = vld [vmem:[#allocation2 + $0x28] sm:$0xff]
        %v1124 = vld [vmem:[#allocation2 + $0x30] sm:$0xff]
        %v1125 = vld [vmem:[#allocation2 + $0x38] sm:$0xff]
        %v1126 = vld [vmem:[#allocation2 + $0x40] sm:$0xff]
        %v1127 = vld [vmem:[#allocation2 + $0x48] sm:$0xff]
        %v1128 = vld [vmem:[#allocation2 + $0x50] sm:$0xff]
        %v1129 = vld [vmem:[#allocation2 + $0x58] sm:$0xff]
        %v1130 = vld [vmem:[#allocation2 + $0x60] sm:$0xff]
        %v1131 = vld [vmem:[#allocation2 + $0x68] sm:$0xff]
        %v1132 = vld [vmem:[#allocation2 + $0x70] sm:$0xff]
        %v1133 = vld [vmem:[#allocation2 + $0x78] sm:$0xff]
        %v1134 = vld [vmem:[#allocation2 + $0x80] sm:$0xff]
        %v1135 = vld [vmem:[#allocation2 + $0x88] sm:$0xff]
        %v1136 = vld [vmem:[#allocation2 + $0x90] sm:$0xff]
        %v1137 = vld [vmem:[#allocation2 + $0x98] sm:$0xff]
        %v1138 = vld [vmem:[#allocation2 + $0xa0] sm:$0xff]
        %v1139 = vld [vmem:[#allocation2 + $0xa8] sm:$0xff]
        %v1140 = vld [vmem:[#allocation2 + $0xb0] sm:$0xff]
        %v1141 = vld [vmem:[#allocation2 + $0xb8] sm:$0xff]
        %v1142 = vld [vmem:[#allocation2 + $0xc0] sm:$0xff]
        %v1143 = vld [vmem:[#allocation2 + $0xc8] sm:$0xff]
        %v1144 = vld [vmem:[#allocation2 + $0xd0] sm:$0xff]
        %v1145 = vld [vmem:[#allocation2 + $0xd8] sm:$0xff]
        %v1146 = vld [vmem:[#allocation2 + $0xe0] sm:$0xff]
        %v1147 = vld [vmem:[#allocation2 + $0xe8] sm:$0xff]
        %v1148 = vld [vmem:[#allocation2 + $0xf0] sm:$0xff]
        %v1149 = vld [vmem:[#allocation2 + $0xf8] sm:$0xff]
        %v1150 = vld [vmem:[#allocation2 + $0x100] sm:$0xff]
        %v1151 = vld [vmem:[#allocation2 + $0x108] sm:$0xff]
        %v1152 = vld [vmem:[#allocation2 + $0x110] sm:$0xff]
        %v1153 = vld [vmem:[#allocation2 + $0x118] sm:$0xff]
        %v1154 = vld [vmem:[#allocation2 + $0x120] sm:$0xff]
        %v1155 = vld [vmem:[#allocation2 + $0x128] sm:$0xff]
        %v1156 = vld [vmem:[#allocation2 + $0x130] sm:$0xff]
        %v1157 = vld [vmem:[#allocation2 + $0x138] sm:$0xff]
        %v1158 = vld [vmem:[#allocation2 + $0x140] sm:$0xff]
        %v1159 = vld [vmem:[#allocation2 + $0x148] sm:$0xff]
        %v1160 = vld [vmem:[#allocation2 + $0x150] sm:$0xff]
        %v1161 = vld [vmem:[#allocation2 + $0x158] sm:$0xff]
        %v1162 = vld [vmem:[#allocation2 + $0x160] sm:$0xff]
        %v1163 = vld [vmem:[#allocation2 + $0x168] sm:$0xff]
        %v1164 = vld [vmem:[#allocation2 + $0x170] sm:$0xff]
        %v1165 = vld [vmem:[#allocation2 + $0x178] sm:$0xff]
        %v1166 = vld [vmem:[#allocation2 + $0x180] sm:$0xff]
        %v1167 = vld [vmem:[#allocation2 + $0x188] sm:$0xff]
        %v1168 = vld [vmem:[#allocation2 + $0x190] sm:$0xff]
        %v1169 = vld [vmem:[#allocation2 + $0x198] sm:$0xff]
        %v1170 = vld [vmem:[#allocation2 + $0x1a0] sm:$0xff]
        %v1171 = vld [vmem:[#allocation2 + $0x1a8] sm:$0xff]
        %v1172 = vld [vmem:[#allocation2 + $0x1b0] sm:$0xff]
        %v1173 = vld [vmem:[#allocation2 + $0x1b8] sm:$0xff]
        %v1174 = vld [vmem:[#allocation2 + $0x1c0] sm:$0xff]
        %v1175 = vld [vmem:[#allocation2 + $0x1c8] sm:$0xff]
        %v1176 = vld [vmem:[#allocation2 + $0x1d0] sm:$0xff]
        %v1177 = vld [vmem:[#allocation2 + $0x1d8] sm:$0xff]
        %v1178 = vld [vmem:[#allocation2 + $0x1e0] sm:$0xff]
        %v1179 = vld [vmem:[#allocation2 + $0x1e8] sm:$0xff]
        %v1180 = vld [vmem:[#allocation2 + $0x1f0] sm:$0xff]
        %v1181 = vld [vmem:[%s2] sm:$0x1]
        %v1183 = vlaneseq
        %v1184 = vshrl.u32 %v1183, 7
        %v1185 = vsub.s32 0, %v1184
        %v1186 = vrot.slane %v1181, %v1185
        %v1188 = vadd.f32 %v1118, %v1186
        %v1189 = vadd.f32 %v1119, %v1186
        %v1190 = vadd.f32 %v1120, %v1186
        %v1191 = vadd.f32 %v1121, %v1186
        %v1192 = vadd.f32 %v1122, %v1186
        %v1193 = vadd.f32 %v1123, %v1186
        %v1194 = vadd.f32 %v1124, %v1186
        %v1195 = vadd.f32 %v1125, %v1186
        %v1196 = vadd.f32 %v1126, %v1186
        %v1197 = vadd.f32 %v1127, %v1186
        %v1198 = vadd.f32 %v1128, %v1186
        %v1199 = vadd.f32 %v1129, %v1186
        %v1200 = vadd.f32 %v1130, %v1186
        %v1201 = vadd.f32 %v1131, %v1186
        %v1202 = vadd.f32 %v1132, %v1186
        %v1203 = vadd.f32 %v1133, %v1186
        %v1204 = vadd.f32 %v1134, %v1186
        %v1205 = vadd.f32 %v1135, %v1186
        %v1206 = vadd.f32 %v1136, %v1186
        %v1207 = vadd.f32 %v1137, %v1186
        %v1208 = vadd.f32 %v1138, %v1186
        %v1209 = vadd.f32 %v1139, %v1186
        %v1210 = vadd.f32 %v1140, %v1186
        %v1211 = vadd.f32 %v1141, %v1186
        %v1212 = vadd.f32 %v1142, %v1186
        %v1213 = vadd.f32 %v1143, %v1186
        %v1214 = vadd.f32 %v1144, %v1186
        %v1215 = vadd.f32 %v1145, %v1186
        %v1216 = vadd.f32 %v1146, %v1186
        %v1217 = vadd.f32 %v1147, %v1186
        %v1218 = vadd.f32 %v1148, %v1186
        %v1219 = vadd.f32 %v1149, %v1186
        %v1220 = vadd.f32 %v1150, %v1186
        %v1221 = vadd.f32 %v1151, %v1186
        %v1222 = vadd.f32 %v1152, %v1186
        %v1223 = vadd.f32 %v1153, %v1186
        %v1224 = vadd.f32 %v1154, %v1186
        %v1225 = vadd.f32 %v1155, %v1186
        %v1226 = vadd.f32 %v1156, %v1186
        %v1227 = vadd.f32 %v1157, %v1186
        %v1228 = vadd.f32 %v1158, %v1186
        %v1229 = vadd.f32 %v1159, %v1186
        %v1230 = vadd.f32 %v1160, %v1186
        %v1231 = vadd.f32 %v1161, %v1186
        %v1232 = vadd.f32 %v1162, %v1186
        %v1233 = vadd.f32 %v1163, %v1186
        %v1234 = vadd.f32 %v1164, %v1186
        %v1235 = vadd.f32 %v1165, %v1186
        %v1236 = vadd.f32 %v1166, %v1186
        %v1237 = vadd.f32 %v1167, %v1186
        %v1238 = vadd.f32 %v1168, %v1186
        %v1239 = vadd.f32 %v1169, %v1186
        %v1240 = vadd.f32 %v1170, %v1186
        %v1241 = vadd.f32 %v1171, %v1186
        %v1242 = vadd.f32 %v1172, %v1186
        %v1243 = vadd.f32 %v1173, %v1186
        %v1244 = vadd.f32 %v1174, %v1186
        %v1245 = vadd.f32 %v1175, %v1186
        %v1246 = vadd.f32 %v1176, %v1186
        %v1247 = vadd.f32 %v1177, %v1186
        %v1248 = vadd.f32 %v1178, %v1186
        %v1249 = vadd.f32 %v1179, %v1186
        %v1250 = vadd.f32 %v1180, %v1186
        %v1251 = vmax.f32 %v1188, 0.0
        %v1252 = vmax.f32 %v1189, 0.0
        %v1253 = vmax.f32 %v1190, 0.0
        %v1254 = vmax.f32 %v1191, 0.0
        %v1255 = vmax.f32 %v1192, 0.0
        %v1256 = vmax.f32 %v1193, 0.0
        %v1257 = vmax.f32 %v1194, 0.0
        %v1258 = vmax.f32 %v1195, 0.0
        %v1259 = vmax.f32 %v1196, 0.0
        %v1260 = vmax.f32 %v1197, 0.0
        %v1261 = vmax.f32 %v1198, 0.0
        %v1262 = vmax.f32 %v1199, 0.0
        %v1263 = vmax.f32 %v1200, 0.0
        %v1264 = vmax.f32 %v1201, 0.0
        %v1265 = vmax.f32 %v1202, 0.0
        %v1266 = vmax.f32 %v1203, 0.0
        %v1267 = vmax.f32 %v1204, 0.0
        %v1268 = vmax.f32 %v1205, 0.0
        %v1269 = vmax.f32 %v1206, 0.0
        %v1270 = vmax.f32 %v1207, 0.0
        %v1271 = vmax.f32 %v1208, 0.0
        %v1272 = vmax.f32 %v1209, 0.0
        %v1273 = vmax.f32 %v1210, 0.0
        %v1274 = vmax.f32 %v1211, 0.0
        %v1275 = vmax.f32 %v1212, 0.0
        %v1276 = vmax.f32 %v1213, 0.0
        %v1277 = vmax.f32 %v1214, 0.0
        %v1278 = vmax.f32 %v1215, 0.0
        %v1279 = vmax.f32 %v1216, 0.0
        %v1280 = vmax.f32 %v1217, 0.0
        %v1281 = vmax.f32 %v1218, 0.0
        %v1282 = vmax.f32 %v1219, 0.0
        %v1283 = vmax.f32 %v1220, 0.0
        %v1284 = vmax.f32 %v1221, 0.0
        %v1285 = vmax.f32 %v1222, 0.0
        %v1286 = vmax.f32 %v1223, 0.0
        %v1287 = vmax.f32 %v1224, 0.0
        %v1288 = vmax.f32 %v1225, 0.0
        %v1289 = vmax.f32 %v1226, 0.0
        %v1290 = vmax.f32 %v1227, 0.0
        %v1291 = vmax.f32 %v1228, 0.0
        %v1292 = vmax.f32 %v1229, 0.0
        %v1293 = vmax.f32 %v1230, 0.0
        %v1294 = vmax.f32 %v1231, 0.0
        %v1295 = vmax.f32 %v1232, 0.0
        %v1296 = vmax.f32 %v1233, 0.0
        %v1297 = vmax.f32 %v1234, 0.0
        %v1298 = vmax.f32 %v1235, 0.0
        %v1299 = vmax.f32 %v1236, 0.0
        %v1300 = vmax.f32 %v1237, 0.0
        %v1301 = vmax.f32 %v1238, 0.0
        %v1302 = vmax.f32 %v1239, 0.0
        %v1303 = vmax.f32 %v1240, 0.0
        %v1304 = vmax.f32 %v1241, 0.0
        %v1305 = vmax.f32 %v1242, 0.0
        %v1306 = vmax.f32 %v1243, 0.0
        %v1307 = vmax.f32 %v1244, 0.0
        %v1308 = vmax.f32 %v1245, 0.0
        %v1309 = vmax.f32 %v1246, 0.0
        %v1310 = vmax.f32 %v1247, 0.0
        %v1311 = vmax.f32 %v1248, 0.0
        %v1312 = vmax.f32 %v1249, 0.0
        %v1313 = vmax.f32 %v1250, 0.0
        %v1314 = vpack.c.bf16 %v1252, %v1251
        %v1315 = vpack.c.bf16 %v1254, %v1253
        %v1316 = vpack.c.bf16 %v1256, %v1255
        %v1317 = vpack.c.bf16 %v1258, %v1257
        %v1318 = vpack.c.bf16 %v1260, %v1259
        %v1319 = vpack.c.bf16 %v1262, %v1261
        %v1320 = vpack.c.bf16 %v1264, %v1263
        %v1321 = vpack.c.bf16 %v1266, %v1265
        %v1322 = vpack.c.bf16 %v1268, %v1267
        %v1323 = vpack.c.bf16 %v1270, %v1269
        %v1324 = vpack.c.bf16 %v1272, %v1271
        %v1325 = vpack.c.bf16 %v1274, %v1273
        %v1326 = vpack.c.bf16 %v1276, %v1275
        %v1327 = vpack.c.bf16 %v1278, %v1277
        %v1328 = vpack.c.bf16 %v1280, %v1279
        %v1329 = vpack.c.bf16 %v1282, %v1281
        %v1330 = vpack.c.bf16 %v1284, %v1283
        %v1331 = vpack.c.bf16 %v1286, %v1285
        %v1332 = vpack.c.bf16 %v1288, %v1287
        %v1333 = vpack.c.bf16 %v1290, %v1289
        %v1334 = vpack.c.bf16 %v1292, %v1291
        %v1335 = vpack.c.bf16 %v1294, %v1293
        %v1336 = vpack.c.bf16 %v1296, %v1295
        %v1337 = vpack.c.bf16 %v1298, %v1297
        %v1338 = vpack.c.bf16 %v1300, %v1299
        %v1339 = vpack.c.bf16 %v1302, %v1301
        %v1340 = vpack.c.bf16 %v1304, %v1303
        %v1341 = vpack.c.bf16 %v1306, %v1305
        %v1342 = vpack.c.bf16 %v1308, %v1307
        %v1343 = vpack.c.bf16 %v1310, %v1309
        %v1344 = vpack.c.bf16 %v1312, %v1311
        %v1345 = vpack.c.bf16 %v1313, %v1313
        %v1378 = vunpack.c.l.b16 %v1314
        %v1379 = vunpack.c.h.b16 %v1314
        %v1380 = vunpack.c.l.b16 %v1315
        %v1381 = vunpack.c.h.b16 %v1315
        %v1382 = vunpack.c.l.b16 %v1316
        %v1383 = vunpack.c.h.b16 %v1316
        %v1384 = vunpack.c.l.b16 %v1317
        %v1385 = vunpack.c.h.b16 %v1317
        %v1386 = vunpack.c.l.b16 %v1318
        %v1387 = vunpack.c.h.b16 %v1318
        %v1388 = vunpack.c.l.b16 %v1319
        %v1389 = vunpack.c.h.b16 %v1319
        %v1390 = vunpack.c.l.b16 %v1320
        %v1391 = vunpack.c.h.b16 %v1320
        %v1392 = vunpack.c.l.b16 %v1321
        %v1393 = vunpack.c.h.b16 %v1321
        %v1394 = vunpack.c.l.b16 %v1322
        %v1395 = vunpack.c.h.b16 %v1322
        %v1396 = vunpack.c.l.b16 %v1323
        %v1397 = vunpack.c.h.b16 %v1323
        %v1398 = vunpack.c.l.b16 %v1324
        %v1399 = vunpack.c.h.b16 %v1324
        %v1400 = vunpack.c.l.b16 %v1325
        %v1401 = vunpack.c.h.b16 %v1325
        %v1402 = vunpack.c.l.b16 %v1326
        %v1403 = vunpack.c.h.b16 %v1326
        %v1404 = vunpack.c.l.b16 %v1327
        %v1405 = vunpack.c.h.b16 %v1327
        %v1406 = vunpack.c.l.b16 %v1328
        %v1407 = vunpack.c.h.b16 %v1328
        %v1408 = vunpack.c.l.b16 %v1329
        %v1409 = vunpack.c.h.b16 %v1329
        %v1410 = vunpack.c.l.b16 %v1330
        %v1411 = vunpack.c.h.b16 %v1330
        %v1412 = vunpack.c.l.b16 %v1331
        %v1413 = vunpack.c.h.b16 %v1331
        %v1414 = vunpack.c.l.b16 %v1332
        %v1415 = vunpack.c.h.b16 %v1332
        %v1416 = vunpack.c.l.b16 %v1333
        %v1417 = vunpack.c.h.b16 %v1333
        %v1418 = vunpack.c.l.b16 %v1334
        %v1419 = vunpack.c.h.b16 %v1334
        %v1420 = vunpack.c.l.b16 %v1335
        %v1421 = vunpack.c.h.b16 %v1335
        %v1422 = vunpack.c.l.b16 %v1336
        %v1423 = vunpack.c.h.b16 %v1336
        %v1424 = vunpack.c.l.b16 %v1337
        %v1425 = vunpack.c.h.b16 %v1337
        %v1426 = vunpack.c.l.b16 %v1338
        %v1427 = vunpack.c.h.b16 %v1338
        %v1428 = vunpack.c.l.b16 %v1339
        %v1429 = vunpack.c.h.b16 %v1339
        %v1430 = vunpack.c.l.b16 %v1340
        %v1431 = vunpack.c.h.b16 %v1340
        %v1432 = vunpack.c.l.b16 %v1341
        %v1433 = vunpack.c.h.b16 %v1341
        %v1434 = vunpack.c.l.b16 %v1342
        %v1435 = vunpack.c.h.b16 %v1342
        %v1436 = vunpack.c.l.b16 %v1343
        %v1437 = vunpack.c.h.b16 %v1343
        %v1438 = vunpack.c.l.b16 %v1344
        %v1439 = vunpack.c.h.b16 %v1344
        %v1440 = vunpack.c.l.b16 %v1345
        %v1441 = vpack.c.b16 %v1378, %v1378
        %v1442 = vpack.c.b16 %v1379, %v1379
        %v1443 = vpack.c.b16 %v1380, %v1380
        %v1444 = vpack.c.b16 %v1381, %v1381
        %v1445 = vpack.c.b16 %v1382, %v1382
        %v1446 = vpack.c.b16 %v1383, %v1383
        %v1447 = vpack.c.b16 %v1384, %v1384
        %v1448 = vpack.c.b16 %v1385, %v1385
        %v1449 = vpack.c.b16 %v1386, %v1386
        %v1450 = vpack.c.b16 %v1387, %v1387
        %v1451 = vpack.c.b16 %v1388, %v1388
        %v1452 = vpack.c.b16 %v1389, %v1389
        %v1453 = vpack.c.b16 %v1390, %v1390
        %v1454 = vpack.c.b16 %v1391, %v1391
        %v1455 = vpack.c.b16 %v1392, %v1392
        %v1456 = vpack.c.b16 %v1393, %v1393
        %v1457 = vpack.c.b16 %v1394, %v1394
        %v1458 = vpack.c.b16 %v1395, %v1395
        %v1459 = vpack.c.b16 %v1396, %v1396
        %v1460 = vpack.c.b16 %v1397, %v1397
        %v1461 = vpack.c.b16 %v1398, %v1398
        %v1462 = vpack.c.b16 %v1399, %v1399
        %v1463 = vpack.c.b16 %v1400, %v1400
        %v1464 = vpack.c.b16 %v1401, %v1401
        %v1465 = vpack.c.b16 %v1402, %v1402
        %v1466 = vpack.c.b16 %v1403, %v1403
        %v1467 = vpack.c.b16 %v1404, %v1404
        %v1468 = vpack.c.b16 %v1405, %v1405
        %v1469 = vpack.c.b16 %v1406, %v1406
        %v1470 = vpack.c.b16 %v1407, %v1407
        %v1471 = vpack.c.b16 %v1408, %v1408
        %v1472 = vpack.c.b16 %v1409, %v1409
        %v1473 = vpack.c.b16 %v1410, %v1410
        %v1474 = vpack.c.b16 %v1411, %v1411
        %v1475 = vpack.c.b16 %v1412, %v1412
        %v1476 = vpack.c.b16 %v1413, %v1413
        %v1477 = vpack.c.b16 %v1414, %v1414
        %v1478 = vpack.c.b16 %v1415, %v1415
        %v1479 = vpack.c.b16 %v1416, %v1416
        %v1480 = vpack.c.b16 %v1417, %v1417
        %v1481 = vpack.c.b16 %v1418, %v1418
        %v1482 = vpack.c.b16 %v1419, %v1419
        %v1483 = vpack.c.b16 %v1420, %v1420
        %v1484 = vpack.c.b16 %v1421, %v1421
        %v1485 = vpack.c.b16 %v1422, %v1422
        %v1486 = vpack.c.b16 %v1423, %v1423
        %v1487 = vpack.c.b16 %v1424, %v1424
        %v1488 = vpack.c.b16 %v1425, %v1425
        %v1489 = vpack.c.b16 %v1426, %v1426
        %v1490 = vpack.c.b16 %v1427, %v1427
        %v1491 = vpack.c.b16 %v1428, %v1428
        %v1492 = vpack.c.b16 %v1429, %v1429
        %v1493 = vpack.c.b16 %v1430, %v1430
        %v1494 = vpack.c.b16 %v1431, %v1431
        %v1495 = vpack.c.b16 %v1432, %v1432
        %v1496 = vpack.c.b16 %v1433, %v1433
        %v1497 = vpack.c.b16 %v1434, %v1434
        %v1498 = vpack.c.b16 %v1435, %v1435
        %v1499 = vpack.c.b16 %v1436, %v1436
        %v1500 = vpack.c.b16 %v1437, %v1437
        %v1501 = vpack.c.b16 %v1438, %v1438
        %v1502 = vpack.c.b16 %v1439, %v1439
        %v1503 = vpack.c.b16 %v1440, %v1440
        %vm1567 = vcmask 519168
        %1568 = vst.msk [vmem:[%s217] sm:$0xf] %vm1567, %v1441
        %1569 = vst.msk [vmem:[%s217 + $0x4] sm:$0xf] %vm1567, %v1442
        %1570 = vst.msk [vmem:[%s217 + $0x8] sm:$0xf] %vm1567, %v1443
        %1571 = vst.msk [vmem:[%s217 + $0xc] sm:$0xf] %vm1567, %v1444
        %1572 = vst.msk [vmem:[%s217 + $0x10] sm:$0xf] %vm1567, %v1445
        %1573 = vst.msk [vmem:[%s217 + $0x14] sm:$0xf] %vm1567, %v1446
        %1574 = vst.msk [vmem:[%s217 + $0x18] sm:$0xf] %vm1567, %v1447
        %1575 = vst.msk [vmem:[%s217 + $0x1c] sm:$0xf] %vm1567, %v1448
        %1576 = vst.msk [vmem:[%s217 + $0x20] sm:$0xf] %vm1567, %v1449
        %1577 = vst.msk [vmem:[%s217 + $0x24] sm:$0xf] %vm1567, %v1450
        %1578 = vst.msk [vmem:[%s217 + $0x28] sm:$0xf] %vm1567, %v1451
        %1579 = vst.msk [vmem:[%s217 + $0x2c] sm:$0xf] %vm1567, %v1452
        %1580 = vst.msk [vmem:[%s217 + $0x30] sm:$0xf] %vm1567, %v1453
        %1581 = vst.msk [vmem:[%s217 + $0x34] sm:$0xf] %vm1567, %v1454
        %1582 = vst.msk [vmem:[%s217 + $0x38] sm:$0xf] %vm1567, %v1455
        %1583 = vst.msk [vmem:[%s217 + $0x3c] sm:$0xf] %vm1567, %v1456
        %1584 = vst.msk [vmem:[%s217 + $0x40] sm:$0xf] %vm1567, %v1457
        %1585 = vst.msk [vmem:[%s217 + $0x44] sm:$0xf] %vm1567, %v1458
        %1586 = vst.msk [vmem:[%s217 + $0x48] sm:$0xf] %vm1567, %v1459
        %1587 = vst.msk [vmem:[%s217 + $0x4c] sm:$0xf] %vm1567, %v1460
        %1588 = vst.msk [vmem:[%s217 + $0x50] sm:$0xf] %vm1567, %v1461
        %1589 = vst.msk [vmem:[%s217 + $0x54] sm:$0xf] %vm1567, %v1462
        %1590 = vst.msk [vmem:[%s217 + $0x58] sm:$0xf] %vm1567, %v1463
        %1591 = vst.msk [vmem:[%s217 + $0x5c] sm:$0xf] %vm1567, %v1464
        %1592 = vst.msk [vmem:[%s217 + $0x60] sm:$0xf] %vm1567, %v1465
        %1593 = vst.msk [vmem:[%s217 + $0x64] sm:$0xf] %vm1567, %v1466
        %1594 = vst.msk [vmem:[%s217 + $0x68] sm:$0xf] %vm1567, %v1467
        %1595 = vst.msk [vmem:[%s217 + $0x6c] sm:$0xf] %vm1567, %v1468
        %1596 = vst.msk [vmem:[%s217 + $0x70] sm:$0xf] %vm1567, %v1469
        %1597 = vst.msk [vmem:[%s217 + $0x74] sm:$0xf] %vm1567, %v1470
        %1598 = vst.msk [vmem:[%s217 + $0x78] sm:$0xf] %vm1567, %v1471
        %1599 = vst.msk [vmem:[%s217 + $0x7c] sm:$0xf] %vm1567, %v1472
        %1600 = vst.msk [vmem:[%s217 + $0x80] sm:$0xf] %vm1567, %v1473
        %1601 = vst.msk [vmem:[%s217 + $0x84] sm:$0xf] %vm1567, %v1474
        %1602 = vst.msk [vmem:[%s217 + $0x88] sm:$0xf] %vm1567, %v1475
        %1603 = vst.msk [vmem:[%s217 + $0x8c] sm:$0xf] %vm1567, %v1476
        %1604 = vst.msk [vmem:[%s217 + $0x90] sm:$0xf] %vm1567, %v1477
        %1605 = vst.msk [vmem:[%s217 + $0x94] sm:$0xf] %vm1567, %v1478
        %1606 = vst.msk [vmem:[%s217 + $0x98] sm:$0xf] %vm1567, %v1479
        %1607 = vst.msk [vmem:[%s217 + $0x9c] sm:$0xf] %vm1567, %v1480
        %1608 = vst.msk [vmem:[%s217 + $0xa0] sm:$0xf] %vm1567, %v1481
        %1609 = vst.msk [vmem:[%s217 + $0xa4] sm:$0xf] %vm1567, %v1482
        %1610 = vst.msk [vmem:[%s217 + $0xa8] sm:$0xf] %vm1567, %v1483
        %1611 = vst.msk [vmem:[%s217 + $0xac] sm:$0xf] %vm1567, %v1484
        %1612 = vst.msk [vmem:[%s217 + $0xb0] sm:$0xf] %vm1567, %v1485
        %1613 = vst.msk [vmem:[%s217 + $0xb4] sm:$0xf] %vm1567, %v1486
        %1614 = vst.msk [vmem:[%s217 + $0xb8] sm:$0xf] %vm1567, %v1487
        %1615 = vst.msk [vmem:[%s217 + $0xbc] sm:$0xf] %vm1567, %v1488
        %1616 = vst.msk [vmem:[%s217 + $0xc0] sm:$0xf] %vm1567, %v1489
        %1617 = vst.msk [vmem:[%s217 + $0xc4] sm:$0xf] %vm1567, %v1490
        %1618 = vst.msk [vmem:[%s217 + $0xc8] sm:$0xf] %vm1567, %v1491
        %1619 = vst.msk [vmem:[%s217 + $0xcc] sm:$0xf] %vm1567, %v1492
        %1620 = vst.msk [vmem:[%s217 + $0xd0] sm:$0xf] %vm1567, %v1493
        %1621 = vst.msk [vmem:[%s217 + $0xd4] sm:$0xf] %vm1567, %v1494
        %1622 = vst.msk [vmem:[%s217 + $0xd8] sm:$0xf] %vm1567, %v1495
        %1623 = vst.msk [vmem:[%s217 + $0xdc] sm:$0xf] %vm1567, %v1496
        %1624 = vst.msk [vmem:[%s217 + $0xe0] sm:$0xf] %vm1567, %v1497
        %1625 = vst.msk [vmem:[%s217 + $0xe4] sm:$0xf] %vm1567, %v1498
        %1626 = vst.msk [vmem:[%s217 + $0xe8] sm:$0xf] %vm1567, %v1499
        %1627 = vst.msk [vmem:[%s217 + $0xec] sm:$0xf] %vm1567, %v1500
        %1628 = vst.msk [vmem:[%s217 + $0xf0] sm:$0xf] %vm1567, %v1501
        %1629 = vst.msk [vmem:[%s217 + $0xf4] sm:$0xf] %vm1567, %v1502
        %1630 = vst.msk [vmem:[%s217 + $0xf8] sm:$0xf] %vm1567, %v1503
      $region40: #{brain_cnn_forward.4} parent=31 // pred_fallthru
        _
      %s1631 = smul.u32 63, %s18
      %p1632 = scmp.lt.s32.totalorder %s1631, 440
      %s1633 = scalar_select %p1632, %s1631, 440
      %s1634 = smul.addr %s1633, 4
      %s1635 = scalar_lea.vmem %s3, %s1634
      // Predicated region
      $region41: #{brain_cnn_forward.4} parent=31 // pred_check
        %p1636 = pneg %p119
      $region42: #{brain_cnn_forward.4} parent=31 // pred_check_branch
        %1638 = sbr.rel (%p1636) target = $region44
      $region43: #{brain_cnn_forward.4} parent=31 // pred_region
        %s1639 = smul.u32 63, %s18
      $region44: #{brain_cnn_forward.4} parent=31 // pred_fallthru
        _
    $region32: #{brain_cnn_forward.4} parent=5 // pred_fallthru
      _
    %p1640 = scmp.le.s32.totalorder 2, %s9
    // Predicated region
    $region45: #{brain_cnn_forward.4} parent=5 // pred_check
      %p1641 = pneg %p1640
    $region46: #{brain_cnn_forward.4} parent=5 // pred_check_branch
      %1643 = sbr.rel (%p1641) target = $region48
    $region47: #{brain_cnn_forward.4} parent=5 // pred_region
      %s1644 = ssub.s32 %s9, 2
      // Predicated region
      $region49: #{brain_cnn_forward.4} parent=47 // pred_check
        %p1645 = pneg %p125
      $region50: #{brain_cnn_forward.4} parent=47 // pred_check_branch
        %1647 = sbr.rel (%p1645) target = $region52
      $region51: #{brain_cnn_forward.4} parent=47 // pred_region
        %s1648 = smul.u32 63, %s20
        %p1649 = scmp.lt.s32.totalorder %s1648, 440
        %s1650 = scalar_select %p1649, %s1648, 440
        %s1651 = smul.addr %s1650, 4
        %s1652 = scalar_lea.vmem %s3, %s1651
      $region52: #{brain_cnn_forward.4} parent=47 // pred_fallthru
        _
    $region48: #{brain_cnn_forward.4} parent=5 // pred_fallthru
      _
  $region6: #{brain_cnn_forward.4} parent=0 // loop_footer
    %s13 = sadd.s32 1, %s9
  $region7: #{brain_cnn_forward.4} parent=0 // loop_footer_branch
    %8 = sbr.rel target = $region3
  $region8: #{brain_cnn_forward.4} parent=0 // loop_exit
    _

// kernel: brain_cnn_forward.5
$region0: #{brain_cnn_forward.5}
  #allocation0 [shape = 'u32[]', space=smem, size = 0x4, offset = 0x4, fixed_abs, tag = 'smem constant byte address 0x4 - core index']
  #allocation1 [shape = 'u32[144,128]{1,0:T(1,128)}', space=vmem, size = 0x12000, scoped, tag = 'internal scratch']
  #allocation2 [shape = 'f32[400,32]{1,0:T(8,128)}', space=vmem, size = 0x32000, scoped, tag = 'scratch operand']
  %s0 = inlined_call_operand.vmem [shape: bf16[800,1024], index: 0, kind: input, shape index: {}]
  %s1 = inlined_call_operand.vmem [shape: bf16[1024,32], index: 1, kind: input, shape index: {}]
  %s2 = inlined_call_operand.vmem [shape: f32[1,32], index: 2, kind: input, shape index: {}]
  %s3 = inlined_call_operand.vmem [shape: bf16[800,32], index: 3, kind: output, shape index: {}]
  %s4 = sld [smem:[#allocation0]]
  $region53: #{brain_cnn_forward.5} parent=0
    _
  %s6 = ssub.s32 1, %s4
  %s7 = scalar_select 0, %s6, %s4
  loop: start=0, step=1, limit=4
  $region2: #{brain_cnn_forward.5} parent=0 // loop_pre_header
    _
  $region3: #{brain_cnn_forward.5} parent=0 // loop_header
    %s9 = sphi 0, %s13
    %p10 = scmp.ge.s32.totalorder %s9, 4
    %s16 = sphi 0, %s28
    %s17 = sphi 0, %s24
    %s18 = sphi 0, %s16
    %s19 = sphi 0, %s17
    %s20 = sphi 0, %s18
    %s21 = sphi 0, %s19
    %s33 = sphi 0, %s35
    %s36 = sphi 0, %s33
    %s37 = sphi 0, %s36
    %s53 = sphi 0, %s37
    %s59 = sphi 0, %s61
    %s62 = sphi 0, %s59
    %s63 = sphi 0, %s62
    %s79 = sphi 0, %s63
    %s83 = sphi 0, %s83
    %s85 = sphi 0, %s83
    %s86 = sphi 0, %s85
    %s100 = sphi 0, %s86
    %s106 = sphi 0, %s108
    %s109 = sphi 0, %s106
    %s110 = sphi 0, %s109
    %s126 = sphi 0, %s110
  $region4: #{brain_cnn_forward.5} parent=0 // loop_header_branch
    %12 = sbr.rel (%p10) target = $region8
  $region5: #{brain_cnn_forward.5} parent=0 // loop_body
    %s14 = ssub.s32 %s9, 1
    %s15 = ssub.s32 %s9, 2
    %s22 = sadd.s32 1, %s17
    %p23 = scmp.ge.s32.totalorder %s22, 1
    %s24 = scalar_select %p23, 0, %s22
    %s25 = sadd.s32 1, %s16
    %s26 = scalar_select %p23, %s25, %s16
    %p27 = scmp.ge.s32.totalorder %s26, 2
    %s28 = scalar_select %p27, 0, %s26
    %s29 = ssub.s32 %s16, %s28
    %s30 = ssub.s32 %s17, %s24
    %s31 = sor.u32 %s29, %s30
    %p32 = scmp.eq.s32.totalorder %s31, 0
    %s34 = sadd.s32 %s33, 1
    %s35 = scalar_select %p32, %s33, %s34
    %p38 = pneg %p32
    %p39 = scmp.eq.s32.totalorder %s9, 1
    %p40 = por %p38, %p39
    %p41 = scmp.ne.s32.totalorder %s33, %s36
    %p42 = scmp.eq.s32.totalorder %s9, 0
    %p43 = por %p41, %p42
    %p44 = scmp.ne.s32.totalorder %s33, %s36
    %p45 = scmp.eq.s32.totalorder %s14, 1
    %p46 = por %p44, %p45
    %p47 = scmp.ne.s32.totalorder %s36, %s37
    %p48 = scmp.eq.s32.totalorder %s14, 0
    %p49 = por %p47, %p48
    %p50 = scmp.ne.s32.totalorder %s36, %s37
    %p51 = scmp.eq.s32.totalorder %s15, 1
    %p52 = por %p50, %p51
    %p54 = scmp.ne.s32.totalorder %s37, %s53
    %p55 = scmp.eq.s32.totalorder %s15, 0
    %p56 = por %p54, %p55
    %s57 = ssub.s32 %s17, %s24
    %p58 = scmp.eq.s32.totalorder %s57, 0
    %s60 = sadd.s32 %s59, 1
    %s61 = scalar_select %p58, %s59, %s60
    %p64 = pneg %p58
    %p65 = scmp.eq.s32.totalorder %s9, 1
    %p66 = por %p64, %p65
    %p67 = scmp.ne.s32.totalorder %s59, %s62
    %p68 = scmp.eq.s32.totalorder %s9, 0
    %p69 = por %p67, %p68
    %p70 = scmp.ne.s32.totalorder %s59, %s62
    %p71 = scmp.eq.s32.totalorder %s14, 1
    %p72 = por %p70, %p71
    %p73 = scmp.ne.s32.totalorder %s62, %s63
    %p74 = scmp.eq.s32.totalorder %s14, 0
    %p75 = por %p73, %p74
    %p76 = scmp.ne.s32.totalorder %s62, %s63
    %p77 = scmp.eq.s32.totalorder %s15, 1
    %p78 = por %p76, %p77
    %p80 = scmp.ne.s32.totalorder %s63, %s79
    %p81 = scmp.eq.s32.totalorder %s15, 0
    %p82 = por %p80, %p81
    %s84 = sadd.s32 %s83, 1
    %p87 = scmp.eq.s32.totalorder %s9, 1
    %p88 = scmp.ne.s32.totalorder %s83, %s85
    %p89 = scmp.eq.s32.totalorder %s9, 0
    %p90 = por %p88, %p89
    %p91 = scmp.ne.s32.totalorder %s83, %s85
    %p92 = scmp.eq.s32.totalorder %s14, 1
    %p93 = por %p91, %p92
    %p94 = scmp.ne.s32.totalorder %s85, %s86
    %p95 = scmp.eq.s32.totalorder %s14, 0
    %p96 = por %p94, %p95
    %p97 = scmp.ne.s32.totalorder %s85, %s86
    %p98 = scmp.eq.s32.totalorder %s15, 1
    %p99 = por %p97, %p98
    %p101 = scmp.ne.s32.totalorder %s86, %s100
    %p102 = scmp.eq.s32.totalorder %s15, 0
    %p103 = por %p101, %p102
    %s104 = ssub.s32 %s16, %s28
    %p105 = scmp.eq.s32.totalorder %s104, 0
    %s107 = sadd.s32 %s106, 1
    %s108 = scalar_select %p105, %s106, %s107
    %p111 = pneg %p105
    %p112 = scmp.eq.s32.totalorder %s9, 1
    %p113 = por %p111, %p112
    %p114 = scmp.ne.s32.totalorder %s106, %s109
    %p115 = scmp.eq.s32.totalorder %s9, 0
    %p116 = por %p114, %p115
    %p117 = scmp.ne.s32.totalorder %s106, %s109
    %p118 = scmp.eq.s32.totalorder %s14, 1
    %p119 = por %p117, %p118
    %p120 = scmp.ne.s32.totalorder %s109, %s110
    %p121 = scmp.eq.s32.totalorder %s14, 0
    %p122 = por %p120, %p121
    %p123 = scmp.ne.s32.totalorder %s109, %s110
    %p124 = scmp.eq.s32.totalorder %s15, 1
    %p125 = por %p123, %p124
    %p127 = scmp.ne.s32.totalorder %s110, %s126
    %p128 = scmp.eq.s32.totalorder %s15, 0
    %p129 = por %p127, %p128
    %p130 = scmp.le.s32.totalorder 1, %s9
    %p131 = scmp.lt.s32.totalorder %s9, 3
    %p132 = pnand %p130, %p131
    %p133 = pneg %p132
    // Predicated region
    $region9: #{brain_cnn_forward.5} parent=5 // pred_check
      _
    $region10: #{brain_cnn_forward.5} parent=5 // pred_check_branch
      %135 = sbr.rel (%p132) target = $region12
    $region11: #{brain_cnn_forward.5} parent=5 // pred_region
      %s136 = ssub.s32 %s9, 1
      // Predicated region
      $region13: #{brain_cnn_forward.5} parent=11 // pred_check
        %p137 = pneg %p75
      $region14: #{brain_cnn_forward.5} parent=11 // pred_check_branch
        %139 = sbr.rel (%p137) target = $region16
      $region15: #{brain_cnn_forward.5} parent=11 // pred_region
        %s140 = smul.u32 128, %s19
        %p141 = scmp.lt.s32.totalorder %s140, 127
        %s142 = scalar_select %p141, %s140, 127
        %s143 = smul.addr %s142, 4
        %s144 = scalar_lea.vmem %s1, %s143
        %s145 = smul.u32 128, %s19
      $region16: #{brain_cnn_forward.5} parent=11 // pred_fallthru
        _
      // Predicated region
      $region17: #{brain_cnn_forward.5} parent=11 // pred_check
        %p146 = pneg %p96
      $region18: #{brain_cnn_forward.5} parent=11 // pred_check_branch
        %148 = sbr.rel (%p146) target = $region20
      $region19: #{brain_cnn_forward.5} parent=11 // pred_region
        _
      $region20: #{brain_cnn_forward.5} parent=11 // pred_fallthru
        _
    $region12: #{brain_cnn_forward.5} parent=5 // pred_fallthru
      _
    %p149 = scmp.lt.s32.totalorder %s9, 2
    // Predicated region
    $region21: #{brain_cnn_forward.5} parent=5 // pred_check
      %p150 = pneg %p149
    $region22: #{brain_cnn_forward.5} parent=5 // pred_check_branch
      %152 = sbr.rel (%p150) target = $region24
    $region23: #{brain_cnn_forward.5} parent=5 // pred_region
      // Predicated region
      $region25: #{brain_cnn_forward.5} parent=23 // pred_check
        %p153 = pneg %p43
      $region26: #{brain_cnn_forward.5} parent=23 // pred_check_branch
        %155 = sbr.rel (%p153) target = $region28
      $region27: #{brain_cnn_forward.5} parent=23 // pred_region
        %s156 = smul.u32 50, %s16
        %s157 = smul.u32 8, %s17
        %p158 = scmp.lt.s32.totalorder %s156, 99
        %s159 = scalar_select %p158, %s156, 99
        %p160 = scmp.lt.s32.totalorder %s157, 7
        %s161 = scalar_select %p160, %s157, 7
        %s162 = smul.addr %s159, 8
        %s163 = sadd.s32 %s161, %s162
        %s164 = smul.addr %s163, 4
        %s165 = scalar_lea.vmem %s0, %s164
        %s166 = smul.u32 50, %s16
        %s167 = smul.u32 8, %s17
      $region28: #{brain_cnn_forward.5} parent=23 // pred_fallthru
        _
    $region24: #{brain_cnn_forward.5} parent=5 // pred_fallthru
      _
    %p168 = scmp.le.s32.totalorder 1, %s9
    %p169 = scmp.lt.s32.totalorder %s9, 3
    %p170 = pnand %p168, %p169
    %p171 = pneg %p170
    // Predicated region
    $region29: #{brain_cnn_forward.5} parent=5 // pred_check
      _
    $region30: #{brain_cnn_forward.5} parent=5 // pred_check_branch
      %173 = sbr.rel (%p170) target = $region32
    $region31: #{brain_cnn_forward.5} parent=5 // pred_region
      %s174 = ssub.s32 %s9, 1
      %s175 = smul.u32 50, %s18
      %s176 = smul.u32 8, %s19
      %p177 = scmp.lt.s32.totalorder %s175, 99
      %s178 = scalar_select %p177, %s175, 99
      %p179 = scmp.lt.s32.totalorder %s176, 7
      %s180 = scalar_select %p179, %s176, 7
      %s181 = smul.addr %s178, 8
      %s182 = sadd.s32 %s180, %s181
      %s183 = smul.addr %s182, 4
      %s184 = scalar_lea.vmem %s0, %s183
      %p185 = pneg %p49
      %p186 = pneg %p46
      %s187 = smul.u32 128, %s19
      %p188 = scmp.lt.s32.totalorder %s187, 127
      %s189 = scalar_select %p188, %s187, 127
      %s190 = smul.addr %s189, 4
      %s191 = scalar_lea.vmem %s1, %s190
      %p192 = pneg %p75
      %p193 = pneg %p72
      %p194 = pneg %p96
      %p195 = pneg %p93
      %p196 = pneg %p122
      %p197 = pneg %p119
      %s198 = smul.u32 50, %s18
      %p199 = scmp.lt.s32.totalorder %s198, 99
      %s200 = scalar_select %p199, %s198, 99
      %s201 = smul.addr %s200, 4
      %s202 = scalar_lea.vmem %s3, %s201
      %s203 = smul.u32 50, %s18
      %s204 = smul.u32 8, %s19
      %p205 = scmp.lt.s32.totalorder %s203, 99
      %s206 = scalar_select %p205, %s203, 99
      %p207 = scmp.lt.s32.totalorder %s204, 7
      %s208 = scalar_select %p207, %s204, 7
      %s209 = smul.addr %s206, 8
      %s210 = sadd.s32 %s208, %s209
      %s211 = smul.addr %s210, 4
      %s212 = scalar_lea.vmem %s0, %s211
      %s213 = smul.u32 50, %s18
      %s214 = smul.u32 8, %s19
      %s215 = smul.u32 128, %s19
      %p216 = scmp.lt.s32.totalorder %s215, 127
      %s217 = scalar_select %p216, %s215, 127
      %s218 = smul.addr %s217, 4
      %s219 = scalar_lea.vmem %s1, %s218
      %s220 = smul.u32 128, %s19
      %s221 = smul.u32 50, %s18
      %p222 = scmp.lt.s32.totalorder %s221, 99
      %s223 = scalar_select %p222, %s221, 99
      %s224 = smul.addr %s223, 4
      %s225 = scalar_lea.vmem %s3, %s224
      %s226 = smul.u32 50, %s18
      %p228 = scmp.eq.s32.totalorder %s19, 0
      // Predicated region
      $region33: #{brain_cnn_forward.5} parent=31 // pred_check
        %p229 = pneg %p228
      $region34: #{brain_cnn_forward.5} parent=31 // pred_check_branch
        %231 = sbr.rel (%p229) target = $region36
      $region35: #{brain_cnn_forward.5} parent=31 // pred_region
        %vm232 = vcmask 261120
        %233 = vst.msk [vmem:[#allocation2] sm:$0xff] %vm232, 0.0
        %234 = vst.msk [vmem:[#allocation2 + $0x8] sm:$0xff] %vm232, 0.0
        %235 = vst.msk [vmem:[#allocation2 + $0x10] sm:$0xff] %vm232, 0.0
        %236 = vst.msk [vmem:[#allocation2 + $0x18] sm:$0xff] %vm232, 0.0
        %237 = vst.msk [vmem:[#allocation2 + $0x20] sm:$0xff] %vm232, 0.0
        %238 = vst.msk [vmem:[#allocation2 + $0x28] sm:$0xff] %vm232, 0.0
        %239 = vst.msk [vmem:[#allocation2 + $0x30] sm:$0xff] %vm232, 0.0
        %240 = vst.msk [vmem:[#allocation2 + $0x38] sm:$0xff] %vm232, 0.0
        %241 = vst.msk [vmem:[#allocation2 + $0x40] sm:$0xff] %vm232, 0.0
        %242 = vst.msk [vmem:[#allocation2 + $0x48] sm:$0xff] %vm232, 0.0
        %243 = vst.msk [vmem:[#allocation2 + $0x50] sm:$0xff] %vm232, 0.0
        %244 = vst.msk [vmem:[#allocation2 + $0x58] sm:$0xff] %vm232, 0.0
        %245 = vst.msk [vmem:[#allocation2 + $0x60] sm:$0xff] %vm232, 0.0
        %246 = vst.msk [vmem:[#allocation2 + $0x68] sm:$0xff] %vm232, 0.0
        %247 = vst.msk [vmem:[#allocation2 + $0x70] sm:$0xff] %vm232, 0.0
        %248 = vst.msk [vmem:[#allocation2 + $0x78] sm:$0xff] %vm232, 0.0
        %249 = vst.msk [vmem:[#allocation2 + $0x80] sm:$0xff] %vm232, 0.0
        %250 = vst.msk [vmem:[#allocation2 + $0x88] sm:$0xff] %vm232, 0.0
        %251 = vst.msk [vmem:[#allocation2 + $0x90] sm:$0xff] %vm232, 0.0
        %252 = vst.msk [vmem:[#allocation2 + $0x98] sm:$0xff] %vm232, 0.0
        %253 = vst.msk [vmem:[#allocation2 + $0xa0] sm:$0xff] %vm232, 0.0
        %254 = vst.msk [vmem:[#allocation2 + $0xa8] sm:$0xff] %vm232, 0.0
        %255 = vst.msk [vmem:[#allocation2 + $0xb0] sm:$0xff] %vm232, 0.0
        %256 = vst.msk [vmem:[#allocation2 + $0xb8] sm:$0xff] %vm232, 0.0
        %257 = vst.msk [vmem:[#allocation2 + $0xc0] sm:$0xff] %vm232, 0.0
        %258 = vst.msk [vmem:[#allocation2 + $0xc8] sm:$0xff] %vm232, 0.0
        %259 = vst.msk [vmem:[#allocation2 + $0xd0] sm:$0xff] %vm232, 0.0
        %260 = vst.msk [vmem:[#allocation2 + $0xd8] sm:$0xff] %vm232, 0.0
        %261 = vst.msk [vmem:[#allocation2 + $0xe0] sm:$0xff] %vm232, 0.0
        %262 = vst.msk [vmem:[#allocation2 + $0xe8] sm:$0xff] %vm232, 0.0
        %263 = vst.msk [vmem:[#allocation2 + $0xf0] sm:$0xff] %vm232, 0.0
        %264 = vst.msk [vmem:[#allocation2 + $0xf8] sm:$0xff] %vm232, 0.0
        %265 = vst.msk [vmem:[#allocation2 + $0x100] sm:$0xff] %vm232, 0.0
        %266 = vst.msk [vmem:[#allocation2 + $0x108] sm:$0xff] %vm232, 0.0
        %267 = vst.msk [vmem:[#allocation2 + $0x110] sm:$0xff] %vm232, 0.0
        %268 = vst.msk [vmem:[#allocation2 + $0x118] sm:$0xff] %vm232, 0.0
        %269 = vst.msk [vmem:[#allocation2 + $0x120] sm:$0xff] %vm232, 0.0
        %270 = vst.msk [vmem:[#allocation2 + $0x128] sm:$0xff] %vm232, 0.0
        %271 = vst.msk [vmem:[#allocation2 + $0x130] sm:$0xff] %vm232, 0.0
        %272 = vst.msk [vmem:[#allocation2 + $0x138] sm:$0xff] %vm232, 0.0
        %273 = vst.msk [vmem:[#allocation2 + $0x140] sm:$0xff] %vm232, 0.0
        %274 = vst.msk [vmem:[#allocation2 + $0x148] sm:$0xff] %vm232, 0.0
        %275 = vst.msk [vmem:[#allocation2 + $0x150] sm:$0xff] %vm232, 0.0
        %276 = vst.msk [vmem:[#allocation2 + $0x158] sm:$0xff] %vm232, 0.0
        %277 = vst.msk [vmem:[#allocation2 + $0x160] sm:$0xff] %vm232, 0.0
        %278 = vst.msk [vmem:[#allocation2 + $0x168] sm:$0xff] %vm232, 0.0
        %279 = vst.msk [vmem:[#allocation2 + $0x170] sm:$0xff] %vm232, 0.0
        %280 = vst.msk [vmem:[#allocation2 + $0x178] sm:$0xff] %vm232, 0.0
        %281 = vst.msk [vmem:[#allocation2 + $0x180] sm:$0xff] %vm232, 0.0
        %282 = vst.msk [vmem:[#allocation2 + $0x188] sm:$0xff] %vm232, 0.0
      $region36: #{brain_cnn_forward.5} parent=31 // pred_fallthru
        _
      %v283 = vld [vmem:[#allocation2] sm:$0xff]
      %v284 = vld [vmem:[#allocation2 + $0x8] sm:$0xff]
      %v285 = vld [vmem:[#allocation2 + $0x10] sm:$0xff]
      %v286 = vld [vmem:[#allocation2 + $0x18] sm:$0xff]
      %v287 = vld [vmem:[#allocation2 + $0x20] sm:$0xff]
      %v288 = vld [vmem:[#allocation2 + $0x28] sm:$0xff]
      %v289 = vld [vmem:[#allocation2 + $0x30] sm:$0xff]
      %v290 = vld [vmem:[#allocation2 + $0x38] sm:$0xff]
      %v291 = vld [vmem:[#allocation2 + $0x40] sm:$0xff]
      %v292 = vld [vmem:[#allocation2 + $0x48] sm:$0xff]
      %v293 = vld [vmem:[#allocation2 + $0x50] sm:$0xff]
      %v294 = vld [vmem:[#allocation2 + $0x58] sm:$0xff]
      %v295 = vld [vmem:[#allocation2 + $0x60] sm:$0xff]
      %v296 = vld [vmem:[#allocation2 + $0x68] sm:$0xff]
      %v297 = vld [vmem:[#allocation2 + $0x70] sm:$0xff]
      %v298 = vld [vmem:[#allocation2 + $0x78] sm:$0xff]
      %v299 = vld [vmem:[#allocation2 + $0x80] sm:$0xff]
      %v300 = vld [vmem:[#allocation2 + $0x88] sm:$0xff]
      %v301 = vld [vmem:[#allocation2 + $0x90] sm:$0xff]
      %v302 = vld [vmem:[#allocation2 + $0x98] sm:$0xff]
      %v303 = vld [vmem:[#allocation2 + $0xa0] sm:$0xff]
      %v304 = vld [vmem:[#allocation2 + $0xa8] sm:$0xff]
      %v305 = vld [vmem:[#allocation2 + $0xb0] sm:$0xff]
      %v306 = vld [vmem:[#allocation2 + $0xb8] sm:$0xff]
      %v307 = vld [vmem:[#allocation2 + $0xc0] sm:$0xff]
      %v308 = vld [vmem:[#allocation2 + $0xc8] sm:$0xff]
      %v309 = vld [vmem:[#allocation2 + $0xd0] sm:$0xff]
      %v310 = vld [vmem:[#allocation2 + $0xd8] sm:$0xff]
      %v311 = vld [vmem:[#allocation2 + $0xe0] sm:$0xff]
      %v312 = vld [vmem:[#allocation2 + $0xe8] sm:$0xff]
      %v313 = vld [vmem:[#allocation2 + $0xf0] sm:$0xff]
      %v314 = vld [vmem:[#allocation2 + $0xf8] sm:$0xff]
      %v315 = vld [vmem:[#allocation2 + $0x100] sm:$0xff]
      %v316 = vld [vmem:[#allocation2 + $0x108] sm:$0xff]
      %v317 = vld [vmem:[#allocation2 + $0x110] sm:$0xff]
      %v318 = vld [vmem:[#allocation2 + $0x118] sm:$0xff]
      %v319 = vld [vmem:[#allocation2 + $0x120] sm:$0xff]
      %v320 = vld [vmem:[#allocation2 + $0x128] sm:$0xff]
      %v321 = vld [vmem:[#allocation2 + $0x130] sm:$0xff]
      %v322 = vld [vmem:[#allocation2 + $0x138] sm:$0xff]
      %v323 = vld [vmem:[#allocation2 + $0x140] sm:$0xff]
      %v324 = vld [vmem:[#allocation2 + $0x148] sm:$0xff]
      %v325 = vld [vmem:[#allocation2 + $0x150] sm:$0xff]
      %v326 = vld [vmem:[#allocation2 + $0x158] sm:$0xff]
      %v327 = vld [vmem:[#allocation2 + $0x160] sm:$0xff]
      %v328 = vld [vmem:[#allocation2 + $0x168] sm:$0xff]
      %v329 = vld [vmem:[#allocation2 + $0x170] sm:$0xff]
      %v330 = vld [vmem:[#allocation2 + $0x178] sm:$0xff]
      %v331 = vld [vmem:[#allocation2 + $0x180] sm:$0xff]
      %v332 = vld [vmem:[#allocation2 + $0x188] sm:$0xff]
      %v333 = vld [vmem:[%s212] sm:$0xff]
      %v334 = vld [vmem:[%s212 + $0x8] sm:$0xff]
      %v335 = vld [vmem:[%s212 + $0x10] sm:$0xff]
      %v336 = vld [vmem:[%s212 + $0x18] sm:$0xff]
      %v337 = vld [vmem:[%s212 + $0x20] sm:$0xff]
      %v338 = vld [vmem:[%s212 + $0x28] sm:$0xff]
      %v339 = vld [vmem:[%s212 + $0x30] sm:$0xff]
      %v340 = vld [vmem:[%s212 + $0x38] sm:$0xff]
      %v341 = vld [vmem:[%s212 + $0x40] sm:$0xff]
      %v342 = vld [vmem:[%s212 + $0x48] sm:$0xff]
      %v343 = vld [vmem:[%s212 + $0x50] sm:$0xff]
      %v344 = vld [vmem:[%s212 + $0x58] sm:$0xff]
      %v345 = vld [vmem:[%s212 + $0x60] sm:$0xff]
      %v346 = vld [vmem:[%s212 + $0x68] sm:$0xff]
      %v347 = vld [vmem:[%s212 + $0x70] sm:$0xff]
      %v348 = vld [vmem:[%s212 + $0x78] sm:$0xff]
      %v349 = vld [vmem:[%s212 + $0x80] sm:$0xff]
      %v350 = vld [vmem:[%s212 + $0x88] sm:$0xff]
      %v351 = vld [vmem:[%s212 + $0x90] sm:$0xff]
      %v352 = vld [vmem:[%s212 + $0x98] sm:$0xff]
      %v353 = vld [vmem:[%s212 + $0xa0] sm:$0xff]
      %v354 = vld [vmem:[%s212 + $0xa8] sm:$0xff]
      %v355 = vld [vmem:[%s212 + $0xb0] sm:$0xff]
      %v356 = vld [vmem:[%s212 + $0xb8] sm:$0xff]
      %v357 = vld [vmem:[%s212 + $0xc0] sm:$0xff]
      %v358 = vld [vmem:[%s212 + $0xc8] sm:$0xff]
      %v359 = vld [vmem:[%s212 + $0xd0] sm:$0xff]
      %v360 = vld [vmem:[%s212 + $0xd8] sm:$0xff]
      %v361 = vld [vmem:[%s212 + $0xe0] sm:$0xff]
      %v362 = vld [vmem:[%s212 + $0xe8] sm:$0xff]
      %v363 = vld [vmem:[%s212 + $0xf0] sm:$0xff]
      %v364 = vld [vmem:[%s212 + $0xf8] sm:$0xff]
      %v365 = vld [vmem:[%s212 + $0x100] sm:$0xff]
      %v366 = vld [vmem:[%s212 + $0x108] sm:$0xff]
      %v367 = vld [vmem:[%s212 + $0x110] sm:$0xff]
      %v368 = vld [vmem:[%s212 + $0x118] sm:$0xff]
      %v369 = vld [vmem:[%s212 + $0x120] sm:$0xff]
      %v370 = vld [vmem:[%s212 + $0x128] sm:$0xff]
      %v371 = vld [vmem:[%s212 + $0x130] sm:$0xff]
      %v372 = vld [vmem:[%s212 + $0x138] sm:$0xff]
      %v373 = vld [vmem:[%s212 + $0x140] sm:$0xff]
      %v374 = vld [vmem:[%s212 + $0x148] sm:$0xff]
      %v375 = vld [vmem:[%s212 + $0x150] sm:$0xff]
      %v376 = vld [vmem:[%s212 + $0x158] sm:$0xff]
      %v377 = vld [vmem:[%s212 + $0x160] sm:$0xff]
      %v378 = vld [vmem:[%s212 + $0x168] sm:$0xff]
      %v379 = vld [vmem:[%s212 + $0x170] sm:$0xff]
      %v380 = vld [vmem:[%s212 + $0x178] sm:$0xff]
      %v381 = vld [vmem:[%s212 + $0x180] sm:$0xff]
      %v382 = vld [vmem:[%s212 + $0x188] sm:$0xff]
      %v383 = vld [vmem:[%s212 + $0x190] sm:$0xff]
      %v384 = vld [vmem:[%s212 + $0x198] sm:$0xff]
      %v385 = vld [vmem:[%s212 + $0x1a0] sm:$0xff]
      %v386 = vld [vmem:[%s212 + $0x1a8] sm:$0xff]
      %v387 = vld [vmem:[%s212 + $0x1b0] sm:$0xff]
      %v388 = vld [vmem:[%s212 + $0x1b8] sm:$0xff]
      %v389 = vld [vmem:[%s212 + $0x1c0] sm:$0xff]
      %v390 = vld [vmem:[%s212 + $0x1c8] sm:$0xff]
      %v391 = vld [vmem:[%s212 + $0x1d0] sm:$0xff]
      %v392 = vld [vmem:[%s212 + $0x1d8] sm:$0xff]
      %v393 = vld [vmem:[%s212 + $0x1e0] sm:$0xff]
      %v394 = vld [vmem:[%s212 + $0x1e8] sm:$0xff]
      %v395 = vld [vmem:[%s212 + $0x1f0] sm:$0xff]
      %v396 = vld [vmem:[%s212 + $0x1f8] sm:$0xff]
      %v397 = vld [vmem:[%s212 + $0x200] sm:$0xff]
      %v398 = vld [vmem:[%s212 + $0x208] sm:$0xff]
      %v399 = vld [vmem:[%s212 + $0x210] sm:$0xff]
      %v400 = vld [vmem:[%s212 + $0x218] sm:$0xff]
      %v401 = vld [vmem:[%s212 + $0x220] sm:$0xff]
      %v402 = vld [vmem:[%s212 + $0x228] sm:$0xff]
      %v403 = vld [vmem:[%s212 + $0x230] sm:$0xff]
      %v404 = vld [vmem:[%s212 + $0x238] sm:$0xff]
      %v405 = vld [vmem:[%s212 + $0x240] sm:$0xff]
      %v406 = vld [vmem:[%s212 + $0x248] sm:$0xff]
      %v407 = vld [vmem:[%s212 + $0x250] sm:$0xff]
      %v408 = vld [vmem:[%s212 + $0x258] sm:$0xff]
      %v409 = vld [vmem:[%s212 + $0x260] sm:$0xff]
      %v410 = vld [vmem:[%s212 + $0x268] sm:$0xff]
      %v411 = vld [vmem:[%s212 + $0x270] sm:$0xff]
      %v412 = vld [vmem:[%s212 + $0x278] sm:$0xff]
      %v413 = vld [vmem:[%s212 + $0x280] sm:$0xff]
      %v414 = vld [vmem:[%s212 + $0x288] sm:$0xff]
      %v415 = vld [vmem:[%s212 + $0x290] sm:$0xff]
      %v416 = vld [vmem:[%s212 + $0x298] sm:$0xff]
      %v417 = vld [vmem:[%s212 + $0x2a0] sm:$0xff]
      %v418 = vld [vmem:[%s212 + $0x2a8] sm:$0xff]
      %v419 = vld [vmem:[%s212 + $0x2b0] sm:$0xff]
      %v420 = vld [vmem:[%s212 + $0x2b8] sm:$0xff]
      %v421 = vld [vmem:[%s212 + $0x2c0] sm:$0xff]
      %v422 = vld [vmem:[%s212 + $0x2c8] sm:$0xff]
      %v423 = vld [vmem:[%s212 + $0x2d0] sm:$0xff]
      %v424 = vld [vmem:[%s212 + $0x2d8] sm:$0xff]
      %v425 = vld [vmem:[%s212 + $0x2e0] sm:$0xff]
      %v426 = vld [vmem:[%s212 + $0x2e8] sm:$0xff]
      %v427 = vld [vmem:[%s212 + $0x2f0] sm:$0xff]
      %v428 = vld [vmem:[%s212 + $0x2f8] sm:$0xff]
      %v429 = vld [vmem:[%s212 + $0x300] sm:$0xff]
      %v430 = vld [vmem:[%s212 + $0x308] sm:$0xff]
      %v431 = vld [vmem:[%s212 + $0x310] sm:$0xff]
      %v432 = vld [vmem:[%s212 + $0x318] sm:$0xff]
      %v433 = vld [vmem:[%s212 + $0x320] sm:$0xff]
      %v434 = vld [vmem:[%s212 + $0x328] sm:$0xff]
      %v435 = vld [vmem:[%s212 + $0x330] sm:$0xff]
      %v436 = vld [vmem:[%s212 + $0x338] sm:$0xff]
      %v437 = vld [vmem:[%s212 + $0x340] sm:$0xff]
      %v438 = vld [vmem:[%s212 + $0x348] sm:$0xff]
      %v439 = vld [vmem:[%s212 + $0x350] sm:$0xff]
      %v440 = vld [vmem:[%s212 + $0x358] sm:$0xff]
      %v441 = vld [vmem:[%s212 + $0x360] sm:$0xff]
      %v442 = vld [vmem:[%s212 + $0x368] sm:$0xff]
      %v443 = vld [vmem:[%s212 + $0x370] sm:$0xff]
      %v444 = vld [vmem:[%s212 + $0x378] sm:$0xff]
      %v445 = vld [vmem:[%s212 + $0x380] sm:$0xff]
      %v446 = vld [vmem:[%s212 + $0x388] sm:$0xff]
      %v447 = vld [vmem:[%s212 + $0x390] sm:$0xff]
      %v448 = vld [vmem:[%s212 + $0x398] sm:$0xff]
      %v449 = vld [vmem:[%s212 + $0x3a0] sm:$0xff]
      %v450 = vld [vmem:[%s212 + $0x3a8] sm:$0xff]
      %v451 = vld [vmem:[%s212 + $0x3b0] sm:$0xff]
      %v452 = vld [vmem:[%s212 + $0x3b8] sm:$0xff]
      %v453 = vld [vmem:[%s212 + $0x3c0] sm:$0xff]
      %v454 = vld [vmem:[%s212 + $0x3c8] sm:$0xff]
      %v455 = vld [vmem:[%s212 + $0x3d0] sm:$0xff]
      %v456 = vld [vmem:[%s212 + $0x3d8] sm:$0xff]
      %v457 = vld [vmem:[%s212 + $0x3e0] sm:$0xff]
      %v458 = vld [vmem:[%s212 + $0x3e8] sm:$0xff]
      %v459 = vld [vmem:[%s212 + $0x3f0] sm:$0xff]
      %v460 = vld [vmem:[%s212 + $0x3f8] sm:$0xff]
      %v461 = vld [vmem:[%s212 + $0x400] sm:$0xff]
      %v462 = vld [vmem:[%s212 + $0x408] sm:$0xff]
      %v463 = vld [vmem:[%s212 + $0x410] sm:$0xff]
      %v464 = vld [vmem:[%s212 + $0x418] sm:$0xff]
      %v465 = vld [vmem:[%s212 + $0x420] sm:$0xff]
      %v466 = vld [vmem:[%s212 + $0x428] sm:$0xff]
      %v467 = vld [vmem:[%s212 + $0x430] sm:$0xff]
      %v468 = vld [vmem:[%s212 + $0x438] sm:$0xff]
      %v469 = vld [vmem:[%s212 + $0x440] sm:$0xff]
      %v470 = vld [vmem:[%s212 + $0x448] sm:$0xff]
      %v471 = vld [vmem:[%s212 + $0x450] sm:$0xff]
      %v472 = vld [vmem:[%s212 + $0x458] sm:$0xff]
      %v473 = vld [vmem:[%s212 + $0x460] sm:$0xff]
      %v474 = vld [vmem:[%s212 + $0x468] sm:$0xff]
      %v475 = vld [vmem:[%s212 + $0x470] sm:$0xff]
      %v476 = vld [vmem:[%s212 + $0x478] sm:$0xff]
      %v477 = vld [vmem:[%s212 + $0x480] sm:$0xff]
      %v478 = vld [vmem:[%s212 + $0x488] sm:$0xff]
      %v479 = vld [vmem:[%s212 + $0x490] sm:$0xff]
      %v480 = vld [vmem:[%s212 + $0x498] sm:$0xff]
      %v481 = vld [vmem:[%s212 + $0x4a0] sm:$0xff]
      %v482 = vld [vmem:[%s212 + $0x4a8] sm:$0xff]
      %v483 = vld [vmem:[%s212 + $0x4b0] sm:$0xff]
      %v484 = vld [vmem:[%s212 + $0x4b8] sm:$0xff]
      %v485 = vld [vmem:[%s212 + $0x4c0] sm:$0xff]
      %v486 = vld [vmem:[%s212 + $0x4c8] sm:$0xff]
      %v487 = vld [vmem:[%s212 + $0x4d0] sm:$0xff]
      %v488 = vld [vmem:[%s212 + $0x4d8] sm:$0xff]
      %v489 = vld [vmem:[%s212 + $0x4e0] sm:$0xff]
      %v490 = vld [vmem:[%s212 + $0x4e8] sm:$0xff]
      %v491 = vld [vmem:[%s212 + $0x4f0] sm:$0xff]
      %v492 = vld [vmem:[%s212 + $0x4f8] sm:$0xff]
      %v493 = vld [vmem:[%s212 + $0x500] sm:$0xff]
      %v494 = vld [vmem:[%s212 + $0x508] sm:$0xff]
      %v495 = vld [vmem:[%s212 + $0x510] sm:$0xff]
      %v496 = vld [vmem:[%s212 + $0x518] sm:$0xff]
      %v497 = vld [vmem:[%s212 + $0x520] sm:$0xff]
      %v498 = vld [vmem:[%s212 + $0x528] sm:$0xff]
      %v499 = vld [vmem:[%s212 + $0x530] sm:$0xff]
      %v500 = vld [vmem:[%s212 + $0x538] sm:$0xff]
      %v501 = vld [vmem:[%s212 + $0x540] sm:$0xff]
      %v502 = vld [vmem:[%s212 + $0x548] sm:$0xff]
      %v503 = vld [vmem:[%s212 + $0x550] sm:$0xff]
      %v504 = vld [vmem:[%s212 + $0x558] sm:$0xff]
      %v505 = vld [vmem:[%s212 + $0x560] sm:$0xff]
      %v506 = vld [vmem:[%s212 + $0x568] sm:$0xff]
      %v507 = vld [vmem:[%s212 + $0x570] sm:$0xff]
      %v508 = vld [vmem:[%s212 + $0x578] sm:$0xff]
      %v509 = vld [vmem:[%s212 + $0x580] sm:$0xff]
      %v510 = vld [vmem:[%s212 + $0x588] sm:$0xff]
      %v511 = vld [vmem:[%s212 + $0x590] sm:$0xff]
      %v512 = vld [vmem:[%s212 + $0x598] sm:$0xff]
      %v513 = vld [vmem:[%s212 + $0x5a0] sm:$0xff]
      %v514 = vld [vmem:[%s212 + $0x5a8] sm:$0xff]
      %v515 = vld [vmem:[%s212 + $0x5b0] sm:$0xff]
      %v516 = vld [vmem:[%s212 + $0x5b8] sm:$0xff]
      %v517 = vld [vmem:[%s212 + $0x5c0] sm:$0xff]
      %v518 = vld [vmem:[%s212 + $0x5c8] sm:$0xff]
      %v519 = vld [vmem:[%s212 + $0x5d0] sm:$0xff]
      %v520 = vld [vmem:[%s212 + $0x5d8] sm:$0xff]
      %v521 = vld [vmem:[%s212 + $0x5e0] sm:$0xff]
      %v522 = vld [vmem:[%s212 + $0x5e8] sm:$0xff]
      %v523 = vld [vmem:[%s212 + $0x5f0] sm:$0xff]
      %v524 = vld [vmem:[%s212 + $0x5f8] sm:$0xff]
      %v525 = vld [vmem:[%s212 + $0x600] sm:$0xff]
      %v526 = vld [vmem:[%s212 + $0x608] sm:$0xff]
      %v527 = vld [vmem:[%s212 + $0x610] sm:$0xff]
      %v528 = vld [vmem:[%s212 + $0x618] sm:$0xff]
      %v529 = vld [vmem:[%s212 + $0x620] sm:$0xff]
      %v530 = vld [vmem:[%s212 + $0x628] sm:$0xff]
      %v531 = vld [vmem:[%s212 + $0x630] sm:$0xff]
      %v532 = vld [vmem:[%s212 + $0x638] sm:$0xff]
      %v533 = vld [vmem:[%s219] sm:$0xf]
      %v534 = vld [vmem:[%s219 + $0x4] sm:$0xf]
      %v535 = vld [vmem:[%s219 + $0x8] sm:$0xf]
      %v536 = vld [vmem:[%s219 + $0xc] sm:$0xf]
      %v537 = vld [vmem:[%s219 + $0x10] sm:$0xf]
      %v538 = vld [vmem:[%s219 + $0x14] sm:$0xf]
      %v539 = vld [vmem:[%s219 + $0x18] sm:$0xf]
      %v540 = vld [vmem:[%s219 + $0x1c] sm:$0xf]
      %v541 = vld [vmem:[%s219 + $0x20] sm:$0xf]
      %v542 = vld [vmem:[%s219 + $0x24] sm:$0xf]
      %v543 = vld [vmem:[%s219 + $0x28] sm:$0xf]
      %v544 = vld [vmem:[%s219 + $0x2c] sm:$0xf]
      %v545 = vld [vmem:[%s219 + $0x30] sm:$0xf]
      %v546 = vld [vmem:[%s219 + $0x34] sm:$0xf]
      %v547 = vld [vmem:[%s219 + $0x38] sm:$0xf]
      %v548 = vld [vmem:[%s219 + $0x3c] sm:$0xf]
      %v549 = vld [vmem:[%s219 + $0x40] sm:$0xf]
      %v550 = vld [vmem:[%s219 + $0x44] sm:$0xf]
      %v551 = vld [vmem:[%s219 + $0x48] sm:$0xf]
      %v552 = vld [vmem:[%s219 + $0x4c] sm:$0xf]
      %v553 = vld [vmem:[%s219 + $0x50] sm:$0xf]
      %v554 = vld [vmem:[%s219 + $0x54] sm:$0xf]
      %v555 = vld [vmem:[%s219 + $0x58] sm:$0xf]
      %v556 = vld [vmem:[%s219 + $0x5c] sm:$0xf]
      %v557 = vld [vmem:[%s219 + $0x60] sm:$0xf]
      %v558 = vld [vmem:[%s219 + $0x64] sm:$0xf]
      %v559 = vld [vmem:[%s219 + $0x68] sm:$0xf]
      %v560 = vld [vmem:[%s219 + $0x6c] sm:$0xf]
      %v561 = vld [vmem:[%s219 + $0x70] sm:$0xf]
      %v562 = vld [vmem:[%s219 + $0x74] sm:$0xf]
      %v563 = vld [vmem:[%s219 + $0x78] sm:$0xf]
      %v564 = vld [vmem:[%s219 + $0x7c] sm:$0xf]
      %v565 = vld [vmem:[%s219 + $0x80] sm:$0xf]
      %v566 = vld [vmem:[%s219 + $0x84] sm:$0xf]
      %v567 = vld [vmem:[%s219 + $0x88] sm:$0xf]
      %v568 = vld [vmem:[%s219 + $0x8c] sm:$0xf]
      %v569 = vld [vmem:[%s219 + $0x90] sm:$0xf]
      %v570 = vld [vmem:[%s219 + $0x94] sm:$0xf]
      %v571 = vld [vmem:[%s219 + $0x98] sm:$0xf]
      %v572 = vld [vmem:[%s219 + $0x9c] sm:$0xf]
      %v573 = vld [vmem:[%s219 + $0xa0] sm:$0xf]
      %v574 = vld [vmem:[%s219 + $0xa4] sm:$0xf]
      %v575 = vld [vmem:[%s219 + $0xa8] sm:$0xf]
      %v576 = vld [vmem:[%s219 + $0xac] sm:$0xf]
      %v577 = vld [vmem:[%s219 + $0xb0] sm:$0xf]
      %v578 = vld [vmem:[%s219 + $0xb4] sm:$0xf]
      %v579 = vld [vmem:[%s219 + $0xb8] sm:$0xf]
      %v580 = vld [vmem:[%s219 + $0xbc] sm:$0xf]
      %v581 = vld [vmem:[%s219 + $0xc0] sm:$0xf]
      %v582 = vld [vmem:[%s219 + $0xc4] sm:$0xf]
      %v583 = vld [vmem:[%s219 + $0xc8] sm:$0xf]
      %v584 = vld [vmem:[%s219 + $0xcc] sm:$0xf]
      %v585 = vld [vmem:[%s219 + $0xd0] sm:$0xf]
      %v586 = vld [vmem:[%s219 + $0xd4] sm:$0xf]
      %v587 = vld [vmem:[%s219 + $0xd8] sm:$0xf]
      %v588 = vld [vmem:[%s219 + $0xdc] sm:$0xf]
      %v589 = vld [vmem:[%s219 + $0xe0] sm:$0xf]
      %v590 = vld [vmem:[%s219 + $0xe4] sm:$0xf]
      %v591 = vld [vmem:[%s219 + $0xe8] sm:$0xf]
      %v592 = vld [vmem:[%s219 + $0xec] sm:$0xf]
      %v593 = vld [vmem:[%s219 + $0xf0] sm:$0xf]
      %v594 = vld [vmem:[%s219 + $0xf4] sm:$0xf]
      %v595 = vld [vmem:[%s219 + $0xf8] sm:$0xf]
      %v596 = vld [vmem:[%s219 + $0xfc] sm:$0xf]
      %v597 = vld [vmem:[%s219 + $0x100] sm:$0xf]
      %v598 = vld [vmem:[%s219 + $0x104] sm:$0xf]
      %v599 = vld [vmem:[%s219 + $0x108] sm:$0xf]
      %v600 = vld [vmem:[%s219 + $0x10c] sm:$0xf]
      %v601 = vld [vmem:[%s219 + $0x110] sm:$0xf]
      %v602 = vld [vmem:[%s219 + $0x114] sm:$0xf]
      %v603 = vld [vmem:[%s219 + $0x118] sm:$0xf]
      %v604 = vld [vmem:[%s219 + $0x11c] sm:$0xf]
      %v605 = vld [vmem:[%s219 + $0x120] sm:$0xf]
      %v606 = vld [vmem:[%s219 + $0x124] sm:$0xf]
      %v607 = vld [vmem:[%s219 + $0x128] sm:$0xf]
      %v608 = vld [vmem:[%s219 + $0x12c] sm:$0xf]
      %v609 = vld [vmem:[%s219 + $0x130] sm:$0xf]
      %v610 = vld [vmem:[%s219 + $0x134] sm:$0xf]
      %v611 = vld [vmem:[%s219 + $0x138] sm:$0xf]
      %v612 = vld [vmem:[%s219 + $0x13c] sm:$0xf]
      %v613 = vld [vmem:[%s219 + $0x140] sm:$0xf]
      %v614 = vld [vmem:[%s219 + $0x144] sm:$0xf]
      %v615 = vld [vmem:[%s219 + $0x148] sm:$0xf]
      %v616 = vld [vmem:[%s219 + $0x14c] sm:$0xf]
      %v617 = vld [vmem:[%s219 + $0x150] sm:$0xf]
      %v618 = vld [vmem:[%s219 + $0x154] sm:$0xf]
      %v619 = vld [vmem:[%s219 + $0x158] sm:$0xf]
      %v620 = vld [vmem:[%s219 + $0x15c] sm:$0xf]
      %v621 = vld [vmem:[%s219 + $0x160] sm:$0xf]
      %v622 = vld [vmem:[%s219 + $0x164] sm:$0xf]
      %v623 = vld [vmem:[%s219 + $0x168] sm:$0xf]
      %v624 = vld [vmem:[%s219 + $0x16c] sm:$0xf]
      %v625 = vld [vmem:[%s219 + $0x170] sm:$0xf]
      %v626 = vld [vmem:[%s219 + $0x174] sm:$0xf]
      %v627 = vld [vmem:[%s219 + $0x178] sm:$0xf]
      %v628 = vld [vmem:[%s219 + $0x17c] sm:$0xf]
      %v629 = vld [vmem:[%s219 + $0x180] sm:$0xf]
      %v630 = vld [vmem:[%s219 + $0x184] sm:$0xf]
      %v631 = vld [vmem:[%s219 + $0x188] sm:$0xf]
      %v632 = vld [vmem:[%s219 + $0x18c] sm:$0xf]
      %v633 = vld [vmem:[%s219 + $0x190] sm:$0xf]
      %v634 = vld [vmem:[%s219 + $0x194] sm:$0xf]
      %v635 = vld [vmem:[%s219 + $0x198] sm:$0xf]
      %v636 = vld [vmem:[%s219 + $0x19c] sm:$0xf]
      %v637 = vld [vmem:[%s219 + $0x1a0] sm:$0xf]
      %v638 = vld [vmem:[%s219 + $0x1a4] sm:$0xf]
      %v639 = vld [vmem:[%s219 + $0x1a8] sm:$0xf]
      %v640 = vld [vmem:[%s219 + $0x1ac] sm:$0xf]
      %v641 = vld [vmem:[%s219 + $0x1b0] sm:$0xf]
      %v642 = vld [vmem:[%s219 + $0x1b4] sm:$0xf]
      %v643 = vld [vmem:[%s219 + $0x1b8] sm:$0xf]
      %v644 = vld [vmem:[%s219 + $0x1bc] sm:$0xf]
      %v645 = vld [vmem:[%s219 + $0x1c0] sm:$0xf]
      %v646 = vld [vmem:[%s219 + $0x1c4] sm:$0xf]
      %v647 = vld [vmem:[%s219 + $0x1c8] sm:$0xf]
      %v648 = vld [vmem:[%s219 + $0x1cc] sm:$0xf]
      %v649 = vld [vmem:[%s219 + $0x1d0] sm:$0xf]
      %v650 = vld [vmem:[%s219 + $0x1d4] sm:$0xf]
      %v651 = vld [vmem:[%s219 + $0x1d8] sm:$0xf]
      %v652 = vld [vmem:[%s219 + $0x1dc] sm:$0xf]
      %v653 = vld [vmem:[%s219 + $0x1e0] sm:$0xf]
      %v654 = vld [vmem:[%s219 + $0x1e4] sm:$0xf]
      %v655 = vld [vmem:[%s219 + $0x1e8] sm:$0xf]
      %v656 = vld [vmem:[%s219 + $0x1ec] sm:$0xf]
      %v657 = vld [vmem:[%s219 + $0x1f0] sm:$0xf]
      %v658 = vld [vmem:[%s219 + $0x1f4] sm:$0xf]
      %v659 = vld [vmem:[%s219 + $0x1f8] sm:$0xf]
      %v660 = vld [vmem:[%s219 + $0x1fc] sm:$0xf]
      %v861 = vunpack.c.l.b16 %v333
      %v862 = vunpack.c.h.b16 %v333
      %v863 = vunpack.c.l.b16 %v334
      %v864 = vunpack.c.h.b16 %v334
      %v865 = vunpack.c.l.b16 %v335
      %v866 = vunpack.c.h.b16 %v335
      %v867 = vunpack.c.l.b16 %v336
      %v868 = vunpack.c.h.b16 %v336
      %v869 = vunpack.c.l.b16 %v337
      %v870 = vunpack.c.h.b16 %v337
      %v871 = vunpack.c.l.b16 %v338
      %v872 = vunpack.c.h.b16 %v338
      %v873 = vunpack.c.l.b16 %v339
      %v874 = vunpack.c.h.b16 %v339
      %v875 = vunpack.c.l.b16 %v340
      %v876 = vunpack.c.h.b16 %v340
      %v877 = vunpack.c.l.b16 %v341
      %v878 = vunpack.c.h.b16 %v341
      %v879 = vunpack.c.l.b16 %v342
      %v880 = vunpack.c.h.b16 %v342
      %v881 = vunpack.c.l.b16 %v343
      %v882 = vunpack.c.h.b16 %v343
      %v883 = vunpack.c.l.b16 %v344
      %v884 = vunpack.c.h.b16 %v344
      %v885 = vunpack.c.l.b16 %v345
      %v886 = vunpack.c.h.b16 %v345
      %v887 = vunpack.c.l.b16 %v346
      %v888 = vunpack.c.h.b16 %v346
      %v889 = vunpack.c.l.b16 %v347
      %v890 = vunpack.c.h.b16 %v347
      %v891 = vunpack.c.l.b16 %v348
      %v892 = vunpack.c.h.b16 %v348
      %v893 = vunpack.c.l.b16 %v349
      %v894 = vunpack.c.h.b16 %v349
      %v895 = vunpack.c.l.b16 %v350
      %v896 = vunpack.c.h.b16 %v350
      %v897 = vunpack.c.l.b16 %v351
      %v898 = vunpack.c.h.b16 %v351
      %v899 = vunpack.c.l.b16 %v352
      %v900 = vunpack.c.h.b16 %v352
      %v901 = vunpack.c.l.b16 %v353
      %v902 = vunpack.c.h.b16 %v353
      %v903 = vunpack.c.l.b16 %v354
      %v904 = vunpack.c.h.b16 %v354
      %v905 = vunpack.c.l.b16 %v355
      %v906 = vunpack.c.h.b16 %v355
      %v907 = vunpack.c.l.b16 %v356
      %v908 = vunpack.c.h.b16 %v356
      %v909 = vunpack.c.l.b16 %v357
      %v910 = vunpack.c.h.b16 %v357
      %v911 = vunpack.c.l.b16 %v358
      %v912 = vunpack.c.h.b16 %v358
      %v913 = vunpack.c.l.b16 %v359
      %v914 = vunpack.c.h.b16 %v359
      %v915 = vunpack.c.l.b16 %v360
      %v916 = vunpack.c.h.b16 %v360
      %v917 = vunpack.c.l.b16 %v361
      %v918 = vunpack.c.h.b16 %v361
      %v919 = vunpack.c.l.b16 %v362
      %v920 = vunpack.c.h.b16 %v362
      %v921 = vunpack.c.l.b16 %v363
      %v922 = vunpack.c.h.b16 %v363
      %v923 = vunpack.c.l.b16 %v364
      %v924 = vunpack.c.h.b16 %v364
      %v925 = vunpack.c.l.b16 %v365
      %v926 = vunpack.c.h.b16 %v365
      %v927 = vunpack.c.l.b16 %v366
      %v928 = vunpack.c.h.b16 %v366
      %v929 = vunpack.c.l.b16 %v367
      %v930 = vunpack.c.h.b16 %v367
      %v931 = vunpack.c.l.b16 %v368
      %v932 = vunpack.c.h.b16 %v368
      %v933 = vunpack.c.l.b16 %v369
      %v934 = vunpack.c.h.b16 %v369
      %v935 = vunpack.c.l.b16 %v370
      %v936 = vunpack.c.h.b16 %v370
      %v937 = vunpack.c.l.b16 %v371
      %v938 = vunpack.c.h.b16 %v371
      %v939 = vunpack.c.l.b16 %v372
      %v940 = vunpack.c.h.b16 %v372
      %v941 = vunpack.c.l.b16 %v373
      %v942 = vunpack.c.h.b16 %v373
      %v943 = vunpack.c.l.b16 %v374
      %v944 = vunpack.c.h.b16 %v374
      %v945 = vunpack.c.l.b16 %v375
      %v946 = vunpack.c.h.b16 %v375
      %v947 = vunpack.c.l.b16 %v376
      %v948 = vunpack.c.h.b16 %v376
      %v949 = vunpack.c.l.b16 %v377
      %v950 = vunpack.c.h.b16 %v377
      %v951 = vunpack.c.l.b16 %v378
      %v952 = vunpack.c.h.b16 %v378
      %v953 = vunpack.c.l.b16 %v379
      %v954 = vunpack.c.h.b16 %v379
      %v955 = vunpack.c.l.b16 %v380
      %v956 = vunpack.c.h.b16 %v380
      %v957 = vunpack.c.l.b16 %v381
      %v958 = vunpack.c.h.b16 %v381
      %v959 = vunpack.c.l.b16 %v382
      %v960 = vunpack.c.h.b16 %v382
      %v961 = vunpack.c.l.b16 %v383
      %v962 = vunpack.c.h.b16 %v383
      %v963 = vunpack.c.l.b16 %v384
      %v964 = vunpack.c.h.b16 %v384
      %v965 = vunpack.c.l.b16 %v385
      %v966 = vunpack.c.h.b16 %v385
      %v967 = vunpack.c.l.b16 %v386
      %v968 = vunpack.c.h.b16 %v386
      %v969 = vunpack.c.l.b16 %v387
      %v970 = vunpack.c.h.b16 %v387
      %v971 = vunpack.c.l.b16 %v388
      %v972 = vunpack.c.h.b16 %v388
      %v973 = vunpack.c.l.b16 %v389
      %v974 = vunpack.c.h.b16 %v389
      %v975 = vunpack.c.l.b16 %v390
      %v976 = vunpack.c.h.b16 %v390
      %v977 = vunpack.c.l.b16 %v391
      %v978 = vunpack.c.h.b16 %v391
      %v979 = vunpack.c.l.b16 %v392
      %v980 = vunpack.c.h.b16 %v392
      %v981 = vunpack.c.l.b16 %v393
      %v982 = vunpack.c.h.b16 %v393
      %v983 = vunpack.c.l.b16 %v394
      %v984 = vunpack.c.h.b16 %v394
      %v985 = vunpack.c.l.b16 %v395
      %v986 = vunpack.c.h.b16 %v395
      %v987 = vunpack.c.l.b16 %v396
      %v988 = vunpack.c.h.b16 %v396
      %v989 = vunpack.c.l.b16 %v397
      %v990 = vunpack.c.h.b16 %v397
      %v991 = vunpack.c.l.b16 %v398
      %v992 = vunpack.c.h.b16 %v398
      %v993 = vunpack.c.l.b16 %v399
      %v994 = vunpack.c.h.b16 %v399
      %v995 = vunpack.c.l.b16 %v400
      %v996 = vunpack.c.h.b16 %v400
      %v997 = vunpack.c.l.b16 %v401
      %v998 = vunpack.c.h.b16 %v401
      %v999 = vunpack.c.l.b16 %v402
      %v1000 = vunpack.c.h.b16 %v402
      %v1001 = vunpack.c.l.b16 %v403
      %v1002 = vunpack.c.h.b16 %v403
      %v1003 = vunpack.c.l.b16 %v404
      %v1004 = vunpack.c.h.b16 %v404
      %v1005 = vunpack.c.l.b16 %v405
      %v1006 = vunpack.c.h.b16 %v405
      %v1007 = vunpack.c.l.b16 %v406
      %v1008 = vunpack.c.h.b16 %v406
      %v1009 = vunpack.c.l.b16 %v407
      %v1010 = vunpack.c.h.b16 %v407
      %v1011 = vunpack.c.l.b16 %v408
      %v1012 = vunpack.c.h.b16 %v408
      %v1013 = vunpack.c.l.b16 %v409
      %v1014 = vunpack.c.h.b16 %v409
      %v1015 = vunpack.c.l.b16 %v410
      %v1016 = vunpack.c.h.b16 %v410
      %v1017 = vunpack.c.l.b16 %v411
      %v1018 = vunpack.c.h.b16 %v411
      %v1019 = vunpack.c.l.b16 %v412
      %v1020 = vunpack.c.h.b16 %v412
      %v1021 = vunpack.c.l.b16 %v413
      %v1022 = vunpack.c.h.b16 %v413
      %v1023 = vunpack.c.l.b16 %v414
      %v1024 = vunpack.c.h.b16 %v414
      %v1025 = vunpack.c.l.b16 %v415
      %v1026 = vunpack.c.h.b16 %v415
      %v1027 = vunpack.c.l.b16 %v416
      %v1028 = vunpack.c.h.b16 %v416
      %v1029 = vunpack.c.l.b16 %v417
      %v1030 = vunpack.c.h.b16 %v417
      %v1031 = vunpack.c.l.b16 %v418
      %v1032 = vunpack.c.h.b16 %v418
      %v1033 = vunpack.c.l.b16 %v419
      %v1034 = vunpack.c.h.b16 %v419
      %v1035 = vunpack.c.l.b16 %v420
      %v1036 = vunpack.c.h.b16 %v420
      %v1037 = vunpack.c.l.b16 %v421
      %v1038 = vunpack.c.h.b16 %v421
      %v1039 = vunpack.c.l.b16 %v422
      %v1040 = vunpack.c.h.b16 %v422
      %v1041 = vunpack.c.l.b16 %v423
      %v1042 = vunpack.c.h.b16 %v423
      %v1043 = vunpack.c.l.b16 %v424
      %v1044 = vunpack.c.h.b16 %v424
      %v1045 = vunpack.c.l.b16 %v425
      %v1046 = vunpack.c.h.b16 %v425
      %v1047 = vunpack.c.l.b16 %v426
      %v1048 = vunpack.c.h.b16 %v426
      %v1049 = vunpack.c.l.b16 %v427
      %v1050 = vunpack.c.h.b16 %v427
      %v1051 = vunpack.c.l.b16 %v428
      %v1052 = vunpack.c.h.b16 %v428
      %v1053 = vunpack.c.l.b16 %v429
      %v1054 = vunpack.c.h.b16 %v429
      %v1055 = vunpack.c.l.b16 %v430
      %v1056 = vunpack.c.h.b16 %v430
      %v1057 = vunpack.c.l.b16 %v431
      %v1058 = vunpack.c.h.b16 %v431
      %v1059 = vunpack.c.l.b16 %v432
      %v1060 = vunpack.c.h.b16 %v432
      %v1061 = vunpack.c.l.b16 %v433
      %v1062 = vunpack.c.h.b16 %v433
      %v1063 = vunpack.c.l.b16 %v434
      %v1064 = vunpack.c.h.b16 %v434
      %v1065 = vunpack.c.l.b16 %v435
      %v1066 = vunpack.c.h.b16 %v435
      %v1067 = vunpack.c.l.b16 %v436
      %v1068 = vunpack.c.h.b16 %v436
      %v1069 = vunpack.c.l.b16 %v437
      %v1070 = vunpack.c.h.b16 %v437
      %v1071 = vunpack.c.l.b16 %v438
      %v1072 = vunpack.c.h.b16 %v438
      %v1073 = vunpack.c.l.b16 %v439
      %v1074 = vunpack.c.h.b16 %v439
      %v1075 = vunpack.c.l.b16 %v440
      %v1076 = vunpack.c.h.b16 %v440
      %v1077 = vunpack.c.l.b16 %v441
      %v1078 = vunpack.c.h.b16 %v441
      %v1079 = vunpack.c.l.b16 %v442
      %v1080 = vunpack.c.h.b16 %v442
      %v1081 = vunpack.c.l.b16 %v443
      %v1082 = vunpack.c.h.b16 %v443
      %v1083 = vunpack.c.l.b16 %v444
      %v1084 = vunpack.c.h.b16 %v444
      %v1085 = vunpack.c.l.b16 %v445
      %v1086 = vunpack.c.h.b16 %v445
      %v1087 = vunpack.c.l.b16 %v446
      %v1088 = vunpack.c.h.b16 %v446
      %v1089 = vunpack.c.l.b16 %v447
      %v1090 = vunpack.c.h.b16 %v447
      %v1091 = vunpack.c.l.b16 %v448
      %v1092 = vunpack.c.h.b16 %v448
      %v1093 = vunpack.c.l.b16 %v449
      %v1094 = vunpack.c.h.b16 %v449
      %v1095 = vunpack.c.l.b16 %v450
      %v1096 = vunpack.c.h.b16 %v450
      %v1097 = vunpack.c.l.b16 %v451
      %v1098 = vunpack.c.h.b16 %v451
      %v1099 = vunpack.c.l.b16 %v452
      %v1100 = vunpack.c.h.b16 %v452
      %v1101 = vunpack.c.l.b16 %v453
      %v1102 = vunpack.c.h.b16 %v453
      %v1103 = vunpack.c.l.b16 %v454
      %v1104 = vunpack.c.h.b16 %v454
      %v1105 = vunpack.c.l.b16 %v455
      %v1106 = vunpack.c.h.b16 %v455
      %v1107 = vunpack.c.l.b16 %v456
      %v1108 = vunpack.c.h.b16 %v456
      %v1109 = vunpack.c.l.b16 %v457
      %v1110 = vunpack.c.h.b16 %v457
      %v1111 = vunpack.c.l.b16 %v458
      %v1112 = vunpack.c.h.b16 %v458
      %v1113 = vunpack.c.l.b16 %v459
      %v1114 = vunpack.c.h.b16 %v459
      %v1115 = vunpack.c.l.b16 %v460
      %v1116 = vunpack.c.h.b16 %v460
      %v1117 = vunpack.c.l.b16 %v461
      %v1118 = vunpack.c.h.b16 %v461
      %v1119 = vunpack.c.l.b16 %v462
      %v1120 = vunpack.c.h.b16 %v462
      %v1121 = vunpack.c.l.b16 %v463
      %v1122 = vunpack.c.h.b16 %v463
      %v1123 = vunpack.c.l.b16 %v464
      %v1124 = vunpack.c.h.b16 %v464
      %v1125 = vunpack.c.l.b16 %v465
      %v1126 = vunpack.c.h.b16 %v465
      %v1127 = vunpack.c.l.b16 %v466
      %v1128 = vunpack.c.h.b16 %v466
      %v1129 = vunpack.c.l.b16 %v467
      %v1130 = vunpack.c.h.b16 %v467
      %v1131 = vunpack.c.l.b16 %v468
      %v1132 = vunpack.c.h.b16 %v468
      %v1133 = vunpack.c.l.b16 %v469
      %v1134 = vunpack.c.h.b16 %v469
      %v1135 = vunpack.c.l.b16 %v470
      %v1136 = vunpack.c.h.b16 %v470
      %v1137 = vunpack.c.l.b16 %v471
      %v1138 = vunpack.c.h.b16 %v471
      %v1139 = vunpack.c.l.b16 %v472
      %v1140 = vunpack.c.h.b16 %v472
      %v1141 = vunpack.c.l.b16 %v473
      %v1142 = vunpack.c.h.b16 %v473
      %v1143 = vunpack.c.l.b16 %v474
      %v1144 = vunpack.c.h.b16 %v474
      %v1145 = vunpack.c.l.b16 %v475
      %v1146 = vunpack.c.h.b16 %v475
      %v1147 = vunpack.c.l.b16 %v476
      %v1148 = vunpack.c.h.b16 %v476
      %v1149 = vunpack.c.l.b16 %v477
      %v1150 = vunpack.c.h.b16 %v477
      %v1151 = vunpack.c.l.b16 %v478
      %v1152 = vunpack.c.h.b16 %v478
      %v1153 = vunpack.c.l.b16 %v479
      %v1154 = vunpack.c.h.b16 %v479
      %v1155 = vunpack.c.l.b16 %v480
      %v1156 = vunpack.c.h.b16 %v480
      %v1157 = vunpack.c.l.b16 %v481
      %v1158 = vunpack.c.h.b16 %v481
      %v1159 = vunpack.c.l.b16 %v482
      %v1160 = vunpack.c.h.b16 %v482
      %v1161 = vunpack.c.l.b16 %v483
      %v1162 = vunpack.c.h.b16 %v483
      %v1163 = vunpack.c.l.b16 %v484
      %v1164 = vunpack.c.h.b16 %v484
      %v1165 = vunpack.c.l.b16 %v485
      %v1166 = vunpack.c.h.b16 %v485
      %v1167 = vunpack.c.l.b16 %v486
      %v1168 = vunpack.c.h.b16 %v486
      %v1169 = vunpack.c.l.b16 %v487
      %v1170 = vunpack.c.h.b16 %v487
      %v1171 = vunpack.c.l.b16 %v488
      %v1172 = vunpack.c.h.b16 %v488
      %v1173 = vunpack.c.l.b16 %v489
      %v1174 = vunpack.c.h.b16 %v489
      %v1175 = vunpack.c.l.b16 %v490
      %v1176 = vunpack.c.h.b16 %v490
      %v1177 = vunpack.c.l.b16 %v491
      %v1178 = vunpack.c.h.b16 %v491
      %v1179 = vunpack.c.l.b16 %v492
      %v1180 = vunpack.c.h.b16 %v492
      %v1181 = vunpack.c.l.b16 %v493
      %v1182 = vunpack.c.h.b16 %v493
      %v1183 = vunpack.c.l.b16 %v494
      %v1184 = vunpack.c.h.b16 %v494
      %v1185 = vunpack.c.l.b16 %v495
      %v1186 = vunpack.c.h.b16 %v495
      %v1187 = vunpack.c.l.b16 %v496
      %v1188 = vunpack.c.h.b16 %v496
      %v1189 = vunpack.c.l.b16 %v497
      %v1190 = vunpack.c.h.b16 %v497
      %v1191 = vunpack.c.l.b16 %v498
      %v1192 = vunpack.c.h.b16 %v498
      %v1193 = vunpack.c.l.b16 %v499
      %v1194 = vunpack.c.h.b16 %v499
      %v1195 = vunpack.c.l.b16 %v500
      %v1196 = vunpack.c.h.b16 %v500
      %v1197 = vunpack.c.l.b16 %v501
      %v1198 = vunpack.c.h.b16 %v501
      %v1199 = vunpack.c.l.b16 %v502
      %v1200 = vunpack.c.h.b16 %v502
      %v1201 = vunpack.c.l.b16 %v503
      %v1202 = vunpack.c.h.b16 %v503
      %v1203 = vunpack.c.l.b16 %v504
      %v1204 = vunpack.c.h.b16 %v504
      %v1205 = vunpack.c.l.b16 %v505
      %v1206 = vunpack.c.h.b16 %v505
      %v1207 = vunpack.c.l.b16 %v506
      %v1208 = vunpack.c.h.b16 %v506
      %v1209 = vunpack.c.l.b16 %v507
      %v1210 = vunpack.c.h.b16 %v507
      %v1211 = vunpack.c.l.b16 %v508
      %v1212 = vunpack.c.h.b16 %v508
      %v1213 = vunpack.c.l.b16 %v509
      %v1214 = vunpack.c.h.b16 %v509
      %v1215 = vunpack.c.l.b16 %v510
      %v1216 = vunpack.c.h.b16 %v510
      %v1217 = vunpack.c.l.b16 %v511
      %v1218 = vunpack.c.h.b16 %v511
      %v1219 = vunpack.c.l.b16 %v512
      %v1220 = vunpack.c.h.b16 %v512
      %v1221 = vunpack.c.l.b16 %v513
      %v1222 = vunpack.c.h.b16 %v513
      %v1223 = vunpack.c.l.b16 %v514
      %v1224 = vunpack.c.h.b16 %v514
      %v1225 = vunpack.c.l.b16 %v515
      %v1226 = vunpack.c.h.b16 %v515
      %v1227 = vunpack.c.l.b16 %v516
      %v1228 = vunpack.c.h.b16 %v516
      %v1229 = vunpack.c.l.b16 %v517
      %v1230 = vunpack.c.h.b16 %v517
      %v1231 = vunpack.c.l.b16 %v518
      %v1232 = vunpack.c.h.b16 %v518
      %v1233 = vunpack.c.l.b16 %v519
      %v1234 = vunpack.c.h.b16 %v519
      %v1235 = vunpack.c.l.b16 %v520
      %v1236 = vunpack.c.h.b16 %v520
      %v1237 = vunpack.c.l.b16 %v521
      %v1238 = vunpack.c.h.b16 %v521
      %v1239 = vunpack.c.l.b16 %v522
      %v1240 = vunpack.c.h.b16 %v522
      %v1241 = vunpack.c.l.b16 %v523
      %v1242 = vunpack.c.h.b16 %v523
      %v1243 = vunpack.c.l.b16 %v524
      %v1244 = vunpack.c.h.b16 %v524
      %v1245 = vunpack.c.l.b16 %v525
      %v1246 = vunpack.c.h.b16 %v525
      %v1247 = vunpack.c.l.b16 %v526
      %v1248 = vunpack.c.h.b16 %v526
      %v1249 = vunpack.c.l.b16 %v527
      %v1250 = vunpack.c.h.b16 %v527
      %v1251 = vunpack.c.l.b16 %v528
      %v1252 = vunpack.c.h.b16 %v528
      %v1253 = vunpack.c.l.b16 %v529
      %v1254 = vunpack.c.h.b16 %v529
      %v1255 = vunpack.c.l.b16 %v530
      %v1256 = vunpack.c.h.b16 %v530
      %v1257 = vunpack.c.l.b16 %v531
      %v1258 = vunpack.c.h.b16 %v531
      %v1259 = vunpack.c.l.b16 %v532
      %v1260 = vunpack.c.h.b16 %v532
      %v1261 = vpack.c.b16 %v869, %v861
      %v1262 = vpack.c.b16 %v870, %v862
      %v1263 = vpack.c.b16 %v871, %v863
      %v1264 = vpack.c.b16 %v872, %v864
      %v1265 = vpack.c.b16 %v873, %v865
      %v1266 = vpack.c.b16 %v874, %v866
      %v1267 = vpack.c.b16 %v875, %v867
      %v1268 = vpack.c.b16 %v876, %v868
      %v1269 = vpack.c.b16 %v885, %v877
      %v1270 = vpack.c.b16 %v886, %v878
      %v1271 = vpack.c.b16 %v887, %v879
      %v1272 = vpack.c.b16 %v888, %v880
      %v1273 = vpack.c.b16 %v889, %v881
      %v1274 = vpack.c.b16 %v890, %v882
      %v1275 = vpack.c.b16 %v891, %v883
      %v1276 = vpack.c.b16 %v892, %v884
      %v1277 = vpack.c.b16 %v901, %v893
      %v1278 = vpack.c.b16 %v902, %v894
      %v1279 = vpack.c.b16 %v903, %v895
      %v1280 = vpack.c.b16 %v904, %v896
      %v1281 = vpack.c.b16 %v905, %v897
      %v1282 = vpack.c.b16 %v906, %v898
      %v1283 = vpack.c.b16 %v907, %v899
      %v1284 = vpack.c.b16 %v908, %v900
      %v1285 = vpack.c.b16 %v917, %v909
      %v1286 = vpack.c.b16 %v918, %v910
      %v1287 = vpack.c.b16 %v919, %v911
      %v1288 = vpack.c.b16 %v920, %v912
      %v1289 = vpack.c.b16 %v921, %v913
      %v1290 = vpack.c.b16 %v922, %v914
      %v1291 = vpack.c.b16 %v923, %v915
      %v1292 = vpack.c.b16 %v924, %v916
      %v1293 = vpack.c.b16 %v933, %v925
      %v1294 = vpack.c.b16 %v934, %v926
      %v1295 = vpack.c.b16 %v935, %v927
      %v1296 = vpack.c.b16 %v936, %v928
      %v1297 = vpack.c.b16 %v937, %v929
      %v1298 = vpack.c.b16 %v938, %v930
      %v1299 = vpack.c.b16 %v939, %v931
      %v1300 = vpack.c.b16 %v940, %v932
      %v1301 = vpack.c.b16 %v949, %v941
      %v1302 = vpack.c.b16 %v950, %v942
      %v1303 = vpack.c.b16 %v951, %v943
      %v1304 = vpack.c.b16 %v952, %v944
      %v1305 = vpack.c.b16 %v953, %v945
      %v1306 = vpack.c.b16 %v954, %v946
      %v1307 = vpack.c.b16 %v955, %v947
      %v1308 = vpack.c.b16 %v956, %v948
      %v1309 = vpack.c.b16 %v965, %v957
      %v1310 = vpack.c.b16 %v966, %v958
      %v1311 = vpack.c.b16 %v967, %v959
      %v1312 = vpack.c.b16 %v968, %v960
      %v1313 = vpack.c.b16 %v969, %v961
      %v1314 = vpack.c.b16 %v970, %v962
      %v1315 = vpack.c.b16 %v971, %v963
      %v1316 = vpack.c.b16 %v972, %v964
      %v1317 = vpack.c.b16 %v981, %v973
      %v1318 = vpack.c.b16 %v982, %v974
      %v1319 = vpack.c.b16 %v983, %v975
      %v1320 = vpack.c.b16 %v984, %v976
      %v1321 = vpack.c.b16 %v985, %v977
      %v1322 = vpack.c.b16 %v986, %v978
      %v1323 = vpack.c.b16 %v987, %v979
      %v1324 = vpack.c.b16 %v988, %v980
      %v1325 = vpack.c.b16 %v997, %v989
      %v1326 = vpack.c.b16 %v998, %v990
      %v1327 = vpack.c.b16 %v999, %v991
      %v1328 = vpack.c.b16 %v1000, %v992
      %v1329 = vpack.c.b16 %v1001, %v993
      %v1330 = vpack.c.b16 %v1002, %v994
      %v1331 = vpack.c.b16 %v1003, %v995
      %v1332 = vpack.c.b16 %v1004, %v996
      %v1333 = vpack.c.b16 %v1013, %v1005
      %v1334 = vpack.c.b16 %v1014, %v1006
      %v1335 = vpack.c.b16 %v1015, %v1007
      %v1336 = vpack.c.b16 %v1016, %v1008
      %v1337 = vpack.c.b16 %v1017, %v1009
      %v1338 = vpack.c.b16 %v1018, %v1010
      %v1339 = vpack.c.b16 %v1019, %v1011
      %v1340 = vpack.c.b16 %v1020, %v1012
      %v1341 = vpack.c.b16 %v1029, %v1021
      %v1342 = vpack.c.b16 %v1030, %v1022
      %v1343 = vpack.c.b16 %v1031, %v1023
      %v1344 = vpack.c.b16 %v1032, %v1024
      %v1345 = vpack.c.b16 %v1033, %v1025
      %v1346 = vpack.c.b16 %v1034, %v1026
      %v1347 = vpack.c.b16 %v1035, %v1027
      %v1348 = vpack.c.b16 %v1036, %v1028
      %v1349 = vpack.c.b16 %v1045, %v1037
      %v1350 = vpack.c.b16 %v1046, %v1038
      %v1351 = vpack.c.b16 %v1047, %v1039
      %v1352 = vpack.c.b16 %v1048, %v1040
      %v1353 = vpack.c.b16 %v1049, %v1041
      %v1354 = vpack.c.b16 %v1050, %v1042
      %v1355 = vpack.c.b16 %v1051, %v1043
      %v1356 = vpack.c.b16 %v1052, %v1044
      %v1357 = vpack.c.b16 %v1061, %v1053
      %v1358 = vpack.c.b16 %v1062, %v1054
      %v1359 = vpack.c.b16 %v1063, %v1055
      %v1360 = vpack.c.b16 %v1064, %v1056
      %v1361 = vpack.c.b16 %v1065, %v1057
      %v1362 = vpack.c.b16 %v1066, %v1058
      %v1363 = vpack.c.b16 %v1067, %v1059
      %v1364 = vpack.c.b16 %v1068, %v1060
      %v1365 = vpack.c.b16 %v1077, %v1069
      %v1366 = vpack.c.b16 %v1078, %v1070
      %v1367 = vpack.c.b16 %v1079, %v1071
      %v1368 = vpack.c.b16 %v1080, %v1072
      %v1369 = vpack.c.b16 %v1081, %v1073
      %v1370 = vpack.c.b16 %v1082, %v1074
      %v1371 = vpack.c.b16 %v1083, %v1075
      %v1372 = vpack.c.b16 %v1084, %v1076
      %v1373 = vpack.c.b16 %v1093, %v1085
      %v1374 = vpack.c.b16 %v1094, %v1086
      %v1375 = vpack.c.b16 %v1095, %v1087
      %v1376 = vpack.c.b16 %v1096, %v1088
      %v1377 = vpack.c.b16 %v1097, %v1089
      %v1378 = vpack.c.b16 %v1098, %v1090
      %v1379 = vpack.c.b16 %v1099, %v1091
      %v1380 = vpack.c.b16 %v1100, %v1092
      %v1381 = vpack.c.b16 %v1109, %v1101
      %v1382 = vpack.c.b16 %v1110, %v1102
      %v1383 = vpack.c.b16 %v1111, %v1103
      %v1384 = vpack.c.b16 %v1112, %v1104
      %v1385 = vpack.c.b16 %v1113, %v1105
      %v1386 = vpack.c.b16 %v1114, %v1106
      %v1387 = vpack.c.b16 %v1115, %v1107
      %v1388 = vpack.c.b16 %v1116, %v1108
      %v1389 = vpack.c.b16 %v1125, %v1117
      %v1390 = vpack.c.b16 %v1126, %v1118
      %v1391 = vpack.c.b16 %v1127, %v1119
      %v1392 = vpack.c.b16 %v1128, %v1120
      %v1393 = vpack.c.b16 %v1129, %v1121
      %v1394 = vpack.c.b16 %v1130, %v1122
      %v1395 = vpack.c.b16 %v1131, %v1123
      %v1396 = vpack.c.b16 %v1132, %v1124
      %v1397 = vpack.c.b16 %v1141, %v1133
      %v1398 = vpack.c.b16 %v1142, %v1134
      %v1399 = vpack.c.b16 %v1143, %v1135
      %v1400 = vpack.c.b16 %v1144, %v1136
      %v1401 = vpack.c.b16 %v1145, %v1137
      %v1402 = vpack.c.b16 %v1146, %v1138
      %v1403 = vpack.c.b16 %v1147, %v1139
      %v1404 = vpack.c.b16 %v1148, %v1140
      %v1405 = vpack.c.b16 %v1157, %v1149
      %v1406 = vpack.c.b16 %v1158, %v1150
      %v1407 = vpack.c.b16 %v1159, %v1151
      %v1408 = vpack.c.b16 %v1160, %v1152
      %v1409 = vpack.c.b16 %v1161, %v1153
      %v1410 = vpack.c.b16 %v1162, %v1154
      %v1411 = vpack.c.b16 %v1163, %v1155
      %v1412 = vpack.c.b16 %v1164, %v1156
      %v1413 = vpack.c.b16 %v1173, %v1165
      %v1414 = vpack.c.b16 %v1174, %v1166
      %v1415 = vpack.c.b16 %v1175, %v1167
      %v1416 = vpack.c.b16 %v1176, %v1168
      %v1417 = vpack.c.b16 %v1177, %v1169
      %v1418 = vpack.c.b16 %v1178, %v1170
      %v1419 = vpack.c.b16 %v1179, %v1171
      %v1420 = vpack.c.b16 %v1180, %v1172
      %v1421 = vpack.c.b16 %v1189, %v1181
      %v1422 = vpack.c.b16 %v1190, %v1182
      %v1423 = vpack.c.b16 %v1191, %v1183
      %v1424 = vpack.c.b16 %v1192, %v1184
      %v1425 = vpack.c.b16 %v1193, %v1185
      %v1426 = vpack.c.b16 %v1194, %v1186
      %v1427 = vpack.c.b16 %v1195, %v1187
      %v1428 = vpack.c.b16 %v1196, %v1188
      %v1429 = vpack.c.b16 %v1205, %v1197
      %v1430 = vpack.c.b16 %v1206, %v1198
      %v1431 = vpack.c.b16 %v1207, %v1199
      %v1432 = vpack.c.b16 %v1208, %v1200
      %v1433 = vpack.c.b16 %v1209, %v1201
      %v1434 = vpack.c.b16 %v1210, %v1202
      %v1435 = vpack.c.b16 %v1211, %v1203
      %v1436 = vpack.c.b16 %v1212, %v1204
      %v1437 = vpack.c.b16 %v1221, %v1213
      %v1438 = vpack.c.b16 %v1222, %v1214
      %v1439 = vpack.c.b16 %v1223, %v1215
      %v1440 = vpack.c.b16 %v1224, %v1216
      %v1441 = vpack.c.b16 %v1225, %v1217
      %v1442 = vpack.c.b16 %v1226, %v1218
      %v1443 = vpack.c.b16 %v1227, %v1219
      %v1444 = vpack.c.b16 %v1228, %v1220
      %v1445 = vpack.c.b16 %v1237, %v1229
      %v1446 = vpack.c.b16 %v1238, %v1230
      %v1447 = vpack.c.b16 %v1239, %v1231
      %v1448 = vpack.c.b16 %v1240, %v1232
      %v1449 = vpack.c.b16 %v1241, %v1233
      %v1450 = vpack.c.b16 %v1242, %v1234
      %v1451 = vpack.c.b16 %v1243, %v1235
      %v1452 = vpack.c.b16 %v1244, %v1236
      %v1453 = vpack.c.b16 %v1253, %v1245
      %v1454 = vpack.c.b16 %v1254, %v1246
      %v1455 = vpack.c.b16 %v1255, %v1247
      %v1456 = vpack.c.b16 %v1256, %v1248
      %v1457 = vpack.c.b16 %v1257, %v1249
      %v1458 = vpack.c.b16 %v1258, %v1250
      %v1459 = vpack.c.b16 %v1259, %v1251
      %v1460 = vpack.c.b16 %v1260, %v1252
      %v1789 = vunpack.c.l.b16 %v533
      %v1790 = vunpack.c.l.b16 %v534
      %v1791 = vunpack.c.l.b16 %v535
      %v1792 = vunpack.c.l.b16 %v536
      %v1793 = vunpack.c.l.b16 %v537
      %v1794 = vunpack.c.l.b16 %v538
      %v1795 = vunpack.c.l.b16 %v539
      %v1796 = vunpack.c.l.b16 %v540
      %v1797 = vunpack.c.l.b16 %v541
      %v1798 = vunpack.c.l.b16 %v542
      %v1799 = vunpack.c.l.b16 %v543
      %v1800 = vunpack.c.l.b16 %v544
      %v1801 = vunpack.c.l.b16 %v545
      %v1802 = vunpack.c.l.b16 %v546
      %v1803 = vunpack.c.l.b16 %v547
      %v1804 = vunpack.c.l.b16 %v548
      %v1805 = vunpack.c.l.b16 %v549
      %v1806 = vunpack.c.l.b16 %v550
      %v1807 = vunpack.c.l.b16 %v551
      %v1808 = vunpack.c.l.b16 %v552
      %v1809 = vunpack.c.l.b16 %v553
      %v1810 = vunpack.c.l.b16 %v554
      %v1811 = vunpack.c.l.b16 %v555
      %v1812 = vunpack.c.l.b16 %v556
      %v1813 = vunpack.c.l.b16 %v557
      %v1814 = vunpack.c.l.b16 %v558
      %v1815 = vunpack.c.l.b16 %v559
      %v1816 = vunpack.c.l.b16 %v560
      %v1817 = vunpack.c.l.b16 %v561
      %v1818 = vunpack.c.l.b16 %v562
      %v1819 = vunpack.c.l.b16 %v563
      %v1820 = vunpack.c.l.b16 %v564
      %v1821 = vunpack.c.l.b16 %v565
      %v1822 = vunpack.c.l.b16 %v566
      %v1823 = vunpack.c.l.b16 %v567
      %v1824 = vunpack.c.l.b16 %v568
      %v1825 = vunpack.c.l.b16 %v569
      %v1826 = vunpack.c.l.b16 %v570
      %v1827 = vunpack.c.l.b16 %v571
      %v1828 = vunpack.c.l.b16 %v572
      %v1829 = vunpack.c.l.b16 %v573
      %v1830 = vunpack.c.l.b16 %v574
      %v1831 = vunpack.c.l.b16 %v575
      %v1832 = vunpack.c.l.b16 %v576
      %v1833 = vunpack.c.l.b16 %v577
      %v1834 = vunpack.c.l.b16 %v578
      %v1835 = vunpack.c.l.b16 %v579
      %v1836 = vunpack.c.l.b16 %v580
      %v1837 = vunpack.c.l.b16 %v581
      %v1838 = vunpack.c.l.b16 %v582
      %v1839 = vunpack.c.l.b16 %v583
      %v1840 = vunpack.c.l.b16 %v584
      %v1841 = vunpack.c.l.b16 %v585
      %v1842 = vunpack.c.l.b16 %v586
      %v1843 = vunpack.c.l.b16 %v587
      %v1844 = vunpack.c.l.b16 %v588
      %v1845 = vunpack.c.l.b16 %v589
      %v1846 = vunpack.c.l.b16 %v590
      %v1847 = vunpack.c.l.b16 %v591
      %v1848 = vunpack.c.l.b16 %v592
      %v1849 = vunpack.c.l.b16 %v593
      %v1850 = vunpack.c.l.b16 %v594
      %v1851 = vunpack.c.l.b16 %v595
      %v1852 = vunpack.c.l.b16 %v596
      %v1853 = vunpack.c.l.b16 %v597
      %v1854 = vunpack.c.l.b16 %v598
      %v1855 = vunpack.c.l.b16 %v599
      %v1856 = vunpack.c.l.b16 %v600
      %v1857 = vunpack.c.l.b16 %v601
      %v1858 = vunpack.c.l.b16 %v602
      %v1859 = vunpack.c.l.b16 %v603
      %v1860 = vunpack.c.l.b16 %v604
      %v1861 = vunpack.c.l.b16 %v605
      %v1862 = vunpack.c.l.b16 %v606
      %v1863 = vunpack.c.l.b16 %v607
      %v1864 = vunpack.c.l.b16 %v608
      %v1865 = vunpack.c.l.b16 %v609
      %v1866 = vunpack.c.l.b16 %v610
      %v1867 = vunpack.c.l.b16 %v611
      %v1868 = vunpack.c.l.b16 %v612
      %v1869 = vunpack.c.l.b16 %v613
      %v1870 = vunpack.c.l.b16 %v614
      %v1871 = vunpack.c.l.b16 %v615
      %v1872 = vunpack.c.l.b16 %v616
      %v1873 = vunpack.c.l.b16 %v617
      %v1874 = vunpack.c.l.b16 %v618
      %v1875 = vunpack.c.l.b16 %v619
      %v1876 = vunpack.c.l.b16 %v620
      %v1877 = vunpack.c.l.b16 %v621
      %v1878 = vunpack.c.l.b16 %v622
      %v1879 = vunpack.c.l.b16 %v623
      %v1880 = vunpack.c.l.b16 %v624
      %v1881 = vunpack.c.l.b16 %v625
      %v1882 = vunpack.c.l.b16 %v626
      %v1883 = vunpack.c.l.b16 %v627
      %v1884 = vunpack.c.l.b16 %v628
      %v1885 = vunpack.c.l.b16 %v629
      %v1886 = vunpack.c.l.b16 %v630
      %v1887 = vunpack.c.l.b16 %v631
      %v1888 = vunpack.c.l.b16 %v632
      %v1889 = vunpack.c.l.b16 %v633
      %v1890 = vunpack.c.l.b16 %v634
      %v1891 = vunpack.c.l.b16 %v635
      %v1892 = vunpack.c.l.b16 %v636
      %v1893 = vunpack.c.l.b16 %v637
      %v1894 = vunpack.c.l.b16 %v638
      %v1895 = vunpack.c.l.b16 %v639
      %v1896 = vunpack.c.l.b16 %v640
      %v1897 = vunpack.c.l.b16 %v641
      %v1898 = vunpack.c.l.b16 %v642
      %v1899 = vunpack.c.l.b16 %v643
      %v1900 = vunpack.c.l.b16 %v644
      %v1901 = vunpack.c.l.b16 %v645
      %v1902 = vunpack.c.l.b16 %v646
      %v1903 = vunpack.c.l.b16 %v647
      %v1904 = vunpack.c.l.b16 %v648
      %v1905 = vunpack.c.l.b16 %v649
      %v1906 = vunpack.c.l.b16 %v650
      %v1907 = vunpack.c.l.b16 %v651
      %v1908 = vunpack.c.l.b16 %v652
      %v1909 = vunpack.c.l.b16 %v653
      %v1910 = vunpack.c.l.b16 %v654
      %v1911 = vunpack.c.l.b16 %v655
      %v1912 = vunpack.c.l.b16 %v656
      %v1913 = vunpack.c.l.b16 %v657
      %v1914 = vunpack.c.l.b16 %v658
      %v1915 = vunpack.c.l.b16 %v659
      %v1916 = vunpack.c.l.b16 %v660
      %v1917 = vpack.c.b16 %v1790, %v1789
      %v1918 = vpack.c.b16 %v1792, %v1791
      %v1919 = vpack.c.b16 %v1794, %v1793
      %v1920 = vpack.c.b16 %v1796, %v1795
      %v1921 = vpack.c.b16 %v1798, %v1797
      %v1922 = vpack.c.b16 %v1800, %v1799
      %v1923 = vpack.c.b16 %v1802, %v1801
      %v1924 = vpack.c.b16 %v1804, %v1803
      %v1925 = vpack.c.b16 %v1806, %v1805
      %v1926 = vpack.c.b16 %v1808, %v1807
      %v1927 = vpack.c.b16 %v1810, %v1809
      %v1928 = vpack.c.b16 %v1812, %v1811
      %v1929 = vpack.c.b16 %v1814, %v1813
      %v1930 = vpack.c.b16 %v1816, %v1815
      %v1931 = vpack.c.b16 %v1818, %v1817
      %v1932 = vpack.c.b16 %v1820, %v1819
      %v1933 = vpack.c.b16 %v1822, %v1821
      %v1934 = vpack.c.b16 %v1824, %v1823
      %v1935 = vpack.c.b16 %v1826, %v1825
      %v1936 = vpack.c.b16 %v1828, %v1827
      %v1937 = vpack.c.b16 %v1830, %v1829
      %v1938 = vpack.c.b16 %v1832, %v1831
      %v1939 = vpack.c.b16 %v1834, %v1833
      %v1940 = vpack.c.b16 %v1836, %v1835
      %v1941 = vpack.c.b16 %v1838, %v1837
      %v1942 = vpack.c.b16 %v1840, %v1839
      %v1943 = vpack.c.b16 %v1842, %v1841
      %v1944 = vpack.c.b16 %v1844, %v1843
      %v1945 = vpack.c.b16 %v1846, %v1845
      %v1946 = vpack.c.b16 %v1848, %v1847
      %v1947 = vpack.c.b16 %v1850, %v1849
      %v1948 = vpack.c.b16 %v1852, %v1851
      %v1949 = vpack.c.b16 %v1854, %v1853
      %v1950 = vpack.c.b16 %v1856, %v1855
      %v1951 = vpack.c.b16 %v1858, %v1857
      %v1952 = vpack.c.b16 %v1860, %v1859
      %v1953 = vpack.c.b16 %v1862, %v1861
      %v1954 = vpack.c.b16 %v1864, %v1863
      %v1955 = vpack.c.b16 %v1866, %v1865
      %v1956 = vpack.c.b16 %v1868, %v1867
      %v1957 = vpack.c.b16 %v1870, %v1869
      %v1958 = vpack.c.b16 %v1872, %v1871
      %v1959 = vpack.c.b16 %v1874, %v1873
      %v1960 = vpack.c.b16 %v1876, %v1875
      %v1961 = vpack.c.b16 %v1878, %v1877
      %v1962 = vpack.c.b16 %v1880, %v1879
      %v1963 = vpack.c.b16 %v1882, %v1881
      %v1964 = vpack.c.b16 %v1884, %v1883
      %v1965 = vpack.c.b16 %v1886, %v1885
      %v1966 = vpack.c.b16 %v1888, %v1887
      %v1967 = vpack.c.b16 %v1890, %v1889
      %v1968 = vpack.c.b16 %v1892, %v1891
      %v1969 = vpack.c.b16 %v1894, %v1893
      %v1970 = vpack.c.b16 %v1896, %v1895
      %v1971 = vpack.c.b16 %v1898, %v1897
      %v1972 = vpack.c.b16 %v1900, %v1899
      %v1973 = vpack.c.b16 %v1902, %v1901
      %v1974 = vpack.c.b16 %v1904, %v1903
      %v1975 = vpack.c.b16 %v1906, %v1905
      %v1976 = vpack.c.b16 %v1908, %v1907
      %v1977 = vpack.c.b16 %v1910, %v1909
      %v1978 = vpack.c.b16 %v1912, %v1911
      %v1979 = vpack.c.b16 %v1914, %v1913
      %v1980 = vpack.c.b16 %v1916, %v1915
      %2045 = vmatprep.subr.bf16.mxu0 0
      %2046 = vmatpush1.bf16.msra.mxu0 %v1924
      %2047 = vmatprep.subr.bf16.mxu0 0
      %2048 = vmatpush1.bf16.msra.mxu0 %v1923
      %2049 = vmatprep.subr.bf16.mxu0 0
      %2050 = vmatpush1.bf16.msra.mxu0 %v1922
      %2051 = vmatprep.subr.bf16.mxu0 0
      %2052 = vmatpush1.bf16.msra.mxu0 %v1921
      %2053 = vmatprep.subr.bf16.mxu0 0
      %2054 = vmatpush1.bf16.msra.mxu0 %v1920
      %2055 = vmatprep.subr.bf16.mxu0 0
      %2056 = vmatpush1.bf16.msra.mxu0 %v1919
      %2057 = vmatprep.subr.bf16.mxu0 0
      %2058 = vmatpush1.bf16.msra.mxu0 %v1918
      %2059 = vmatprep.subr.bf16.mxu0 0
      %2060 = vmatpush1.bf16.msra.mxu0 %v1917
      %2061 = vmatprep.subr.bf16.mxu0 0
      %2062 = vmatpush2.bf16.msra.mxu0 %v1932
      %2063 = vmatprep.subr.bf16.mxu0 0
      %2064 = vmatpush2.bf16.msra.mxu0 %v1931
      %2065 = vmatprep.subr.bf16.mxu0 0
      %2066 = vmatpush2.bf16.msra.mxu0 %v1930
      %2067 = vmatprep.subr.bf16.mxu0 0
      %2068 = vmatpush2.bf16.msra.mxu0 %v1929
      %2069 = vmatprep.subr.bf16.mxu0 0
      %2070 = vmatpush2.bf16.msra.mxu0 %v1928
      %2071 = vmatprep.subr.bf16.mxu0 0
      %2072 = vmatpush2.bf16.msra.mxu0 %v1927
      %2073 = vmatprep.subr.bf16.mxu0 0
      %2074 = vmatpush2.bf16.msra.mxu0 %v1926
      %2075 = vmatprep.subr.bf16.mxu0 0
      %2076 = vmatpush2.bf16.msra.mxu0 %v1925
      %2077 = vmatprep.mubr.bf16.mxu0 %v1262
      %2078 = vmatmul.mubr.bf16.gmra.mxu0 %v1261
      %v2079 = vpop.f32.mrf.mxu0
      %v2080 = vadd.f32 0.0, %v2079
      %v2081 = vpop.f32.mrf.mxu0
      %v2082 = vpop.f32.mrf.mxu0
      %v2083 = vadd.f32 0.0, %v2082
      %v2084 = vpop.f32.mrf.mxu0
      %2085 = vmatprep.mubr.bf16.mxu0 %v1270
      %2086 = vmatmul.mubr.bf16.gmra.mxu0 %v1269
      %v2087 = vpop.f32.mrf.mxu0
      %v2088 = vadd.f32 0.0, %v2087
      %v2089 = vpop.f32.mrf.mxu0
      %v2090 = vpop.f32.mrf.mxu0
      %v2091 = vadd.f32 0.0, %v2090
      %v2092 = vpop.f32.mrf.mxu0
      %2093 = vmatprep.mubr.bf16.mxu0 %v1278
      %2094 = vmatmul.mubr.bf16.gmra.mxu0 %v1277
      %v2095 = vpop.f32.mrf.mxu0
      %v2096 = vadd.f32 0.0, %v2095
      %v2097 = vpop.f32.mrf.mxu0
      %v2098 = vpop.f32.mrf.mxu0
      %v2099 = vadd.f32 0.0, %v2098
      %v2100 = vpop.f32.mrf.mxu0
      %2101 = vmatprep.mubr.bf16.mxu0 %v1286
      %2102 = vmatmul.mubr.bf16.gmra.mxu0 %v1285
      %v2103 = vpop.f32.mrf.mxu0
      %v2104 = vadd.f32 0.0, %v2103
      %v2105 = vpop.f32.mrf.mxu0
      %v2106 = vpop.f32.mrf.mxu0
      %v2107 = vadd.f32 0.0, %v2106
      %v2108 = vpop.f32.mrf.mxu0
      %2109 = vmatprep.mubr.bf16.mxu0 %v1294
      %2110 = vmatmul.mubr.bf16.gmra.mxu0 %v1293
      %v2111 = vpop.f32.mrf.mxu0
      %v2112 = vadd.f32 0.0, %v2111
      %v2113 = vpop.f32.mrf.mxu0
      %v2114 = vpop.f32.mrf.mxu0
      %v2115 = vadd.f32 0.0, %v2114
      %v2116 = vpop.f32.mrf.mxu0
      %2117 = vmatprep.mubr.bf16.mxu0 %v1302
      %2118 = vmatmul.mubr.bf16.gmra.mxu0 %v1301
      %v2119 = vpop.f32.mrf.mxu0
      %v2120 = vadd.f32 0.0, %v2119
      %v2121 = vpop.f32.mrf.mxu0
      %v2122 = vpop.f32.mrf.mxu0
      %v2123 = vadd.f32 0.0, %v2122
      %v2124 = vpop.f32.mrf.mxu0
      %2125 = vmatprep.mubr.bf16.mxu0 %v1310
      %2126 = vmatmul.mubr.bf16.gmra.mxu0 %v1309
      %v2127 = vpop.f32.mrf.mxu0
      %v2128 = vadd.f32 0.0, %v2127
      %v2129 = vpop.f32.mrf.mxu0
      %v2130 = vpop.f32.mrf.mxu0
      %v2131 = vadd.f32 0.0, %v2130
      %v2132 = vpop.f32.mrf.mxu0
      %2133 = vmatprep.mubr.bf16.mxu0 %v1318
      %2134 = vmatmul.mubr.bf16.gmra.mxu0 %v1317
      %v2135 = vpop.f32.mrf.mxu0
      %v2136 = vadd.f32 0.0, %v2135
      %v2137 = vpop.f32.mrf.mxu0
      %v2138 = vpop.f32.mrf.mxu0
      %v2139 = vadd.f32 0.0, %v2138
      %v2140 = vpop.f32.mrf.mxu0
      %2141 = vmatprep.mubr.bf16.mxu0 %v1326
      %2142 = vmatmul.mubr.bf16.gmra.mxu0 %v1325
      %v2143 = vpop.f32.mrf.mxu0
      %v2144 = vadd.f32 0.0, %v2143
      %v2145 = vpop.f32.mrf.mxu0
      %v2146 = vpop.f32.mrf.mxu0
      %v2147 = vadd.f32 0.0, %v2146
      %v2148 = vpop.f32.mrf.mxu0
      %2149 = vmatprep.mubr.bf16.mxu0 %v1334
      %2150 = vmatmul.mubr.bf16.gmra.mxu0 %v1333
      %v2151 = vpop.f32.mrf.mxu0
      %v2152 = vadd.f32 0.0, %v2151
      %v2153 = vpop.f32.mrf.mxu0
      %v2154 = vpop.f32.mrf.mxu0
      %v2155 = vadd.f32 0.0, %v2154
      %v2156 = vpop.f32.mrf.mxu0
      %2157 = vmatprep.mubr.bf16.mxu0 %v1342
      %2158 = vmatmul.mubr.bf16.gmra.mxu0 %v1341
      %v2159 = vpop.f32.mrf.mxu0
      %v2160 = vadd.f32 0.0, %v2159
      %v2161 = vpop.f32.mrf.mxu0
      %v2162 = vpop.f32.mrf.mxu0
      %v2163 = vadd.f32 0.0, %v2162
      %v2164 = vpop.f32.mrf.mxu0
      %2165 = vmatprep.mubr.bf16.mxu0 %v1350
      %2166 = vmatmul.mubr.bf16.gmra.mxu0 %v1349
      %v2167 = vpop.f32.mrf.mxu0
      %v2168 = vadd.f32 0.0, %v2167
      %v2169 = vpop.f32.mrf.mxu0
      %v2170 = vpop.f32.mrf.mxu0
      %v2171 = vadd.f32 0.0, %v2170
      %v2172 = vpop.f32.mrf.mxu0
      %2173 = vmatprep.mubr.bf16.mxu0 %v1358
      %2174 = vmatmul.mubr.bf16.gmra.mxu0 %v1357
      %v2175 = vpop.f32.mrf.mxu0
      %v2176 = vadd.f32 0.0, %v2175
      %v2177 = vpop.f32.mrf.mxu0
      %v2178 = vpop.f32.mrf.mxu0
      %v2179 = vadd.f32 0.0, %v2178
      %v2180 = vpop.f32.mrf.mxu0
      %2181 = vmatprep.mubr.bf16.mxu0 %v1366
      %2182 = vmatmul.mubr.bf16.gmra.mxu0 %v1365
      %v2183 = vpop.f32.mrf.mxu0
      %v2184 = vadd.f32 0.0, %v2183
      %v2185 = vpop.f32.mrf.mxu0
      %v2186 = vpop.f32.mrf.mxu0
      %v2187 = vadd.f32 0.0, %v2186
      %v2188 = vpop.f32.mrf.mxu0
      %2189 = vmatprep.mubr.bf16.mxu0 %v1374
      %2190 = vmatmul.mubr.bf16.gmra.mxu0 %v1373
      %v2191 = vpop.f32.mrf.mxu0
      %v2192 = vadd.f32 0.0, %v2191
      %v2193 = vpop.f32.mrf.mxu0
      %v2194 = vpop.f32.mrf.mxu0
      %v2195 = vadd.f32 0.0, %v2194
      %v2196 = vpop.f32.mrf.mxu0
      %2197 = vmatprep.mubr.bf16.mxu0 %v1382
      %2198 = vmatmul.mubr.bf16.gmra.mxu0 %v1381
      %v2199 = vpop.f32.mrf.mxu0
      %v2200 = vadd.f32 0.0, %v2199
      %v2201 = vpop.f32.mrf.mxu0
      %v2202 = vpop.f32.mrf.mxu0
      %v2203 = vadd.f32 0.0, %v2202
      %v2204 = vpop.f32.mrf.mxu0
      %2205 = vmatprep.mubr.bf16.mxu0 %v1390
      %2206 = vmatmul.mubr.bf16.gmra.mxu0 %v1389
      %v2207 = vpop.f32.mrf.mxu0
      %v2208 = vadd.f32 0.0, %v2207
      %v2209 = vpop.f32.mrf.mxu0
      %v2210 = vpop.f32.mrf.mxu0
      %v2211 = vadd.f32 0.0, %v2210
      %v2212 = vpop.f32.mrf.mxu0
      %2213 = vmatprep.mubr.bf16.mxu0 %v1398
      %2214 = vmatmul.mubr.bf16.gmra.mxu0 %v1397
      %v2215 = vpop.f32.mrf.mxu0
      %v2216 = vadd.f32 0.0, %v2215
      %v2217 = vpop.f32.mrf.mxu0
      %v2218 = vpop.f32.mrf.mxu0
      %v2219 = vadd.f32 0.0, %v2218
      %v2220 = vpop.f32.mrf.mxu0
      %2221 = vmatprep.mubr.bf16.mxu0 %v1406
      %2222 = vmatmul.mubr.bf16.gmra.mxu0 %v1405
      %v2223 = vpop.f32.mrf.mxu0
      %v2224 = vadd.f32 0.0, %v2223
      %v2225 = vpop.f32.mrf.mxu0
      %v2226 = vpop.f32.mrf.mxu0
      %v2227 = vadd.f32 0.0, %v2226
      %v2228 = vpop.f32.mrf.mxu0
      %2229 = vmatprep.mubr.bf16.mxu0 %v1414
      %2230 = vmatmul.mubr.bf16.gmra.mxu0 %v1413
      %v2231 = vpop.f32.mrf.mxu0
      %v2232 = vadd.f32 0.0, %v2231
      %v2233 = vpop.f32.mrf.mxu0
      %v2234 = vpop.f32.mrf.mxu0
      %v2235 = vadd.f32 0.0, %v2234
      %v2236 = vpop.f32.mrf.mxu0
      %2237 = vmatprep.mubr.bf16.mxu0 %v1422
      %2238 = vmatmul.mubr.bf16.gmra.mxu0 %v1421
      %v2239 = vpop.f32.mrf.mxu0
      %v2240 = vadd.f32 0.0, %v2239
      %v2241 = vpop.f32.mrf.mxu0
      %v2242 = vpop.f32.mrf.mxu0
      %v2243 = vadd.f32 0.0, %v2242
      %v2244 = vpop.f32.mrf.mxu0
      %2245 = vmatprep.mubr.bf16.mxu0 %v1430
      %2246 = vmatmul.mubr.bf16.gmra.mxu0 %v1429
      %v2247 = vpop.f32.mrf.mxu0
      %v2248 = vadd.f32 0.0, %v2247
      %v2249 = vpop.f32.mrf.mxu0
      %v2250 = vpop.f32.mrf.mxu0
      %v2251 = vadd.f32 0.0, %v2250
      %v2252 = vpop.f32.mrf.mxu0
      %2253 = vmatprep.mubr.bf16.mxu0 %v1438
      %2254 = vmatmul.mubr.bf16.gmra.mxu0 %v1437
      %v2255 = vpop.f32.mrf.mxu0
      %v2256 = vadd.f32 0.0, %v2255
      %v2257 = vpop.f32.mrf.mxu0
      %v2258 = vpop.f32.mrf.mxu0
      %v2259 = vadd.f32 0.0, %v2258
      %v2260 = vpop.f32.mrf.mxu0
      %2261 = vmatprep.mubr.bf16.mxu0 %v1446
      %2262 = vmatmul.mubr.bf16.gmra.mxu0 %v1445
      %v2263 = vpop.f32.mrf.mxu0
      %v2264 = vadd.f32 0.0, %v2263
      %v2265 = vpop.f32.mrf.mxu0
      %v2266 = vpop.f32.mrf.mxu0
      %v2267 = vadd.f32 0.0, %v2266
      %v2268 = vpop.f32.mrf.mxu0
      %2269 = vmatprep.mubr.bf16.mxu0 %v1454
      %2270 = vmatmul.mubr.bf16.gmra.mxu0 %v1453
      %v2271 = vpop.f32.mrf.mxu0
      %v2272 = vadd.f32 0.0, %v2271
      %v2273 = vpop.f32.mrf.mxu0
      %v2274 = vpop.f32.mrf.mxu0
      %v2275 = vadd.f32 0.0, %v2274
      %v2276 = vpop.f32.mrf.mxu0
      %2277 = vdwg.mxu0
      %2278 = vmatprep.subr.bf16.mxu0 0
      %2279 = vmatpush1.bf16.msra.mxu0 %v1940
      %2280 = vmatprep.subr.bf16.mxu0 0
      %2281 = vmatpush1.bf16.msra.mxu0 %v1939
      %2282 = vmatprep.subr.bf16.mxu0 0
      %2283 = vmatpush1.bf16.msra.mxu0 %v1938
      %2284 = vmatprep.subr.bf16.mxu0 0
      %2285 = vmatpush1.bf16.msra.mxu0 %v1937
      %2286 = vmatprep.subr.bf16.mxu0 0
      %2287 = vmatpush1.bf16.msra.mxu0 %v1936
      %2288 = vmatprep.subr.bf16.mxu0 0
      %2289 = vmatpush1.bf16.msra.mxu0 %v1935
      %2290 = vmatprep.subr.bf16.mxu0 0
      %2291 = vmatpush1.bf16.msra.mxu0 %v1934
      %2292 = vmatprep.subr.bf16.mxu0 0
      %2293 = vmatpush1.bf16.msra.mxu0 %v1933
      %2294 = vmatprep.subr.bf16.mxu0 0
      %2295 = vmatpush2.bf16.msra.mxu0 %v1948
      %2296 = vmatprep.subr.bf16.mxu0 0
      %2297 = vmatpush2.bf16.msra.mxu0 %v1947
      %2298 = vmatprep.subr.bf16.mxu0 0
      %2299 = vmatpush2.bf16.msra.mxu0 %v1946
      %2300 = vmatprep.subr.bf16.mxu0 0
      %2301 = vmatpush2.bf16.msra.mxu0 %v1945
      %2302 = vmatprep.subr.bf16.mxu0 0
      %2303 = vmatpush2.bf16.msra.mxu0 %v1944
      %2304 = vmatprep.subr.bf16.mxu0 0
      %2305 = vmatpush2.bf16.msra.mxu0 %v1943
      %2306 = vmatprep.subr.bf16.mxu0 0
      %2307 = vmatpush2.bf16.msra.mxu0 %v1942
      %2308 = vmatprep.subr.bf16.mxu0 0
      %2309 = vmatpush2.bf16.msra.mxu0 %v1941
      %2310 = vmatprep.mubr.bf16.mxu0 %v1264
      %2311 = vmatmul.mubr.bf16.gmra.mxu0 %v1263
      %v2312 = vpop.f32.mrf.mxu0
      %v2313 = vadd.f32 %v2080, %v2312
      %v2314 = vpop.f32.mrf.mxu0
      %v2315 = vpop.f32.mrf.mxu0
      %v2316 = vadd.f32 %v2083, %v2315
      %v2317 = vpop.f32.mrf.mxu0
      %2318 = vmatprep.mubr.bf16.mxu0 %v1272
      %2319 = vmatmul.mubr.bf16.gmra.mxu0 %v1271
      %v2320 = vpop.f32.mrf.mxu0
      %v2321 = vadd.f32 %v2088, %v2320
      %v2322 = vpop.f32.mrf.mxu0
      %v2323 = vpop.f32.mrf.mxu0
      %v2324 = vadd.f32 %v2091, %v2323
      %v2325 = vpop.f32.mrf.mxu0
      %2326 = vmatprep.mubr.bf16.mxu0 %v1280
      %2327 = vmatmul.mubr.bf16.gmra.mxu0 %v1279
      %v2328 = vpop.f32.mrf.mxu0
      %v2329 = vadd.f32 %v2096, %v2328
      %v2330 = vpop.f32.mrf.mxu0
      %v2331 = vpop.f32.mrf.mxu0
      %v2332 = vadd.f32 %v2099, %v2331
      %v2333 = vpop.f32.mrf.mxu0
      %2334 = vmatprep.mubr.bf16.mxu0 %v1288
      %2335 = vmatmul.mubr.bf16.gmra.mxu0 %v1287
      %v2336 = vpop.f32.mrf.mxu0
      %v2337 = vadd.f32 %v2104, %v2336
      %v2338 = vpop.f32.mrf.mxu0
      %v2339 = vpop.f32.mrf.mxu0
      %v2340 = vadd.f32 %v2107, %v2339
      %v2341 = vpop.f32.mrf.mxu0
      %2342 = vmatprep.mubr.bf16.mxu0 %v1296
      %2343 = vmatmul.mubr.bf16.gmra.mxu0 %v1295
      %v2344 = vpop.f32.mrf.mxu0
      %v2345 = vadd.f32 %v2112, %v2344
      %v2346 = vpop.f32.mrf.mxu0
      %v2347 = vpop.f32.mrf.mxu0
      %v2348 = vadd.f32 %v2115, %v2347
      %v2349 = vpop.f32.mrf.mxu0
      %2350 = vmatprep.mubr.bf16.mxu0 %v1304
      %2351 = vmatmul.mubr.bf16.gmra.mxu0 %v1303
      %v2352 = vpop.f32.mrf.mxu0
      %v2353 = vadd.f32 %v2120, %v2352
      %v2354 = vpop.f32.mrf.mxu0
      %v2355 = vpop.f32.mrf.mxu0
      %v2356 = vadd.f32 %v2123, %v2355
      %v2357 = vpop.f32.mrf.mxu0
      %2358 = vmatprep.mubr.bf16.mxu0 %v1312
      %2359 = vmatmul.mubr.bf16.gmra.mxu0 %v1311
      %v2360 = vpop.f32.mrf.mxu0
      %v2361 = vadd.f32 %v2128, %v2360
      %v2362 = vpop.f32.mrf.mxu0
      %v2363 = vpop.f32.mrf.mxu0
      %v2364 = vadd.f32 %v2131, %v2363
      %v2365 = vpop.f32.mrf.mxu0
      %2366 = vmatprep.mubr.bf16.mxu0 %v1320
      %2367 = vmatmul.mubr.bf16.gmra.mxu0 %v1319
      %v2368 = vpop.f32.mrf.mxu0
      %v2369 = vadd.f32 %v2136, %v2368
      %v2370 = vpop.f32.mrf.mxu0
      %v2371 = vpop.f32.mrf.mxu0
      %v2372 = vadd.f32 %v2139, %v2371
      %v2373 = vpop.f32.mrf.mxu0
      %2374 = vmatprep.mubr.bf16.mxu0 %v1328
      %2375 = vmatmul.mubr.bf16.gmra.mxu0 %v1327
      %v2376 = vpop.f32.mrf.mxu0
      %v2377 = vadd.f32 %v2144, %v2376
      %v2378 = vpop.f32.mrf.mxu0
      %v2379 = vpop.f32.mrf.mxu0
      %v2380 = vadd.f32 %v2147, %v2379
      %v2381 = vpop.f32.mrf.mxu0
      %2382 = vmatprep.mubr.bf16.mxu0 %v1336
      %2383 = vmatmul.mubr.bf16.gmra.mxu0 %v1335
      %v2384 = vpop.f32.mrf.mxu0
      %v2385 = vadd.f32 %v2152, %v2384
      %v2386 = vpop.f32.mrf.mxu0
      %v2387 = vpop.f32.mrf.mxu0
      %v2388 = vadd.f32 %v2155, %v2387
      %v2389 = vpop.f32.mrf.mxu0
      %2390 = vmatprep.mubr.bf16.mxu0 %v1344
      %2391 = vmatmul.mubr.bf16.gmra.mxu0 %v1343
      %v2392 = vpop.f32.mrf.mxu0
      %v2393 = vadd.f32 %v2160, %v2392
      %v2394 = vpop.f32.mrf.mxu0
      %v2395 = vpop.f32.mrf.mxu0
      %v2396 = vadd.f32 %v2163, %v2395
      %v2397 = vpop.f32.mrf.mxu0
      %2398 = vmatprep.mubr.bf16.mxu0 %v1352
      %2399 = vmatmul.mubr.bf16.gmra.mxu0 %v1351
      %v2400 = vpop.f32.mrf.mxu0
      %v2401 = vadd.f32 %v2168, %v2400
      %v2402 = vpop.f32.mrf.mxu0
      %v2403 = vpop.f32.mrf.mxu0
      %v2404 = vadd.f32 %v2171, %v2403
      %v2405 = vpop.f32.mrf.mxu0
      %2406 = vmatprep.mubr.bf16.mxu0 %v1360
      %2407 = vmatmul.mubr.bf16.gmra.mxu0 %v1359
      %v2408 = vpop.f32.mrf.mxu0
      %v2409 = vadd.f32 %v2176, %v2408
      %v2410 = vpop.f32.mrf.mxu0
      %v2411 = vpop.f32.mrf.mxu0
      %v2412 = vadd.f32 %v2179, %v2411
      %v2413 = vpop.f32.mrf.mxu0
      %2414 = vmatprep.mubr.bf16.mxu0 %v1368
      %2415 = vmatmul.mubr.bf16.gmra.mxu0 %v1367
      %v2416 = vpop.f32.mrf.mxu0
      %v2417 = vadd.f32 %v2184, %v2416
      %v2418 = vpop.f32.mrf.mxu0
      %v2419 = vpop.f32.mrf.mxu0
      %v2420 = vadd.f32 %v2187, %v2419
      %v2421 = vpop.f32.mrf.mxu0
      %2422 = vmatprep.mubr.bf16.mxu0 %v1376
      %2423 = vmatmul.mubr.bf16.gmra.mxu0 %v1375
      %v2424 = vpop.f32.mrf.mxu0
      %v2425 = vadd.f32 %v2192, %v2424
      %v2426 = vpop.f32.mrf.mxu0
      %v2427 = vpop.f32.mrf.mxu0
      %v2428 = vadd.f32 %v2195, %v2427
      %v2429 = vpop.f32.mrf.mxu0
      %2430 = vmatprep.mubr.bf16.mxu0 %v1384
      %2431 = vmatmul.mubr.bf16.gmra.mxu0 %v1383
      %v2432 = vpop.f32.mrf.mxu0
      %v2433 = vadd.f32 %v2200, %v2432
      %v2434 = vpop.f32.mrf.mxu0
      %v2435 = vpop.f32.mrf.mxu0
      %v2436 = vadd.f32 %v2203, %v2435
      %v2437 = vpop.f32.mrf.mxu0
      %2438 = vmatprep.mubr.bf16.mxu0 %v1392
      %2439 = vmatmul.mubr.bf16.gmra.mxu0 %v1391
      %v2440 = vpop.f32.mrf.mxu0
      %v2441 = vadd.f32 %v2208, %v2440
      %v2442 = vpop.f32.mrf.mxu0
      %v2443 = vpop.f32.mrf.mxu0
      %v2444 = vadd.f32 %v2211, %v2443
      %v2445 = vpop.f32.mrf.mxu0
      %2446 = vmatprep.mubr.bf16.mxu0 %v1400
      %2447 = vmatmul.mubr.bf16.gmra.mxu0 %v1399
      %v2448 = vpop.f32.mrf.mxu0
      %v2449 = vadd.f32 %v2216, %v2448
      %v2450 = vpop.f32.mrf.mxu0
      %v2451 = vpop.f32.mrf.mxu0
      %v2452 = vadd.f32 %v2219, %v2451
      %v2453 = vpop.f32.mrf.mxu0
      %2454 = vmatprep.mubr.bf16.mxu0 %v1408
      %2455 = vmatmul.mubr.bf16.gmra.mxu0 %v1407
      %v2456 = vpop.f32.mrf.mxu0
      %v2457 = vadd.f32 %v2224, %v2456
      %v2458 = vpop.f32.mrf.mxu0
      %v2459 = vpop.f32.mrf.mxu0
      %v2460 = vadd.f32 %v2227, %v2459
      %v2461 = vpop.f32.mrf.mxu0
      %2462 = vmatprep.mubr.bf16.mxu0 %v1416
      %2463 = vmatmul.mubr.bf16.gmra.mxu0 %v1415
      %v2464 = vpop.f32.mrf.mxu0
      %v2465 = vadd.f32 %v2232, %v2464
      %v2466 = vpop.f32.mrf.mxu0
      %v2467 = vpop.f32.mrf.mxu0
      %v2468 = vadd.f32 %v2235, %v2467
      %v2469 = vpop.f32.mrf.mxu0
      %2470 = vmatprep.mubr.bf16.mxu0 %v1424
      %2471 = vmatmul.mubr.bf16.gmra.mxu0 %v1423
      %v2472 = vpop.f32.mrf.mxu0
      %v2473 = vadd.f32 %v2240, %v2472
      %v2474 = vpop.f32.mrf.mxu0
      %v2475 = vpop.f32.mrf.mxu0
      %v2476 = vadd.f32 %v2243, %v2475
      %v2477 = vpop.f32.mrf.mxu0
      %2478 = vmatprep.mubr.bf16.mxu0 %v1432
      %2479 = vmatmul.mubr.bf16.gmra.mxu0 %v1431
      %v2480 = vpop.f32.mrf.mxu0
      %v2481 = vadd.f32 %v2248, %v2480
      %v2482 = vpop.f32.mrf.mxu0
      %v2483 = vpop.f32.mrf.mxu0
      %v2484 = vadd.f32 %v2251, %v2483
      %v2485 = vpop.f32.mrf.mxu0
      %2486 = vmatprep.mubr.bf16.mxu0 %v1440
      %2487 = vmatmul.mubr.bf16.gmra.mxu0 %v1439
      %v2488 = vpop.f32.mrf.mxu0
      %v2489 = vadd.f32 %v2256, %v2488
      %v2490 = vpop.f32.mrf.mxu0
      %v2491 = vpop.f32.mrf.mxu0
      %v2492 = vadd.f32 %v2259, %v2491
      %v2493 = vpop.f32.mrf.mxu0
      %2494 = vmatprep.mubr.bf16.mxu0 %v1448
      %2495 = vmatmul.mubr.bf16.gmra.mxu0 %v1447
      %v2496 = vpop.f32.mrf.mxu0
      %v2497 = vadd.f32 %v2264, %v2496
      %v2498 = vpop.f32.mrf.mxu0
      %v2499 = vpop.f32.mrf.mxu0
      %v2500 = vadd.f32 %v2267, %v2499
      %v2501 = vpop.f32.mrf.mxu0
      %2502 = vmatprep.mubr.bf16.mxu0 %v1456
      %2503 = vmatmul.mubr.bf16.gmra.mxu0 %v1455
      %v2504 = vpop.f32.mrf.mxu0
      %v2505 = vadd.f32 %v2272, %v2504
      %v2506 = vpop.f32.mrf.mxu0
      %v2507 = vpop.f32.mrf.mxu0
      %v2508 = vadd.f32 %v2275, %v2507
      %v2509 = vpop.f32.mrf.mxu0
      %2510 = vdwg.mxu0
      %2511 = vmatprep.subr.bf16.mxu0 0
      %2512 = vmatpush1.bf16.msra.mxu0 %v1956
      %2513 = vmatprep.subr.bf16.mxu0 0
      %2514 = vmatpush1.bf16.msra.mxu0 %v1955
      %2515 = vmatprep.subr.bf16.mxu0 0
      %2516 = vmatpush1.bf16.msra.mxu0 %v1954
      %2517 = vmatprep.subr.bf16.mxu0 0
      %2518 = vmatpush1.bf16.msra.mxu0 %v1953
      %2519 = vmatprep.subr.bf16.mxu0 0
      %2520 = vmatpush1.bf16.msra.mxu0 %v1952
      %2521 = vmatprep.subr.bf16.mxu0 0
      %2522 = vmatpush1.bf16.msra.mxu0 %v1951
      %2523 = vmatprep.subr.bf16.mxu0 0
      %2524 = vmatpush1.bf16.msra.mxu0 %v1950
      %2525 = vmatprep.subr.bf16.mxu0 0
      %2526 = vmatpush1.bf16.msra.mxu0 %v1949
      %2527 = vmatprep.subr.bf16.mxu0 0
      %2528 = vmatpush2.bf16.msra.mxu0 %v1964
      %2529 = vmatprep.subr.bf16.mxu0 0
      %2530 = vmatpush2.bf16.msra.mxu0 %v1963
      %2531 = vmatprep.subr.bf16.mxu0 0
      %2532 = vmatpush2.bf16.msra.mxu0 %v1962
      %2533 = vmatprep.subr.bf16.mxu0 0
      %2534 = vmatpush2.bf16.msra.mxu0 %v1961
      %2535 = vmatprep.subr.bf16.mxu0 0
      %2536 = vmatpush2.bf16.msra.mxu0 %v1960
      %2537 = vmatprep.subr.bf16.mxu0 0
      %2538 = vmatpush2.bf16.msra.mxu0 %v1959
      %2539 = vmatprep.subr.bf16.mxu0 0
      %2540 = vmatpush2.bf16.msra.mxu0 %v1958
      %2541 = vmatprep.subr.bf16.mxu0 0
      %2542 = vmatpush2.bf16.msra.mxu0 %v1957
      %2543 = vmatprep.mubr.bf16.mxu0 %v1266
      %2544 = vmatmul.mubr.bf16.gmra.mxu0 %v1265
      %v2545 = vpop.f32.mrf.mxu0
      %v2546 = vadd.f32 %v2313, %v2545
      %v2547 = vpop.f32.mrf.mxu0
      %v2548 = vpop.f32.mrf.mxu0
      %v2549 = vadd.f32 %v2316, %v2548
      %v2550 = vpop.f32.mrf.mxu0
      %2551 = vmatprep.mubr.bf16.mxu0 %v1274
      %2552 = vmatmul.mubr.bf16.gmra.mxu0 %v1273
      %v2553 = vpop.f32.mrf.mxu0
      %v2554 = vadd.f32 %v2321, %v2553
      %v2555 = vpop.f32.mrf.mxu0
      %v2556 = vpop.f32.mrf.mxu0
      %v2557 = vadd.f32 %v2324, %v2556
      %v2558 = vpop.f32.mrf.mxu0
      %2559 = vmatprep.mubr.bf16.mxu0 %v1282
      %2560 = vmatmul.mubr.bf16.gmra.mxu0 %v1281
      %v2561 = vpop.f32.mrf.mxu0
      %v2562 = vadd.f32 %v2329, %v2561
      %v2563 = vpop.f32.mrf.mxu0
      %v2564 = vpop.f32.mrf.mxu0
      %v2565 = vadd.f32 %v2332, %v2564
      %v2566 = vpop.f32.mrf.mxu0
      %2567 = vmatprep.mubr.bf16.mxu0 %v1290
      %2568 = vmatmul.mubr.bf16.gmra.mxu0 %v1289
      %v2569 = vpop.f32.mrf.mxu0
      %v2570 = vadd.f32 %v2337, %v2569
      %v2571 = vpop.f32.mrf.mxu0
      %v2572 = vpop.f32.mrf.mxu0
      %v2573 = vadd.f32 %v2340, %v2572
      %v2574 = vpop.f32.mrf.mxu0
      %2575 = vmatprep.mubr.bf16.mxu0 %v1298
      %2576 = vmatmul.mubr.bf16.gmra.mxu0 %v1297
      %v2577 = vpop.f32.mrf.mxu0
      %v2578 = vadd.f32 %v2345, %v2577
      %v2579 = vpop.f32.mrf.mxu0
      %v2580 = vpop.f32.mrf.mxu0
      %v2581 = vadd.f32 %v2348, %v2580
      %v2582 = vpop.f32.mrf.mxu0
      %2583 = vmatprep.mubr.bf16.mxu0 %v1306
      %2584 = vmatmul.mubr.bf16.gmra.mxu0 %v1305
      %v2585 = vpop.f32.mrf.mxu0
      %v2586 = vadd.f32 %v2353, %v2585
      %v2587 = vpop.f32.mrf.mxu0
      %v2588 = vpop.f32.mrf.mxu0
      %v2589 = vadd.f32 %v2356, %v2588
      %v2590 = vpop.f32.mrf.mxu0
      %2591 = vmatprep.mubr.bf16.mxu0 %v1314
      %2592 = vmatmul.mubr.bf16.gmra.mxu0 %v1313
      %v2593 = vpop.f32.mrf.mxu0
      %v2594 = vadd.f32 %v2361, %v2593
      %v2595 = vpop.f32.mrf.mxu0
      %v2596 = vpop.f32.mrf.mxu0
      %v2597 = vadd.f32 %v2364, %v2596
      %v2598 = vpop.f32.mrf.mxu0
      %2599 = vmatprep.mubr.bf16.mxu0 %v1322
      %2600 = vmatmul.mubr.bf16.gmra.mxu0 %v1321
      %v2601 = vpop.f32.mrf.mxu0
      %v2602 = vadd.f32 %v2369, %v2601
      %v2603 = vpop.f32.mrf.mxu0
      %v2604 = vpop.f32.mrf.mxu0
      %v2605 = vadd.f32 %v2372, %v2604
      %v2606 = vpop.f32.mrf.mxu0
      %2607 = vmatprep.mubr.bf16.mxu0 %v1330
      %2608 = vmatmul.mubr.bf16.gmra.mxu0 %v1329
      %v2609 = vpop.f32.mrf.mxu0
      %v2610 = vadd.f32 %v2377, %v2609
      %v2611 = vpop.f32.mrf.mxu0
      %v2612 = vpop.f32.mrf.mxu0
      %v2613 = vadd.f32 %v2380, %v2612
      %v2614 = vpop.f32.mrf.mxu0
      %2615 = vmatprep.mubr.bf16.mxu0 %v1338
      %2616 = vmatmul.mubr.bf16.gmra.mxu0 %v1337
      %v2617 = vpop.f32.mrf.mxu0
      %v2618 = vadd.f32 %v2385, %v2617
      %v2619 = vpop.f32.mrf.mxu0
      %v2620 = vpop.f32.mrf.mxu0
      %v2621 = vadd.f32 %v2388, %v2620
      %v2622 = vpop.f32.mrf.mxu0
      %2623 = vmatprep.mubr.bf16.mxu0 %v1346
      %2624 = vmatmul.mubr.bf16.gmra.mxu0 %v1345
      %v2625 = vpop.f32.mrf.mxu0
      %v2626 = vadd.f32 %v2393, %v2625
      %v2627 = vpop.f32.mrf.mxu0
      %v2628 = vpop.f32.mrf.mxu0
      %v2629 = vadd.f32 %v2396, %v2628
      %v2630 = vpop.f32.mrf.mxu0
      %2631 = vmatprep.mubr.bf16.mxu0 %v1354
      %2632 = vmatmul.mubr.bf16.gmra.mxu0 %v1353
      %v2633 = vpop.f32.mrf.mxu0
      %v2634 = vadd.f32 %v2401, %v2633
      %v2635 = vpop.f32.mrf.mxu0
      %v2636 = vpop.f32.mrf.mxu0
      %v2637 = vadd.f32 %v2404, %v2636
      %v2638 = vpop.f32.mrf.mxu0
      %2639 = vmatprep.mubr.bf16.mxu0 %v1362
      %2640 = vmatmul.mubr.bf16.gmra.mxu0 %v1361
      %v2641 = vpop.f32.mrf.mxu0
      %v2642 = vadd.f32 %v2409, %v2641
      %v2643 = vpop.f32.mrf.mxu0
      %v2644 = vpop.f32.mrf.mxu0
      %v2645 = vadd.f32 %v2412, %v2644
      %v2646 = vpop.f32.mrf.mxu0
      %2647 = vmatprep.mubr.bf16.mxu0 %v1370
      %2648 = vmatmul.mubr.bf16.gmra.mxu0 %v1369
      %v2649 = vpop.f32.mrf.mxu0
      %v2650 = vadd.f32 %v2417, %v2649
      %v2651 = vpop.f32.mrf.mxu0
      %v2652 = vpop.f32.mrf.mxu0
      %v2653 = vadd.f32 %v2420, %v2652
      %v2654 = vpop.f32.mrf.mxu0
      %2655 = vmatprep.mubr.bf16.mxu0 %v1378
      %2656 = vmatmul.mubr.bf16.gmra.mxu0 %v1377
      %v2657 = vpop.f32.mrf.mxu0
      %v2658 = vadd.f32 %v2425, %v2657
      %v2659 = vpop.f32.mrf.mxu0
      %v2660 = vpop.f32.mrf.mxu0
      %v2661 = vadd.f32 %v2428, %v2660
      %v2662 = vpop.f32.mrf.mxu0
      %2663 = vmatprep.mubr.bf16.mxu0 %v1386
      %2664 = vmatmul.mubr.bf16.gmra.mxu0 %v1385
      %v2665 = vpop.f32.mrf.mxu0
      %v2666 = vadd.f32 %v2433, %v2665
      %v2667 = vpop.f32.mrf.mxu0
      %v2668 = vpop.f32.mrf.mxu0
      %v2669 = vadd.f32 %v2436, %v2668
      %v2670 = vpop.f32.mrf.mxu0
      %2671 = vmatprep.mubr.bf16.mxu0 %v1394
      %2672 = vmatmul.mubr.bf16.gmra.mxu0 %v1393
      %v2673 = vpop.f32.mrf.mxu0
      %v2674 = vadd.f32 %v2441, %v2673
      %v2675 = vpop.f32.mrf.mxu0
      %v2676 = vpop.f32.mrf.mxu0
      %v2677 = vadd.f32 %v2444, %v2676
      %v2678 = vpop.f32.mrf.mxu0
      %2679 = vmatprep.mubr.bf16.mxu0 %v1402
      %2680 = vmatmul.mubr.bf16.gmra.mxu0 %v1401
      %v2681 = vpop.f32.mrf.mxu0
      %v2682 = vadd.f32 %v2449, %v2681
      %v2683 = vpop.f32.mrf.mxu0
      %v2684 = vpop.f32.mrf.mxu0
      %v2685 = vadd.f32 %v2452, %v2684
      %v2686 = vpop.f32.mrf.mxu0
      %2687 = vmatprep.mubr.bf16.mxu0 %v1410
      %2688 = vmatmul.mubr.bf16.gmra.mxu0 %v1409
      %v2689 = vpop.f32.mrf.mxu0
      %v2690 = vadd.f32 %v2457, %v2689
      %v2691 = vpop.f32.mrf.mxu0
      %v2692 = vpop.f32.mrf.mxu0
      %v2693 = vadd.f32 %v2460, %v2692
      %v2694 = vpop.f32.mrf.mxu0
      %2695 = vmatprep.mubr.bf16.mxu0 %v1418
      %2696 = vmatmul.mubr.bf16.gmra.mxu0 %v1417
      %v2697 = vpop.f32.mrf.mxu0
      %v2698 = vadd.f32 %v2465, %v2697
      %v2699 = vpop.f32.mrf.mxu0
      %v2700 = vpop.f32.mrf.mxu0
      %v2701 = vadd.f32 %v2468, %v2700
      %v2702 = vpop.f32.mrf.mxu0
      %2703 = vmatprep.mubr.bf16.mxu0 %v1426
      %2704 = vmatmul.mubr.bf16.gmra.mxu0 %v1425
      %v2705 = vpop.f32.mrf.mxu0
      %v2706 = vadd.f32 %v2473, %v2705
      %v2707 = vpop.f32.mrf.mxu0
      %v2708 = vpop.f32.mrf.mxu0
      %v2709 = vadd.f32 %v2476, %v2708
      %v2710 = vpop.f32.mrf.mxu0
      %2711 = vmatprep.mubr.bf16.mxu0 %v1434
      %2712 = vmatmul.mubr.bf16.gmra.mxu0 %v1433
      %v2713 = vpop.f32.mrf.mxu0
      %v2714 = vadd.f32 %v2481, %v2713
      %v2715 = vpop.f32.mrf.mxu0
      %v2716 = vpop.f32.mrf.mxu0
      %v2717 = vadd.f32 %v2484, %v2716
      %v2718 = vpop.f32.mrf.mxu0
      %2719 = vmatprep.mubr.bf16.mxu0 %v1442
      %2720 = vmatmul.mubr.bf16.gmra.mxu0 %v1441
      %v2721 = vpop.f32.mrf.mxu0
      %v2722 = vadd.f32 %v2489, %v2721
      %v2723 = vpop.f32.mrf.mxu0
      %v2724 = vpop.f32.mrf.mxu0
      %v2725 = vadd.f32 %v2492, %v2724
      %v2726 = vpop.f32.mrf.mxu0
      %2727 = vmatprep.mubr.bf16.mxu0 %v1450
      %2728 = vmatmul.mubr.bf16.gmra.mxu0 %v1449
      %v2729 = vpop.f32.mrf.mxu0
      %v2730 = vadd.f32 %v2497, %v2729
      %v2731 = vpop.f32.mrf.mxu0
      %v2732 = vpop.f32.mrf.mxu0
      %v2733 = vadd.f32 %v2500, %v2732
      %v2734 = vpop.f32.mrf.mxu0
      %2735 = vmatprep.mubr.bf16.mxu0 %v1458
      %2736 = vmatmul.mubr.bf16.gmra.mxu0 %v1457
      %v2737 = vpop.f32.mrf.mxu0
      %v2738 = vadd.f32 %v2505, %v2737
      %v2739 = vpop.f32.mrf.mxu0
      %v2740 = vpop.f32.mrf.mxu0
      %v2741 = vadd.f32 %v2508, %v2740
      %v2742 = vpop.f32.mrf.mxu0
      %2743 = vdwg.mxu0
      %2744 = vmatprep.subr.bf16.mxu0 0
      %2745 = vmatpush1.bf16.msra.mxu0 %v1972
      %2746 = vmatprep.subr.bf16.mxu0 0
      %2747 = vmatpush1.bf16.msra.mxu0 %v1971
      %2748 = vmatprep.subr.bf16.mxu0 0
      %2749 = vmatpush1.bf16.msra.mxu0 %v1970
      %2750 = vmatprep.subr.bf16.mxu0 0
      %2751 = vmatpush1.bf16.msra.mxu0 %v1969
      %2752 = vmatprep.subr.bf16.mxu0 0
      %2753 = vmatpush1.bf16.msra.mxu0 %v1968
      %2754 = vmatprep.subr.bf16.mxu0 0
      %2755 = vmatpush1.bf16.msra.mxu0 %v1967
      %2756 = vmatprep.subr.bf16.mxu0 0
      %2757 = vmatpush1.bf16.msra.mxu0 %v1966
      %2758 = vmatprep.subr.bf16.mxu0 0
      %2759 = vmatpush1.bf16.msra.mxu0 %v1965
      %2760 = vmatprep.subr.bf16.mxu0 0
      %2761 = vmatpush2.bf16.msra.mxu0 %v1980
      %2762 = vmatprep.subr.bf16.mxu0 0
      %2763 = vmatpush2.bf16.msra.mxu0 %v1979
      %2764 = vmatprep.subr.bf16.mxu0 0
      %2765 = vmatpush2.bf16.msra.mxu0 %v1978
      %2766 = vmatprep.subr.bf16.mxu0 0
      %2767 = vmatpush2.bf16.msra.mxu0 %v1977
      %2768 = vmatprep.subr.bf16.mxu0 0
      %2769 = vmatpush2.bf16.msra.mxu0 %v1976
      %2770 = vmatprep.subr.bf16.mxu0 0
      %2771 = vmatpush2.bf16.msra.mxu0 %v1975
      %2772 = vmatprep.subr.bf16.mxu0 0
      %2773 = vmatpush2.bf16.msra.mxu0 %v1974
      %2774 = vmatprep.subr.bf16.mxu0 0
      %2775 = vmatpush2.bf16.msra.mxu0 %v1973
      %2776 = vmatprep.mubr.bf16.mxu0 %v1268
      %2777 = vmatmul.mubr.bf16.gmra.mxu0 %v1267
      %v2778 = vpop.f32.mrf.mxu0
      %v2779 = vadd.f32 %v2546, %v2778
      %v2780 = vpop.f32.mrf.mxu0
      %v2781 = vpop.f32.mrf.mxu0
      %v2782 = vadd.f32 %v2549, %v2781
      %v2783 = vpop.f32.mrf.mxu0
      %2784 = vmatprep.mubr.bf16.mxu0 %v1276
      %2785 = vmatmul.mubr.bf16.gmra.mxu0 %v1275
      %v2786 = vpop.f32.mrf.mxu0
      %v2787 = vadd.f32 %v2554, %v2786
      %v2788 = vpop.f32.mrf.mxu0
      %v2789 = vpop.f32.mrf.mxu0
      %v2790 = vadd.f32 %v2557, %v2789
      %v2791 = vpop.f32.mrf.mxu0
      %2792 = vmatprep.mubr.bf16.mxu0 %v1284
      %2793 = vmatmul.mubr.bf16.gmra.mxu0 %v1283
      %v2794 = vpop.f32.mrf.mxu0
      %v2795 = vadd.f32 %v2562, %v2794
      %v2796 = vpop.f32.mrf.mxu0
      %v2797 = vpop.f32.mrf.mxu0
      %v2798 = vadd.f32 %v2565, %v2797
      %v2799 = vpop.f32.mrf.mxu0
      %2800 = vmatprep.mubr.bf16.mxu0 %v1292
      %2801 = vmatmul.mubr.bf16.gmra.mxu0 %v1291
      %v2802 = vpop.f32.mrf.mxu0
      %v2803 = vadd.f32 %v2570, %v2802
      %v2804 = vpop.f32.mrf.mxu0
      %v2805 = vpop.f32.mrf.mxu0
      %v2806 = vadd.f32 %v2573, %v2805
      %v2807 = vpop.f32.mrf.mxu0
      %2808 = vmatprep.mubr.bf16.mxu0 %v1300
      %2809 = vmatmul.mubr.bf16.gmra.mxu0 %v1299
      %v2810 = vpop.f32.mrf.mxu0
      %v2811 = vadd.f32 %v2578, %v2810
      %v2812 = vpop.f32.mrf.mxu0
      %v2813 = vpop.f32.mrf.mxu0
      %v2814 = vadd.f32 %v2581, %v2813
      %v2815 = vpop.f32.mrf.mxu0
      %2816 = vmatprep.mubr.bf16.mxu0 %v1308
      %2817 = vmatmul.mubr.bf16.gmra.mxu0 %v1307
      %v2818 = vpop.f32.mrf.mxu0
      %v2819 = vadd.f32 %v2586, %v2818
      %v2820 = vpop.f32.mrf.mxu0
      %v2821 = vpop.f32.mrf.mxu0
      %v2822 = vadd.f32 %v2589, %v2821
      %v2823 = vpop.f32.mrf.mxu0
      %2824 = vmatprep.mubr.bf16.mxu0 %v1316
      %2825 = vmatmul.mubr.bf16.gmra.mxu0 %v1315
      %v2826 = vpop.f32.mrf.mxu0
      %v2827 = vadd.f32 %v2594, %v2826
      %v2828 = vpop.f32.mrf.mxu0
      %v2829 = vpop.f32.mrf.mxu0
      %v2830 = vadd.f32 %v2597, %v2829
      %v2831 = vpop.f32.mrf.mxu0
      %2832 = vmatprep.mubr.bf16.mxu0 %v1324
      %2833 = vmatmul.mubr.bf16.gmra.mxu0 %v1323
      %v2834 = vpop.f32.mrf.mxu0
      %v2835 = vadd.f32 %v2602, %v2834
      %v2836 = vpop.f32.mrf.mxu0
      %v2837 = vpop.f32.mrf.mxu0
      %v2838 = vadd.f32 %v2605, %v2837
      %v2839 = vpop.f32.mrf.mxu0
      %2840 = vmatprep.mubr.bf16.mxu0 %v1332
      %2841 = vmatmul.mubr.bf16.gmra.mxu0 %v1331
      %v2842 = vpop.f32.mrf.mxu0
      %v2843 = vadd.f32 %v2610, %v2842
      %v2844 = vpop.f32.mrf.mxu0
      %v2845 = vpop.f32.mrf.mxu0
      %v2846 = vadd.f32 %v2613, %v2845
      %v2847 = vpop.f32.mrf.mxu0
      %2848 = vmatprep.mubr.bf16.mxu0 %v1340
      %2849 = vmatmul.mubr.bf16.gmra.mxu0 %v1339
      %v2850 = vpop.f32.mrf.mxu0
      %v2851 = vadd.f32 %v2618, %v2850
      %v2852 = vpop.f32.mrf.mxu0
      %v2853 = vpop.f32.mrf.mxu0
      %v2854 = vadd.f32 %v2621, %v2853
      %v2855 = vpop.f32.mrf.mxu0
      %2856 = vmatprep.mubr.bf16.mxu0 %v1348
      %2857 = vmatmul.mubr.bf16.gmra.mxu0 %v1347
      %v2858 = vpop.f32.mrf.mxu0
      %v2859 = vadd.f32 %v2626, %v2858
      %v2860 = vpop.f32.mrf.mxu0
      %v2861 = vpop.f32.mrf.mxu0
      %v2862 = vadd.f32 %v2629, %v2861
      %v2863 = vpop.f32.mrf.mxu0
      %2864 = vmatprep.mubr.bf16.mxu0 %v1356
      %2865 = vmatmul.mubr.bf16.gmra.mxu0 %v1355
      %v2866 = vpop.f32.mrf.mxu0
      %v2867 = vadd.f32 %v2634, %v2866
      %v2868 = vpop.f32.mrf.mxu0
      %v2869 = vpop.f32.mrf.mxu0
      %v2870 = vadd.f32 %v2637, %v2869
      %v2871 = vpop.f32.mrf.mxu0
      %2872 = vmatprep.mubr.bf16.mxu0 %v1364
      %2873 = vmatmul.mubr.bf16.gmra.mxu0 %v1363
      %v2874 = vpop.f32.mrf.mxu0
      %v2875 = vadd.f32 %v2642, %v2874
      %v2876 = vpop.f32.mrf.mxu0
      %v2877 = vpop.f32.mrf.mxu0
      %v2878 = vadd.f32 %v2645, %v2877
      %v2879 = vpop.f32.mrf.mxu0
      %2880 = vmatprep.mubr.bf16.mxu0 %v1372
      %2881 = vmatmul.mubr.bf16.gmra.mxu0 %v1371
      %v2882 = vpop.f32.mrf.mxu0
      %v2883 = vadd.f32 %v2650, %v2882
      %v2884 = vpop.f32.mrf.mxu0
      %v2885 = vpop.f32.mrf.mxu0
      %v2886 = vadd.f32 %v2653, %v2885
      %v2887 = vpop.f32.mrf.mxu0
      %2888 = vmatprep.mubr.bf16.mxu0 %v1380
      %2889 = vmatmul.mubr.bf16.gmra.mxu0 %v1379
      %v2890 = vpop.f32.mrf.mxu0
      %v2891 = vadd.f32 %v2658, %v2890
      %v2892 = vpop.f32.mrf.mxu0
      %v2893 = vpop.f32.mrf.mxu0
      %v2894 = vadd.f32 %v2661, %v2893
      %v2895 = vpop.f32.mrf.mxu0
      %2896 = vmatprep.mubr.bf16.mxu0 %v1388
      %2897 = vmatmul.mubr.bf16.gmra.mxu0 %v1387
      %v2898 = vpop.f32.mrf.mxu0
      %v2899 = vadd.f32 %v2666, %v2898
      %v2900 = vpop.f32.mrf.mxu0
      %v2901 = vpop.f32.mrf.mxu0
      %v2902 = vadd.f32 %v2669, %v2901
      %v2903 = vpop.f32.mrf.mxu0
      %2904 = vmatprep.mubr.bf16.mxu0 %v1396
      %2905 = vmatmul.mubr.bf16.gmra.mxu0 %v1395
      %v2906 = vpop.f32.mrf.mxu0
      %v2907 = vadd.f32 %v2674, %v2906
      %v2908 = vpop.f32.mrf.mxu0
      %v2909 = vpop.f32.mrf.mxu0
      %v2910 = vadd.f32 %v2677, %v2909
      %v2911 = vpop.f32.mrf.mxu0
      %2912 = vmatprep.mubr.bf16.mxu0 %v1404
      %2913 = vmatmul.mubr.bf16.gmra.mxu0 %v1403
      %v2914 = vpop.f32.mrf.mxu0
      %v2915 = vadd.f32 %v2682, %v2914
      %v2916 = vpop.f32.mrf.mxu0
      %v2917 = vpop.f32.mrf.mxu0
      %v2918 = vadd.f32 %v2685, %v2917
      %v2919 = vpop.f32.mrf.mxu0
      %2920 = vmatprep.mubr.bf16.mxu0 %v1412
      %2921 = vmatmul.mubr.bf16.gmra.mxu0 %v1411
      %v2922 = vpop.f32.mrf.mxu0
      %v2923 = vadd.f32 %v2690, %v2922
      %v2924 = vpop.f32.mrf.mxu0
      %v2925 = vpop.f32.mrf.mxu0
      %v2926 = vadd.f32 %v2693, %v2925
      %v2927 = vpop.f32.mrf.mxu0
      %2928 = vmatprep.mubr.bf16.mxu0 %v1420
      %2929 = vmatmul.mubr.bf16.gmra.mxu0 %v1419
      %v2930 = vpop.f32.mrf.mxu0
      %v2931 = vadd.f32 %v2698, %v2930
      %v2932 = vpop.f32.mrf.mxu0
      %v2933 = vpop.f32.mrf.mxu0
      %v2934 = vadd.f32 %v2701, %v2933
      %v2935 = vpop.f32.mrf.mxu0
      %2936 = vmatprep.mubr.bf16.mxu0 %v1428
      %2937 = vmatmul.mubr.bf16.gmra.mxu0 %v1427
      %v2938 = vpop.f32.mrf.mxu0
      %v2939 = vadd.f32 %v2706, %v2938
      %v2940 = vpop.f32.mrf.mxu0
      %v2941 = vpop.f32.mrf.mxu0
      %v2942 = vadd.f32 %v2709, %v2941
      %v2943 = vpop.f32.mrf.mxu0
      %2944 = vmatprep.mubr.bf16.mxu0 %v1436
      %2945 = vmatmul.mubr.bf16.gmra.mxu0 %v1435
      %v2946 = vpop.f32.mrf.mxu0
      %v2947 = vadd.f32 %v2714, %v2946
      %v2948 = vpop.f32.mrf.mxu0
      %v2949 = vpop.f32.mrf.mxu0
      %v2950 = vadd.f32 %v2717, %v2949
      %v2951 = vpop.f32.mrf.mxu0
      %2952 = vmatprep.mubr.bf16.mxu0 %v1444
      %2953 = vmatmul.mubr.bf16.gmra.mxu0 %v1443
      %v2954 = vpop.f32.mrf.mxu0
      %v2955 = vadd.f32 %v2722, %v2954
      %v2956 = vpop.f32.mrf.mxu0
      %v2957 = vpop.f32.mrf.mxu0
      %v2958 = vadd.f32 %v2725, %v2957
      %v2959 = vpop.f32.mrf.mxu0
      %2960 = vmatprep.mubr.bf16.mxu0 %v1452
      %2961 = vmatmul.mubr.bf16.gmra.mxu0 %v1451
      %v2962 = vpop.f32.mrf.mxu0
      %v2963 = vadd.f32 %v2730, %v2962
      %v2964 = vpop.f32.mrf.mxu0
      %v2965 = vpop.f32.mrf.mxu0
      %v2966 = vadd.f32 %v2733, %v2965
      %v2967 = vpop.f32.mrf.mxu0
      %2968 = vmatprep.mubr.bf16.mxu0 %v1460
      %2969 = vmatmul.mubr.bf16.gmra.mxu0 %v1459
      %v2970 = vpop.f32.mrf.mxu0
      %v2971 = vadd.f32 %v2738, %v2970
      %v2972 = vpop.f32.mrf.mxu0
      %v2973 = vpop.f32.mrf.mxu0
      %v2974 = vadd.f32 %v2741, %v2973
      %v2975 = vpop.f32.mrf.mxu0
      %2976 = vdwg.mxu0
      %v2977 = vadd.f32 %v283, %v2779
      %v2978 = vadd.f32 %v284, %v2782
      %v2979 = vadd.f32 %v285, %v2787
      %v2980 = vadd.f32 %v286, %v2790
      %v2981 = vadd.f32 %v287, %v2795
      %v2982 = vadd.f32 %v288, %v2798
      %v2983 = vadd.f32 %v289, %v2803
      %v2984 = vadd.f32 %v290, %v2806
      %v2985 = vadd.f32 %v291, %v2811
      %v2986 = vadd.f32 %v292, %v2814
      %v2987 = vadd.f32 %v293, %v2819
      %v2988 = vadd.f32 %v294, %v2822
      %v2989 = vadd.f32 %v295, %v2827
      %v2990 = vadd.f32 %v296, %v2830
      %v2991 = vadd.f32 %v297, %v2835
      %v2992 = vadd.f32 %v298, %v2838
      %v2993 = vadd.f32 %v299, %v2843
      %v2994 = vadd.f32 %v300, %v2846
      %v2995 = vadd.f32 %v301, %v2851
      %v2996 = vadd.f32 %v302, %v2854
      %v2997 = vadd.f32 %v303, %v2859
      %v2998 = vadd.f32 %v304, %v2862
      %v2999 = vadd.f32 %v305, %v2867
      %v3000 = vadd.f32 %v306, %v2870
      %v3001 = vadd.f32 %v307, %v2875
      %v3002 = vadd.f32 %v308, %v2878
      %v3003 = vadd.f32 %v309, %v2883
      %v3004 = vadd.f32 %v310, %v2886
      %v3005 = vadd.f32 %v311, %v2891
      %v3006 = vadd.f32 %v312, %v2894
      %v3007 = vadd.f32 %v313, %v2899
      %v3008 = vadd.f32 %v314, %v2902
      %v3009 = vadd.f32 %v315, %v2907
      %v3010 = vadd.f32 %v316, %v2910
      %v3011 = vadd.f32 %v317, %v2915
      %v3012 = vadd.f32 %v318, %v2918
      %v3013 = vadd.f32 %v319, %v2923
      %v3014 = vadd.f32 %v320, %v2926
      %v3015 = vadd.f32 %v321, %v2931
      %v3016 = vadd.f32 %v322, %v2934
      %v3017 = vadd.f32 %v323, %v2939
      %v3018 = vadd.f32 %v324, %v2942
      %v3019 = vadd.f32 %v325, %v2947
      %v3020 = vadd.f32 %v326, %v2950
      %v3021 = vadd.f32 %v327, %v2955
      %v3022 = vadd.f32 %v328, %v2958
      %v3023 = vadd.f32 %v329, %v2963
      %v3024 = vadd.f32 %v330, %v2966
      %v3025 = vadd.f32 %v331, %v2971
      %v3026 = vadd.f32 %v332, %v2974
      %vm3027 = vcmask 261120
      %3028 = vst.msk [vmem:[#allocation2] sm:$0xff] %vm3027, %v2977
      %3029 = vst.msk [vmem:[#allocation2 + $0x8] sm:$0xff] %vm3027, %v2978
      %3030 = vst.msk [vmem:[#allocation2 + $0x10] sm:$0xff] %vm3027, %v2979
      %3031 = vst.msk [vmem:[#allocation2 + $0x18] sm:$0xff] %vm3027, %v2980
      %3032 = vst.msk [vmem:[#allocation2 + $0x20] sm:$0xff] %vm3027, %v2981
      %3033 = vst.msk [vmem:[#allocation2 + $0x28] sm:$0xff] %vm3027, %v2982
      %3034 = vst.msk [vmem:[#allocation2 + $0x30] sm:$0xff] %vm3027, %v2983
      %3035 = vst.msk [vmem:[#allocation2 + $0x38] sm:$0xff] %vm3027, %v2984
      %3036 = vst.msk [vmem:[#allocation2 + $0x40] sm:$0xff] %vm3027, %v2985
      %3037 = vst.msk [vmem:[#allocation2 + $0x48] sm:$0xff] %vm3027, %v2986
      %3038 = vst.msk [vmem:[#allocation2 + $0x50] sm:$0xff] %vm3027, %v2987
      %3039 = vst.msk [vmem:[#allocation2 + $0x58] sm:$0xff] %vm3027, %v2988
      %3040 = vst.msk [vmem:[#allocation2 + $0x60] sm:$0xff] %vm3027, %v2989
      %3041 = vst.msk [vmem:[#allocation2 + $0x68] sm:$0xff] %vm3027, %v2990
      %3042 = vst.msk [vmem:[#allocation2 + $0x70] sm:$0xff] %vm3027, %v2991
      %3043 = vst.msk [vmem:[#allocation2 + $0x78] sm:$0xff] %vm3027, %v2992
      %3044 = vst.msk [vmem:[#allocation2 + $0x80] sm:$0xff] %vm3027, %v2993
      %3045 = vst.msk [vmem:[#allocation2 + $0x88] sm:$0xff] %vm3027, %v2994
      %3046 = vst.msk [vmem:[#allocation2 + $0x90] sm:$0xff] %vm3027, %v2995
      %3047 = vst.msk [vmem:[#allocation2 + $0x98] sm:$0xff] %vm3027, %v2996
      %3048 = vst.msk [vmem:[#allocation2 + $0xa0] sm:$0xff] %vm3027, %v2997
      %3049 = vst.msk [vmem:[#allocation2 + $0xa8] sm:$0xff] %vm3027, %v2998
      %3050 = vst.msk [vmem:[#allocation2 + $0xb0] sm:$0xff] %vm3027, %v2999
      %3051 = vst.msk [vmem:[#allocation2 + $0xb8] sm:$0xff] %vm3027, %v3000
      %3052 = vst.msk [vmem:[#allocation2 + $0xc0] sm:$0xff] %vm3027, %v3001
      %3053 = vst.msk [vmem:[#allocation2 + $0xc8] sm:$0xff] %vm3027, %v3002
      %3054 = vst.msk [vmem:[#allocation2 + $0xd0] sm:$0xff] %vm3027, %v3003
      %3055 = vst.msk [vmem:[#allocation2 + $0xd8] sm:$0xff] %vm3027, %v3004
      %3056 = vst.msk [vmem:[#allocation2 + $0xe0] sm:$0xff] %vm3027, %v3005
      %3057 = vst.msk [vmem:[#allocation2 + $0xe8] sm:$0xff] %vm3027, %v3006
      %3058 = vst.msk [vmem:[#allocation2 + $0xf0] sm:$0xff] %vm3027, %v3007
      %3059 = vst.msk [vmem:[#allocation2 + $0xf8] sm:$0xff] %vm3027, %v3008
      %3060 = vst.msk [vmem:[#allocation2 + $0x100] sm:$0xff] %vm3027, %v3009
      %3061 = vst.msk [vmem:[#allocation2 + $0x108] sm:$0xff] %vm3027, %v3010
      %3062 = vst.msk [vmem:[#allocation2 + $0x110] sm:$0xff] %vm3027, %v3011
      %3063 = vst.msk [vmem:[#allocation2 + $0x118] sm:$0xff] %vm3027, %v3012
      %3064 = vst.msk [vmem:[#allocation2 + $0x120] sm:$0xff] %vm3027, %v3013
      %3065 = vst.msk [vmem:[#allocation2 + $0x128] sm:$0xff] %vm3027, %v3014
      %3066 = vst.msk [vmem:[#allocation2 + $0x130] sm:$0xff] %vm3027, %v3015
      %3067 = vst.msk [vmem:[#allocation2 + $0x138] sm:$0xff] %vm3027, %v3016
      %3068 = vst.msk [vmem:[#allocation2 + $0x140] sm:$0xff] %vm3027, %v3017
      %3069 = vst.msk [vmem:[#allocation2 + $0x148] sm:$0xff] %vm3027, %v3018
      %3070 = vst.msk [vmem:[#allocation2 + $0x150] sm:$0xff] %vm3027, %v3019
      %3071 = vst.msk [vmem:[#allocation2 + $0x158] sm:$0xff] %vm3027, %v3020
      %3072 = vst.msk [vmem:[#allocation2 + $0x160] sm:$0xff] %vm3027, %v3021
      %3073 = vst.msk [vmem:[#allocation2 + $0x168] sm:$0xff] %vm3027, %v3022
      %3074 = vst.msk [vmem:[#allocation2 + $0x170] sm:$0xff] %vm3027, %v3023
      %3075 = vst.msk [vmem:[#allocation2 + $0x178] sm:$0xff] %vm3027, %v3024
      %3076 = vst.msk [vmem:[#allocation2 + $0x180] sm:$0xff] %vm3027, %v3025
      %3077 = vst.msk [vmem:[#allocation2 + $0x188] sm:$0xff] %vm3027, %v3026
      // Predicated region
      $region37: #{brain_cnn_forward.5} parent=31 // pred_check
        %p3078 = pneg %p228
      $region38: #{brain_cnn_forward.5} parent=31 // pred_check_branch
        %3080 = sbr.rel (%p3078) target = $region40
      $region39: #{brain_cnn_forward.5} parent=31 // pred_region
        %v3081 = vld [vmem:[#allocation2] sm:$0xff]
        %v3082 = vld [vmem:[#allocation2 + $0x8] sm:$0xff]
        %v3083 = vld [vmem:[#allocation2 + $0x10] sm:$0xff]
        %v3084 = vld [vmem:[#allocation2 + $0x18] sm:$0xff]
        %v3085 = vld [vmem:[#allocation2 + $0x20] sm:$0xff]
        %v3086 = vld [vmem:[#allocation2 + $0x28] sm:$0xff]
        %v3087 = vld [vmem:[#allocation2 + $0x30] sm:$0xff]
        %v3088 = vld [vmem:[#allocation2 + $0x38] sm:$0xff]
        %v3089 = vld [vmem:[#allocation2 + $0x40] sm:$0xff]
        %v3090 = vld [vmem:[#allocation2 + $0x48] sm:$0xff]
        %v3091 = vld [vmem:[#allocation2 + $0x50] sm:$0xff]
        %v3092 = vld [vmem:[#allocation2 + $0x58] sm:$0xff]
        %v3093 = vld [vmem:[#allocation2 + $0x60] sm:$0xff]
        %v3094 = vld [vmem:[#allocation2 + $0x68] sm:$0xff]
        %v3095 = vld [vmem:[#allocation2 + $0x70] sm:$0xff]
        %v3096 = vld [vmem:[#allocation2 + $0x78] sm:$0xff]
        %v3097 = vld [vmem:[#allocation2 + $0x80] sm:$0xff]
        %v3098 = vld [vmem:[#allocation2 + $0x88] sm:$0xff]
        %v3099 = vld [vmem:[#allocation2 + $0x90] sm:$0xff]
        %v3100 = vld [vmem:[#allocation2 + $0x98] sm:$0xff]
        %v3101 = vld [vmem:[#allocation2 + $0xa0] sm:$0xff]
        %v3102 = vld [vmem:[#allocation2 + $0xa8] sm:$0xff]
        %v3103 = vld [vmem:[#allocation2 + $0xb0] sm:$0xff]
        %v3104 = vld [vmem:[#allocation2 + $0xb8] sm:$0xff]
        %v3105 = vld [vmem:[#allocation2 + $0xc0] sm:$0xff]
        %v3106 = vld [vmem:[#allocation2 + $0xc8] sm:$0xff]
        %v3107 = vld [vmem:[#allocation2 + $0xd0] sm:$0xff]
        %v3108 = vld [vmem:[#allocation2 + $0xd8] sm:$0xff]
        %v3109 = vld [vmem:[#allocation2 + $0xe0] sm:$0xff]
        %v3110 = vld [vmem:[#allocation2 + $0xe8] sm:$0xff]
        %v3111 = vld [vmem:[#allocation2 + $0xf0] sm:$0xff]
        %v3112 = vld [vmem:[#allocation2 + $0xf8] sm:$0xff]
        %v3113 = vld [vmem:[#allocation2 + $0x100] sm:$0xff]
        %v3114 = vld [vmem:[#allocation2 + $0x108] sm:$0xff]
        %v3115 = vld [vmem:[#allocation2 + $0x110] sm:$0xff]
        %v3116 = vld [vmem:[#allocation2 + $0x118] sm:$0xff]
        %v3117 = vld [vmem:[#allocation2 + $0x120] sm:$0xff]
        %v3118 = vld [vmem:[#allocation2 + $0x128] sm:$0xff]
        %v3119 = vld [vmem:[#allocation2 + $0x130] sm:$0xff]
        %v3120 = vld [vmem:[#allocation2 + $0x138] sm:$0xff]
        %v3121 = vld [vmem:[#allocation2 + $0x140] sm:$0xff]
        %v3122 = vld [vmem:[#allocation2 + $0x148] sm:$0xff]
        %v3123 = vld [vmem:[#allocation2 + $0x150] sm:$0xff]
        %v3124 = vld [vmem:[#allocation2 + $0x158] sm:$0xff]
        %v3125 = vld [vmem:[#allocation2 + $0x160] sm:$0xff]
        %v3126 = vld [vmem:[#allocation2 + $0x168] sm:$0xff]
        %v3127 = vld [vmem:[#allocation2 + $0x170] sm:$0xff]
        %v3128 = vld [vmem:[#allocation2 + $0x178] sm:$0xff]
        %v3129 = vld [vmem:[#allocation2 + $0x180] sm:$0xff]
        %v3130 = vld [vmem:[#allocation2 + $0x188] sm:$0xff]
        %v3131 = vld [vmem:[%s2] sm:$0x1]
        %v3133 = vlaneseq
        %v3134 = vshrl.u32 %v3133, 7
        %v3135 = vsub.s32 0, %v3134
        %v3136 = vrot.slane %v3131, %v3135
        %v3138 = vadd.f32 %v3081, %v3136
        %v3139 = vadd.f32 %v3082, %v3136
        %v3140 = vadd.f32 %v3083, %v3136
        %v3141 = vadd.f32 %v3084, %v3136
        %v3142 = vadd.f32 %v3085, %v3136
        %v3143 = vadd.f32 %v3086, %v3136
        %v3144 = vadd.f32 %v3087, %v3136
        %v3145 = vadd.f32 %v3088, %v3136
        %v3146 = vadd.f32 %v3089, %v3136
        %v3147 = vadd.f32 %v3090, %v3136
        %v3148 = vadd.f32 %v3091, %v3136
        %v3149 = vadd.f32 %v3092, %v3136
        %v3150 = vadd.f32 %v3093, %v3136
        %v3151 = vadd.f32 %v3094, %v3136
        %v3152 = vadd.f32 %v3095, %v3136
        %v3153 = vadd.f32 %v3096, %v3136
        %v3154 = vadd.f32 %v3097, %v3136
        %v3155 = vadd.f32 %v3098, %v3136
        %v3156 = vadd.f32 %v3099, %v3136
        %v3157 = vadd.f32 %v3100, %v3136
        %v3158 = vadd.f32 %v3101, %v3136
        %v3159 = vadd.f32 %v3102, %v3136
        %v3160 = vadd.f32 %v3103, %v3136
        %v3161 = vadd.f32 %v3104, %v3136
        %v3162 = vadd.f32 %v3105, %v3136
        %v3163 = vadd.f32 %v3106, %v3136
        %v3164 = vadd.f32 %v3107, %v3136
        %v3165 = vadd.f32 %v3108, %v3136
        %v3166 = vadd.f32 %v3109, %v3136
        %v3167 = vadd.f32 %v3110, %v3136
        %v3168 = vadd.f32 %v3111, %v3136
        %v3169 = vadd.f32 %v3112, %v3136
        %v3170 = vadd.f32 %v3113, %v3136
        %v3171 = vadd.f32 %v3114, %v3136
        %v3172 = vadd.f32 %v3115, %v3136
        %v3173 = vadd.f32 %v3116, %v3136
        %v3174 = vadd.f32 %v3117, %v3136
        %v3175 = vadd.f32 %v3118, %v3136
        %v3176 = vadd.f32 %v3119, %v3136
        %v3177 = vadd.f32 %v3120, %v3136
        %v3178 = vadd.f32 %v3121, %v3136
        %v3179 = vadd.f32 %v3122, %v3136
        %v3180 = vadd.f32 %v3123, %v3136
        %v3181 = vadd.f32 %v3124, %v3136
        %v3182 = vadd.f32 %v3125, %v3136
        %v3183 = vadd.f32 %v3126, %v3136
        %v3184 = vadd.f32 %v3127, %v3136
        %v3185 = vadd.f32 %v3128, %v3136
        %v3186 = vadd.f32 %v3129, %v3136
        %v3187 = vadd.f32 %v3130, %v3136
        %v3188 = vmax.f32 %v3138, 0.0
        %v3189 = vmax.f32 %v3139, 0.0
        %v3190 = vmax.f32 %v3140, 0.0
        %v3191 = vmax.f32 %v3141, 0.0
        %v3192 = vmax.f32 %v3142, 0.0
        %v3193 = vmax.f32 %v3143, 0.0
        %v3194 = vmax.f32 %v3144, 0.0
        %v3195 = vmax.f32 %v3145, 0.0
        %v3196 = vmax.f32 %v3146, 0.0
        %v3197 = vmax.f32 %v3147, 0.0
        %v3198 = vmax.f32 %v3148, 0.0
        %v3199 = vmax.f32 %v3149, 0.0
        %v3200 = vmax.f32 %v3150, 0.0
        %v3201 = vmax.f32 %v3151, 0.0
        %v3202 = vmax.f32 %v3152, 0.0
        %v3203 = vmax.f32 %v3153, 0.0
        %v3204 = vmax.f32 %v3154, 0.0
        %v3205 = vmax.f32 %v3155, 0.0
        %v3206 = vmax.f32 %v3156, 0.0
        %v3207 = vmax.f32 %v3157, 0.0
        %v3208 = vmax.f32 %v3158, 0.0
        %v3209 = vmax.f32 %v3159, 0.0
        %v3210 = vmax.f32 %v3160, 0.0
        %v3211 = vmax.f32 %v3161, 0.0
        %v3212 = vmax.f32 %v3162, 0.0
        %v3213 = vmax.f32 %v3163, 0.0
        %v3214 = vmax.f32 %v3164, 0.0
        %v3215 = vmax.f32 %v3165, 0.0
        %v3216 = vmax.f32 %v3166, 0.0
        %v3217 = vmax.f32 %v3167, 0.0
        %v3218 = vmax.f32 %v3168, 0.0
        %v3219 = vmax.f32 %v3169, 0.0
        %v3220 = vmax.f32 %v3170, 0.0
        %v3221 = vmax.f32 %v3171, 0.0
        %v3222 = vmax.f32 %v3172, 0.0
        %v3223 = vmax.f32 %v3173, 0.0
        %v3224 = vmax.f32 %v3174, 0.0
        %v3225 = vmax.f32 %v3175, 0.0
        %v3226 = vmax.f32 %v3176, 0.0
        %v3227 = vmax.f32 %v3177, 0.0
        %v3228 = vmax.f32 %v3178, 0.0
        %v3229 = vmax.f32 %v3179, 0.0
        %v3230 = vmax.f32 %v3180, 0.0
        %v3231 = vmax.f32 %v3181, 0.0
        %v3232 = vmax.f32 %v3182, 0.0
        %v3233 = vmax.f32 %v3183, 0.0
        %v3234 = vmax.f32 %v3184, 0.0
        %v3235 = vmax.f32 %v3185, 0.0
        %v3236 = vmax.f32 %v3186, 0.0
        %v3237 = vmax.f32 %v3187, 0.0
        %v3238 = vpack.c.bf16 %v3189, %v3188
        %v3239 = vpack.c.bf16 %v3191, %v3190
        %v3240 = vpack.c.bf16 %v3193, %v3192
        %v3241 = vpack.c.bf16 %v3195, %v3194
        %v3242 = vpack.c.bf16 %v3197, %v3196
        %v3243 = vpack.c.bf16 %v3199, %v3198
        %v3244 = vpack.c.bf16 %v3201, %v3200
        %v3245 = vpack.c.bf16 %v3203, %v3202
        %v3246 = vpack.c.bf16 %v3205, %v3204
        %v3247 = vpack.c.bf16 %v3207, %v3206
        %v3248 = vpack.c.bf16 %v3209, %v3208
        %v3249 = vpack.c.bf16 %v3211, %v3210
        %v3250 = vpack.c.bf16 %v3213, %v3212
        %v3251 = vpack.c.bf16 %v3215, %v3214
        %v3252 = vpack.c.bf16 %v3217, %v3216
        %v3253 = vpack.c.bf16 %v3219, %v3218
        %v3254 = vpack.c.bf16 %v3221, %v3220
        %v3255 = vpack.c.bf16 %v3223, %v3222
        %v3256 = vpack.c.bf16 %v3225, %v3224
        %v3257 = vpack.c.bf16 %v3227, %v3226
        %v3258 = vpack.c.bf16 %v3229, %v3228
        %v3259 = vpack.c.bf16 %v3231, %v3230
        %v3260 = vpack.c.bf16 %v3233, %v3232
        %v3261 = vpack.c.bf16 %v3235, %v3234
        %v3262 = vpack.c.bf16 %v3237, %v3236
        %v3288 = vunpack.c.l.b16 %v3238
        %v3289 = vunpack.c.h.b16 %v3238
        %v3290 = vunpack.c.l.b16 %v3239
        %v3291 = vunpack.c.h.b16 %v3239
        %v3292 = vunpack.c.l.b16 %v3240
        %v3293 = vunpack.c.h.b16 %v3240
        %v3294 = vunpack.c.l.b16 %v3241
        %v3295 = vunpack.c.h.b16 %v3241
        %v3296 = vunpack.c.l.b16 %v3242
        %v3297 = vunpack.c.h.b16 %v3242
        %v3298 = vunpack.c.l.b16 %v3243
        %v3299 = vunpack.c.h.b16 %v3243
        %v3300 = vunpack.c.l.b16 %v3244
        %v3301 = vunpack.c.h.b16 %v3244
        %v3302 = vunpack.c.l.b16 %v3245
        %v3303 = vunpack.c.h.b16 %v3245
        %v3304 = vunpack.c.l.b16 %v3246
        %v3305 = vunpack.c.h.b16 %v3246
        %v3306 = vunpack.c.l.b16 %v3247
        %v3307 = vunpack.c.h.b16 %v3247
        %v3308 = vunpack.c.l.b16 %v3248
        %v3309 = vunpack.c.h.b16 %v3248
        %v3310 = vunpack.c.l.b16 %v3249
        %v3311 = vunpack.c.h.b16 %v3249
        %v3312 = vunpack.c.l.b16 %v3250
        %v3313 = vunpack.c.h.b16 %v3250
        %v3314 = vunpack.c.l.b16 %v3251
        %v3315 = vunpack.c.h.b16 %v3251
        %v3316 = vunpack.c.l.b16 %v3252
        %v3317 = vunpack.c.h.b16 %v3252
        %v3318 = vunpack.c.l.b16 %v3253
        %v3319 = vunpack.c.h.b16 %v3253
        %v3320 = vunpack.c.l.b16 %v3254
        %v3321 = vunpack.c.h.b16 %v3254
        %v3322 = vunpack.c.l.b16 %v3255
        %v3323 = vunpack.c.h.b16 %v3255
        %v3324 = vunpack.c.l.b16 %v3256
        %v3325 = vunpack.c.h.b16 %v3256
        %v3326 = vunpack.c.l.b16 %v3257
        %v3327 = vunpack.c.h.b16 %v3257
        %v3328 = vunpack.c.l.b16 %v3258
        %v3329 = vunpack.c.h.b16 %v3258
        %v3330 = vunpack.c.l.b16 %v3259
        %v3331 = vunpack.c.h.b16 %v3259
        %v3332 = vunpack.c.l.b16 %v3260
        %v3333 = vunpack.c.h.b16 %v3260
        %v3334 = vunpack.c.l.b16 %v3261
        %v3335 = vunpack.c.h.b16 %v3261
        %v3336 = vunpack.c.l.b16 %v3262
        %v3337 = vunpack.c.h.b16 %v3262
        %v3338 = vpack.c.b16 %v3288, %v3288
        %v3339 = vpack.c.b16 %v3289, %v3289
        %v3340 = vpack.c.b16 %v3290, %v3290
        %v3341 = vpack.c.b16 %v3291, %v3291
        %v3342 = vpack.c.b16 %v3292, %v3292
        %v3343 = vpack.c.b16 %v3293, %v3293
        %v3344 = vpack.c.b16 %v3294, %v3294
        %v3345 = vpack.c.b16 %v3295, %v3295
        %v3346 = vpack.c.b16 %v3296, %v3296
        %v3347 = vpack.c.b16 %v3297, %v3297
        %v3348 = vpack.c.b16 %v3298, %v3298
        %v3349 = vpack.c.b16 %v3299, %v3299
        %v3350 = vpack.c.b16 %v3300, %v3300
        %v3351 = vpack.c.b16 %v3301, %v3301
        %v3352 = vpack.c.b16 %v3302, %v3302
        %v3353 = vpack.c.b16 %v3303, %v3303
        %v3354 = vpack.c.b16 %v3304, %v3304
        %v3355 = vpack.c.b16 %v3305, %v3305
        %v3356 = vpack.c.b16 %v3306, %v3306
        %v3357 = vpack.c.b16 %v3307, %v3307
        %v3358 = vpack.c.b16 %v3308, %v3308
        %v3359 = vpack.c.b16 %v3309, %v3309
        %v3360 = vpack.c.b16 %v3310, %v3310
        %v3361 = vpack.c.b16 %v3311, %v3311
        %v3362 = vpack.c.b16 %v3312, %v3312
        %v3363 = vpack.c.b16 %v3313, %v3313
        %v3364 = vpack.c.b16 %v3314, %v3314
        %v3365 = vpack.c.b16 %v3315, %v3315
        %v3366 = vpack.c.b16 %v3316, %v3316
        %v3367 = vpack.c.b16 %v3317, %v3317
        %v3368 = vpack.c.b16 %v3318, %v3318
        %v3369 = vpack.c.b16 %v3319, %v3319
        %v3370 = vpack.c.b16 %v3320, %v3320
        %v3371 = vpack.c.b16 %v3321, %v3321
        %v3372 = vpack.c.b16 %v3322, %v3322
        %v3373 = vpack.c.b16 %v3323, %v3323
        %v3374 = vpack.c.b16 %v3324, %v3324
        %v3375 = vpack.c.b16 %v3325, %v3325
        %v3376 = vpack.c.b16 %v3326, %v3326
        %v3377 = vpack.c.b16 %v3327, %v3327
        %v3378 = vpack.c.b16 %v3328, %v3328
        %v3379 = vpack.c.b16 %v3329, %v3329
        %v3380 = vpack.c.b16 %v3330, %v3330
        %v3381 = vpack.c.b16 %v3331, %v3331
        %v3382 = vpack.c.b16 %v3332, %v3332
        %v3383 = vpack.c.b16 %v3333, %v3333
        %v3384 = vpack.c.b16 %v3334, %v3334
        %v3385 = vpack.c.b16 %v3335, %v3335
        %v3386 = vpack.c.b16 %v3336, %v3336
        %v3387 = vpack.c.b16 %v3337, %v3337
        %vm3438 = vcmask 257024
        %3439 = vst.msk [vmem:[%s225] sm:$0xf] %vm3438, %v3338
        %3440 = vst.msk [vmem:[%s225 + $0x4] sm:$0xf] %vm3438, %v3339
        %3441 = vst.msk [vmem:[%s225 + $0x8] sm:$0xf] %vm3438, %v3340
        %3442 = vst.msk [vmem:[%s225 + $0xc] sm:$0xf] %vm3438, %v3341
        %3443 = vst.msk [vmem:[%s225 + $0x10] sm:$0xf] %vm3438, %v3342
        %3444 = vst.msk [vmem:[%s225 + $0x14] sm:$0xf] %vm3438, %v3343
        %3445 = vst.msk [vmem:[%s225 + $0x18] sm:$0xf] %vm3438, %v3344
        %3446 = vst.msk [vmem:[%s225 + $0x1c] sm:$0xf] %vm3438, %v3345
        %3447 = vst.msk [vmem:[%s225 + $0x20] sm:$0xf] %vm3438, %v3346
        %3448 = vst.msk [vmem:[%s225 + $0x24] sm:$0xf] %vm3438, %v3347
        %3449 = vst.msk [vmem:[%s225 + $0x28] sm:$0xf] %vm3438, %v3348
        %3450 = vst.msk [vmem:[%s225 + $0x2c] sm:$0xf] %vm3438, %v3349
        %3451 = vst.msk [vmem:[%s225 + $0x30] sm:$0xf] %vm3438, %v3350
        %3452 = vst.msk [vmem:[%s225 + $0x34] sm:$0xf] %vm3438, %v3351
        %3453 = vst.msk [vmem:[%s225 + $0x38] sm:$0xf] %vm3438, %v3352
        %3454 = vst.msk [vmem:[%s225 + $0x3c] sm:$0xf] %vm3438, %v3353
        %3455 = vst.msk [vmem:[%s225 + $0x40] sm:$0xf] %vm3438, %v3354
        %3456 = vst.msk [vmem:[%s225 + $0x44] sm:$0xf] %vm3438, %v3355
        %3457 = vst.msk [vmem:[%s225 + $0x48] sm:$0xf] %vm3438, %v3356
        %3458 = vst.msk [vmem:[%s225 + $0x4c] sm:$0xf] %vm3438, %v3357
        %3459 = vst.msk [vmem:[%s225 + $0x50] sm:$0xf] %vm3438, %v3358
        %3460 = vst.msk [vmem:[%s225 + $0x54] sm:$0xf] %vm3438, %v3359
        %3461 = vst.msk [vmem:[%s225 + $0x58] sm:$0xf] %vm3438, %v3360
        %3462 = vst.msk [vmem:[%s225 + $0x5c] sm:$0xf] %vm3438, %v3361
        %3463 = vst.msk [vmem:[%s225 + $0x60] sm:$0xf] %vm3438, %v3362
        %3464 = vst.msk [vmem:[%s225 + $0x64] sm:$0xf] %vm3438, %v3363
        %3465 = vst.msk [vmem:[%s225 + $0x68] sm:$0xf] %vm3438, %v3364
        %3466 = vst.msk [vmem:[%s225 + $0x6c] sm:$0xf] %vm3438, %v3365
        %3467 = vst.msk [vmem:[%s225 + $0x70] sm:$0xf] %vm3438, %v3366
        %3468 = vst.msk [vmem:[%s225 + $0x74] sm:$0xf] %vm3438, %v3367
        %3469 = vst.msk [vmem:[%s225 + $0x78] sm:$0xf] %vm3438, %v3368
        %3470 = vst.msk [vmem:[%s225 + $0x7c] sm:$0xf] %vm3438, %v3369
        %3471 = vst.msk [vmem:[%s225 + $0x80] sm:$0xf] %vm3438, %v3370
        %3472 = vst.msk [vmem:[%s225 + $0x84] sm:$0xf] %vm3438, %v3371
        %3473 = vst.msk [vmem:[%s225 + $0x88] sm:$0xf] %vm3438, %v3372
        %3474 = vst.msk [vmem:[%s225 + $0x8c] sm:$0xf] %vm3438, %v3373
        %3475 = vst.msk [vmem:[%s225 + $0x90] sm:$0xf] %vm3438, %v3374
        %3476 = vst.msk [vmem:[%s225 + $0x94] sm:$0xf] %vm3438, %v3375
        %3477 = vst.msk [vmem:[%s225 + $0x98] sm:$0xf] %vm3438, %v3376
        %3478 = vst.msk [vmem:[%s225 + $0x9c] sm:$0xf] %vm3438, %v3377
        %3479 = vst.msk [vmem:[%s225 + $0xa0] sm:$0xf] %vm3438, %v3378
        %3480 = vst.msk [vmem:[%s225 + $0xa4] sm:$0xf] %vm3438, %v3379
        %3481 = vst.msk [vmem:[%s225 + $0xa8] sm:$0xf] %vm3438, %v3380
        %3482 = vst.msk [vmem:[%s225 + $0xac] sm:$0xf] %vm3438, %v3381
        %3483 = vst.msk [vmem:[%s225 + $0xb0] sm:$0xf] %vm3438, %v3382
        %3484 = vst.msk [vmem:[%s225 + $0xb4] sm:$0xf] %vm3438, %v3383
        %3485 = vst.msk [vmem:[%s225 + $0xb8] sm:$0xf] %vm3438, %v3384
        %3486 = vst.msk [vmem:[%s225 + $0xbc] sm:$0xf] %vm3438, %v3385
        %3487 = vst.msk [vmem:[%s225 + $0xc0] sm:$0xf] %vm3438, %v3386
        %3488 = vst.msk [vmem:[%s225 + $0xc4] sm:$0xf] %vm3438, %v3387
      $region40: #{brain_cnn_forward.5} parent=31 // pred_fallthru
        _
      %s3489 = smul.u32 50, %s18
      %p3490 = scmp.lt.s32.totalorder %s3489, 99
      %s3491 = scalar_select %p3490, %s3489, 99
      %s3492 = smul.addr %s3491, 4
      %s3493 = scalar_lea.vmem %s3, %s3492
      // Predicated region
      $region41: #{brain_cnn_forward.5} parent=31 // pred_check
        %p3494 = pneg %p119
      $region42: #{brain_cnn_forward.5} parent=31 // pred_check_branch
        %3496 = sbr.rel (%p3494) target = $region44
      $region43: #{brain_cnn_forward.5} parent=31 // pred_region
        %s3497 = smul.u32 50, %s18
      $region44: #{brain_cnn_forward.5} parent=31 // pred_fallthru
        _
    $region32: #{brain_cnn_forward.5} parent=5 // pred_fallthru
      _
    %p3498 = scmp.le.s32.totalorder 2, %s9
    // Predicated region
    $region45: #{brain_cnn_forward.5} parent=5 // pred_check
      %p3499 = pneg %p3498
    $region46: #{brain_cnn_forward.5} parent=5 // pred_check_branch
      %3501 = sbr.rel (%p3499) target = $region48
    $region47: #{brain_cnn_forward.5} parent=5 // pred_region
      %s3502 = ssub.s32 %s9, 2
      // Predicated region
      $region49: #{brain_cnn_forward.5} parent=47 // pred_check
        %p3503 = pneg %p125
      $region50: #{brain_cnn_forward.5} parent=47 // pred_check_branch
        %3505 = sbr.rel (%p3503) target = $region52
      $region51: #{brain_cnn_forward.5} parent=47 // pred_region
        %s3506 = smul.u32 50, %s20
        %p3507 = scmp.lt.s32.totalorder %s3506, 99
        %s3508 = scalar_select %p3507, %s3506, 99
        %s3509 = smul.addr %s3508, 4
        %s3510 = scalar_lea.vmem %s3, %s3509
      $region52: #{brain_cnn_forward.5} parent=47 // pred_fallthru
        _
    $region48: #{brain_cnn_forward.5} parent=5 // pred_fallthru
      _
  $region6: #{brain_cnn_forward.5} parent=0 // loop_footer
    %s13 = sadd.s32 1, %s9
  $region7: #{brain_cnn_forward.5} parent=0 // loop_footer_branch
    %8 = sbr.rel target = $region3
  $region8: #{brain_cnn_forward.5} parent=0 // loop_exit
    _

// kernel: brain_cnn_forward.6
$region0: #{brain_cnn_forward.6}
  #allocation0 [shape = 'u32[]', space=smem, size = 0x4, offset = 0x4, fixed_abs, tag = 'smem constant byte address 0x4 - core index']
  #allocation1 [shape = 'u32[144,128]{1,0:T(1,128)}', space=vmem, size = 0x12000, scoped, tag = 'internal scratch']
  #allocation2 [shape = 'f32[216,32]{1,0:T(8,128)}', space=vmem, size = 0x1b000, scoped, tag = 'scratch operand']
  %s0 = inlined_call_operand.vmem [shape: bf16[648,288], index: 0, kind: input, shape index: {}]
  %s1 = inlined_call_operand.vmem [shape: bf16[288,32], index: 1, kind: input, shape index: {}]
  %s2 = inlined_call_operand.vmem [shape: f32[1,32], index: 2, kind: input, shape index: {}]
  %s3 = inlined_call_operand.vmem [shape: bf16[648,32], index: 3, kind: output, shape index: {}]
  %s4 = sld [smem:[#allocation0]]
  $region53: #{brain_cnn_forward.6} parent=0
    _
  %s6 = ssub.s32 1, %s4
  %s7 = scalar_select 0, %s6, %s4
  loop: start=0, step=1, limit=5
  $region2: #{brain_cnn_forward.6} parent=0 // loop_pre_header
    _
  $region3: #{brain_cnn_forward.6} parent=0 // loop_header
    %s9 = sphi 0, %s13
    %p10 = scmp.ge.s32.totalorder %s9, 5
    %s16 = sphi 0, %s28
    %s17 = sphi 0, %s24
    %s18 = sphi 0, %s16
    %s19 = sphi 0, %s17
    %s20 = sphi 0, %s18
    %s21 = sphi 0, %s19
    %s33 = sphi 0, %s35
    %s36 = sphi 0, %s33
    %s37 = sphi 0, %s36
    %s53 = sphi 0, %s37
    %s59 = sphi 0, %s61
    %s62 = sphi 0, %s59
    %s63 = sphi 0, %s62
    %s79 = sphi 0, %s63
    %s83 = sphi 0, %s83
    %s85 = sphi 0, %s83
    %s86 = sphi 0, %s85
    %s100 = sphi 0, %s86
    %s106 = sphi 0, %s108
    %s109 = sphi 0, %s106
    %s110 = sphi 0, %s109
    %s126 = sphi 0, %s110
  $region4: #{brain_cnn_forward.6} parent=0 // loop_header_branch
    %12 = sbr.rel (%p10) target = $region8
  $region5: #{brain_cnn_forward.6} parent=0 // loop_body
    %s14 = ssub.s32 %s9, 1
    %s15 = ssub.s32 %s9, 2
    %s22 = sadd.s32 1, %s17
    %p23 = scmp.ge.s32.totalorder %s22, 1
    %s24 = scalar_select %p23, 0, %s22
    %s25 = sadd.s32 1, %s16
    %s26 = scalar_select %p23, %s25, %s16
    %p27 = scmp.ge.s32.totalorder %s26, 3
    %s28 = scalar_select %p27, 0, %s26
    %s29 = ssub.s32 %s16, %s28
    %s30 = ssub.s32 %s17, %s24
    %s31 = sor.u32 %s29, %s30
    %p32 = scmp.eq.s32.totalorder %s31, 0
    %s34 = sadd.s32 %s33, 1
    %s35 = scalar_select %p32, %s33, %s34
    %p38 = pneg %p32
    %p39 = scmp.eq.s32.totalorder %s9, 2
    %p40 = por %p38, %p39
    %p41 = scmp.ne.s32.totalorder %s33, %s36
    %p42 = scmp.eq.s32.totalorder %s9, 0
    %p43 = por %p41, %p42
    %p44 = scmp.ne.s32.totalorder %s33, %s36
    %p45 = scmp.eq.s32.totalorder %s14, 2
    %p46 = por %p44, %p45
    %p47 = scmp.ne.s32.totalorder %s36, %s37
    %p48 = scmp.eq.s32.totalorder %s14, 0
    %p49 = por %p47, %p48
    %p50 = scmp.ne.s32.totalorder %s36, %s37
    %p51 = scmp.eq.s32.totalorder %s15, 2
    %p52 = por %p50, %p51
    %p54 = scmp.ne.s32.totalorder %s37, %s53
    %p55 = scmp.eq.s32.totalorder %s15, 0
    %p56 = por %p54, %p55
    %s57 = ssub.s32 %s17, %s24
    %p58 = scmp.eq.s32.totalorder %s57, 0
    %s60 = sadd.s32 %s59, 1
    %s61 = scalar_select %p58, %s59, %s60
    %p64 = pneg %p58
    %p65 = scmp.eq.s32.totalorder %s9, 2
    %p66 = por %p64, %p65
    %p67 = scmp.ne.s32.totalorder %s59, %s62
    %p68 = scmp.eq.s32.totalorder %s9, 0
    %p69 = por %p67, %p68
    %p70 = scmp.ne.s32.totalorder %s59, %s62
    %p71 = scmp.eq.s32.totalorder %s14, 2
    %p72 = por %p70, %p71
    %p73 = scmp.ne.s32.totalorder %s62, %s63
    %p74 = scmp.eq.s32.totalorder %s14, 0
    %p75 = por %p73, %p74
    %p76 = scmp.ne.s32.totalorder %s62, %s63
    %p77 = scmp.eq.s32.totalorder %s15, 2
    %p78 = por %p76, %p77
    %p80 = scmp.ne.s32.totalorder %s63, %s79
    %p81 = scmp.eq.s32.totalorder %s15, 0
    %p82 = por %p80, %p81
    %s84 = sadd.s32 %s83, 1
    %p87 = scmp.eq.s32.totalorder %s9, 2
    %p88 = scmp.ne.s32.totalorder %s83, %s85
    %p89 = scmp.eq.s32.totalorder %s9, 0
    %p90 = por %p88, %p89
    %p91 = scmp.ne.s32.totalorder %s83, %s85
    %p92 = scmp.eq.s32.totalorder %s14, 2
    %p93 = por %p91, %p92
    %p94 = scmp.ne.s32.totalorder %s85, %s86
    %p95 = scmp.eq.s32.totalorder %s14, 0
    %p96 = por %p94, %p95
    %p97 = scmp.ne.s32.totalorder %s85, %s86
    %p98 = scmp.eq.s32.totalorder %s15, 2
    %p99 = por %p97, %p98
    %p101 = scmp.ne.s32.totalorder %s86, %s100
    %p102 = scmp.eq.s32.totalorder %s15, 0
    %p103 = por %p101, %p102
    %s104 = ssub.s32 %s16, %s28
    %p105 = scmp.eq.s32.totalorder %s104, 0
    %s107 = sadd.s32 %s106, 1
    %s108 = scalar_select %p105, %s106, %s107
    %p111 = pneg %p105
    %p112 = scmp.eq.s32.totalorder %s9, 2
    %p113 = por %p111, %p112
    %p114 = scmp.ne.s32.totalorder %s106, %s109
    %p115 = scmp.eq.s32.totalorder %s9, 0
    %p116 = por %p114, %p115
    %p117 = scmp.ne.s32.totalorder %s106, %s109
    %p118 = scmp.eq.s32.totalorder %s14, 2
    %p119 = por %p117, %p118
    %p120 = scmp.ne.s32.totalorder %s109, %s110
    %p121 = scmp.eq.s32.totalorder %s14, 0
    %p122 = por %p120, %p121
    %p123 = scmp.ne.s32.totalorder %s109, %s110
    %p124 = scmp.eq.s32.totalorder %s15, 2
    %p125 = por %p123, %p124
    %p127 = scmp.ne.s32.totalorder %s110, %s126
    %p128 = scmp.eq.s32.totalorder %s15, 0
    %p129 = por %p127, %p128
    %p130 = scmp.le.s32.totalorder 1, %s9
    %p131 = scmp.lt.s32.totalorder %s9, 4
    %p132 = pnand %p130, %p131
    %p133 = pneg %p132
    // Predicated region
    $region9: #{brain_cnn_forward.6} parent=5 // pred_check
      _
    $region10: #{brain_cnn_forward.6} parent=5 // pred_check_branch
      %135 = sbr.rel (%p132) target = $region12
    $region11: #{brain_cnn_forward.6} parent=5 // pred_region
      %s136 = ssub.s32 %s9, 1
      // Predicated region
      $region13: #{brain_cnn_forward.6} parent=11 // pred_check
        %p137 = pneg %p75
      $region14: #{brain_cnn_forward.6} parent=11 // pred_check_branch
        %139 = sbr.rel (%p137) target = $region16
      $region15: #{brain_cnn_forward.6} parent=11 // pred_region
        %s140 = smul.u32 36, %s19
        %p141 = scmp.lt.s32.totalorder %s140, 35
        %s142 = scalar_select %p141, %s140, 35
        %s143 = smul.addr %s142, 4
        %s144 = scalar_lea.vmem %s1, %s143
        %s145 = smul.u32 36, %s19
      $region16: #{brain_cnn_forward.6} parent=11 // pred_fallthru
        _
      // Predicated region
      $region17: #{brain_cnn_forward.6} parent=11 // pred_check
        %p146 = pneg %p96
      $region18: #{brain_cnn_forward.6} parent=11 // pred_check_branch
        %148 = sbr.rel (%p146) target = $region20
      $region19: #{brain_cnn_forward.6} parent=11 // pred_region
        _
      $region20: #{brain_cnn_forward.6} parent=11 // pred_fallthru
        _
    $region12: #{brain_cnn_forward.6} parent=5 // pred_fallthru
      _
    %p149 = scmp.lt.s32.totalorder %s9, 3
    // Predicated region
    $region21: #{brain_cnn_forward.6} parent=5 // pred_check
      %p150 = pneg %p149
    $region22: #{brain_cnn_forward.6} parent=5 // pred_check_branch
      %152 = sbr.rel (%p150) target = $region24
    $region23: #{brain_cnn_forward.6} parent=5 // pred_region
      // Predicated region
      $region25: #{brain_cnn_forward.6} parent=23 // pred_check
        %p153 = pneg %p43
      $region26: #{brain_cnn_forward.6} parent=23 // pred_check_branch
        %155 = sbr.rel (%p153) target = $region28
      $region27: #{brain_cnn_forward.6} parent=23 // pred_region
        %s156 = smul.u32 27, %s16
        %s157 = smul.u32 3, %s17
        %p158 = scmp.lt.s32.totalorder %s156, 80
        %s159 = scalar_select %p158, %s156, 80
        %p160 = scmp.lt.s32.totalorder %s157, 2
        %s161 = scalar_select %p160, %s157, 2
        %s162 = smul.addr %s159, 3
        %s163 = sadd.s32 %s161, %s162
        %s164 = smul.addr %s163, 4
        %s165 = scalar_lea.vmem %s0, %s164
        %s166 = smul.u32 27, %s16
        %s167 = smul.u32 3, %s17
      $region28: #{brain_cnn_forward.6} parent=23 // pred_fallthru
        _
    $region24: #{brain_cnn_forward.6} parent=5 // pred_fallthru
      _
    %p168 = scmp.le.s32.totalorder 1, %s9
    %p169 = scmp.lt.s32.totalorder %s9, 4
    %p170 = pnand %p168, %p169
    %p171 = pneg %p170
    // Predicated region
    $region29: #{brain_cnn_forward.6} parent=5 // pred_check
      _
    $region30: #{brain_cnn_forward.6} parent=5 // pred_check_branch
      %173 = sbr.rel (%p170) target = $region32
    $region31: #{brain_cnn_forward.6} parent=5 // pred_region
      %s174 = ssub.s32 %s9, 1
      %s175 = smul.u32 27, %s18
      %s176 = smul.u32 3, %s19
      %p177 = scmp.lt.s32.totalorder %s175, 80
      %s178 = scalar_select %p177, %s175, 80
      %p179 = scmp.lt.s32.totalorder %s176, 2
      %s180 = scalar_select %p179, %s176, 2
      %s181 = smul.addr %s178, 3
      %s182 = sadd.s32 %s180, %s181
      %s183 = smul.addr %s182, 4
      %s184 = scalar_lea.vmem %s0, %s183
      %p185 = pneg %p49
      %p186 = pneg %p46
      %s187 = smul.u32 36, %s19
      %p188 = scmp.lt.s32.totalorder %s187, 35
      %s189 = scalar_select %p188, %s187, 35
      %s190 = smul.addr %s189, 4
      %s191 = scalar_lea.vmem %s1, %s190
      %p192 = pneg %p75
      %p193 = pneg %p72
      %p194 = pneg %p96
      %p195 = pneg %p93
      %p196 = pneg %p122
      %p197 = pneg %p119
      %s198 = smul.u32 27, %s18
      %p199 = scmp.lt.s32.totalorder %s198, 80
      %s200 = scalar_select %p199, %s198, 80
      %s201 = smul.addr %s200, 4
      %s202 = scalar_lea.vmem %s3, %s201
      %s203 = smul.u32 27, %s18
      %s204 = smul.u32 3, %s19
      %p205 = scmp.lt.s32.totalorder %s203, 80
      %s206 = scalar_select %p205, %s203, 80
      %p207 = scmp.lt.s32.totalorder %s204, 2
      %s208 = scalar_select %p207, %s204, 2
      %s209 = smul.addr %s206, 3
      %s210 = sadd.s32 %s208, %s209
      %s211 = smul.addr %s210, 4
      %s212 = scalar_lea.vmem %s0, %s211
      %s213 = smul.u32 27, %s18
      %s214 = smul.u32 3, %s19
      %s215 = smul.u32 36, %s19
      %p216 = scmp.lt.s32.totalorder %s215, 35
      %s217 = scalar_select %p216, %s215, 35
      %s218 = smul.addr %s217, 4
      %s219 = scalar_lea.vmem %s1, %s218
      %s220 = smul.u32 36, %s19
      %s221 = smul.u32 27, %s18
      %p222 = scmp.lt.s32.totalorder %s221, 80
      %s223 = scalar_select %p222, %s221, 80
      %s224 = smul.addr %s223, 4
      %s225 = scalar_lea.vmem %s3, %s224
      %s226 = smul.u32 27, %s18
      %p228 = scmp.eq.s32.totalorder %s19, 0
      // Predicated region
      $region33: #{brain_cnn_forward.6} parent=31 // pred_check
        %p229 = pneg %p228
      $region34: #{brain_cnn_forward.6} parent=31 // pred_check_branch
        %231 = sbr.rel (%p229) target = $region36
      $region35: #{brain_cnn_forward.6} parent=31 // pred_region
        %vm232 = vcmask 261120
        %233 = vst.msk [vmem:[#allocation2] sm:$0xff] %vm232, 0.0
        %234 = vst.msk [vmem:[#allocation2 + $0x8] sm:$0xff] %vm232, 0.0
        %235 = vst.msk [vmem:[#allocation2 + $0x10] sm:$0xff] %vm232, 0.0
        %236 = vst.msk [vmem:[#allocation2 + $0x18] sm:$0xff] %vm232, 0.0
        %237 = vst.msk [vmem:[#allocation2 + $0x20] sm:$0xff] %vm232, 0.0
        %238 = vst.msk [vmem:[#allocation2 + $0x28] sm:$0xff] %vm232, 0.0
        %239 = vst.msk [vmem:[#allocation2 + $0x30] sm:$0xff] %vm232, 0.0
        %240 = vst.msk [vmem:[#allocation2 + $0x38] sm:$0xff] %vm232, 0.0
        %241 = vst.msk [vmem:[#allocation2 + $0x40] sm:$0xff] %vm232, 0.0
        %242 = vst.msk [vmem:[#allocation2 + $0x48] sm:$0xff] %vm232, 0.0
        %243 = vst.msk [vmem:[#allocation2 + $0x50] sm:$0xff] %vm232, 0.0
        %244 = vst.msk [vmem:[#allocation2 + $0x58] sm:$0xff] %vm232, 0.0
        %245 = vst.msk [vmem:[#allocation2 + $0x60] sm:$0xff] %vm232, 0.0
        %246 = vst.msk [vmem:[#allocation2 + $0x68] sm:$0xff] %vm232, 0.0
        %247 = vst.msk [vmem:[#allocation2 + $0x70] sm:$0xff] %vm232, 0.0
        %248 = vst.msk [vmem:[#allocation2 + $0x78] sm:$0xff] %vm232, 0.0
        %249 = vst.msk [vmem:[#allocation2 + $0x80] sm:$0xff] %vm232, 0.0
        %250 = vst.msk [vmem:[#allocation2 + $0x88] sm:$0xff] %vm232, 0.0
        %251 = vst.msk [vmem:[#allocation2 + $0x90] sm:$0xff] %vm232, 0.0
        %252 = vst.msk [vmem:[#allocation2 + $0x98] sm:$0xff] %vm232, 0.0
        %253 = vst.msk [vmem:[#allocation2 + $0xa0] sm:$0xff] %vm232, 0.0
        %254 = vst.msk [vmem:[#allocation2 + $0xa8] sm:$0xff] %vm232, 0.0
        %255 = vst.msk [vmem:[#allocation2 + $0xb0] sm:$0xff] %vm232, 0.0
        %256 = vst.msk [vmem:[#allocation2 + $0xb8] sm:$0xff] %vm232, 0.0
        %257 = vst.msk [vmem:[#allocation2 + $0xc0] sm:$0xff] %vm232, 0.0
        %258 = vst.msk [vmem:[#allocation2 + $0xc8] sm:$0xff] %vm232, 0.0
        %259 = vst.msk [vmem:[#allocation2 + $0xd0] sm:$0xff] %vm232, 0.0
      $region36: #{brain_cnn_forward.6} parent=31 // pred_fallthru
        _
      %v260 = vld [vmem:[#allocation2] sm:$0xff]
      %v261 = vld [vmem:[#allocation2 + $0x8] sm:$0xff]
      %v262 = vld [vmem:[#allocation2 + $0x10] sm:$0xff]
      %v263 = vld [vmem:[#allocation2 + $0x18] sm:$0xff]
      %v264 = vld [vmem:[#allocation2 + $0x20] sm:$0xff]
      %v265 = vld [vmem:[#allocation2 + $0x28] sm:$0xff]
      %v266 = vld [vmem:[#allocation2 + $0x30] sm:$0xff]
      %v267 = vld [vmem:[#allocation2 + $0x38] sm:$0xff]
      %v268 = vld [vmem:[#allocation2 + $0x40] sm:$0xff]
      %v269 = vld [vmem:[#allocation2 + $0x48] sm:$0xff]
      %v270 = vld [vmem:[#allocation2 + $0x50] sm:$0xff]
      %v271 = vld [vmem:[#allocation2 + $0x58] sm:$0xff]
      %v272 = vld [vmem:[#allocation2 + $0x60] sm:$0xff]
      %v273 = vld [vmem:[#allocation2 + $0x68] sm:$0xff]
      %v274 = vld [vmem:[#allocation2 + $0x70] sm:$0xff]
      %v275 = vld [vmem:[#allocation2 + $0x78] sm:$0xff]
      %v276 = vld [vmem:[#allocation2 + $0x80] sm:$0xff]
      %v277 = vld [vmem:[#allocation2 + $0x88] sm:$0xff]
      %v278 = vld [vmem:[#allocation2 + $0x90] sm:$0xff]
      %v279 = vld [vmem:[#allocation2 + $0x98] sm:$0xff]
      %v280 = vld [vmem:[#allocation2 + $0xa0] sm:$0xff]
      %v281 = vld [vmem:[#allocation2 + $0xa8] sm:$0xff]
      %v282 = vld [vmem:[#allocation2 + $0xb0] sm:$0xff]
      %v283 = vld [vmem:[#allocation2 + $0xb8] sm:$0xff]
      %v284 = vld [vmem:[#allocation2 + $0xc0] sm:$0xff]
      %v285 = vld [vmem:[#allocation2 + $0xc8] sm:$0xff]
      %v286 = vld [vmem:[#allocation2 + $0xd0] sm:$0xff]
      %v287 = vld [vmem:[%s212] sm:$0xff]
      %v288 = vld [vmem:[%s212 + $0x8] sm:$0xf]
      %v289 = vld [vmem:[%s212 + $0xc] sm:$0xff]
      %v290 = vld [vmem:[%s212 + $0x14] sm:$0xf]
      %v291 = vld [vmem:[%s212 + $0x18] sm:$0xff]
      %v292 = vld [vmem:[%s212 + $0x20] sm:$0xf]
      %v293 = vld [vmem:[%s212 + $0x24] sm:$0xff]
      %v294 = vld [vmem:[%s212 + $0x2c] sm:$0xf]
      %v295 = vld [vmem:[%s212 + $0x30] sm:$0xff]
      %v296 = vld [vmem:[%s212 + $0x38] sm:$0xf]
      %v297 = vld [vmem:[%s212 + $0x3c] sm:$0xff]
      %v298 = vld [vmem:[%s212 + $0x44] sm:$0xf]
      %v299 = vld [vmem:[%s212 + $0x48] sm:$0xff]
      %v300 = vld [vmem:[%s212 + $0x50] sm:$0xf]
      %v301 = vld [vmem:[%s212 + $0x54] sm:$0xff]
      %v302 = vld [vmem:[%s212 + $0x5c] sm:$0xf]
      %v303 = vld [vmem:[%s212 + $0x60] sm:$0xff]
      %v304 = vld [vmem:[%s212 + $0x68] sm:$0xf]
      %v305 = vld [vmem:[%s212 + $0x6c] sm:$0xff]
      %v306 = vld [vmem:[%s212 + $0x74] sm:$0xf]
      %v307 = vld [vmem:[%s212 + $0x78] sm:$0xff]
      %v308 = vld [vmem:[%s212 + $0x80] sm:$0xf]
      %v309 = vld [vmem:[%s212 + $0x84] sm:$0xff]
      %v310 = vld [vmem:[%s212 + $0x8c] sm:$0xf]
      %v311 = vld [vmem:[%s212 + $0x90] sm:$0xff]
      %v312 = vld [vmem:[%s212 + $0x98] sm:$0xf]
      %v313 = vld [vmem:[%s212 + $0x9c] sm:$0xff]
      %v314 = vld [vmem:[%s212 + $0xa4] sm:$0xf]
      %v315 = vld [vmem:[%s212 + $0xa8] sm:$0xff]
      %v316 = vld [vmem:[%s212 + $0xb0] sm:$0xf]
      %v317 = vld [vmem:[%s212 + $0xb4] sm:$0xff]
      %v318 = vld [vmem:[%s212 + $0xbc] sm:$0xf]
      %v319 = vld [vmem:[%s212 + $0xc0] sm:$0xff]
      %v320 = vld [vmem:[%s212 + $0xc8] sm:$0xf]
      %v321 = vld [vmem:[%s212 + $0xcc] sm:$0xff]
      %v322 = vld [vmem:[%s212 + $0xd4] sm:$0xf]
      %v323 = vld [vmem:[%s212 + $0xd8] sm:$0xff]
      %v324 = vld [vmem:[%s212 + $0xe0] sm:$0xf]
      %v325 = vld [vmem:[%s212 + $0xe4] sm:$0xff]
      %v326 = vld [vmem:[%s212 + $0xec] sm:$0xf]
      %v327 = vld [vmem:[%s212 + $0xf0] sm:$0xff]
      %v328 = vld [vmem:[%s212 + $0xf8] sm:$0xf]
      %v329 = vld [vmem:[%s212 + $0xfc] sm:$0xff]
      %v330 = vld [vmem:[%s212 + $0x104] sm:$0xf]
      %v331 = vld [vmem:[%s212 + $0x108] sm:$0xff]
      %v332 = vld [vmem:[%s212 + $0x110] sm:$0xf]
      %v333 = vld [vmem:[%s212 + $0x114] sm:$0xff]
      %v334 = vld [vmem:[%s212 + $0x11c] sm:$0xf]
      %v335 = vld [vmem:[%s212 + $0x120] sm:$0xff]
      %v336 = vld [vmem:[%s212 + $0x128] sm:$0xf]
      %v337 = vld [vmem:[%s212 + $0x12c] sm:$0xff]
      %v338 = vld [vmem:[%s212 + $0x134] sm:$0xf]
      %v339 = vld [vmem:[%s212 + $0x138] sm:$0xff]
      %v340 = vld [vmem:[%s212 + $0x140] sm:$0xf]
      %v341 = vld [vmem:[%s219] sm:$0xf]
      %v342 = vld [vmem:[%s219 + $0x4] sm:$0xf]
      %v343 = vld [vmem:[%s219 + $0x8] sm:$0xf]
      %v344 = vld [vmem:[%s219 + $0xc] sm:$0xf]
      %v345 = vld [vmem:[%s219 + $0x10] sm:$0xf]
      %v346 = vld [vmem:[%s219 + $0x14] sm:$0xf]
      %v347 = vld [vmem:[%s219 + $0x18] sm:$0xf]
      %v348 = vld [vmem:[%s219 + $0x1c] sm:$0xf]
      %v349 = vld [vmem:[%s219 + $0x20] sm:$0xf]
      %v350 = vld [vmem:[%s219 + $0x24] sm:$0xf]
      %v351 = vld [vmem:[%s219 + $0x28] sm:$0xf]
      %v352 = vld [vmem:[%s219 + $0x2c] sm:$0xf]
      %v353 = vld [vmem:[%s219 + $0x30] sm:$0xf]
      %v354 = vld [vmem:[%s219 + $0x34] sm:$0xf]
      %v355 = vld [vmem:[%s219 + $0x38] sm:$0xf]
      %v356 = vld [vmem:[%s219 + $0x3c] sm:$0xf]
      %v357 = vld [vmem:[%s219 + $0x40] sm:$0xf]
      %v358 = vld [vmem:[%s219 + $0x44] sm:$0xf]
      %v359 = vld [vmem:[%s219 + $0x48] sm:$0xf]
      %v360 = vld [vmem:[%s219 + $0x4c] sm:$0xf]
      %v361 = vld [vmem:[%s219 + $0x50] sm:$0xf]
      %v362 = vld [vmem:[%s219 + $0x54] sm:$0xf]
      %v363 = vld [vmem:[%s219 + $0x58] sm:$0xf]
      %v364 = vld [vmem:[%s219 + $0x5c] sm:$0xf]
      %v365 = vld [vmem:[%s219 + $0x60] sm:$0xf]
      %v366 = vld [vmem:[%s219 + $0x64] sm:$0xf]
      %v367 = vld [vmem:[%s219 + $0x68] sm:$0xf]
      %v368 = vld [vmem:[%s219 + $0x6c] sm:$0xf]
      %v369 = vld [vmem:[%s219 + $0x70] sm:$0xf]
      %v370 = vld [vmem:[%s219 + $0x74] sm:$0xf]
      %v371 = vld [vmem:[%s219 + $0x78] sm:$0xf]
      %v372 = vld [vmem:[%s219 + $0x7c] sm:$0xf]
      %v373 = vld [vmem:[%s219 + $0x80] sm:$0xf]
      %v374 = vld [vmem:[%s219 + $0x84] sm:$0xf]
      %v375 = vld [vmem:[%s219 + $0x88] sm:$0xf]
      %v376 = vld [vmem:[%s219 + $0x8c] sm:$0xf]
      %v431 = vunpack.c.l.b16 %v287
      %v432 = vunpack.c.h.b16 %v287
      %v433 = vunpack.c.l.b16 %v288
      %v434 = vunpack.c.l.b16 %v289
      %v435 = vunpack.c.h.b16 %v289
      %v436 = vunpack.c.l.b16 %v290
      %v437 = vunpack.c.l.b16 %v291
      %v438 = vunpack.c.h.b16 %v291
      %v439 = vunpack.c.l.b16 %v292
      %v440 = vunpack.c.l.b16 %v293
      %v441 = vunpack.c.h.b16 %v293
      %v442 = vunpack.c.l.b16 %v294
      %v443 = vunpack.c.l.b16 %v295
      %v444 = vunpack.c.h.b16 %v295
      %v445 = vunpack.c.l.b16 %v296
      %v446 = vunpack.c.l.b16 %v297
      %v447 = vunpack.c.h.b16 %v297
      %v448 = vunpack.c.l.b16 %v298
      %v449 = vunpack.c.l.b16 %v299
      %v450 = vunpack.c.h.b16 %v299
      %v451 = vunpack.c.l.b16 %v300
      %v452 = vunpack.c.l.b16 %v301
      %v453 = vunpack.c.h.b16 %v301
      %v454 = vunpack.c.l.b16 %v302
      %v455 = vunpack.c.l.b16 %v303
      %v456 = vunpack.c.h.b16 %v303
      %v457 = vunpack.c.l.b16 %v304
      %v458 = vunpack.c.l.b16 %v305
      %v459 = vunpack.c.h.b16 %v305
      %v460 = vunpack.c.l.b16 %v306
      %v461 = vunpack.c.l.b16 %v307
      %v462 = vunpack.c.h.b16 %v307
      %v463 = vunpack.c.l.b16 %v308
      %v464 = vunpack.c.l.b16 %v309
      %v465 = vunpack.c.h.b16 %v309
      %v466 = vunpack.c.l.b16 %v310
      %v467 = vunpack.c.l.b16 %v311
      %v468 = vunpack.c.h.b16 %v311
      %v469 = vunpack.c.l.b16 %v312
      %v470 = vunpack.c.l.b16 %v313
      %v471 = vunpack.c.h.b16 %v313
      %v472 = vunpack.c.l.b16 %v314
      %v473 = vunpack.c.l.b16 %v315
      %v474 = vunpack.c.h.b16 %v315
      %v475 = vunpack.c.l.b16 %v316
      %v476 = vunpack.c.l.b16 %v317
      %v477 = vunpack.c.h.b16 %v317
      %v478 = vunpack.c.l.b16 %v318
      %v479 = vunpack.c.l.b16 %v319
      %v480 = vunpack.c.h.b16 %v319
      %v481 = vunpack.c.l.b16 %v320
      %v482 = vunpack.c.l.b16 %v321
      %v483 = vunpack.c.h.b16 %v321
      %v484 = vunpack.c.l.b16 %v322
      %v485 = vunpack.c.l.b16 %v323
      %v486 = vunpack.c.h.b16 %v323
      %v487 = vunpack.c.l.b16 %v324
      %v488 = vunpack.c.l.b16 %v325
      %v489 = vunpack.c.h.b16 %v325
      %v490 = vunpack.c.l.b16 %v326
      %v491 = vunpack.c.l.b16 %v327
      %v492 = vunpack.c.h.b16 %v327
      %v493 = vunpack.c.l.b16 %v328
      %v494 = vunpack.c.l.b16 %v329
      %v495 = vunpack.c.h.b16 %v329
      %v496 = vunpack.c.l.b16 %v330
      %v497 = vunpack.c.l.b16 %v331
      %v498 = vunpack.c.h.b16 %v331
      %v499 = vunpack.c.l.b16 %v332
      %v500 = vunpack.c.l.b16 %v333
      %v501 = vunpack.c.h.b16 %v333
      %v502 = vunpack.c.l.b16 %v334
      %v503 = vunpack.c.l.b16 %v335
      %v504 = vunpack.c.h.b16 %v335
      %v505 = vunpack.c.l.b16 %v336
      %v506 = vunpack.c.l.b16 %v337
      %v507 = vunpack.c.h.b16 %v337
      %v508 = vunpack.c.l.b16 %v338
      %v509 = vunpack.c.l.b16 %v339
      %v510 = vunpack.c.h.b16 %v339
      %v511 = vunpack.c.l.b16 %v340
      %v512 = vpack.c.b16 %v434, %v431
      %v513 = vpack.c.b16 %v435, %v432
      %v514 = vpack.c.b16 %v436, %v433
      %v515 = vpack.c.b16 %v440, %v437
      %v516 = vpack.c.b16 %v441, %v438
      %v517 = vpack.c.b16 %v442, %v439
      %v518 = vpack.c.b16 %v446, %v443
      %v519 = vpack.c.b16 %v447, %v444
      %v520 = vpack.c.b16 %v448, %v445
      %v521 = vpack.c.b16 %v452, %v449
      %v522 = vpack.c.b16 %v453, %v450
      %v523 = vpack.c.b16 %v454, %v451
      %v524 = vpack.c.b16 %v458, %v455
      %v525 = vpack.c.b16 %v459, %v456
      %v526 = vpack.c.b16 %v460, %v457
      %v527 = vpack.c.b16 %v464, %v461
      %v528 = vpack.c.b16 %v465, %v462
      %v529 = vpack.c.b16 %v466, %v463
      %v530 = vpack.c.b16 %v470, %v467
      %v531 = vpack.c.b16 %v471, %v468
      %v532 = vpack.c.b16 %v472, %v469
      %v533 = vpack.c.b16 %v476, %v473
      %v534 = vpack.c.b16 %v477, %v474
      %v535 = vpack.c.b16 %v478, %v475
      %v536 = vpack.c.b16 %v482, %v479
      %v537 = vpack.c.b16 %v483, %v480
      %v538 = vpack.c.b16 %v484, %v481
      %v539 = vpack.c.b16 %v488, %v485
      %v540 = vpack.c.b16 %v489, %v486
      %v541 = vpack.c.b16 %v490, %v487
      %v542 = vpack.c.b16 %v494, %v491
      %v543 = vpack.c.b16 %v495, %v492
      %v544 = vpack.c.b16 %v496, %v493
      %v545 = vpack.c.b16 %v500, %v497
      %v546 = vpack.c.b16 %v501, %v498
      %v547 = vpack.c.b16 %v502, %v499
      %v548 = vpack.c.b16 %v506, %v503
      %v549 = vpack.c.b16 %v507, %v504
      %v550 = vpack.c.b16 %v508, %v505
      %v551 = vpack.c.b16 %v509, %v509
      %v552 = vpack.c.b16 %v510, %v510
      %v553 = vpack.c.b16 %v511, %v511
      %v618 = vunpack.c.l.b16 %v341
      %v619 = vunpack.c.l.b16 %v342
      %v620 = vunpack.c.l.b16 %v343
      %v621 = vunpack.c.l.b16 %v344
      %v622 = vunpack.c.l.b16 %v345
      %v623 = vunpack.c.l.b16 %v346
      %v624 = vunpack.c.l.b16 %v347
      %v625 = vunpack.c.l.b16 %v348
      %v626 = vunpack.c.l.b16 %v349
      %v627 = vunpack.c.l.b16 %v350
      %v628 = vunpack.c.l.b16 %v351
      %v629 = vunpack.c.l.b16 %v352
      %v630 = vunpack.c.l.b16 %v353
      %v631 = vunpack.c.l.b16 %v354
      %v632 = vunpack.c.l.b16 %v355
      %v633 = vunpack.c.l.b16 %v356
      %v634 = vunpack.c.l.b16 %v357
      %v635 = vunpack.c.l.b16 %v358
      %v636 = vunpack.c.l.b16 %v359
      %v637 = vunpack.c.l.b16 %v360
      %v638 = vunpack.c.l.b16 %v361
      %v639 = vunpack.c.l.b16 %v362
      %v640 = vunpack.c.l.b16 %v363
      %v641 = vunpack.c.l.b16 %v364
      %v642 = vunpack.c.l.b16 %v365
      %v643 = vunpack.c.l.b16 %v366
      %v644 = vunpack.c.l.b16 %v367
      %v645 = vunpack.c.l.b16 %v368
      %v646 = vunpack.c.l.b16 %v369
      %v647 = vunpack.c.l.b16 %v370
      %v648 = vunpack.c.l.b16 %v371
      %v649 = vunpack.c.l.b16 %v372
      %v650 = vunpack.c.l.b16 %v373
      %v651 = vunpack.c.l.b16 %v374
      %v652 = vunpack.c.l.b16 %v375
      %v653 = vunpack.c.l.b16 %v376
      %v654 = vpack.c.b16 %v619, %v618
      %v655 = vpack.c.b16 %v621, %v620
      %v656 = vpack.c.b16 %v623, %v622
      %v657 = vpack.c.b16 %v625, %v624
      %v658 = vpack.c.b16 %v627, %v626
      %v659 = vpack.c.b16 %v629, %v628
      %v660 = vpack.c.b16 %v631, %v630
      %v661 = vpack.c.b16 %v633, %v632
      %v662 = vpack.c.b16 %v635, %v634
      %v663 = vpack.c.b16 %v637, %v636
      %v664 = vpack.c.b16 %v639, %v638
      %v665 = vpack.c.b16 %v641, %v640
      %v666 = vpack.c.b16 %v643, %v642
      %v667 = vpack.c.b16 %v645, %v644
      %v668 = vpack.c.b16 %v647, %v646
      %v669 = vpack.c.b16 %v649, %v648
      %v670 = vpack.c.b16 %v651, %v650
      %v671 = vpack.c.b16 %v653, %v652
      %vm690 = vcmask 261120
      %v692 = vsel %vm690, %v514, 0
      %v695 = vsel %vm690, %v517, 0
      %v698 = vsel %vm690, %v520, 0
      %v701 = vsel %vm690, %v523, 0
      %v704 = vsel %vm690, %v526, 0
      %v707 = vsel %vm690, %v529, 0
      %v710 = vsel %vm690, %v532, 0
      %v713 = vsel %vm690, %v535, 0
      %v716 = vsel %vm690, %v538, 0
      %v719 = vsel %vm690, %v541, 0
      %v722 = vsel %vm690, %v544, 0
      %v725 = vsel %vm690, %v547, 0
      %v728 = vsel %vm690, %v550, 0
      %v731 = vsel %vm690, %v553, 0
      %733 = vmatprep.subr.bf16.mxu0 0
      %734 = vmatpush1.bf16.msra.mxu0 %v661
      %735 = vmatprep.subr.bf16.mxu0 0
      %736 = vmatpush1.bf16.msra.mxu0 %v660
      %737 = vmatprep.subr.bf16.mxu0 0
      %738 = vmatpush1.bf16.msra.mxu0 %v659
      %739 = vmatprep.subr.bf16.mxu0 0
      %740 = vmatpush1.bf16.msra.mxu0 %v658
      %741 = vmatprep.subr.bf16.mxu0 0
      %742 = vmatpush1.bf16.msra.mxu0 %v657
      %743 = vmatprep.subr.bf16.mxu0 0
      %744 = vmatpush1.bf16.msra.mxu0 %v656
      %745 = vmatprep.subr.bf16.mxu0 0
      %746 = vmatpush1.bf16.msra.mxu0 %v655
      %747 = vmatprep.subr.bf16.mxu0 0
      %748 = vmatpush1.bf16.msra.mxu0 %v654
      %749 = vmatprep.subr.bf16.mxu0 0
      %750 = vmatpush2.bf16.msra.mxu0 %v669
      %751 = vmatprep.subr.bf16.mxu0 0
      %752 = vmatpush2.bf16.msra.mxu0 %v668
      %753 = vmatprep.subr.bf16.mxu0 0
      %754 = vmatpush2.bf16.msra.mxu0 %v667
      %755 = vmatprep.subr.bf16.mxu0 0
      %756 = vmatpush2.bf16.msra.mxu0 %v666
      %757 = vmatprep.subr.bf16.mxu0 0
      %758 = vmatpush2.bf16.msra.mxu0 %v665
      %759 = vmatprep.subr.bf16.mxu0 0
      %760 = vmatpush2.bf16.msra.mxu0 %v664
      %761 = vmatprep.subr.bf16.mxu0 0
      %762 = vmatpush2.bf16.msra.mxu0 %v663
      %763 = vmatprep.subr.bf16.mxu0 0
      %764 = vmatpush2.bf16.msra.mxu0 %v662
      %765 = vmatprep.mubr.bf16.mxu0 %v513
      %766 = vmatmul.mubr.bf16.gmra.mxu0 %v512
      %v767 = vpop.f32.mrf.mxu0
      %v768 = vadd.f32 0.0, %v767
      %v769 = vpop.f32.mrf.mxu0
      %v770 = vpop.f32.mrf.mxu0
      %v771 = vadd.f32 0.0, %v770
      %v772 = vpop.f32.mrf.mxu0
      %773 = vmatprep.mubr.bf16.mxu0 %v516
      %774 = vmatmul.mubr.bf16.gmra.mxu0 %v515
      %v775 = vpop.f32.mrf.mxu0
      %v776 = vadd.f32 0.0, %v775
      %v777 = vpop.f32.mrf.mxu0
      %v778 = vpop.f32.mrf.mxu0
      %v779 = vadd.f32 0.0, %v778
      %v780 = vpop.f32.mrf.mxu0
      %781 = vmatprep.mubr.bf16.mxu0 %v519
      %782 = vmatmul.mubr.bf16.gmra.mxu0 %v518
      %v783 = vpop.f32.mrf.mxu0
      %v784 = vadd.f32 0.0, %v783
      %v785 = vpop.f32.mrf.mxu0
      %v786 = vpop.f32.mrf.mxu0
      %v787 = vadd.f32 0.0, %v786
      %v788 = vpop.f32.mrf.mxu0
      %789 = vmatprep.mubr.bf16.mxu0 %v522
      %790 = vmatmul.mubr.bf16.gmra.mxu0 %v521
      %v791 = vpop.f32.mrf.mxu0
      %v792 = vadd.f32 0.0, %v791
      %v793 = vpop.f32.mrf.mxu0
      %v794 = vpop.f32.mrf.mxu0
      %v795 = vadd.f32 0.0, %v794
      %v796 = vpop.f32.mrf.mxu0
      %797 = vmatprep.mubr.bf16.mxu0 %v525
      %798 = vmatmul.mubr.bf16.gmra.mxu0 %v524
      %v799 = vpop.f32.mrf.mxu0
      %v800 = vadd.f32 0.0, %v799
      %v801 = vpop.f32.mrf.mxu0
      %v802 = vpop.f32.mrf.mxu0
      %v803 = vadd.f32 0.0, %v802
      %v804 = vpop.f32.mrf.mxu0
      %805 = vmatprep.mubr.bf16.mxu0 %v528
      %806 = vmatmul.mubr.bf16.gmra.mxu0 %v527
      %v807 = vpop.f32.mrf.mxu0
      %v808 = vadd.f32 0.0, %v807
      %v809 = vpop.f32.mrf.mxu0
      %v810 = vpop.f32.mrf.mxu0
      %v811 = vadd.f32 0.0, %v810
      %v812 = vpop.f32.mrf.mxu0
      %813 = vmatprep.mubr.bf16.mxu0 %v531
      %814 = vmatmul.mubr.bf16.gmra.mxu0 %v530
      %v815 = vpop.f32.mrf.mxu0
      %v816 = vadd.f32 0.0, %v815
      %v817 = vpop.f32.mrf.mxu0
      %v818 = vpop.f32.mrf.mxu0
      %v819 = vadd.f32 0.0, %v818
      %v820 = vpop.f32.mrf.mxu0
      %821 = vmatprep.mubr.bf16.mxu0 %v534
      %822 = vmatmul.mubr.bf16.gmra.mxu0 %v533
      %v823 = vpop.f32.mrf.mxu0
      %v824 = vadd.f32 0.0, %v823
      %v825 = vpop.f32.mrf.mxu0
      %v826 = vpop.f32.mrf.mxu0
      %v827 = vadd.f32 0.0, %v826
      %v828 = vpop.f32.mrf.mxu0
      %829 = vmatprep.mubr.bf16.mxu0 %v537
      %830 = vmatmul.mubr.bf16.gmra.mxu0 %v536
      %v831 = vpop.f32.mrf.mxu0
      %v832 = vadd.f32 0.0, %v831
      %v833 = vpop.f32.mrf.mxu0
      %v834 = vpop.f32.mrf.mxu0
      %v835 = vadd.f32 0.0, %v834
      %v836 = vpop.f32.mrf.mxu0
      %837 = vmatprep.mubr.bf16.mxu0 %v540
      %838 = vmatmul.mubr.bf16.gmra.mxu0 %v539
      %v839 = vpop.f32.mrf.mxu0
      %v840 = vadd.f32 0.0, %v839
      %v841 = vpop.f32.mrf.mxu0
      %v842 = vpop.f32.mrf.mxu0
      %v843 = vadd.f32 0.0, %v842
      %v844 = vpop.f32.mrf.mxu0
      %845 = vmatprep.mubr.bf16.mxu0 %v543
      %846 = vmatmul.mubr.bf16.gmra.mxu0 %v542
      %v847 = vpop.f32.mrf.mxu0
      %v848 = vadd.f32 0.0, %v847
      %v849 = vpop.f32.mrf.mxu0
      %v850 = vpop.f32.mrf.mxu0
      %v851 = vadd.f32 0.0, %v850
      %v852 = vpop.f32.mrf.mxu0
      %853 = vmatprep.mubr.bf16.mxu0 %v546
      %854 = vmatmul.mubr.bf16.gmra.mxu0 %v545
      %v855 = vpop.f32.mrf.mxu0
      %v856 = vadd.f32 0.0, %v855
      %v857 = vpop.f32.mrf.mxu0
      %v858 = vpop.f32.mrf.mxu0
      %v859 = vadd.f32 0.0, %v858
      %v860 = vpop.f32.mrf.mxu0
      %861 = vmatprep.mubr.bf16.mxu0 %v549
      %862 = vmatmul.mubr.bf16.gmra.mxu0 %v548
      %v863 = vpop.f32.mrf.mxu0
      %v864 = vadd.f32 0.0, %v863
      %v865 = vpop.f32.mrf.mxu0
      %v866 = vpop.f32.mrf.mxu0
      %v867 = vadd.f32 0.0, %v866
      %v868 = vpop.f32.mrf.mxu0
      %869 = vmatprep.mubr.bf16.mxu0 %v552
      %870 = vmatmul.mubr.bf16.gmra.mxu0 %v551
      %v871 = vpop.f32.mrf.mxu0
      %v872 = vadd.f32 0.0, %v871
      %v873 = vpop.f32.mrf.mxu0
      %v874 = vpop.f32.mrf.mxu0
      %v875 = vpop.f32.mrf.mxu0
      %876 = vdwg.mxu0
      %877 = vmatprep.subr.bf16.mxu0 0
      %878 = vmatpush1.bf16.msra.mxu0 0
      %879 = vmatprep.subr.bf16.mxu0 0
      %880 = vmatpush1.bf16.msra.mxu0 0
      %881 = vmatprep.subr.bf16.mxu0 0
      %882 = vmatpush1.bf16.msra.mxu0 0
      %883 = vmatprep.subr.bf16.mxu0 0
      %884 = vmatpush1.bf16.msra.mxu0 0
      %885 = vmatprep.subr.bf16.mxu0 0
      %886 = vmatpush1.bf16.msra.mxu0 0
      %887 = vmatprep.subr.bf16.mxu0 0
      %888 = vmatpush1.bf16.msra.mxu0 0
      %889 = vmatprep.subr.bf16.mxu0 0
      %890 = vmatpush1.bf16.msra.mxu0 %v671
      %891 = vmatprep.subr.bf16.mxu0 0
      %892 = vmatpush1.bf16.msra.mxu0 %v670
      %893 = vmatprep.subr.bf16.mxu0 0
      %894 = vmatpush2.bf16.msra.mxu0 0
      %895 = vmatprep.subr.bf16.mxu0 0
      %896 = vmatpush2.bf16.msra.mxu0 0
      %897 = vmatprep.subr.bf16.mxu0 0
      %898 = vmatpush2.bf16.msra.mxu0 0
      %899 = vmatprep.subr.bf16.mxu0 0
      %900 = vmatpush2.bf16.msra.mxu0 0
      %901 = vmatprep.subr.bf16.mxu0 0
      %902 = vmatpush2.bf16.msra.mxu0 0
      %903 = vmatprep.subr.bf16.mxu0 0
      %904 = vmatpush2.bf16.msra.mxu0 0
      %905 = vmatprep.subr.bf16.mxu0 0
      %906 = vmatpush2.bf16.msra.mxu0 0
      %907 = vmatprep.subr.bf16.mxu0 0
      %908 = vmatpush2.bf16.msra.mxu0 0
      %909 = vmatprep.mubr.bf16.mxu0 0
      %910 = vmatmul.mubr.bf16.gmra.mxu0 %v692
      %v911 = vpop.f32.mrf.mxu0
      %v912 = vadd.f32 %v768, %v911
      %v913 = vpop.f32.mrf.mxu0
      %v914 = vpop.f32.mrf.mxu0
      %v915 = vadd.f32 %v771, %v914
      %v916 = vpop.f32.mrf.mxu0
      %917 = vmatprep.mubr.bf16.mxu0 0
      %918 = vmatmul.mubr.bf16.gmra.mxu0 %v695
      %v919 = vpop.f32.mrf.mxu0
      %v920 = vadd.f32 %v776, %v919
      %v921 = vpop.f32.mrf.mxu0
      %v922 = vpop.f32.mrf.mxu0
      %v923 = vadd.f32 %v779, %v922
      %v924 = vpop.f32.mrf.mxu0
      %925 = vmatprep.mubr.bf16.mxu0 0
      %926 = vmatmul.mubr.bf16.gmra.mxu0 %v698
      %v927 = vpop.f32.mrf.mxu0
      %v928 = vadd.f32 %v784, %v927
      %v929 = vpop.f32.mrf.mxu0
      %v930 = vpop.f32.mrf.mxu0
      %v931 = vadd.f32 %v787, %v930
      %v932 = vpop.f32.mrf.mxu0
      %933 = vmatprep.mubr.bf16.mxu0 0
      %934 = vmatmul.mubr.bf16.gmra.mxu0 %v701
      %v935 = vpop.f32.mrf.mxu0
      %v936 = vadd.f32 %v792, %v935
      %v937 = vpop.f32.mrf.mxu0
      %v938 = vpop.f32.mrf.mxu0
      %v939 = vadd.f32 %v795, %v938
      %v940 = vpop.f32.mrf.mxu0
      %941 = vmatprep.mubr.bf16.mxu0 0
      %942 = vmatmul.mubr.bf16.gmra.mxu0 %v704
      %v943 = vpop.f32.mrf.mxu0
      %v944 = vadd.f32 %v800, %v943
      %v945 = vpop.f32.mrf.mxu0
      %v946 = vpop.f32.mrf.mxu0
      %v947 = vadd.f32 %v803, %v946
      %v948 = vpop.f32.mrf.mxu0
      %949 = vmatprep.mubr.bf16.mxu0 0
      %950 = vmatmul.mubr.bf16.gmra.mxu0 %v707
      %v951 = vpop.f32.mrf.mxu0
      %v952 = vadd.f32 %v808, %v951
      %v953 = vpop.f32.mrf.mxu0
      %v954 = vpop.f32.mrf.mxu0
      %v955 = vadd.f32 %v811, %v954
      %v956 = vpop.f32.mrf.mxu0
      %957 = vmatprep.mubr.bf16.mxu0 0
      %958 = vmatmul.mubr.bf16.gmra.mxu0 %v710
      %v959 = vpop.f32.mrf.mxu0
      %v960 = vadd.f32 %v816, %v959
      %v961 = vpop.f32.mrf.mxu0
      %v962 = vpop.f32.mrf.mxu0
      %v963 = vadd.f32 %v819, %v962
      %v964 = vpop.f32.mrf.mxu0
      %965 = vmatprep.mubr.bf16.mxu0 0
      %966 = vmatmul.mubr.bf16.gmra.mxu0 %v713
      %v967 = vpop.f32.mrf.mxu0
      %v968 = vadd.f32 %v824, %v967
      %v969 = vpop.f32.mrf.mxu0
      %v970 = vpop.f32.mrf.mxu0
      %v971 = vadd.f32 %v827, %v970
      %v972 = vpop.f32.mrf.mxu0
      %973 = vmatprep.mubr.bf16.mxu0 0
      %974 = vmatmul.mubr.bf16.gmra.mxu0 %v716
      %v975 = vpop.f32.mrf.mxu0
      %v976 = vadd.f32 %v832, %v975
      %v977 = vpop.f32.mrf.mxu0
      %v978 = vpop.f32.mrf.mxu0
      %v979 = vadd.f32 %v835, %v978
      %v980 = vpop.f32.mrf.mxu0
      %981 = vmatprep.mubr.bf16.mxu0 0
      %982 = vmatmul.mubr.bf16.gmra.mxu0 %v719
      %v983 = vpop.f32.mrf.mxu0
      %v984 = vadd.f32 %v840, %v983
      %v985 = vpop.f32.mrf.mxu0
      %v986 = vpop.f32.mrf.mxu0
      %v987 = vadd.f32 %v843, %v986
      %v988 = vpop.f32.mrf.mxu0
      %989 = vmatprep.mubr.bf16.mxu0 0
      %990 = vmatmul.mubr.bf16.gmra.mxu0 %v722
      %v991 = vpop.f32.mrf.mxu0
      %v992 = vadd.f32 %v848, %v991
      %v993 = vpop.f32.mrf.mxu0
      %v994 = vpop.f32.mrf.mxu0
      %v995 = vadd.f32 %v851, %v994
      %v996 = vpop.f32.mrf.mxu0
      %997 = vmatprep.mubr.bf16.mxu0 0
      %998 = vmatmul.mubr.bf16.gmra.mxu0 %v725
      %v999 = vpop.f32.mrf.mxu0
      %v1000 = vadd.f32 %v856, %v999
      %v1001 = vpop.f32.mrf.mxu0
      %v1002 = vpop.f32.mrf.mxu0
      %v1003 = vadd.f32 %v859, %v1002
      %v1004 = vpop.f32.mrf.mxu0
      %1005 = vmatprep.mubr.bf16.mxu0 0
      %1006 = vmatmul.mubr.bf16.gmra.mxu0 %v728
      %v1007 = vpop.f32.mrf.mxu0
      %v1008 = vadd.f32 %v864, %v1007
      %v1009 = vpop.f32.mrf.mxu0
      %v1010 = vpop.f32.mrf.mxu0
      %v1011 = vadd.f32 %v867, %v1010
      %v1012 = vpop.f32.mrf.mxu0
      %1013 = vmatprep.mubr.bf16.mxu0 0
      %1014 = vmatmul.mubr.bf16.gmra.mxu0 %v731
      %v1015 = vpop.f32.mrf.mxu0
      %v1016 = vadd.f32 %v872, %v1015
      %v1017 = vpop.f32.mrf.mxu0
      %v1018 = vpop.f32.mrf.mxu0
      %v1019 = vpop.f32.mrf.mxu0
      %1020 = vdwg.mxu0
      %v1021 = vadd.f32 %v260, %v912
      %v1022 = vadd.f32 %v261, %v915
      %v1023 = vadd.f32 %v262, %v920
      %v1024 = vadd.f32 %v263, %v923
      %v1025 = vadd.f32 %v264, %v928
      %v1026 = vadd.f32 %v265, %v931
      %v1027 = vadd.f32 %v266, %v936
      %v1028 = vadd.f32 %v267, %v939
      %v1029 = vadd.f32 %v268, %v944
      %v1030 = vadd.f32 %v269, %v947
      %v1031 = vadd.f32 %v270, %v952
      %v1032 = vadd.f32 %v271, %v955
      %v1033 = vadd.f32 %v272, %v960
      %v1034 = vadd.f32 %v273, %v963
      %v1035 = vadd.f32 %v274, %v968
      %v1036 = vadd.f32 %v275, %v971
      %v1037 = vadd.f32 %v276, %v976
      %v1038 = vadd.f32 %v277, %v979
      %v1039 = vadd.f32 %v278, %v984
      %v1040 = vadd.f32 %v279, %v987
      %v1041 = vadd.f32 %v280, %v992
      %v1042 = vadd.f32 %v281, %v995
      %v1043 = vadd.f32 %v282, %v1000
      %v1044 = vadd.f32 %v283, %v1003
      %v1045 = vadd.f32 %v284, %v1008
      %v1046 = vadd.f32 %v285, %v1011
      %v1047 = vadd.f32 %v286, %v1016
      %1048 = vst.msk [vmem:[#allocation2] sm:$0xff] %vm690, %v1021
      %1049 = vst.msk [vmem:[#allocation2 + $0x8] sm:$0xff] %vm690, %v1022
      %1050 = vst.msk [vmem:[#allocation2 + $0x10] sm:$0xff] %vm690, %v1023
      %1051 = vst.msk [vmem:[#allocation2 + $0x18] sm:$0xff] %vm690, %v1024
      %1052 = vst.msk [vmem:[#allocation2 + $0x20] sm:$0xff] %vm690, %v1025
      %1053 = vst.msk [vmem:[#allocation2 + $0x28] sm:$0xff] %vm690, %v1026
      %1054 = vst.msk [vmem:[#allocation2 + $0x30] sm:$0xff] %vm690, %v1027
      %1055 = vst.msk [vmem:[#allocation2 + $0x38] sm:$0xff] %vm690, %v1028
      %1056 = vst.msk [vmem:[#allocation2 + $0x40] sm:$0xff] %vm690, %v1029
      %1057 = vst.msk [vmem:[#allocation2 + $0x48] sm:$0xff] %vm690, %v1030
      %1058 = vst.msk [vmem:[#allocation2 + $0x50] sm:$0xff] %vm690, %v1031
      %1059 = vst.msk [vmem:[#allocation2 + $0x58] sm:$0xff] %vm690, %v1032
      %1060 = vst.msk [vmem:[#allocation2 + $0x60] sm:$0xff] %vm690, %v1033
      %1061 = vst.msk [vmem:[#allocation2 + $0x68] sm:$0xff] %vm690, %v1034
      %1062 = vst.msk [vmem:[#allocation2 + $0x70] sm:$0xff] %vm690, %v1035
      %1063 = vst.msk [vmem:[#allocation2 + $0x78] sm:$0xff] %vm690, %v1036
      %1064 = vst.msk [vmem:[#allocation2 + $0x80] sm:$0xff] %vm690, %v1037
      %1065 = vst.msk [vmem:[#allocation2 + $0x88] sm:$0xff] %vm690, %v1038
      %1066 = vst.msk [vmem:[#allocation2 + $0x90] sm:$0xff] %vm690, %v1039
      %1067 = vst.msk [vmem:[#allocation2 + $0x98] sm:$0xff] %vm690, %v1040
      %1068 = vst.msk [vmem:[#allocation2 + $0xa0] sm:$0xff] %vm690, %v1041
      %1069 = vst.msk [vmem:[#allocation2 + $0xa8] sm:$0xff] %vm690, %v1042
      %1070 = vst.msk [vmem:[#allocation2 + $0xb0] sm:$0xff] %vm690, %v1043
      %1071 = vst.msk [vmem:[#allocation2 + $0xb8] sm:$0xff] %vm690, %v1044
      %1072 = vst.msk [vmem:[#allocation2 + $0xc0] sm:$0xff] %vm690, %v1045
      %1073 = vst.msk [vmem:[#allocation2 + $0xc8] sm:$0xff] %vm690, %v1046
      %1074 = vst.msk [vmem:[#allocation2 + $0xd0] sm:$0xff] %vm690, %v1047
      // Predicated region
      $region37: #{brain_cnn_forward.6} parent=31 // pred_check
        %p1075 = pneg %p228
      $region38: #{brain_cnn_forward.6} parent=31 // pred_check_branch
        %1077 = sbr.rel (%p1075) target = $region40
      $region39: #{brain_cnn_forward.6} parent=31 // pred_region
        %v1078 = vld [vmem:[#allocation2] sm:$0xff]
        %v1079 = vld [vmem:[#allocation2 + $0x8] sm:$0xff]
        %v1080 = vld [vmem:[#allocation2 + $0x10] sm:$0xff]
        %v1081 = vld [vmem:[#allocation2 + $0x18] sm:$0xff]
        %v1082 = vld [vmem:[#allocation2 + $0x20] sm:$0xff]
        %v1083 = vld [vmem:[#allocation2 + $0x28] sm:$0xff]
        %v1084 = vld [vmem:[#allocation2 + $0x30] sm:$0xff]
        %v1085 = vld [vmem:[#allocation2 + $0x38] sm:$0xff]
        %v1086 = vld [vmem:[#allocation2 + $0x40] sm:$0xff]
        %v1087 = vld [vmem:[#allocation2 + $0x48] sm:$0xff]
        %v1088 = vld [vmem:[#allocation2 + $0x50] sm:$0xff]
        %v1089 = vld [vmem:[#allocation2 + $0x58] sm:$0xff]
        %v1090 = vld [vmem:[#allocation2 + $0x60] sm:$0xff]
        %v1091 = vld [vmem:[#allocation2 + $0x68] sm:$0xff]
        %v1092 = vld [vmem:[#allocation2 + $0x70] sm:$0xff]
        %v1093 = vld [vmem:[#allocation2 + $0x78] sm:$0xff]
        %v1094 = vld [vmem:[#allocation2 + $0x80] sm:$0xff]
        %v1095 = vld [vmem:[#allocation2 + $0x88] sm:$0xff]
        %v1096 = vld [vmem:[#allocation2 + $0x90] sm:$0xff]
        %v1097 = vld [vmem:[#allocation2 + $0x98] sm:$0xff]
        %v1098 = vld [vmem:[#allocation2 + $0xa0] sm:$0xff]
        %v1099 = vld [vmem:[#allocation2 + $0xa8] sm:$0xff]
        %v1100 = vld [vmem:[#allocation2 + $0xb0] sm:$0xff]
        %v1101 = vld [vmem:[#allocation2 + $0xb8] sm:$0xff]
        %v1102 = vld [vmem:[#allocation2 + $0xc0] sm:$0xff]
        %v1103 = vld [vmem:[#allocation2 + $0xc8] sm:$0xff]
        %v1104 = vld [vmem:[#allocation2 + $0xd0] sm:$0xff]
        %v1105 = vld [vmem:[%s2] sm:$0x1]
        %v1107 = vlaneseq
        %v1108 = vshrl.u32 %v1107, 7
        %v1109 = vsub.s32 0, %v1108
        %v1110 = vrot.slane %v1105, %v1109
        %v1112 = vadd.f32 %v1078, %v1110
        %v1113 = vadd.f32 %v1079, %v1110
        %v1114 = vadd.f32 %v1080, %v1110
        %v1115 = vadd.f32 %v1081, %v1110
        %v1116 = vadd.f32 %v1082, %v1110
        %v1117 = vadd.f32 %v1083, %v1110
        %v1118 = vadd.f32 %v1084, %v1110
        %v1119 = vadd.f32 %v1085, %v1110
        %v1120 = vadd.f32 %v1086, %v1110
        %v1121 = vadd.f32 %v1087, %v1110
        %v1122 = vadd.f32 %v1088, %v1110
        %v1123 = vadd.f32 %v1089, %v1110
        %v1124 = vadd.f32 %v1090, %v1110
        %v1125 = vadd.f32 %v1091, %v1110
        %v1126 = vadd.f32 %v1092, %v1110
        %v1127 = vadd.f32 %v1093, %v1110
        %v1128 = vadd.f32 %v1094, %v1110
        %v1129 = vadd.f32 %v1095, %v1110
        %v1130 = vadd.f32 %v1096, %v1110
        %v1131 = vadd.f32 %v1097, %v1110
        %v1132 = vadd.f32 %v1098, %v1110
        %v1133 = vadd.f32 %v1099, %v1110
        %v1134 = vadd.f32 %v1100, %v1110
        %v1135 = vadd.f32 %v1101, %v1110
        %v1136 = vadd.f32 %v1102, %v1110
        %v1137 = vadd.f32 %v1103, %v1110
        %v1138 = vadd.f32 %v1104, %v1110
        %v1139 = vmax.f32 %v1112, 0.0
        %v1140 = vmax.f32 %v1113, 0.0
        %v1141 = vmax.f32 %v1114, 0.0
        %v1142 = vmax.f32 %v1115, 0.0
        %v1143 = vmax.f32 %v1116, 0.0
        %v1144 = vmax.f32 %v1117, 0.0
        %v1145 = vmax.f32 %v1118, 0.0
        %v1146 = vmax.f32 %v1119, 0.0
        %v1147 = vmax.f32 %v1120, 0.0
        %v1148 = vmax.f32 %v1121, 0.0
        %v1149 = vmax.f32 %v1122, 0.0
        %v1150 = vmax.f32 %v1123, 0.0
        %v1151 = vmax.f32 %v1124, 0.0
        %v1152 = vmax.f32 %v1125, 0.0
        %v1153 = vmax.f32 %v1126, 0.0
        %v1154 = vmax.f32 %v1127, 0.0
        %v1155 = vmax.f32 %v1128, 0.0
        %v1156 = vmax.f32 %v1129, 0.0
        %v1157 = vmax.f32 %v1130, 0.0
        %v1158 = vmax.f32 %v1131, 0.0
        %v1159 = vmax.f32 %v1132, 0.0
        %v1160 = vmax.f32 %v1133, 0.0
        %v1161 = vmax.f32 %v1134, 0.0
        %v1162 = vmax.f32 %v1135, 0.0
        %v1163 = vmax.f32 %v1136, 0.0
        %v1164 = vmax.f32 %v1137, 0.0
        %v1165 = vmax.f32 %v1138, 0.0
        %v1166 = vpack.c.bf16 %v1140, %v1139
        %v1167 = vpack.c.bf16 %v1142, %v1141
        %v1168 = vpack.c.bf16 %v1144, %v1143
        %v1169 = vpack.c.bf16 %v1146, %v1145
        %v1170 = vpack.c.bf16 %v1148, %v1147
        %v1171 = vpack.c.bf16 %v1150, %v1149
        %v1172 = vpack.c.bf16 %v1152, %v1151
        %v1173 = vpack.c.bf16 %v1154, %v1153
        %v1174 = vpack.c.bf16 %v1156, %v1155
        %v1175 = vpack.c.bf16 %v1158, %v1157
        %v1176 = vpack.c.bf16 %v1160, %v1159
        %v1177 = vpack.c.bf16 %v1162, %v1161
        %v1178 = vpack.c.bf16 %v1164, %v1163
        %v1179 = vpack.c.bf16 %v1165, %v1165
        %v1194 = vunpack.c.l.b16 %v1166
        %v1195 = vunpack.c.h.b16 %v1166
        %v1196 = vunpack.c.l.b16 %v1167
        %v1197 = vunpack.c.h.b16 %v1167
        %v1198 = vunpack.c.l.b16 %v1168
        %v1199 = vunpack.c.h.b16 %v1168
        %v1200 = vunpack.c.l.b16 %v1169
        %v1201 = vunpack.c.h.b16 %v1169
        %v1202 = vunpack.c.l.b16 %v1170
        %v1203 = vunpack.c.h.b16 %v1170
        %v1204 = vunpack.c.l.b16 %v1171
        %v1205 = vunpack.c.h.b16 %v1171
        %v1206 = vunpack.c.l.b16 %v1172
        %v1207 = vunpack.c.h.b16 %v1172
        %v1208 = vunpack.c.l.b16 %v1173
        %v1209 = vunpack.c.h.b16 %v1173
        %v1210 = vunpack.c.l.b16 %v1174
        %v1211 = vunpack.c.h.b16 %v1174
        %v1212 = vunpack.c.l.b16 %v1175
        %v1213 = vunpack.c.h.b16 %v1175
        %v1214 = vunpack.c.l.b16 %v1176
        %v1215 = vunpack.c.h.b16 %v1176
        %v1216 = vunpack.c.l.b16 %v1177
        %v1217 = vunpack.c.h.b16 %v1177
        %v1218 = vunpack.c.l.b16 %v1178
        %v1219 = vunpack.c.h.b16 %v1178
        %v1220 = vunpack.c.l.b16 %v1179
        %v1221 = vpack.c.b16 %v1194, %v1194
        %v1222 = vpack.c.b16 %v1195, %v1195
        %v1223 = vpack.c.b16 %v1196, %v1196
        %v1224 = vpack.c.b16 %v1197, %v1197
        %v1225 = vpack.c.b16 %v1198, %v1198
        %v1226 = vpack.c.b16 %v1199, %v1199
        %v1227 = vpack.c.b16 %v1200, %v1200
        %v1228 = vpack.c.b16 %v1201, %v1201
        %v1229 = vpack.c.b16 %v1202, %v1202
        %v1230 = vpack.c.b16 %v1203, %v1203
        %v1231 = vpack.c.b16 %v1204, %v1204
        %v1232 = vpack.c.b16 %v1205, %v1205
        %v1233 = vpack.c.b16 %v1206, %v1206
        %v1234 = vpack.c.b16 %v1207, %v1207
        %v1235 = vpack.c.b16 %v1208, %v1208
        %v1236 = vpack.c.b16 %v1209, %v1209
        %v1237 = vpack.c.b16 %v1210, %v1210
        %v1238 = vpack.c.b16 %v1211, %v1211
        %v1239 = vpack.c.b16 %v1212, %v1212
        %v1240 = vpack.c.b16 %v1213, %v1213
        %v1241 = vpack.c.b16 %v1214, %v1214
        %v1242 = vpack.c.b16 %v1215, %v1215
        %v1243 = vpack.c.b16 %v1216, %v1216
        %v1244 = vpack.c.b16 %v1217, %v1217
        %v1245 = vpack.c.b16 %v1218, %v1218
        %v1246 = vpack.c.b16 %v1219, %v1219
        %v1247 = vpack.c.b16 %v1220, %v1220
        %vm1275 = vcmask 257024
        %1276 = vst.msk [vmem:[%s225] sm:$0xf] %vm1275, %v1221
        %1277 = vst.msk [vmem:[%s225 + $0x4] sm:$0xf] %vm1275, %v1222
        %1278 = vst.msk [vmem:[%s225 + $0x8] sm:$0xf] %vm1275, %v1223
        %1279 = vst.msk [vmem:[%s225 + $0xc] sm:$0xf] %vm1275, %v1224
        %1280 = vst.msk [vmem:[%s225 + $0x10] sm:$0xf] %vm1275, %v1225
        %1281 = vst.msk [vmem:[%s225 + $0x14] sm:$0xf] %vm1275, %v1226
        %1282 = vst.msk [vmem:[%s225 + $0x18] sm:$0xf] %vm1275, %v1227
        %1283 = vst.msk [vmem:[%s225 + $0x1c] sm:$0xf] %vm1275, %v1228
        %1284 = vst.msk [vmem:[%s225 + $0x20] sm:$0xf] %vm1275, %v1229
        %1285 = vst.msk [vmem:[%s225 + $0x24] sm:$0xf] %vm1275, %v1230
        %1286 = vst.msk [vmem:[%s225 + $0x28] sm:$0xf] %vm1275, %v1231
        %1287 = vst.msk [vmem:[%s225 + $0x2c] sm:$0xf] %vm1275, %v1232
        %1288 = vst.msk [vmem:[%s225 + $0x30] sm:$0xf] %vm1275, %v1233
        %1289 = vst.msk [vmem:[%s225 + $0x34] sm:$0xf] %vm1275, %v1234
        %1290 = vst.msk [vmem:[%s225 + $0x38] sm:$0xf] %vm1275, %v1235
        %1291 = vst.msk [vmem:[%s225 + $0x3c] sm:$0xf] %vm1275, %v1236
        %1292 = vst.msk [vmem:[%s225 + $0x40] sm:$0xf] %vm1275, %v1237
        %1293 = vst.msk [vmem:[%s225 + $0x44] sm:$0xf] %vm1275, %v1238
        %1294 = vst.msk [vmem:[%s225 + $0x48] sm:$0xf] %vm1275, %v1239
        %1295 = vst.msk [vmem:[%s225 + $0x4c] sm:$0xf] %vm1275, %v1240
        %1296 = vst.msk [vmem:[%s225 + $0x50] sm:$0xf] %vm1275, %v1241
        %1297 = vst.msk [vmem:[%s225 + $0x54] sm:$0xf] %vm1275, %v1242
        %1298 = vst.msk [vmem:[%s225 + $0x58] sm:$0xf] %vm1275, %v1243
        %1299 = vst.msk [vmem:[%s225 + $0x5c] sm:$0xf] %vm1275, %v1244
        %1300 = vst.msk [vmem:[%s225 + $0x60] sm:$0xf] %vm1275, %v1245
        %1301 = vst.msk [vmem:[%s225 + $0x64] sm:$0xf] %vm1275, %v1246
        %1302 = vst.msk [vmem:[%s225 + $0x68] sm:$0xf] %vm1275, %v1247
      $region40: #{brain_cnn_forward.6} parent=31 // pred_fallthru
        _
      %s1303 = smul.u32 27, %s18
      %p1304 = scmp.lt.s32.totalorder %s1303, 80
      %s1305 = scalar_select %p1304, %s1303, 80
      %s1306 = smul.addr %s1305, 4
      %s1307 = scalar_lea.vmem %s3, %s1306
      // Predicated region
      $region41: #{brain_cnn_forward.6} parent=31 // pred_check
        %p1308 = pneg %p119
      $region42: #{brain_cnn_forward.6} parent=31 // pred_check_branch
        %1310 = sbr.rel (%p1308) target = $region44
      $region43: #{brain_cnn_forward.6} parent=31 // pred_region
        %s1311 = smul.u32 27, %s18
      $region44: #{brain_cnn_forward.6} parent=31 // pred_fallthru
        _
    $region32: #{brain_cnn_forward.6} parent=5 // pred_fallthru
      _
    %p1312 = scmp.le.s32.totalorder 2, %s9
    // Predicated region
    $region45: #{brain_cnn_forward.6} parent=5 // pred_check
      %p1313 = pneg %p1312
    $region46: #{brain_cnn_forward.6} parent=5 // pred_check_branch
      %1315 = sbr.rel (%p1313) target = $region48
    $region47: #{brain_cnn_forward.6} parent=5 // pred_region
      %s1316 = ssub.s32 %s9, 2
      // Predicated region
      $region49: #{brain_cnn_forward.6} parent=47 // pred_check
        %p1317 = pneg %p125
      $region50: #{brain_cnn_forward.6} parent=47 // pred_check_branch
        %1319 = sbr.rel (%p1317) target = $region52
      $region51: #{brain_cnn_forward.6} parent=47 // pred_region
        %s1320 = smul.u32 27, %s20
        %p1321 = scmp.lt.s32.totalorder %s1320, 80
        %s1322 = scalar_select %p1321, %s1320, 80
        %s1323 = smul.addr %s1322, 4
        %s1324 = scalar_lea.vmem %s3, %s1323
      $region52: #{brain_cnn_forward.6} parent=47 // pred_fallthru
        _
    $region48: #{brain_cnn_forward.6} parent=5 // pred_fallthru
      _
  $region6: #{brain_cnn_forward.6} parent=0 // loop_footer
    %s13 = sadd.s32 1, %s9
  $region7: #{brain_cnn_forward.6} parent=0 // loop_footer_branch
    %8 = sbr.rel target = $region3
  $region8: #{brain_cnn_forward.6} parent=0 // loop_exit
    _

// kernel: brain_cnn_forward.7
$region0: #{brain_cnn_forward.7}
  #allocation0 [shape = 'u32[]', space=smem, size = 0x4, offset = 0x4, fixed_abs, tag = 'smem constant byte address 0x4 - core index']
  #allocation1 [shape = 'u32[144,128]{1,0:T(1,128)}', space=vmem, size = 0x12000, scoped, tag = 'internal scratch']
  #allocation2 [shape = 'f32[2,6]{1,0:T(2,128)}', space=vmem, size = 0x400, scoped, tag = 'scratch operand']
  %s0 = inlined_call_operand.vmem [shape: bf16[2,10368], index: 0, kind: input, shape index: {}]
  %s1 = inlined_call_operand.vmem [shape: bf16[10368,6], index: 1, kind: input, shape index: {}]
  %s2 = inlined_call_operand.vmem [shape: f32[1,6], index: 2, kind: input, shape index: {}]
  %s3 = inlined_call_operand.hbm [shape: f32[2,6], index: 3, kind: output, shape index: {}]
  %s4 = sld [smem:[#allocation0]]
  $region30: #{brain_cnn_forward.7} parent=0
    _
  %s6 = ssub.s32 1, %s4
  %s7 = scalar_select 0, %s6, %s4
  $region1: #{brain_cnn_forward.7} parent=0
    #allocation3 [shape = 'u8[1024]{0}', space=vmem, size = 0x400, scoped, tag = 'output window, operand 0, single buffered']
    #allocation4 [shape = 's32[1]{0}', space=sflag, size = 0x4, scoped, tag = 'scoped memory for brain_cnn_forward.7']
    %8 = vsyncpa [#allocation4], 0
    // Predicated region
    $region2: #{brain_cnn_forward.7} parent=1 // pred_check
      _
    $region3: #{brain_cnn_forward.7} parent=1 // pred_check_branch
      %10 = sbr.rel (0) target = $region5
    $region4: #{brain_cnn_forward.7} parent=1 // pred_region
      _
    $region5: #{brain_cnn_forward.7} parent=1 // pred_fallthru
      _
    // Predicated region
    $region6: #{brain_cnn_forward.7} parent=1 // pred_check
      _
    $region7: #{brain_cnn_forward.7} parent=1 // pred_check_branch
      %12 = sbr.rel (0) target = $region9
    $region8: #{brain_cnn_forward.7} parent=1 // pred_region
      _
    $region9: #{brain_cnn_forward.7} parent=1 // pred_fallthru
      _
    // Predicated region
    $region10: #{brain_cnn_forward.7} parent=1 // pred_check
      _
    $region11: #{brain_cnn_forward.7} parent=1 // pred_check_branch
      %14 = sbr.rel (0) target = $region13
    $region12: #{brain_cnn_forward.7} parent=1 // pred_region
      _
    $region13: #{brain_cnn_forward.7} parent=1 // pred_fallthru
      _
    %p16 = scmp.eq.s32.totalorder 0, 0
    // Predicated region
    $region14: #{brain_cnn_forward.7} parent=1 // pred_check
      %p17 = pneg %p16
    $region15: #{brain_cnn_forward.7} parent=1 // pred_check_branch
      %19 = sbr.rel (%p17) target = $region17
    $region16: #{brain_cnn_forward.7} parent=1 // pred_region
      %vm20 = vcmask 41984
      %21 = vst.msk [vmem:[#allocation2] sm:$0x3] %vm20, 0.0
    $region17: #{brain_cnn_forward.7} parent=1 // pred_fallthru
      _
    %v22 = vld [vmem:[#allocation2] sm:$0x3]
    %v23 = vld [vmem:[%s0] sm:$0xff]
    %v24 = vld [vmem:[%s0 + $0x8] sm:$0xff]
    %v25 = vld [vmem:[%s0 + $0x10] sm:$0xff]
    %v26 = vld [vmem:[%s0 + $0x18] sm:$0xff]
    %v27 = vld [vmem:[%s0 + $0x20] sm:$0xff]
    %v28 = vld [vmem:[%s0 + $0x28] sm:$0xff]
    %v29 = vld [vmem:[%s0 + $0x30] sm:$0xff]
    %v30 = vld [vmem:[%s0 + $0x38] sm:$0xff]
    %v31 = vld [vmem:[%s0 + $0x40] sm:$0xff]
    %v32 = vld [vmem:[%s0 + $0x48] sm:$0xff]
    %v33 = vld [vmem:[%s0 + $0x50] sm:$0x1]
    %v34 = vld [vmem:[%s1] sm:$0xf]
    %v35 = vld [vmem:[%s1 + $0x4] sm:$0xf]
    %v36 = vld [vmem:[%s1 + $0x8] sm:$0xf]
    %v37 = vld [vmem:[%s1 + $0xc] sm:$0xf]
    %v38 = vld [vmem:[%s1 + $0x10] sm:$0xf]
    %v39 = vld [vmem:[%s1 + $0x14] sm:$0xf]
    %v40 = vld [vmem:[%s1 + $0x18] sm:$0xf]
    %v41 = vld [vmem:[%s1 + $0x1c] sm:$0xf]
    %v42 = vld [vmem:[%s1 + $0x20] sm:$0xf]
    %v43 = vld [vmem:[%s1 + $0x24] sm:$0xf]
    %v44 = vld [vmem:[%s1 + $0x28] sm:$0xf]
    %v45 = vld [vmem:[%s1 + $0x2c] sm:$0xf]
    %v46 = vld [vmem:[%s1 + $0x30] sm:$0xf]
    %v47 = vld [vmem:[%s1 + $0x34] sm:$0xf]
    %v48 = vld [vmem:[%s1 + $0x38] sm:$0xf]
    %v49 = vld [vmem:[%s1 + $0x3c] sm:$0xf]
    %v50 = vld [vmem:[%s1 + $0x40] sm:$0xf]
    %v51 = vld [vmem:[%s1 + $0x44] sm:$0xf]
    %v52 = vld [vmem:[%s1 + $0x48] sm:$0xf]
    %v53 = vld [vmem:[%s1 + $0x4c] sm:$0xf]
    %v54 = vld [vmem:[%s1 + $0x50] sm:$0xf]
    %v55 = vld [vmem:[%s1 + $0x54] sm:$0xf]
    %v56 = vld [vmem:[%s1 + $0x58] sm:$0xf]
    %v57 = vld [vmem:[%s1 + $0x5c] sm:$0xf]
    %v58 = vld [vmem:[%s1 + $0x60] sm:$0xf]
    %v59 = vld [vmem:[%s1 + $0x64] sm:$0xf]
    %v60 = vld [vmem:[%s1 + $0x68] sm:$0xf]
    %v61 = vld [vmem:[%s1 + $0x6c] sm:$0xf]
    %v62 = vld [vmem:[%s1 + $0x70] sm:$0xf]
    %v63 = vld [vmem:[%s1 + $0x74] sm:$0xf]
    %v64 = vld [vmem:[%s1 + $0x78] sm:$0xf]
    %v65 = vld [vmem:[%s1 + $0x7c] sm:$0xf]
    %v66 = vld [vmem:[%s1 + $0x80] sm:$0xf]
    %v67 = vld [vmem:[%s1 + $0x84] sm:$0xf]
    %v68 = vld [vmem:[%s1 + $0x88] sm:$0xf]
    %v69 = vld [vmem:[%s1 + $0x8c] sm:$0xf]
    %v70 = vld [vmem:[%s1 + $0x90] sm:$0xf]
    %v71 = vld [vmem:[%s1 + $0x94] sm:$0xf]
    %v72 = vld [vmem:[%s1 + $0x98] sm:$0xf]
    %v73 = vld [vmem:[%s1 + $0x9c] sm:$0xf]
    %v74 = vld [vmem:[%s1 + $0xa0] sm:$0xf]
    %v75 = vld [vmem:[%s1 + $0xa4] sm:$0xf]
    %v76 = vld [vmem:[%s1 + $0xa8] sm:$0xf]
    %v77 = vld [vmem:[%s1 + $0xac] sm:$0xf]
    %v78 = vld [vmem:[%s1 + $0xb0] sm:$0xf]
    %v79 = vld [vmem:[%s1 + $0xb4] sm:$0xf]
    %v80 = vld [vmem:[%s1 + $0xb8] sm:$0xf]
    %v81 = vld [vmem:[%s1 + $0xbc] sm:$0xf]
    %v82 = vld [vmem:[%s1 + $0xc0] sm:$0xf]
    %v83 = vld [vmem:[%s1 + $0xc4] sm:$0xf]
    %v84 = vld [vmem:[%s1 + $0xc8] sm:$0xf]
    %v85 = vld [vmem:[%s1 + $0xcc] sm:$0xf]
    %v86 = vld [vmem:[%s1 + $0xd0] sm:$0xf]
    %v87 = vld [vmem:[%s1 + $0xd4] sm:$0xf]
    %v88 = vld [vmem:[%s1 + $0xd8] sm:$0xf]
    %v89 = vld [vmem:[%s1 + $0xdc] sm:$0xf]
    %v90 = vld [vmem:[%s1 + $0xe0] sm:$0xf]
    %v91 = vld [vmem:[%s1 + $0xe4] sm:$0xf]
    %v92 = vld [vmem:[%s1 + $0xe8] sm:$0xf]
    %v93 = vld [vmem:[%s1 + $0xec] sm:$0xf]
    %v94 = vld [vmem:[%s1 + $0xf0] sm:$0xf]
    %v95 = vld [vmem:[%s1 + $0xf4] sm:$0xf]
    %v96 = vld [vmem:[%s1 + $0xf8] sm:$0xf]
    %v97 = vld [vmem:[%s1 + $0xfc] sm:$0xf]
    %v98 = vld [vmem:[%s1 + $0x100] sm:$0xf]
    %v99 = vld [vmem:[%s1 + $0x104] sm:$0xf]
    %v100 = vld [vmem:[%s1 + $0x108] sm:$0xf]
    %v101 = vld [vmem:[%s1 + $0x10c] sm:$0xf]
    %v102 = vld [vmem:[%s1 + $0x110] sm:$0xf]
    %v103 = vld [vmem:[%s1 + $0x114] sm:$0xf]
    %v104 = vld [vmem:[%s1 + $0x118] sm:$0xf]
    %v105 = vld [vmem:[%s1 + $0x11c] sm:$0xf]
    %v106 = vld [vmem:[%s1 + $0x120] sm:$0xf]
    %v107 = vld [vmem:[%s1 + $0x124] sm:$0xf]
    %v108 = vld [vmem:[%s1 + $0x128] sm:$0xf]
    %v109 = vld [vmem:[%s1 + $0x12c] sm:$0xf]
    %v110 = vld [vmem:[%s1 + $0x130] sm:$0xf]
    %v111 = vld [vmem:[%s1 + $0x134] sm:$0xf]
    %v112 = vld [vmem:[%s1 + $0x138] sm:$0xf]
    %v113 = vld [vmem:[%s1 + $0x13c] sm:$0xf]
    %v114 = vld [vmem:[%s1 + $0x140] sm:$0xf]
    %v115 = vld [vmem:[%s1 + $0x144] sm:$0xf]
    %v116 = vld [vmem:[%s1 + $0x148] sm:$0xf]
    %v117 = vld [vmem:[%s1 + $0x14c] sm:$0xf]
    %v118 = vld [vmem:[%s1 + $0x150] sm:$0xf]
    %v119 = vld [vmem:[%s1 + $0x154] sm:$0xf]
    %v120 = vld [vmem:[%s1 + $0x158] sm:$0xf]
    %v121 = vld [vmem:[%s1 + $0x15c] sm:$0xf]
    %v122 = vld [vmem:[%s1 + $0x160] sm:$0xf]
    %v123 = vld [vmem:[%s1 + $0x164] sm:$0xf]
    %v124 = vld [vmem:[%s1 + $0x168] sm:$0xf]
    %v125 = vld [vmem:[%s1 + $0x16c] sm:$0xf]
    %v126 = vld [vmem:[%s1 + $0x170] sm:$0xf]
    %v127 = vld [vmem:[%s1 + $0x174] sm:$0xf]
    %v128 = vld [vmem:[%s1 + $0x178] sm:$0xf]
    %v129 = vld [vmem:[%s1 + $0x17c] sm:$0xf]
    %v130 = vld [vmem:[%s1 + $0x180] sm:$0xf]
    %v131 = vld [vmem:[%s1 + $0x184] sm:$0xf]
    %v132 = vld [vmem:[%s1 + $0x188] sm:$0xf]
    %v133 = vld [vmem:[%s1 + $0x18c] sm:$0xf]
    %v134 = vld [vmem:[%s1 + $0x190] sm:$0xf]
    %v135 = vld [vmem:[%s1 + $0x194] sm:$0xf]
    %v136 = vld [vmem:[%s1 + $0x198] sm:$0xf]
    %v137 = vld [vmem:[%s1 + $0x19c] sm:$0xf]
    %v138 = vld [vmem:[%s1 + $0x1a0] sm:$0xf]
    %v139 = vld [vmem:[%s1 + $0x1a4] sm:$0xf]
    %v140 = vld [vmem:[%s1 + $0x1a8] sm:$0xf]
    %v141 = vld [vmem:[%s1 + $0x1ac] sm:$0xf]
    %v142 = vld [vmem:[%s1 + $0x1b0] sm:$0xf]
    %v143 = vld [vmem:[%s1 + $0x1b4] sm:$0xf]
    %v144 = vld [vmem:[%s1 + $0x1b8] sm:$0xf]
    %v145 = vld [vmem:[%s1 + $0x1bc] sm:$0xf]
    %v146 = vld [vmem:[%s1 + $0x1c0] sm:$0xf]
    %v147 = vld [vmem:[%s1 + $0x1c4] sm:$0xf]
    %v148 = vld [vmem:[%s1 + $0x1c8] sm:$0xf]
    %v149 = vld [vmem:[%s1 + $0x1cc] sm:$0xf]
    %v150 = vld [vmem:[%s1 + $0x1d0] sm:$0xf]
    %v151 = vld [vmem:[%s1 + $0x1d4] sm:$0xf]
    %v152 = vld [vmem:[%s1 + $0x1d8] sm:$0xf]
    %v153 = vld [vmem:[%s1 + $0x1dc] sm:$0xf]
    %v154 = vld [vmem:[%s1 + $0x1e0] sm:$0xf]
    %v155 = vld [vmem:[%s1 + $0x1e4] sm:$0xf]
    %v156 = vld [vmem:[%s1 + $0x1e8] sm:$0xf]
    %v157 = vld [vmem:[%s1 + $0x1ec] sm:$0xf]
    %v158 = vld [vmem:[%s1 + $0x1f0] sm:$0xf]
    %v159 = vld [vmem:[%s1 + $0x1f4] sm:$0xf]
    %v160 = vld [vmem:[%s1 + $0x1f8] sm:$0xf]
    %v161 = vld [vmem:[%s1 + $0x1fc] sm:$0xf]
    %v162 = vld [vmem:[%s1 + $0x200] sm:$0xf]
    %v163 = vld [vmem:[%s1 + $0x204] sm:$0xf]
    %v164 = vld [vmem:[%s1 + $0x208] sm:$0xf]
    %v165 = vld [vmem:[%s1 + $0x20c] sm:$0xf]
    %v166 = vld [vmem:[%s1 + $0x210] sm:$0xf]
    %v167 = vld [vmem:[%s1 + $0x214] sm:$0xf]
    %v168 = vld [vmem:[%s1 + $0x218] sm:$0xf]
    %v169 = vld [vmem:[%s1 + $0x21c] sm:$0xf]
    %v170 = vld [vmem:[%s1 + $0x220] sm:$0xf]
    %v171 = vld [vmem:[%s1 + $0x224] sm:$0xf]
    %v172 = vld [vmem:[%s1 + $0x228] sm:$0xf]
    %v173 = vld [vmem:[%s1 + $0x22c] sm:$0xf]
    %v174 = vld [vmem:[%s1 + $0x230] sm:$0xf]
    %v175 = vld [vmem:[%s1 + $0x234] sm:$0xf]
    %v176 = vld [vmem:[%s1 + $0x238] sm:$0xf]
    %v177 = vld [vmem:[%s1 + $0x23c] sm:$0xf]
    %v178 = vld [vmem:[%s1 + $0x240] sm:$0xf]
    %v179 = vld [vmem:[%s1 + $0x244] sm:$0xf]
    %v180 = vld [vmem:[%s1 + $0x248] sm:$0xf]
    %v181 = vld [vmem:[%s1 + $0x24c] sm:$0xf]
    %v182 = vld [vmem:[%s1 + $0x250] sm:$0xf]
    %v183 = vld [vmem:[%s1 + $0x254] sm:$0xf]
    %v184 = vld [vmem:[%s1 + $0x258] sm:$0xf]
    %v185 = vld [vmem:[%s1 + $0x25c] sm:$0xf]
    %v186 = vld [vmem:[%s1 + $0x260] sm:$0xf]
    %v187 = vld [vmem:[%s1 + $0x264] sm:$0xf]
    %v188 = vld [vmem:[%s1 + $0x268] sm:$0xf]
    %v189 = vld [vmem:[%s1 + $0x26c] sm:$0xf]
    %v190 = vld [vmem:[%s1 + $0x270] sm:$0xf]
    %v191 = vld [vmem:[%s1 + $0x274] sm:$0xf]
    %v192 = vld [vmem:[%s1 + $0x278] sm:$0xf]
    %v193 = vld [vmem:[%s1 + $0x27c] sm:$0xf]
    %v194 = vld [vmem:[%s1 + $0x280] sm:$0xf]
    %v195 = vld [vmem:[%s1 + $0x284] sm:$0xf]
    %v196 = vld [vmem:[%s1 + $0x288] sm:$0xf]
    %v197 = vld [vmem:[%s1 + $0x28c] sm:$0xf]
    %v198 = vld [vmem:[%s1 + $0x290] sm:$0xf]
    %v199 = vld [vmem:[%s1 + $0x294] sm:$0xf]
    %v200 = vld [vmem:[%s1 + $0x298] sm:$0xf]
    %v201 = vld [vmem:[%s1 + $0x29c] sm:$0xf]
    %v202 = vld [vmem:[%s1 + $0x2a0] sm:$0xf]
    %v203 = vld [vmem:[%s1 + $0x2a4] sm:$0xf]
    %v204 = vld [vmem:[%s1 + $0x2a8] sm:$0xf]
    %v205 = vld [vmem:[%s1 + $0x2ac] sm:$0xf]
    %v206 = vld [vmem:[%s1 + $0x2b0] sm:$0xf]
    %v207 = vld [vmem:[%s1 + $0x2b4] sm:$0xf]
    %v208 = vld [vmem:[%s1 + $0x2b8] sm:$0xf]
    %v209 = vld [vmem:[%s1 + $0x2bc] sm:$0xf]
    %v210 = vld [vmem:[%s1 + $0x2c0] sm:$0xf]
    %v211 = vld [vmem:[%s1 + $0x2c4] sm:$0xf]
    %v212 = vld [vmem:[%s1 + $0x2c8] sm:$0xf]
    %v213 = vld [vmem:[%s1 + $0x2cc] sm:$0xf]
    %v214 = vld [vmem:[%s1 + $0x2d0] sm:$0xf]
    %v215 = vld [vmem:[%s1 + $0x2d4] sm:$0xf]
    %v216 = vld [vmem:[%s1 + $0x2d8] sm:$0xf]
    %v217 = vld [vmem:[%s1 + $0x2dc] sm:$0xf]
    %v218 = vld [vmem:[%s1 + $0x2e0] sm:$0xf]
    %v219 = vld [vmem:[%s1 + $0x2e4] sm:$0xf]
    %v220 = vld [vmem:[%s1 + $0x2e8] sm:$0xf]
    %v221 = vld [vmem:[%s1 + $0x2ec] sm:$0xf]
    %v222 = vld [vmem:[%s1 + $0x2f0] sm:$0xf]
    %v223 = vld [vmem:[%s1 + $0x2f4] sm:$0xf]
    %v224 = vld [vmem:[%s1 + $0x2f8] sm:$0xf]
    %v225 = vld [vmem:[%s1 + $0x2fc] sm:$0xf]
    %v226 = vld [vmem:[%s1 + $0x300] sm:$0xf]
    %v227 = vld [vmem:[%s1 + $0x304] sm:$0xf]
    %v228 = vld [vmem:[%s1 + $0x308] sm:$0xf]
    %v229 = vld [vmem:[%s1 + $0x30c] sm:$0xf]
    %v230 = vld [vmem:[%s1 + $0x310] sm:$0xf]
    %v231 = vld [vmem:[%s1 + $0x314] sm:$0xf]
    %v232 = vld [vmem:[%s1 + $0x318] sm:$0xf]
    %v233 = vld [vmem:[%s1 + $0x31c] sm:$0xf]
    %v234 = vld [vmem:[%s1 + $0x320] sm:$0xf]
    %v235 = vld [vmem:[%s1 + $0x324] sm:$0xf]
    %v236 = vld [vmem:[%s1 + $0x328] sm:$0xf]
    %v237 = vld [vmem:[%s1 + $0x32c] sm:$0xf]
    %v238 = vld [vmem:[%s1 + $0x330] sm:$0xf]
    %v239 = vld [vmem:[%s1 + $0x334] sm:$0xf]
    %v240 = vld [vmem:[%s1 + $0x338] sm:$0xf]
    %v241 = vld [vmem:[%s1 + $0x33c] sm:$0xf]
    %v242 = vld [vmem:[%s1 + $0x340] sm:$0xf]
    %v243 = vld [vmem:[%s1 + $0x344] sm:$0xf]
    %v244 = vld [vmem:[%s1 + $0x348] sm:$0xf]
    %v245 = vld [vmem:[%s1 + $0x34c] sm:$0xf]
    %v246 = vld [vmem:[%s1 + $0x350] sm:$0xf]
    %v247 = vld [vmem:[%s1 + $0x354] sm:$0xf]
    %v248 = vld [vmem:[%s1 + $0x358] sm:$0xf]
    %v249 = vld [vmem:[%s1 + $0x35c] sm:$0xf]
    %v250 = vld [vmem:[%s1 + $0x360] sm:$0xf]
    %v251 = vld [vmem:[%s1 + $0x364] sm:$0xf]
    %v252 = vld [vmem:[%s1 + $0x368] sm:$0xf]
    %v253 = vld [vmem:[%s1 + $0x36c] sm:$0xf]
    %v254 = vld [vmem:[%s1 + $0x370] sm:$0xf]
    %v255 = vld [vmem:[%s1 + $0x374] sm:$0xf]
    %v256 = vld [vmem:[%s1 + $0x378] sm:$0xf]
    %v257 = vld [vmem:[%s1 + $0x37c] sm:$0xf]
    %v258 = vld [vmem:[%s1 + $0x380] sm:$0xf]
    %v259 = vld [vmem:[%s1 + $0x384] sm:$0xf]
    %v260 = vld [vmem:[%s1 + $0x388] sm:$0xf]
    %v261 = vld [vmem:[%s1 + $0x38c] sm:$0xf]
    %v262 = vld [vmem:[%s1 + $0x390] sm:$0xf]
    %v263 = vld [vmem:[%s1 + $0x394] sm:$0xf]
    %v264 = vld [vmem:[%s1 + $0x398] sm:$0xf]
    %v265 = vld [vmem:[%s1 + $0x39c] sm:$0xf]
    %v266 = vld [vmem:[%s1 + $0x3a0] sm:$0xf]
    %v267 = vld [vmem:[%s1 + $0x3a4] sm:$0xf]
    %v268 = vld [vmem:[%s1 + $0x3a8] sm:$0xf]
    %v269 = vld [vmem:[%s1 + $0x3ac] sm:$0xf]
    %v270 = vld [vmem:[%s1 + $0x3b0] sm:$0xf]
    %v271 = vld [vmem:[%s1 + $0x3b4] sm:$0xf]
    %v272 = vld [vmem:[%s1 + $0x3b8] sm:$0xf]
    %v273 = vld [vmem:[%s1 + $0x3bc] sm:$0xf]
    %v274 = vld [vmem:[%s1 + $0x3c0] sm:$0xf]
    %v275 = vld [vmem:[%s1 + $0x3c4] sm:$0xf]
    %v276 = vld [vmem:[%s1 + $0x3c8] sm:$0xf]
    %v277 = vld [vmem:[%s1 + $0x3cc] sm:$0xf]
    %v278 = vld [vmem:[%s1 + $0x3d0] sm:$0xf]
    %v279 = vld [vmem:[%s1 + $0x3d4] sm:$0xf]
    %v280 = vld [vmem:[%s1 + $0x3d8] sm:$0xf]
    %v281 = vld [vmem:[%s1 + $0x3dc] sm:$0xf]
    %v282 = vld [vmem:[%s1 + $0x3e0] sm:$0xf]
    %v283 = vld [vmem:[%s1 + $0x3e4] sm:$0xf]
    %v284 = vld [vmem:[%s1 + $0x3e8] sm:$0xf]
    %v285 = vld [vmem:[%s1 + $0x3ec] sm:$0xf]
    %v286 = vld [vmem:[%s1 + $0x3f0] sm:$0xf]
    %v287 = vld [vmem:[%s1 + $0x3f4] sm:$0xf]
    %v288 = vld [vmem:[%s1 + $0x3f8] sm:$0xf]
    %v289 = vld [vmem:[%s1 + $0x3fc] sm:$0xf]
    %v290 = vld [vmem:[%s1 + $0x400] sm:$0xf]
    %v291 = vld [vmem:[%s1 + $0x404] sm:$0xf]
    %v292 = vld [vmem:[%s1 + $0x408] sm:$0xf]
    %v293 = vld [vmem:[%s1 + $0x40c] sm:$0xf]
    %v294 = vld [vmem:[%s1 + $0x410] sm:$0xf]
    %v295 = vld [vmem:[%s1 + $0x414] sm:$0xf]
    %v296 = vld [vmem:[%s1 + $0x418] sm:$0xf]
    %v297 = vld [vmem:[%s1 + $0x41c] sm:$0xf]
    %v298 = vld [vmem:[%s1 + $0x420] sm:$0xf]
    %v299 = vld [vmem:[%s1 + $0x424] sm:$0xf]
    %v300 = vld [vmem:[%s1 + $0x428] sm:$0xf]
    %v301 = vld [vmem:[%s1 + $0x42c] sm:$0xf]
    %v302 = vld [vmem:[%s1 + $0x430] sm:$0xf]
    %v303 = vld [vmem:[%s1 + $0x434] sm:$0xf]
    %v304 = vld [vmem:[%s1 + $0x438] sm:$0xf]
    %v305 = vld [vmem:[%s1 + $0x43c] sm:$0xf]
    %v306 = vld [vmem:[%s1 + $0x440] sm:$0xf]
    %v307 = vld [vmem:[%s1 + $0x444] sm:$0xf]
    %v308 = vld [vmem:[%s1 + $0x448] sm:$0xf]
    %v309 = vld [vmem:[%s1 + $0x44c] sm:$0xf]
    %v310 = vld [vmem:[%s1 + $0x450] sm:$0xf]
    %v311 = vld [vmem:[%s1 + $0x454] sm:$0xf]
    %v312 = vld [vmem:[%s1 + $0x458] sm:$0xf]
    %v313 = vld [vmem:[%s1 + $0x45c] sm:$0xf]
    %v314 = vld [vmem:[%s1 + $0x460] sm:$0xf]
    %v315 = vld [vmem:[%s1 + $0x464] sm:$0xf]
    %v316 = vld [vmem:[%s1 + $0x468] sm:$0xf]
    %v317 = vld [vmem:[%s1 + $0x46c] sm:$0xf]
    %v318 = vld [vmem:[%s1 + $0x470] sm:$0xf]
    %v319 = vld [vmem:[%s1 + $0x474] sm:$0xf]
    %v320 = vld [vmem:[%s1 + $0x478] sm:$0xf]
    %v321 = vld [vmem:[%s1 + $0x47c] sm:$0xf]
    %v322 = vld [vmem:[%s1 + $0x480] sm:$0xf]
    %v323 = vld [vmem:[%s1 + $0x484] sm:$0xf]
    %v324 = vld [vmem:[%s1 + $0x488] sm:$0xf]
    %v325 = vld [vmem:[%s1 + $0x48c] sm:$0xf]
    %v326 = vld [vmem:[%s1 + $0x490] sm:$0xf]
    %v327 = vld [vmem:[%s1 + $0x494] sm:$0xf]
    %v328 = vld [vmem:[%s1 + $0x498] sm:$0xf]
    %v329 = vld [vmem:[%s1 + $0x49c] sm:$0xf]
    %v330 = vld [vmem:[%s1 + $0x4a0] sm:$0xf]
    %v331 = vld [vmem:[%s1 + $0x4a4] sm:$0xf]
    %v332 = vld [vmem:[%s1 + $0x4a8] sm:$0xf]
    %v333 = vld [vmem:[%s1 + $0x4ac] sm:$0xf]
    %v334 = vld [vmem:[%s1 + $0x4b0] sm:$0xf]
    %v335 = vld [vmem:[%s1 + $0x4b4] sm:$0xf]
    %v336 = vld [vmem:[%s1 + $0x4b8] sm:$0xf]
    %v337 = vld [vmem:[%s1 + $0x4bc] sm:$0xf]
    %v338 = vld [vmem:[%s1 + $0x4c0] sm:$0xf]
    %v339 = vld [vmem:[%s1 + $0x4c4] sm:$0xf]
    %v340 = vld [vmem:[%s1 + $0x4c8] sm:$0xf]
    %v341 = vld [vmem:[%s1 + $0x4cc] sm:$0xf]
    %v342 = vld [vmem:[%s1 + $0x4d0] sm:$0xf]
    %v343 = vld [vmem:[%s1 + $0x4d4] sm:$0xf]
    %v344 = vld [vmem:[%s1 + $0x4d8] sm:$0xf]
    %v345 = vld [vmem:[%s1 + $0x4dc] sm:$0xf]
    %v346 = vld [vmem:[%s1 + $0x4e0] sm:$0xf]
    %v347 = vld [vmem:[%s1 + $0x4e4] sm:$0xf]
    %v348 = vld [vmem:[%s1 + $0x4e8] sm:$0xf]
    %v349 = vld [vmem:[%s1 + $0x4ec] sm:$0xf]
    %v350 = vld [vmem:[%s1 + $0x4f0] sm:$0xf]
    %v351 = vld [vmem:[%s1 + $0x4f4] sm:$0xf]
    %v352 = vld [vmem:[%s1 + $0x4f8] sm:$0xf]
    %v353 = vld [vmem:[%s1 + $0x4fc] sm:$0xf]
    %v354 = vld [vmem:[%s1 + $0x500] sm:$0xf]
    %v355 = vld [vmem:[%s1 + $0x504] sm:$0xf]
    %v356 = vld [vmem:[%s1 + $0x508] sm:$0xf]
    %v357 = vld [vmem:[%s1 + $0x50c] sm:$0xf]
    %v358 = vld [vmem:[%s1 + $0x510] sm:$0xf]
    %v359 = vld [vmem:[%s1 + $0x514] sm:$0xf]
    %v360 = vld [vmem:[%s1 + $0x518] sm:$0xf]
    %v361 = vld [vmem:[%s1 + $0x51c] sm:$0xf]
    %v362 = vld [vmem:[%s1 + $0x520] sm:$0xf]
    %v363 = vld [vmem:[%s1 + $0x524] sm:$0xf]
    %v364 = vld [vmem:[%s1 + $0x528] sm:$0xf]
    %v365 = vld [vmem:[%s1 + $0x52c] sm:$0xf]
    %v366 = vld [vmem:[%s1 + $0x530] sm:$0xf]
    %v367 = vld [vmem:[%s1 + $0x534] sm:$0xf]
    %v368 = vld [vmem:[%s1 + $0x538] sm:$0xf]
    %v369 = vld [vmem:[%s1 + $0x53c] sm:$0xf]
    %v370 = vld [vmem:[%s1 + $0x540] sm:$0xf]
    %v371 = vld [vmem:[%s1 + $0x544] sm:$0xf]
    %v372 = vld [vmem:[%s1 + $0x548] sm:$0xf]
    %v373 = vld [vmem:[%s1 + $0x54c] sm:$0xf]
    %v374 = vld [vmem:[%s1 + $0x550] sm:$0xf]
    %v375 = vld [vmem:[%s1 + $0x554] sm:$0xf]
    %v376 = vld [vmem:[%s1 + $0x558] sm:$0xf]
    %v377 = vld [vmem:[%s1 + $0x55c] sm:$0xf]
    %v378 = vld [vmem:[%s1 + $0x560] sm:$0xf]
    %v379 = vld [vmem:[%s1 + $0x564] sm:$0xf]
    %v380 = vld [vmem:[%s1 + $0x568] sm:$0xf]
    %v381 = vld [vmem:[%s1 + $0x56c] sm:$0xf]
    %v382 = vld [vmem:[%s1 + $0x570] sm:$0xf]
    %v383 = vld [vmem:[%s1 + $0x574] sm:$0xf]
    %v384 = vld [vmem:[%s1 + $0x578] sm:$0xf]
    %v385 = vld [vmem:[%s1 + $0x57c] sm:$0xf]
    %v386 = vld [vmem:[%s1 + $0x580] sm:$0xf]
    %v387 = vld [vmem:[%s1 + $0x584] sm:$0xf]
    %v388 = vld [vmem:[%s1 + $0x588] sm:$0xf]
    %v389 = vld [vmem:[%s1 + $0x58c] sm:$0xf]
    %v390 = vld [vmem:[%s1 + $0x590] sm:$0xf]
    %v391 = vld [vmem:[%s1 + $0x594] sm:$0xf]
    %v392 = vld [vmem:[%s1 + $0x598] sm:$0xf]
    %v393 = vld [vmem:[%s1 + $0x59c] sm:$0xf]
    %v394 = vld [vmem:[%s1 + $0x5a0] sm:$0xf]
    %v395 = vld [vmem:[%s1 + $0x5a4] sm:$0xf]
    %v396 = vld [vmem:[%s1 + $0x5a8] sm:$0xf]
    %v397 = vld [vmem:[%s1 + $0x5ac] sm:$0xf]
    %v398 = vld [vmem:[%s1 + $0x5b0] sm:$0xf]
    %v399 = vld [vmem:[%s1 + $0x5b4] sm:$0xf]
    %v400 = vld [vmem:[%s1 + $0x5b8] sm:$0xf]
    %v401 = vld [vmem:[%s1 + $0x5bc] sm:$0xf]
    %v402 = vld [vmem:[%s1 + $0x5c0] sm:$0xf]
    %v403 = vld [vmem:[%s1 + $0x5c4] sm:$0xf]
    %v404 = vld [vmem:[%s1 + $0x5c8] sm:$0xf]
    %v405 = vld [vmem:[%s1 + $0x5cc] sm:$0xf]
    %v406 = vld [vmem:[%s1 + $0x5d0] sm:$0xf]
    %v407 = vld [vmem:[%s1 + $0x5d4] sm:$0xf]
    %v408 = vld [vmem:[%s1 + $0x5d8] sm:$0xf]
    %v409 = vld [vmem:[%s1 + $0x5dc] sm:$0xf]
    %v410 = vld [vmem:[%s1 + $0x5e0] sm:$0xf]
    %v411 = vld [vmem:[%s1 + $0x5e4] sm:$0xf]
    %v412 = vld [vmem:[%s1 + $0x5e8] sm:$0xf]
    %v413 = vld [vmem:[%s1 + $0x5ec] sm:$0xf]
    %v414 = vld [vmem:[%s1 + $0x5f0] sm:$0xf]
    %v415 = vld [vmem:[%s1 + $0x5f4] sm:$0xf]
    %v416 = vld [vmem:[%s1 + $0x5f8] sm:$0xf]
    %v417 = vld [vmem:[%s1 + $0x5fc] sm:$0xf]
    %v418 = vld [vmem:[%s1 + $0x600] sm:$0xf]
    %v419 = vld [vmem:[%s1 + $0x604] sm:$0xf]
    %v420 = vld [vmem:[%s1 + $0x608] sm:$0xf]
    %v421 = vld [vmem:[%s1 + $0x60c] sm:$0xf]
    %v422 = vld [vmem:[%s1 + $0x610] sm:$0xf]
    %v423 = vld [vmem:[%s1 + $0x614] sm:$0xf]
    %v424 = vld [vmem:[%s1 + $0x618] sm:$0xf]
    %v425 = vld [vmem:[%s1 + $0x61c] sm:$0xf]
    %v426 = vld [vmem:[%s1 + $0x620] sm:$0xf]
    %v427 = vld [vmem:[%s1 + $0x624] sm:$0xf]
    %v428 = vld [vmem:[%s1 + $0x628] sm:$0xf]
    %v429 = vld [vmem:[%s1 + $0x62c] sm:$0xf]
    %v430 = vld [vmem:[%s1 + $0x630] sm:$0xf]
    %v431 = vld [vmem:[%s1 + $0x634] sm:$0xf]
    %v432 = vld [vmem:[%s1 + $0x638] sm:$0xf]
    %v433 = vld [vmem:[%s1 + $0x63c] sm:$0xf]
    %v434 = vld [vmem:[%s1 + $0x640] sm:$0xf]
    %v435 = vld [vmem:[%s1 + $0x644] sm:$0xf]
    %v436 = vld [vmem:[%s1 + $0x648] sm:$0xf]
    %v437 = vld [vmem:[%s1 + $0x64c] sm:$0xf]
    %v438 = vld [vmem:[%s1 + $0x650] sm:$0xf]
    %v439 = vld [vmem:[%s1 + $0x654] sm:$0xf]
    %v440 = vld [vmem:[%s1 + $0x658] sm:$0xf]
    %v441 = vld [vmem:[%s1 + $0x65c] sm:$0xf]
    %v442 = vld [vmem:[%s1 + $0x660] sm:$0xf]
    %v443 = vld [vmem:[%s1 + $0x664] sm:$0xf]
    %v444 = vld [vmem:[%s1 + $0x668] sm:$0xf]
    %v445 = vld [vmem:[%s1 + $0x66c] sm:$0xf]
    %v446 = vld [vmem:[%s1 + $0x670] sm:$0xf]
    %v447 = vld [vmem:[%s1 + $0x674] sm:$0xf]
    %v448 = vld [vmem:[%s1 + $0x678] sm:$0xf]
    %v449 = vld [vmem:[%s1 + $0x67c] sm:$0xf]
    %v450 = vld [vmem:[%s1 + $0x680] sm:$0xf]
    %v451 = vld [vmem:[%s1 + $0x684] sm:$0xf]
    %v452 = vld [vmem:[%s1 + $0x688] sm:$0xf]
    %v453 = vld [vmem:[%s1 + $0x68c] sm:$0xf]
    %v454 = vld [vmem:[%s1 + $0x690] sm:$0xf]
    %v455 = vld [vmem:[%s1 + $0x694] sm:$0xf]
    %v456 = vld [vmem:[%s1 + $0x698] sm:$0xf]
    %v457 = vld [vmem:[%s1 + $0x69c] sm:$0xf]
    %v458 = vld [vmem:[%s1 + $0x6a0] sm:$0xf]
    %v459 = vld [vmem:[%s1 + $0x6a4] sm:$0xf]
    %v460 = vld [vmem:[%s1 + $0x6a8] sm:$0xf]
    %v461 = vld [vmem:[%s1 + $0x6ac] sm:$0xf]
    %v462 = vld [vmem:[%s1 + $0x6b0] sm:$0xf]
    %v463 = vld [vmem:[%s1 + $0x6b4] sm:$0xf]
    %v464 = vld [vmem:[%s1 + $0x6b8] sm:$0xf]
    %v465 = vld [vmem:[%s1 + $0x6bc] sm:$0xf]
    %v466 = vld [vmem:[%s1 + $0x6c0] sm:$0xf]
    %v467 = vld [vmem:[%s1 + $0x6c4] sm:$0xf]
    %v468 = vld [vmem:[%s1 + $0x6c8] sm:$0xf]
    %v469 = vld [vmem:[%s1 + $0x6cc] sm:$0xf]
    %v470 = vld [vmem:[%s1 + $0x6d0] sm:$0xf]
    %v471 = vld [vmem:[%s1 + $0x6d4] sm:$0xf]
    %v472 = vld [vmem:[%s1 + $0x6d8] sm:$0xf]
    %v473 = vld [vmem:[%s1 + $0x6dc] sm:$0xf]
    %v474 = vld [vmem:[%s1 + $0x6e0] sm:$0xf]
    %v475 = vld [vmem:[%s1 + $0x6e4] sm:$0xf]
    %v476 = vld [vmem:[%s1 + $0x6e8] sm:$0xf]
    %v477 = vld [vmem:[%s1 + $0x6ec] sm:$0xf]
    %v478 = vld [vmem:[%s1 + $0x6f0] sm:$0xf]
    %v479 = vld [vmem:[%s1 + $0x6f4] sm:$0xf]
    %v480 = vld [vmem:[%s1 + $0x6f8] sm:$0xf]
    %v481 = vld [vmem:[%s1 + $0x6fc] sm:$0xf]
    %v482 = vld [vmem:[%s1 + $0x700] sm:$0xf]
    %v483 = vld [vmem:[%s1 + $0x704] sm:$0xf]
    %v484 = vld [vmem:[%s1 + $0x708] sm:$0xf]
    %v485 = vld [vmem:[%s1 + $0x70c] sm:$0xf]
    %v486 = vld [vmem:[%s1 + $0x710] sm:$0xf]
    %v487 = vld [vmem:[%s1 + $0x714] sm:$0xf]
    %v488 = vld [vmem:[%s1 + $0x718] sm:$0xf]
    %v489 = vld [vmem:[%s1 + $0x71c] sm:$0xf]
    %v490 = vld [vmem:[%s1 + $0x720] sm:$0xf]
    %v491 = vld [vmem:[%s1 + $0x724] sm:$0xf]
    %v492 = vld [vmem:[%s1 + $0x728] sm:$0xf]
    %v493 = vld [vmem:[%s1 + $0x72c] sm:$0xf]
    %v494 = vld [vmem:[%s1 + $0x730] sm:$0xf]
    %v495 = vld [vmem:[%s1 + $0x734] sm:$0xf]
    %v496 = vld [vmem:[%s1 + $0x738] sm:$0xf]
    %v497 = vld [vmem:[%s1 + $0x73c] sm:$0xf]
    %v498 = vld [vmem:[%s1 + $0x740] sm:$0xf]
    %v499 = vld [vmem:[%s1 + $0x744] sm:$0xf]
    %v500 = vld [vmem:[%s1 + $0x748] sm:$0xf]
    %v501 = vld [vmem:[%s1 + $0x74c] sm:$0xf]
    %v502 = vld [vmem:[%s1 + $0x750] sm:$0xf]
    %v503 = vld [vmem:[%s1 + $0x754] sm:$0xf]
    %v504 = vld [vmem:[%s1 + $0x758] sm:$0xf]
    %v505 = vld [vmem:[%s1 + $0x75c] sm:$0xf]
    %v506 = vld [vmem:[%s1 + $0x760] sm:$0xf]
    %v507 = vld [vmem:[%s1 + $0x764] sm:$0xf]
    %v508 = vld [vmem:[%s1 + $0x768] sm:$0xf]
    %v509 = vld [vmem:[%s1 + $0x76c] sm:$0xf]
    %v510 = vld [vmem:[%s1 + $0x770] sm:$0xf]
    %v511 = vld [vmem:[%s1 + $0x774] sm:$0xf]
    %v512 = vld [vmem:[%s1 + $0x778] sm:$0xf]
    %v513 = vld [vmem:[%s1 + $0x77c] sm:$0xf]
    %v514 = vld [vmem:[%s1 + $0x780] sm:$0xf]
    %v515 = vld [vmem:[%s1 + $0x784] sm:$0xf]
    %v516 = vld [vmem:[%s1 + $0x788] sm:$0xf]
    %v517 = vld [vmem:[%s1 + $0x78c] sm:$0xf]
    %v518 = vld [vmem:[%s1 + $0x790] sm:$0xf]
    %v519 = vld [vmem:[%s1 + $0x794] sm:$0xf]
    %v520 = vld [vmem:[%s1 + $0x798] sm:$0xf]
    %v521 = vld [vmem:[%s1 + $0x79c] sm:$0xf]
    %v522 = vld [vmem:[%s1 + $0x7a0] sm:$0xf]
    %v523 = vld [vmem:[%s1 + $0x7a4] sm:$0xf]
    %v524 = vld [vmem:[%s1 + $0x7a8] sm:$0xf]
    %v525 = vld [vmem:[%s1 + $0x7ac] sm:$0xf]
    %v526 = vld [vmem:[%s1 + $0x7b0] sm:$0xf]
    %v527 = vld [vmem:[%s1 + $0x7b4] sm:$0xf]
    %v528 = vld [vmem:[%s1 + $0x7b8] sm:$0xf]
    %v529 = vld [vmem:[%s1 + $0x7bc] sm:$0xf]
    %v530 = vld [vmem:[%s1 + $0x7c0] sm:$0xf]
    %v531 = vld [vmem:[%s1 + $0x7c4] sm:$0xf]
    %v532 = vld [vmem:[%s1 + $0x7c8] sm:$0xf]
    %v533 = vld [vmem:[%s1 + $0x7cc] sm:$0xf]
    %v534 = vld [vmem:[%s1 + $0x7d0] sm:$0xf]
    %v535 = vld [vmem:[%s1 + $0x7d4] sm:$0xf]
    %v536 = vld [vmem:[%s1 + $0x7d8] sm:$0xf]
    %v537 = vld [vmem:[%s1 + $0x7dc] sm:$0xf]
    %v538 = vld [vmem:[%s1 + $0x7e0] sm:$0xf]
    %v539 = vld [vmem:[%s1 + $0x7e4] sm:$0xf]
    %v540 = vld [vmem:[%s1 + $0x7e8] sm:$0xf]
    %v541 = vld [vmem:[%s1 + $0x7ec] sm:$0xf]
    %v542 = vld [vmem:[%s1 + $0x7f0] sm:$0xf]
    %v543 = vld [vmem:[%s1 + $0x7f4] sm:$0xf]
    %v544 = vld [vmem:[%s1 + $0x7f8] sm:$0xf]
    %v545 = vld [vmem:[%s1 + $0x7fc] sm:$0xf]
    %v546 = vld [vmem:[%s1 + $0x800] sm:$0xf]
    %v547 = vld [vmem:[%s1 + $0x804] sm:$0xf]
    %v548 = vld [vmem:[%s1 + $0x808] sm:$0xf]
    %v549 = vld [vmem:[%s1 + $0x80c] sm:$0xf]
    %v550 = vld [vmem:[%s1 + $0x810] sm:$0xf]
    %v551 = vld [vmem:[%s1 + $0x814] sm:$0xf]
    %v552 = vld [vmem:[%s1 + $0x818] sm:$0xf]
    %v553 = vld [vmem:[%s1 + $0x81c] sm:$0xf]
    %v554 = vld [vmem:[%s1 + $0x820] sm:$0xf]
    %v555 = vld [vmem:[%s1 + $0x824] sm:$0xf]
    %v556 = vld [vmem:[%s1 + $0x828] sm:$0xf]
    %v557 = vld [vmem:[%s1 + $0x82c] sm:$0xf]
    %v558 = vld [vmem:[%s1 + $0x830] sm:$0xf]
    %v559 = vld [vmem:[%s1 + $0x834] sm:$0xf]
    %v560 = vld [vmem:[%s1 + $0x838] sm:$0xf]
    %v561 = vld [vmem:[%s1 + $0x83c] sm:$0xf]
    %v562 = vld [vmem:[%s1 + $0x840] sm:$0xf]
    %v563 = vld [vmem:[%s1 + $0x844] sm:$0xf]
    %v564 = vld [vmem:[%s1 + $0x848] sm:$0xf]
    %v565 = vld [vmem:[%s1 + $0x84c] sm:$0xf]
    %v566 = vld [vmem:[%s1 + $0x850] sm:$0xf]
    %v567 = vld [vmem:[%s1 + $0x854] sm:$0xf]
    %v568 = vld [vmem:[%s1 + $0x858] sm:$0xf]
    %v569 = vld [vmem:[%s1 + $0x85c] sm:$0xf]
    %v570 = vld [vmem:[%s1 + $0x860] sm:$0xf]
    %v571 = vld [vmem:[%s1 + $0x864] sm:$0xf]
    %v572 = vld [vmem:[%s1 + $0x868] sm:$0xf]
    %v573 = vld [vmem:[%s1 + $0x86c] sm:$0xf]
    %v574 = vld [vmem:[%s1 + $0x870] sm:$0xf]
    %v575 = vld [vmem:[%s1 + $0x874] sm:$0xf]
    %v576 = vld [vmem:[%s1 + $0x878] sm:$0xf]
    %v577 = vld [vmem:[%s1 + $0x87c] sm:$0xf]
    %v578 = vld [vmem:[%s1 + $0x880] sm:$0xf]
    %v579 = vld [vmem:[%s1 + $0x884] sm:$0xf]
    %v580 = vld [vmem:[%s1 + $0x888] sm:$0xf]
    %v581 = vld [vmem:[%s1 + $0x88c] sm:$0xf]
    %v582 = vld [vmem:[%s1 + $0x890] sm:$0xf]
    %v583 = vld [vmem:[%s1 + $0x894] sm:$0xf]
    %v584 = vld [vmem:[%s1 + $0x898] sm:$0xf]
    %v585 = vld [vmem:[%s1 + $0x89c] sm:$0xf]
    %v586 = vld [vmem:[%s1 + $0x8a0] sm:$0xf]
    %v587 = vld [vmem:[%s1 + $0x8a4] sm:$0xf]
    %v588 = vld [vmem:[%s1 + $0x8a8] sm:$0xf]
    %v589 = vld [vmem:[%s1 + $0x8ac] sm:$0xf]
    %v590 = vld [vmem:[%s1 + $0x8b0] sm:$0xf]
    %v591 = vld [vmem:[%s1 + $0x8b4] sm:$0xf]
    %v592 = vld [vmem:[%s1 + $0x8b8] sm:$0xf]
    %v593 = vld [vmem:[%s1 + $0x8bc] sm:$0xf]
    %v594 = vld [vmem:[%s1 + $0x8c0] sm:$0xf]
    %v595 = vld [vmem:[%s1 + $0x8c4] sm:$0xf]
    %v596 = vld [vmem:[%s1 + $0x8c8] sm:$0xf]
    %v597 = vld [vmem:[%s1 + $0x8cc] sm:$0xf]
    %v598 = vld [vmem:[%s1 + $0x8d0] sm:$0xf]
    %v599 = vld [vmem:[%s1 + $0x8d4] sm:$0xf]
    %v600 = vld [vmem:[%s1 + $0x8d8] sm:$0xf]
    %v601 = vld [vmem:[%s1 + $0x8dc] sm:$0xf]
    %v602 = vld [vmem:[%s1 + $0x8e0] sm:$0xf]
    %v603 = vld [vmem:[%s1 + $0x8e4] sm:$0xf]
    %v604 = vld [vmem:[%s1 + $0x8e8] sm:$0xf]
    %v605 = vld [vmem:[%s1 + $0x8ec] sm:$0xf]
    %v606 = vld [vmem:[%s1 + $0x8f0] sm:$0xf]
    %v607 = vld [vmem:[%s1 + $0x8f4] sm:$0xf]
    %v608 = vld [vmem:[%s1 + $0x8f8] sm:$0xf]
    %v609 = vld [vmem:[%s1 + $0x8fc] sm:$0xf]
    %v610 = vld [vmem:[%s1 + $0x900] sm:$0xf]
    %v611 = vld [vmem:[%s1 + $0x904] sm:$0xf]
    %v612 = vld [vmem:[%s1 + $0x908] sm:$0xf]
    %v613 = vld [vmem:[%s1 + $0x90c] sm:$0xf]
    %v614 = vld [vmem:[%s1 + $0x910] sm:$0xf]
    %v615 = vld [vmem:[%s1 + $0x914] sm:$0xf]
    %v616 = vld [vmem:[%s1 + $0x918] sm:$0xf]
    %v617 = vld [vmem:[%s1 + $0x91c] sm:$0xf]
    %v618 = vld [vmem:[%s1 + $0x920] sm:$0xf]
    %v619 = vld [vmem:[%s1 + $0x924] sm:$0xf]
    %v620 = vld [vmem:[%s1 + $0x928] sm:$0xf]
    %v621 = vld [vmem:[%s1 + $0x92c] sm:$0xf]
    %v622 = vld [vmem:[%s1 + $0x930] sm:$0xf]
    %v623 = vld [vmem:[%s1 + $0x934] sm:$0xf]
    %v624 = vld [vmem:[%s1 + $0x938] sm:$0xf]
    %v625 = vld [vmem:[%s1 + $0x93c] sm:$0xf]
    %v626 = vld [vmem:[%s1 + $0x940] sm:$0xf]
    %v627 = vld [vmem:[%s1 + $0x944] sm:$0xf]
    %v628 = vld [vmem:[%s1 + $0x948] sm:$0xf]
    %v629 = vld [vmem:[%s1 + $0x94c] sm:$0xf]
    %v630 = vld [vmem:[%s1 + $0x950] sm:$0xf]
    %v631 = vld [vmem:[%s1 + $0x954] sm:$0xf]
    %v632 = vld [vmem:[%s1 + $0x958] sm:$0xf]
    %v633 = vld [vmem:[%s1 + $0x95c] sm:$0xf]
    %v634 = vld [vmem:[%s1 + $0x960] sm:$0xf]
    %v635 = vld [vmem:[%s1 + $0x964] sm:$0xf]
    %v636 = vld [vmem:[%s1 + $0x968] sm:$0xf]
    %v637 = vld [vmem:[%s1 + $0x96c] sm:$0xf]
    %v638 = vld [vmem:[%s1 + $0x970] sm:$0xf]
    %v639 = vld [vmem:[%s1 + $0x974] sm:$0xf]
    %v640 = vld [vmem:[%s1 + $0x978] sm:$0xf]
    %v641 = vld [vmem:[%s1 + $0x97c] sm:$0xf]
    %v642 = vld [vmem:[%s1 + $0x980] sm:$0xf]
    %v643 = vld [vmem:[%s1 + $0x984] sm:$0xf]
    %v644 = vld [vmem:[%s1 + $0x988] sm:$0xf]
    %v645 = vld [vmem:[%s1 + $0x98c] sm:$0xf]
    %v646 = vld [vmem:[%s1 + $0x990] sm:$0xf]
    %v647 = vld [vmem:[%s1 + $0x994] sm:$0xf]
    %v648 = vld [vmem:[%s1 + $0x998] sm:$0xf]
    %v649 = vld [vmem:[%s1 + $0x99c] sm:$0xf]
    %v650 = vld [vmem:[%s1 + $0x9a0] sm:$0xf]
    %v651 = vld [vmem:[%s1 + $0x9a4] sm:$0xf]
    %v652 = vld [vmem:[%s1 + $0x9a8] sm:$0xf]
    %v653 = vld [vmem:[%s1 + $0x9ac] sm:$0xf]
    %v654 = vld [vmem:[%s1 + $0x9b0] sm:$0xf]
    %v655 = vld [vmem:[%s1 + $0x9b4] sm:$0xf]
    %v656 = vld [vmem:[%s1 + $0x9b8] sm:$0xf]
    %v657 = vld [vmem:[%s1 + $0x9bc] sm:$0xf]
    %v658 = vld [vmem:[%s1 + $0x9c0] sm:$0xf]
    %v659 = vld [vmem:[%s1 + $0x9c4] sm:$0xf]
    %v660 = vld [vmem:[%s1 + $0x9c8] sm:$0xf]
    %v661 = vld [vmem:[%s1 + $0x9cc] sm:$0xf]
    %v662 = vld [vmem:[%s1 + $0x9d0] sm:$0xf]
    %v663 = vld [vmem:[%s1 + $0x9d4] sm:$0xf]
    %v664 = vld [vmem:[%s1 + $0x9d8] sm:$0xf]
    %v665 = vld [vmem:[%s1 + $0x9dc] sm:$0xf]
    %v666 = vld [vmem:[%s1 + $0x9e0] sm:$0xf]
    %v667 = vld [vmem:[%s1 + $0x9e4] sm:$0xf]
    %v668 = vld [vmem:[%s1 + $0x9e8] sm:$0xf]
    %v669 = vld [vmem:[%s1 + $0x9ec] sm:$0xf]
    %v670 = vld [vmem:[%s1 + $0x9f0] sm:$0xf]
    %v671 = vld [vmem:[%s1 + $0x9f4] sm:$0xf]
    %v672 = vld [vmem:[%s1 + $0x9f8] sm:$0xf]
    %v673 = vld [vmem:[%s1 + $0x9fc] sm:$0xf]
    %v674 = vld [vmem:[%s1 + $0xa00] sm:$0xf]
    %v675 = vld [vmem:[%s1 + $0xa04] sm:$0xf]
    %v676 = vld [vmem:[%s1 + $0xa08] sm:$0xf]
    %v677 = vld [vmem:[%s1 + $0xa0c] sm:$0xf]
    %v678 = vld [vmem:[%s1 + $0xa10] sm:$0xf]
    %v679 = vld [vmem:[%s1 + $0xa14] sm:$0xf]
    %v680 = vld [vmem:[%s1 + $0xa18] sm:$0xf]
    %v681 = vld [vmem:[%s1 + $0xa1c] sm:$0xf]
    %v682 = vld [vmem:[%s1 + $0xa20] sm:$0xf]
    %v683 = vld [vmem:[%s1 + $0xa24] sm:$0xf]
    %v684 = vld [vmem:[%s1 + $0xa28] sm:$0xf]
    %v685 = vld [vmem:[%s1 + $0xa2c] sm:$0xf]
    %v686 = vld [vmem:[%s1 + $0xa30] sm:$0xf]
    %v687 = vld [vmem:[%s1 + $0xa34] sm:$0xf]
    %v688 = vld [vmem:[%s1 + $0xa38] sm:$0xf]
    %v689 = vld [vmem:[%s1 + $0xa3c] sm:$0xf]
    %v690 = vld [vmem:[%s1 + $0xa40] sm:$0xf]
    %v691 = vld [vmem:[%s1 + $0xa44] sm:$0xf]
    %v692 = vld [vmem:[%s1 + $0xa48] sm:$0xf]
    %v693 = vld [vmem:[%s1 + $0xa4c] sm:$0xf]
    %v694 = vld [vmem:[%s1 + $0xa50] sm:$0xf]
    %v695 = vld [vmem:[%s1 + $0xa54] sm:$0xf]
    %v696 = vld [vmem:[%s1 + $0xa58] sm:$0xf]
    %v697 = vld [vmem:[%s1 + $0xa5c] sm:$0xf]
    %v698 = vld [vmem:[%s1 + $0xa60] sm:$0xf]
    %v699 = vld [vmem:[%s1 + $0xa64] sm:$0xf]
    %v700 = vld [vmem:[%s1 + $0xa68] sm:$0xf]
    %v701 = vld [vmem:[%s1 + $0xa6c] sm:$0xf]
    %v702 = vld [vmem:[%s1 + $0xa70] sm:$0xf]
    %v703 = vld [vmem:[%s1 + $0xa74] sm:$0xf]
    %v704 = vld [vmem:[%s1 + $0xa78] sm:$0xf]
    %v705 = vld [vmem:[%s1 + $0xa7c] sm:$0xf]
    %v706 = vld [vmem:[%s1 + $0xa80] sm:$0xf]
    %v707 = vld [vmem:[%s1 + $0xa84] sm:$0xf]
    %v708 = vld [vmem:[%s1 + $0xa88] sm:$0xf]
    %v709 = vld [vmem:[%s1 + $0xa8c] sm:$0xf]
    %v710 = vld [vmem:[%s1 + $0xa90] sm:$0xf]
    %v711 = vld [vmem:[%s1 + $0xa94] sm:$0xf]
    %v712 = vld [vmem:[%s1 + $0xa98] sm:$0xf]
    %v713 = vld [vmem:[%s1 + $0xa9c] sm:$0xf]
    %v714 = vld [vmem:[%s1 + $0xaa0] sm:$0xf]
    %v715 = vld [vmem:[%s1 + $0xaa4] sm:$0xf]
    %v716 = vld [vmem:[%s1 + $0xaa8] sm:$0xf]
    %v717 = vld [vmem:[%s1 + $0xaac] sm:$0xf]
    %v718 = vld [vmem:[%s1 + $0xab0] sm:$0xf]
    %v719 = vld [vmem:[%s1 + $0xab4] sm:$0xf]
    %v720 = vld [vmem:[%s1 + $0xab8] sm:$0xf]
    %v721 = vld [vmem:[%s1 + $0xabc] sm:$0xf]
    %v722 = vld [vmem:[%s1 + $0xac0] sm:$0xf]
    %v723 = vld [vmem:[%s1 + $0xac4] sm:$0xf]
    %v724 = vld [vmem:[%s1 + $0xac8] sm:$0xf]
    %v725 = vld [vmem:[%s1 + $0xacc] sm:$0xf]
    %v726 = vld [vmem:[%s1 + $0xad0] sm:$0xf]
    %v727 = vld [vmem:[%s1 + $0xad4] sm:$0xf]
    %v728 = vld [vmem:[%s1 + $0xad8] sm:$0xf]
    %v729 = vld [vmem:[%s1 + $0xadc] sm:$0xf]
    %v730 = vld [vmem:[%s1 + $0xae0] sm:$0xf]
    %v731 = vld [vmem:[%s1 + $0xae4] sm:$0xf]
    %v732 = vld [vmem:[%s1 + $0xae8] sm:$0xf]
    %v733 = vld [vmem:[%s1 + $0xaec] sm:$0xf]
    %v734 = vld [vmem:[%s1 + $0xaf0] sm:$0xf]
    %v735 = vld [vmem:[%s1 + $0xaf4] sm:$0xf]
    %v736 = vld [vmem:[%s1 + $0xaf8] sm:$0xf]
    %v737 = vld [vmem:[%s1 + $0xafc] sm:$0xf]
    %v738 = vld [vmem:[%s1 + $0xb00] sm:$0xf]
    %v739 = vld [vmem:[%s1 + $0xb04] sm:$0xf]
    %v740 = vld [vmem:[%s1 + $0xb08] sm:$0xf]
    %v741 = vld [vmem:[%s1 + $0xb0c] sm:$0xf]
    %v742 = vld [vmem:[%s1 + $0xb10] sm:$0xf]
    %v743 = vld [vmem:[%s1 + $0xb14] sm:$0xf]
    %v744 = vld [vmem:[%s1 + $0xb18] sm:$0xf]
    %v745 = vld [vmem:[%s1 + $0xb1c] sm:$0xf]
    %v746 = vld [vmem:[%s1 + $0xb20] sm:$0xf]
    %v747 = vld [vmem:[%s1 + $0xb24] sm:$0xf]
    %v748 = vld [vmem:[%s1 + $0xb28] sm:$0xf]
    %v749 = vld [vmem:[%s1 + $0xb2c] sm:$0xf]
    %v750 = vld [vmem:[%s1 + $0xb30] sm:$0xf]
    %v751 = vld [vmem:[%s1 + $0xb34] sm:$0xf]
    %v752 = vld [vmem:[%s1 + $0xb38] sm:$0xf]
    %v753 = vld [vmem:[%s1 + $0xb3c] sm:$0xf]
    %v754 = vld [vmem:[%s1 + $0xb40] sm:$0xf]
    %v755 = vld [vmem:[%s1 + $0xb44] sm:$0xf]
    %v756 = vld [vmem:[%s1 + $0xb48] sm:$0xf]
    %v757 = vld [vmem:[%s1 + $0xb4c] sm:$0xf]
    %v758 = vld [vmem:[%s1 + $0xb50] sm:$0xf]
    %v759 = vld [vmem:[%s1 + $0xb54] sm:$0xf]
    %v760 = vld [vmem:[%s1 + $0xb58] sm:$0xf]
    %v761 = vld [vmem:[%s1 + $0xb5c] sm:$0xf]
    %v762 = vld [vmem:[%s1 + $0xb60] sm:$0xf]
    %v763 = vld [vmem:[%s1 + $0xb64] sm:$0xf]
    %v764 = vld [vmem:[%s1 + $0xb68] sm:$0xf]
    %v765 = vld [vmem:[%s1 + $0xb6c] sm:$0xf]
    %v766 = vld [vmem:[%s1 + $0xb70] sm:$0xf]
    %v767 = vld [vmem:[%s1 + $0xb74] sm:$0xf]
    %v768 = vld [vmem:[%s1 + $0xb78] sm:$0xf]
    %v769 = vld [vmem:[%s1 + $0xb7c] sm:$0xf]
    %v770 = vld [vmem:[%s1 + $0xb80] sm:$0xf]
    %v771 = vld [vmem:[%s1 + $0xb84] sm:$0xf]
    %v772 = vld [vmem:[%s1 + $0xb88] sm:$0xf]
    %v773 = vld [vmem:[%s1 + $0xb8c] sm:$0xf]
    %v774 = vld [vmem:[%s1 + $0xb90] sm:$0xf]
    %v775 = vld [vmem:[%s1 + $0xb94] sm:$0xf]
    %v776 = vld [vmem:[%s1 + $0xb98] sm:$0xf]
    %v777 = vld [vmem:[%s1 + $0xb9c] sm:$0xf]
    %v778 = vld [vmem:[%s1 + $0xba0] sm:$0xf]
    %v779 = vld [vmem:[%s1 + $0xba4] sm:$0xf]
    %v780 = vld [vmem:[%s1 + $0xba8] sm:$0xf]
    %v781 = vld [vmem:[%s1 + $0xbac] sm:$0xf]
    %v782 = vld [vmem:[%s1 + $0xbb0] sm:$0xf]
    %v783 = vld [vmem:[%s1 + $0xbb4] sm:$0xf]
    %v784 = vld [vmem:[%s1 + $0xbb8] sm:$0xf]
    %v785 = vld [vmem:[%s1 + $0xbbc] sm:$0xf]
    %v786 = vld [vmem:[%s1 + $0xbc0] sm:$0xf]
    %v787 = vld [vmem:[%s1 + $0xbc4] sm:$0xf]
    %v788 = vld [vmem:[%s1 + $0xbc8] sm:$0xf]
    %v789 = vld [vmem:[%s1 + $0xbcc] sm:$0xf]
    %v790 = vld [vmem:[%s1 + $0xbd0] sm:$0xf]
    %v791 = vld [vmem:[%s1 + $0xbd4] sm:$0xf]
    %v792 = vld [vmem:[%s1 + $0xbd8] sm:$0xf]
    %v793 = vld [vmem:[%s1 + $0xbdc] sm:$0xf]
    %v794 = vld [vmem:[%s1 + $0xbe0] sm:$0xf]
    %v795 = vld [vmem:[%s1 + $0xbe4] sm:$0xf]
    %v796 = vld [vmem:[%s1 + $0xbe8] sm:$0xf]
    %v797 = vld [vmem:[%s1 + $0xbec] sm:$0xf]
    %v798 = vld [vmem:[%s1 + $0xbf0] sm:$0xf]
    %v799 = vld [vmem:[%s1 + $0xbf4] sm:$0xf]
    %v800 = vld [vmem:[%s1 + $0xbf8] sm:$0xf]
    %v801 = vld [vmem:[%s1 + $0xbfc] sm:$0xf]
    %v802 = vld [vmem:[%s1 + $0xc00] sm:$0xf]
    %v803 = vld [vmem:[%s1 + $0xc04] sm:$0xf]
    %v804 = vld [vmem:[%s1 + $0xc08] sm:$0xf]
    %v805 = vld [vmem:[%s1 + $0xc0c] sm:$0xf]
    %v806 = vld [vmem:[%s1 + $0xc10] sm:$0xf]
    %v807 = vld [vmem:[%s1 + $0xc14] sm:$0xf]
    %v808 = vld [vmem:[%s1 + $0xc18] sm:$0xf]
    %v809 = vld [vmem:[%s1 + $0xc1c] sm:$0xf]
    %v810 = vld [vmem:[%s1 + $0xc20] sm:$0xf]
    %v811 = vld [vmem:[%s1 + $0xc24] sm:$0xf]
    %v812 = vld [vmem:[%s1 + $0xc28] sm:$0xf]
    %v813 = vld [vmem:[%s1 + $0xc2c] sm:$0xf]
    %v814 = vld [vmem:[%s1 + $0xc30] sm:$0xf]
    %v815 = vld [vmem:[%s1 + $0xc34] sm:$0xf]
    %v816 = vld [vmem:[%s1 + $0xc38] sm:$0xf]
    %v817 = vld [vmem:[%s1 + $0xc3c] sm:$0xf]
    %v818 = vld [vmem:[%s1 + $0xc40] sm:$0xf]
    %v819 = vld [vmem:[%s1 + $0xc44] sm:$0xf]
    %v820 = vld [vmem:[%s1 + $0xc48] sm:$0xf]
    %v821 = vld [vmem:[%s1 + $0xc4c] sm:$0xf]
    %v822 = vld [vmem:[%s1 + $0xc50] sm:$0xf]
    %v823 = vld [vmem:[%s1 + $0xc54] sm:$0xf]
    %v824 = vld [vmem:[%s1 + $0xc58] sm:$0xf]
    %v825 = vld [vmem:[%s1 + $0xc5c] sm:$0xf]
    %v826 = vld [vmem:[%s1 + $0xc60] sm:$0xf]
    %v827 = vld [vmem:[%s1 + $0xc64] sm:$0xf]
    %v828 = vld [vmem:[%s1 + $0xc68] sm:$0xf]
    %v829 = vld [vmem:[%s1 + $0xc6c] sm:$0xf]
    %v830 = vld [vmem:[%s1 + $0xc70] sm:$0xf]
    %v831 = vld [vmem:[%s1 + $0xc74] sm:$0xf]
    %v832 = vld [vmem:[%s1 + $0xc78] sm:$0xf]
    %v833 = vld [vmem:[%s1 + $0xc7c] sm:$0xf]
    %v834 = vld [vmem:[%s1 + $0xc80] sm:$0xf]
    %v835 = vld [vmem:[%s1 + $0xc84] sm:$0xf]
    %v836 = vld [vmem:[%s1 + $0xc88] sm:$0xf]
    %v837 = vld [vmem:[%s1 + $0xc8c] sm:$0xf]
    %v838 = vld [vmem:[%s1 + $0xc90] sm:$0xf]
    %v839 = vld [vmem:[%s1 + $0xc94] sm:$0xf]
    %v840 = vld [vmem:[%s1 + $0xc98] sm:$0xf]
    %v841 = vld [vmem:[%s1 + $0xc9c] sm:$0xf]
    %v842 = vld [vmem:[%s1 + $0xca0] sm:$0xf]
    %v843 = vld [vmem:[%s1 + $0xca4] sm:$0xf]
    %v844 = vld [vmem:[%s1 + $0xca8] sm:$0xf]
    %v845 = vld [vmem:[%s1 + $0xcac] sm:$0xf]
    %v846 = vld [vmem:[%s1 + $0xcb0] sm:$0xf]
    %v847 = vld [vmem:[%s1 + $0xcb4] sm:$0xf]
    %v848 = vld [vmem:[%s1 + $0xcb8] sm:$0xf]
    %v849 = vld [vmem:[%s1 + $0xcbc] sm:$0xf]
    %v850 = vld [vmem:[%s1 + $0xcc0] sm:$0xf]
    %v851 = vld [vmem:[%s1 + $0xcc4] sm:$0xf]
    %v852 = vld [vmem:[%s1 + $0xcc8] sm:$0xf]
    %v853 = vld [vmem:[%s1 + $0xccc] sm:$0xf]
    %v854 = vld [vmem:[%s1 + $0xcd0] sm:$0xf]
    %v855 = vld [vmem:[%s1 + $0xcd4] sm:$0xf]
    %v856 = vld [vmem:[%s1 + $0xcd8] sm:$0xf]
    %v857 = vld [vmem:[%s1 + $0xcdc] sm:$0xf]
    %v858 = vld [vmem:[%s1 + $0xce0] sm:$0xf]
    %v859 = vld [vmem:[%s1 + $0xce4] sm:$0xf]
    %v860 = vld [vmem:[%s1 + $0xce8] sm:$0xf]
    %v861 = vld [vmem:[%s1 + $0xcec] sm:$0xf]
    %v862 = vld [vmem:[%s1 + $0xcf0] sm:$0xf]
    %v863 = vld [vmem:[%s1 + $0xcf4] sm:$0xf]
    %v864 = vld [vmem:[%s1 + $0xcf8] sm:$0xf]
    %v865 = vld [vmem:[%s1 + $0xcfc] sm:$0xf]
    %v866 = vld [vmem:[%s1 + $0xd00] sm:$0xf]
    %v867 = vld [vmem:[%s1 + $0xd04] sm:$0xf]
    %v868 = vld [vmem:[%s1 + $0xd08] sm:$0xf]
    %v869 = vld [vmem:[%s1 + $0xd0c] sm:$0xf]
    %v870 = vld [vmem:[%s1 + $0xd10] sm:$0xf]
    %v871 = vld [vmem:[%s1 + $0xd14] sm:$0xf]
    %v872 = vld [vmem:[%s1 + $0xd18] sm:$0xf]
    %v873 = vld [vmem:[%s1 + $0xd1c] sm:$0xf]
    %v874 = vld [vmem:[%s1 + $0xd20] sm:$0xf]
    %v875 = vld [vmem:[%s1 + $0xd24] sm:$0xf]
    %v876 = vld [vmem:[%s1 + $0xd28] sm:$0xf]
    %v877 = vld [vmem:[%s1 + $0xd2c] sm:$0xf]
    %v878 = vld [vmem:[%s1 + $0xd30] sm:$0xf]
    %v879 = vld [vmem:[%s1 + $0xd34] sm:$0xf]
    %v880 = vld [vmem:[%s1 + $0xd38] sm:$0xf]
    %v881 = vld [vmem:[%s1 + $0xd3c] sm:$0xf]
    %v882 = vld [vmem:[%s1 + $0xd40] sm:$0xf]
    %v883 = vld [vmem:[%s1 + $0xd44] sm:$0xf]
    %v884 = vld [vmem:[%s1 + $0xd48] sm:$0xf]
    %v885 = vld [vmem:[%s1 + $0xd4c] sm:$0xf]
    %v886 = vld [vmem:[%s1 + $0xd50] sm:$0xf]
    %v887 = vld [vmem:[%s1 + $0xd54] sm:$0xf]
    %v888 = vld [vmem:[%s1 + $0xd58] sm:$0xf]
    %v889 = vld [vmem:[%s1 + $0xd5c] sm:$0xf]
    %v890 = vld [vmem:[%s1 + $0xd60] sm:$0xf]
    %v891 = vld [vmem:[%s1 + $0xd64] sm:$0xf]
    %v892 = vld [vmem:[%s1 + $0xd68] sm:$0xf]
    %v893 = vld [vmem:[%s1 + $0xd6c] sm:$0xf]
    %v894 = vld [vmem:[%s1 + $0xd70] sm:$0xf]
    %v895 = vld [vmem:[%s1 + $0xd74] sm:$0xf]
    %v896 = vld [vmem:[%s1 + $0xd78] sm:$0xf]
    %v897 = vld [vmem:[%s1 + $0xd7c] sm:$0xf]
    %v898 = vld [vmem:[%s1 + $0xd80] sm:$0xf]
    %v899 = vld [vmem:[%s1 + $0xd84] sm:$0xf]
    %v900 = vld [vmem:[%s1 + $0xd88] sm:$0xf]
    %v901 = vld [vmem:[%s1 + $0xd8c] sm:$0xf]
    %v902 = vld [vmem:[%s1 + $0xd90] sm:$0xf]
    %v903 = vld [vmem:[%s1 + $0xd94] sm:$0xf]
    %v904 = vld [vmem:[%s1 + $0xd98] sm:$0xf]
    %v905 = vld [vmem:[%s1 + $0xd9c] sm:$0xf]
    %v906 = vld [vmem:[%s1 + $0xda0] sm:$0xf]
    %v907 = vld [vmem:[%s1 + $0xda4] sm:$0xf]
    %v908 = vld [vmem:[%s1 + $0xda8] sm:$0xf]
    %v909 = vld [vmem:[%s1 + $0xdac] sm:$0xf]
    %v910 = vld [vmem:[%s1 + $0xdb0] sm:$0xf]
    %v911 = vld [vmem:[%s1 + $0xdb4] sm:$0xf]
    %v912 = vld [vmem:[%s1 + $0xdb8] sm:$0xf]
    %v913 = vld [vmem:[%s1 + $0xdbc] sm:$0xf]
    %v914 = vld [vmem:[%s1 + $0xdc0] sm:$0xf]
    %v915 = vld [vmem:[%s1 + $0xdc4] sm:$0xf]
    %v916 = vld [vmem:[%s1 + $0xdc8] sm:$0xf]
    %v917 = vld [vmem:[%s1 + $0xdcc] sm:$0xf]
    %v918 = vld [vmem:[%s1 + $0xdd0] sm:$0xf]
    %v919 = vld [vmem:[%s1 + $0xdd4] sm:$0xf]
    %v920 = vld [vmem:[%s1 + $0xdd8] sm:$0xf]
    %v921 = vld [vmem:[%s1 + $0xddc] sm:$0xf]
    %v922 = vld [vmem:[%s1 + $0xde0] sm:$0xf]
    %v923 = vld [vmem:[%s1 + $0xde4] sm:$0xf]
    %v924 = vld [vmem:[%s1 + $0xde8] sm:$0xf]
    %v925 = vld [vmem:[%s1 + $0xdec] sm:$0xf]
    %v926 = vld [vmem:[%s1 + $0xdf0] sm:$0xf]
    %v927 = vld [vmem:[%s1 + $0xdf4] sm:$0xf]
    %v928 = vld [vmem:[%s1 + $0xdf8] sm:$0xf]
    %v929 = vld [vmem:[%s1 + $0xdfc] sm:$0xf]
    %v930 = vld [vmem:[%s1 + $0xe00] sm:$0xf]
    %v931 = vld [vmem:[%s1 + $0xe04] sm:$0xf]
    %v932 = vld [vmem:[%s1 + $0xe08] sm:$0xf]
    %v933 = vld [vmem:[%s1 + $0xe0c] sm:$0xf]
    %v934 = vld [vmem:[%s1 + $0xe10] sm:$0xf]
    %v935 = vld [vmem:[%s1 + $0xe14] sm:$0xf]
    %v936 = vld [vmem:[%s1 + $0xe18] sm:$0xf]
    %v937 = vld [vmem:[%s1 + $0xe1c] sm:$0xf]
    %v938 = vld [vmem:[%s1 + $0xe20] sm:$0xf]
    %v939 = vld [vmem:[%s1 + $0xe24] sm:$0xf]
    %v940 = vld [vmem:[%s1 + $0xe28] sm:$0xf]
    %v941 = vld [vmem:[%s1 + $0xe2c] sm:$0xf]
    %v942 = vld [vmem:[%s1 + $0xe30] sm:$0xf]
    %v943 = vld [vmem:[%s1 + $0xe34] sm:$0xf]
    %v944 = vld [vmem:[%s1 + $0xe38] sm:$0xf]
    %v945 = vld [vmem:[%s1 + $0xe3c] sm:$0xf]
    %v946 = vld [vmem:[%s1 + $0xe40] sm:$0xf]
    %v947 = vld [vmem:[%s1 + $0xe44] sm:$0xf]
    %v948 = vld [vmem:[%s1 + $0xe48] sm:$0xf]
    %v949 = vld [vmem:[%s1 + $0xe4c] sm:$0xf]
    %v950 = vld [vmem:[%s1 + $0xe50] sm:$0xf]
    %v951 = vld [vmem:[%s1 + $0xe54] sm:$0xf]
    %v952 = vld [vmem:[%s1 + $0xe58] sm:$0xf]
    %v953 = vld [vmem:[%s1 + $0xe5c] sm:$0xf]
    %v954 = vld [vmem:[%s1 + $0xe60] sm:$0xf]
    %v955 = vld [vmem:[%s1 + $0xe64] sm:$0xf]
    %v956 = vld [vmem:[%s1 + $0xe68] sm:$0xf]
    %v957 = vld [vmem:[%s1 + $0xe6c] sm:$0xf]
    %v958 = vld [vmem:[%s1 + $0xe70] sm:$0xf]
    %v959 = vld [vmem:[%s1 + $0xe74] sm:$0xf]
    %v960 = vld [vmem:[%s1 + $0xe78] sm:$0xf]
    %v961 = vld [vmem:[%s1 + $0xe7c] sm:$0xf]
    %v962 = vld [vmem:[%s1 + $0xe80] sm:$0xf]
    %v963 = vld [vmem:[%s1 + $0xe84] sm:$0xf]
    %v964 = vld [vmem:[%s1 + $0xe88] sm:$0xf]
    %v965 = vld [vmem:[%s1 + $0xe8c] sm:$0xf]
    %v966 = vld [vmem:[%s1 + $0xe90] sm:$0xf]
    %v967 = vld [vmem:[%s1 + $0xe94] sm:$0xf]
    %v968 = vld [vmem:[%s1 + $0xe98] sm:$0xf]
    %v969 = vld [vmem:[%s1 + $0xe9c] sm:$0xf]
    %v970 = vld [vmem:[%s1 + $0xea0] sm:$0xf]
    %v971 = vld [vmem:[%s1 + $0xea4] sm:$0xf]
    %v972 = vld [vmem:[%s1 + $0xea8] sm:$0xf]
    %v973 = vld [vmem:[%s1 + $0xeac] sm:$0xf]
    %v974 = vld [vmem:[%s1 + $0xeb0] sm:$0xf]
    %v975 = vld [vmem:[%s1 + $0xeb4] sm:$0xf]
    %v976 = vld [vmem:[%s1 + $0xeb8] sm:$0xf]
    %v977 = vld [vmem:[%s1 + $0xebc] sm:$0xf]
    %v978 = vld [vmem:[%s1 + $0xec0] sm:$0xf]
    %v979 = vld [vmem:[%s1 + $0xec4] sm:$0xf]
    %v980 = vld [vmem:[%s1 + $0xec8] sm:$0xf]
    %v981 = vld [vmem:[%s1 + $0xecc] sm:$0xf]
    %v982 = vld [vmem:[%s1 + $0xed0] sm:$0xf]
    %v983 = vld [vmem:[%s1 + $0xed4] sm:$0xf]
    %v984 = vld [vmem:[%s1 + $0xed8] sm:$0xf]
    %v985 = vld [vmem:[%s1 + $0xedc] sm:$0xf]
    %v986 = vld [vmem:[%s1 + $0xee0] sm:$0xf]
    %v987 = vld [vmem:[%s1 + $0xee4] sm:$0xf]
    %v988 = vld [vmem:[%s1 + $0xee8] sm:$0xf]
    %v989 = vld [vmem:[%s1 + $0xeec] sm:$0xf]
    %v990 = vld [vmem:[%s1 + $0xef0] sm:$0xf]
    %v991 = vld [vmem:[%s1 + $0xef4] sm:$0xf]
    %v992 = vld [vmem:[%s1 + $0xef8] sm:$0xf]
    %v993 = vld [vmem:[%s1 + $0xefc] sm:$0xf]
    %v994 = vld [vmem:[%s1 + $0xf00] sm:$0xf]
    %v995 = vld [vmem:[%s1 + $0xf04] sm:$0xf]
    %v996 = vld [vmem:[%s1 + $0xf08] sm:$0xf]
    %v997 = vld [vmem:[%s1 + $0xf0c] sm:$0xf]
    %v998 = vld [vmem:[%s1 + $0xf10] sm:$0xf]
    %v999 = vld [vmem:[%s1 + $0xf14] sm:$0xf]
    %v1000 = vld [vmem:[%s1 + $0xf18] sm:$0xf]
    %v1001 = vld [vmem:[%s1 + $0xf1c] sm:$0xf]
    %v1002 = vld [vmem:[%s1 + $0xf20] sm:$0xf]
    %v1003 = vld [vmem:[%s1 + $0xf24] sm:$0xf]
    %v1004 = vld [vmem:[%s1 + $0xf28] sm:$0xf]
    %v1005 = vld [vmem:[%s1 + $0xf2c] sm:$0xf]
    %v1006 = vld [vmem:[%s1 + $0xf30] sm:$0xf]
    %v1007 = vld [vmem:[%s1 + $0xf34] sm:$0xf]
    %v1008 = vld [vmem:[%s1 + $0xf38] sm:$0xf]
    %v1009 = vld [vmem:[%s1 + $0xf3c] sm:$0xf]
    %v1010 = vld [vmem:[%s1 + $0xf40] sm:$0xf]
    %v1011 = vld [vmem:[%s1 + $0xf44] sm:$0xf]
    %v1012 = vld [vmem:[%s1 + $0xf48] sm:$0xf]
    %v1013 = vld [vmem:[%s1 + $0xf4c] sm:$0xf]
    %v1014 = vld [vmem:[%s1 + $0xf50] sm:$0xf]
    %v1015 = vld [vmem:[%s1 + $0xf54] sm:$0xf]
    %v1016 = vld [vmem:[%s1 + $0xf58] sm:$0xf]
    %v1017 = vld [vmem:[%s1 + $0xf5c] sm:$0xf]
    %v1018 = vld [vmem:[%s1 + $0xf60] sm:$0xf]
    %v1019 = vld [vmem:[%s1 + $0xf64] sm:$0xf]
    %v1020 = vld [vmem:[%s1 + $0xf68] sm:$0xf]
    %v1021 = vld [vmem:[%s1 + $0xf6c] sm:$0xf]
    %v1022 = vld [vmem:[%s1 + $0xf70] sm:$0xf]
    %v1023 = vld [vmem:[%s1 + $0xf74] sm:$0xf]
    %v1024 = vld [vmem:[%s1 + $0xf78] sm:$0xf]
    %v1025 = vld [vmem:[%s1 + $0xf7c] sm:$0xf]
    %v1026 = vld [vmem:[%s1 + $0xf80] sm:$0xf]
    %v1027 = vld [vmem:[%s1 + $0xf84] sm:$0xf]
    %v1028 = vld [vmem:[%s1 + $0xf88] sm:$0xf]
    %v1029 = vld [vmem:[%s1 + $0xf8c] sm:$0xf]
    %v1030 = vld [vmem:[%s1 + $0xf90] sm:$0xf]
    %v1031 = vld [vmem:[%s1 + $0xf94] sm:$0xf]
    %v1032 = vld [vmem:[%s1 + $0xf98] sm:$0xf]
    %v1033 = vld [vmem:[%s1 + $0xf9c] sm:$0xf]
    %v1034 = vld [vmem:[%s1 + $0xfa0] sm:$0xf]
    %v1035 = vld [vmem:[%s1 + $0xfa4] sm:$0xf]
    %v1036 = vld [vmem:[%s1 + $0xfa8] sm:$0xf]
    %v1037 = vld [vmem:[%s1 + $0xfac] sm:$0xf]
    %v1038 = vld [vmem:[%s1 + $0xfb0] sm:$0xf]
    %v1039 = vld [vmem:[%s1 + $0xfb4] sm:$0xf]
    %v1040 = vld [vmem:[%s1 + $0xfb8] sm:$0xf]
    %v1041 = vld [vmem:[%s1 + $0xfbc] sm:$0xf]
    %v1042 = vld [vmem:[%s1 + $0xfc0] sm:$0xf]
    %v1043 = vld [vmem:[%s1 + $0xfc4] sm:$0xf]
    %v1044 = vld [vmem:[%s1 + $0xfc8] sm:$0xf]
    %v1045 = vld [vmem:[%s1 + $0xfcc] sm:$0xf]
    %v1046 = vld [vmem:[%s1 + $0xfd0] sm:$0xf]
    %v1047 = vld [vmem:[%s1 + $0xfd4] sm:$0xf]
    %v1048 = vld [vmem:[%s1 + $0xfd8] sm:$0xf]
    %v1049 = vld [vmem:[%s1 + $0xfdc] sm:$0xf]
    %v1050 = vld [vmem:[%s1 + $0xfe0] sm:$0xf]
    %v1051 = vld [vmem:[%s1 + $0xfe4] sm:$0xf]
    %v1052 = vld [vmem:[%s1 + $0xfe8] sm:$0xf]
    %v1053 = vld [vmem:[%s1 + $0xfec] sm:$0xf]
    %v1054 = vld [vmem:[%s1 + $0xff0] sm:$0xf]
    %v1055 = vld [vmem:[%s1 + $0xff4] sm:$0xf]
    %v1056 = vld [vmem:[%s1 + $0xff8] sm:$0xf]
    %v1057 = vld [vmem:[%s1 + $0xffc] sm:$0xf]
    %v1058 = vld [vmem:[%s1 + $0x1000] sm:$0xf]
    %v1059 = vld [vmem:[%s1 + $0x1004] sm:$0xf]
    %v1060 = vld [vmem:[%s1 + $0x1008] sm:$0xf]
    %v1061 = vld [vmem:[%s1 + $0x100c] sm:$0xf]
    %v1062 = vld [vmem:[%s1 + $0x1010] sm:$0xf]
    %v1063 = vld [vmem:[%s1 + $0x1014] sm:$0xf]
    %v1064 = vld [vmem:[%s1 + $0x1018] sm:$0xf]
    %v1065 = vld [vmem:[%s1 + $0x101c] sm:$0xf]
    %v1066 = vld [vmem:[%s1 + $0x1020] sm:$0xf]
    %v1067 = vld [vmem:[%s1 + $0x1024] sm:$0xf]
    %v1068 = vld [vmem:[%s1 + $0x1028] sm:$0xf]
    %v1069 = vld [vmem:[%s1 + $0x102c] sm:$0xf]
    %v1070 = vld [vmem:[%s1 + $0x1030] sm:$0xf]
    %v1071 = vld [vmem:[%s1 + $0x1034] sm:$0xf]
    %v1072 = vld [vmem:[%s1 + $0x1038] sm:$0xf]
    %v1073 = vld [vmem:[%s1 + $0x103c] sm:$0xf]
    %v1074 = vld [vmem:[%s1 + $0x1040] sm:$0xf]
    %v1075 = vld [vmem:[%s1 + $0x1044] sm:$0xf]
    %v1076 = vld [vmem:[%s1 + $0x1048] sm:$0xf]
    %v1077 = vld [vmem:[%s1 + $0x104c] sm:$0xf]
    %v1078 = vld [vmem:[%s1 + $0x1050] sm:$0xf]
    %v1079 = vld [vmem:[%s1 + $0x1054] sm:$0xf]
    %v1080 = vld [vmem:[%s1 + $0x1058] sm:$0xf]
    %v1081 = vld [vmem:[%s1 + $0x105c] sm:$0xf]
    %v1082 = vld [vmem:[%s1 + $0x1060] sm:$0xf]
    %v1083 = vld [vmem:[%s1 + $0x1064] sm:$0xf]
    %v1084 = vld [vmem:[%s1 + $0x1068] sm:$0xf]
    %v1085 = vld [vmem:[%s1 + $0x106c] sm:$0xf]
    %v1086 = vld [vmem:[%s1 + $0x1070] sm:$0xf]
    %v1087 = vld [vmem:[%s1 + $0x1074] sm:$0xf]
    %v1088 = vld [vmem:[%s1 + $0x1078] sm:$0xf]
    %v1089 = vld [vmem:[%s1 + $0x107c] sm:$0xf]
    %v1090 = vld [vmem:[%s1 + $0x1080] sm:$0xf]
    %v1091 = vld [vmem:[%s1 + $0x1084] sm:$0xf]
    %v1092 = vld [vmem:[%s1 + $0x1088] sm:$0xf]
    %v1093 = vld [vmem:[%s1 + $0x108c] sm:$0xf]
    %v1094 = vld [vmem:[%s1 + $0x1090] sm:$0xf]
    %v1095 = vld [vmem:[%s1 + $0x1094] sm:$0xf]
    %v1096 = vld [vmem:[%s1 + $0x1098] sm:$0xf]
    %v1097 = vld [vmem:[%s1 + $0x109c] sm:$0xf]
    %v1098 = vld [vmem:[%s1 + $0x10a0] sm:$0xf]
    %v1099 = vld [vmem:[%s1 + $0x10a4] sm:$0xf]
    %v1100 = vld [vmem:[%s1 + $0x10a8] sm:$0xf]
    %v1101 = vld [vmem:[%s1 + $0x10ac] sm:$0xf]
    %v1102 = vld [vmem:[%s1 + $0x10b0] sm:$0xf]
    %v1103 = vld [vmem:[%s1 + $0x10b4] sm:$0xf]
    %v1104 = vld [vmem:[%s1 + $0x10b8] sm:$0xf]
    %v1105 = vld [vmem:[%s1 + $0x10bc] sm:$0xf]
    %v1106 = vld [vmem:[%s1 + $0x10c0] sm:$0xf]
    %v1107 = vld [vmem:[%s1 + $0x10c4] sm:$0xf]
    %v1108 = vld [vmem:[%s1 + $0x10c8] sm:$0xf]
    %v1109 = vld [vmem:[%s1 + $0x10cc] sm:$0xf]
    %v1110 = vld [vmem:[%s1 + $0x10d0] sm:$0xf]
    %v1111 = vld [vmem:[%s1 + $0x10d4] sm:$0xf]
    %v1112 = vld [vmem:[%s1 + $0x10d8] sm:$0xf]
    %v1113 = vld [vmem:[%s1 + $0x10dc] sm:$0xf]
    %v1114 = vld [vmem:[%s1 + $0x10e0] sm:$0xf]
    %v1115 = vld [vmem:[%s1 + $0x10e4] sm:$0xf]
    %v1116 = vld [vmem:[%s1 + $0x10e8] sm:$0xf]
    %v1117 = vld [vmem:[%s1 + $0x10ec] sm:$0xf]
    %v1118 = vld [vmem:[%s1 + $0x10f0] sm:$0xf]
    %v1119 = vld [vmem:[%s1 + $0x10f4] sm:$0xf]
    %v1120 = vld [vmem:[%s1 + $0x10f8] sm:$0xf]
    %v1121 = vld [vmem:[%s1 + $0x10fc] sm:$0xf]
    %v1122 = vld [vmem:[%s1 + $0x1100] sm:$0xf]
    %v1123 = vld [vmem:[%s1 + $0x1104] sm:$0xf]
    %v1124 = vld [vmem:[%s1 + $0x1108] sm:$0xf]
    %v1125 = vld [vmem:[%s1 + $0x110c] sm:$0xf]
    %v1126 = vld [vmem:[%s1 + $0x1110] sm:$0xf]
    %v1127 = vld [vmem:[%s1 + $0x1114] sm:$0xf]
    %v1128 = vld [vmem:[%s1 + $0x1118] sm:$0xf]
    %v1129 = vld [vmem:[%s1 + $0x111c] sm:$0xf]
    %v1130 = vld [vmem:[%s1 + $0x1120] sm:$0xf]
    %v1131 = vld [vmem:[%s1 + $0x1124] sm:$0xf]
    %v1132 = vld [vmem:[%s1 + $0x1128] sm:$0xf]
    %v1133 = vld [vmem:[%s1 + $0x112c] sm:$0xf]
    %v1134 = vld [vmem:[%s1 + $0x1130] sm:$0xf]
    %v1135 = vld [vmem:[%s1 + $0x1134] sm:$0xf]
    %v1136 = vld [vmem:[%s1 + $0x1138] sm:$0xf]
    %v1137 = vld [vmem:[%s1 + $0x113c] sm:$0xf]
    %v1138 = vld [vmem:[%s1 + $0x1140] sm:$0xf]
    %v1139 = vld [vmem:[%s1 + $0x1144] sm:$0xf]
    %v1140 = vld [vmem:[%s1 + $0x1148] sm:$0xf]
    %v1141 = vld [vmem:[%s1 + $0x114c] sm:$0xf]
    %v1142 = vld [vmem:[%s1 + $0x1150] sm:$0xf]
    %v1143 = vld [vmem:[%s1 + $0x1154] sm:$0xf]
    %v1144 = vld [vmem:[%s1 + $0x1158] sm:$0xf]
    %v1145 = vld [vmem:[%s1 + $0x115c] sm:$0xf]
    %v1146 = vld [vmem:[%s1 + $0x1160] sm:$0xf]
    %v1147 = vld [vmem:[%s1 + $0x1164] sm:$0xf]
    %v1148 = vld [vmem:[%s1 + $0x1168] sm:$0xf]
    %v1149 = vld [vmem:[%s1 + $0x116c] sm:$0xf]
    %v1150 = vld [vmem:[%s1 + $0x1170] sm:$0xf]
    %v1151 = vld [vmem:[%s1 + $0x1174] sm:$0xf]
    %v1152 = vld [vmem:[%s1 + $0x1178] sm:$0xf]
    %v1153 = vld [vmem:[%s1 + $0x117c] sm:$0xf]
    %v1154 = vld [vmem:[%s1 + $0x1180] sm:$0xf]
    %v1155 = vld [vmem:[%s1 + $0x1184] sm:$0xf]
    %v1156 = vld [vmem:[%s1 + $0x1188] sm:$0xf]
    %v1157 = vld [vmem:[%s1 + $0x118c] sm:$0xf]
    %v1158 = vld [vmem:[%s1 + $0x1190] sm:$0xf]
    %v1159 = vld [vmem:[%s1 + $0x1194] sm:$0xf]
    %v1160 = vld [vmem:[%s1 + $0x1198] sm:$0xf]
    %v1161 = vld [vmem:[%s1 + $0x119c] sm:$0xf]
    %v1162 = vld [vmem:[%s1 + $0x11a0] sm:$0xf]
    %v1163 = vld [vmem:[%s1 + $0x11a4] sm:$0xf]
    %v1164 = vld [vmem:[%s1 + $0x11a8] sm:$0xf]
    %v1165 = vld [vmem:[%s1 + $0x11ac] sm:$0xf]
    %v1166 = vld [vmem:[%s1 + $0x11b0] sm:$0xf]
    %v1167 = vld [vmem:[%s1 + $0x11b4] sm:$0xf]
    %v1168 = vld [vmem:[%s1 + $0x11b8] sm:$0xf]
    %v1169 = vld [vmem:[%s1 + $0x11bc] sm:$0xf]
    %v1170 = vld [vmem:[%s1 + $0x11c0] sm:$0xf]
    %v1171 = vld [vmem:[%s1 + $0x11c4] sm:$0xf]
    %v1172 = vld [vmem:[%s1 + $0x11c8] sm:$0xf]
    %v1173 = vld [vmem:[%s1 + $0x11cc] sm:$0xf]
    %v1174 = vld [vmem:[%s1 + $0x11d0] sm:$0xf]
    %v1175 = vld [vmem:[%s1 + $0x11d4] sm:$0xf]
    %v1176 = vld [vmem:[%s1 + $0x11d8] sm:$0xf]
    %v1177 = vld [vmem:[%s1 + $0x11dc] sm:$0xf]
    %v1178 = vld [vmem:[%s1 + $0x11e0] sm:$0xf]
    %v1179 = vld [vmem:[%s1 + $0x11e4] sm:$0xf]
    %v1180 = vld [vmem:[%s1 + $0x11e8] sm:$0xf]
    %v1181 = vld [vmem:[%s1 + $0x11ec] sm:$0xf]
    %v1182 = vld [vmem:[%s1 + $0x11f0] sm:$0xf]
    %v1183 = vld [vmem:[%s1 + $0x11f4] sm:$0xf]
    %v1184 = vld [vmem:[%s1 + $0x11f8] sm:$0xf]
    %v1185 = vld [vmem:[%s1 + $0x11fc] sm:$0xf]
    %v1186 = vld [vmem:[%s1 + $0x1200] sm:$0xf]
    %v1187 = vld [vmem:[%s1 + $0x1204] sm:$0xf]
    %v1188 = vld [vmem:[%s1 + $0x1208] sm:$0xf]
    %v1189 = vld [vmem:[%s1 + $0x120c] sm:$0xf]
    %v1190 = vld [vmem:[%s1 + $0x1210] sm:$0xf]
    %v1191 = vld [vmem:[%s1 + $0x1214] sm:$0xf]
    %v1192 = vld [vmem:[%s1 + $0x1218] sm:$0xf]
    %v1193 = vld [vmem:[%s1 + $0x121c] sm:$0xf]
    %v1194 = vld [vmem:[%s1 + $0x1220] sm:$0xf]
    %v1195 = vld [vmem:[%s1 + $0x1224] sm:$0xf]
    %v1196 = vld [vmem:[%s1 + $0x1228] sm:$0xf]
    %v1197 = vld [vmem:[%s1 + $0x122c] sm:$0xf]
    %v1198 = vld [vmem:[%s1 + $0x1230] sm:$0xf]
    %v1199 = vld [vmem:[%s1 + $0x1234] sm:$0xf]
    %v1200 = vld [vmem:[%s1 + $0x1238] sm:$0xf]
    %v1201 = vld [vmem:[%s1 + $0x123c] sm:$0xf]
    %v1202 = vld [vmem:[%s1 + $0x1240] sm:$0xf]
    %v1203 = vld [vmem:[%s1 + $0x1244] sm:$0xf]
    %v1204 = vld [vmem:[%s1 + $0x1248] sm:$0xf]
    %v1205 = vld [vmem:[%s1 + $0x124c] sm:$0xf]
    %v1206 = vld [vmem:[%s1 + $0x1250] sm:$0xf]
    %v1207 = vld [vmem:[%s1 + $0x1254] sm:$0xf]
    %v1208 = vld [vmem:[%s1 + $0x1258] sm:$0xf]
    %v1209 = vld [vmem:[%s1 + $0x125c] sm:$0xf]
    %v1210 = vld [vmem:[%s1 + $0x1260] sm:$0xf]
    %v1211 = vld [vmem:[%s1 + $0x1264] sm:$0xf]
    %v1212 = vld [vmem:[%s1 + $0x1268] sm:$0xf]
    %v1213 = vld [vmem:[%s1 + $0x126c] sm:$0xf]
    %v1214 = vld [vmem:[%s1 + $0x1270] sm:$0xf]
    %v1215 = vld [vmem:[%s1 + $0x1274] sm:$0xf]
    %v1216 = vld [vmem:[%s1 + $0x1278] sm:$0xf]
    %v1217 = vld [vmem:[%s1 + $0x127c] sm:$0xf]
    %v1218 = vld [vmem:[%s1 + $0x1280] sm:$0xf]
    %v1219 = vld [vmem:[%s1 + $0x1284] sm:$0xf]
    %v1220 = vld [vmem:[%s1 + $0x1288] sm:$0xf]
    %v1221 = vld [vmem:[%s1 + $0x128c] sm:$0xf]
    %v1222 = vld [vmem:[%s1 + $0x1290] sm:$0xf]
    %v1223 = vld [vmem:[%s1 + $0x1294] sm:$0xf]
    %v1224 = vld [vmem:[%s1 + $0x1298] sm:$0xf]
    %v1225 = vld [vmem:[%s1 + $0x129c] sm:$0xf]
    %v1226 = vld [vmem:[%s1 + $0x12a0] sm:$0xf]
    %v1227 = vld [vmem:[%s1 + $0x12a4] sm:$0xf]
    %v1228 = vld [vmem:[%s1 + $0x12a8] sm:$0xf]
    %v1229 = vld [vmem:[%s1 + $0x12ac] sm:$0xf]
    %v1230 = vld [vmem:[%s1 + $0x12b0] sm:$0xf]
    %v1231 = vld [vmem:[%s1 + $0x12b4] sm:$0xf]
    %v1232 = vld [vmem:[%s1 + $0x12b8] sm:$0xf]
    %v1233 = vld [vmem:[%s1 + $0x12bc] sm:$0xf]
    %v1234 = vld [vmem:[%s1 + $0x12c0] sm:$0xf]
    %v1235 = vld [vmem:[%s1 + $0x12c4] sm:$0xf]
    %v1236 = vld [vmem:[%s1 + $0x12c8] sm:$0xf]
    %v1237 = vld [vmem:[%s1 + $0x12cc] sm:$0xf]
    %v1238 = vld [vmem:[%s1 + $0x12d0] sm:$0xf]
    %v1239 = vld [vmem:[%s1 + $0x12d4] sm:$0xf]
    %v1240 = vld [vmem:[%s1 + $0x12d8] sm:$0xf]
    %v1241 = vld [vmem:[%s1 + $0x12dc] sm:$0xf]
    %v1242 = vld [vmem:[%s1 + $0x12e0] sm:$0xf]
    %v1243 = vld [vmem:[%s1 + $0x12e4] sm:$0xf]
    %v1244 = vld [vmem:[%s1 + $0x12e8] sm:$0xf]
    %v1245 = vld [vmem:[%s1 + $0x12ec] sm:$0xf]
    %v1246 = vld [vmem:[%s1 + $0x12f0] sm:$0xf]
    %v1247 = vld [vmem:[%s1 + $0x12f4] sm:$0xf]
    %v1248 = vld [vmem:[%s1 + $0x12f8] sm:$0xf]
    %v1249 = vld [vmem:[%s1 + $0x12fc] sm:$0xf]
    %v1250 = vld [vmem:[%s1 + $0x1300] sm:$0xf]
    %v1251 = vld [vmem:[%s1 + $0x1304] sm:$0xf]
    %v1252 = vld [vmem:[%s1 + $0x1308] sm:$0xf]
    %v1253 = vld [vmem:[%s1 + $0x130c] sm:$0xf]
    %v1254 = vld [vmem:[%s1 + $0x1310] sm:$0xf]
    %v1255 = vld [vmem:[%s1 + $0x1314] sm:$0xf]
    %v1256 = vld [vmem:[%s1 + $0x1318] sm:$0xf]
    %v1257 = vld [vmem:[%s1 + $0x131c] sm:$0xf]
    %v1258 = vld [vmem:[%s1 + $0x1320] sm:$0xf]
    %v1259 = vld [vmem:[%s1 + $0x1324] sm:$0xf]
    %v1260 = vld [vmem:[%s1 + $0x1328] sm:$0xf]
    %v1261 = vld [vmem:[%s1 + $0x132c] sm:$0xf]
    %v1262 = vld [vmem:[%s1 + $0x1330] sm:$0xf]
    %v1263 = vld [vmem:[%s1 + $0x1334] sm:$0xf]
    %v1264 = vld [vmem:[%s1 + $0x1338] sm:$0xf]
    %v1265 = vld [vmem:[%s1 + $0x133c] sm:$0xf]
    %v1266 = vld [vmem:[%s1 + $0x1340] sm:$0xf]
    %v1267 = vld [vmem:[%s1 + $0x1344] sm:$0xf]
    %v1268 = vld [vmem:[%s1 + $0x1348] sm:$0xf]
    %v1269 = vld [vmem:[%s1 + $0x134c] sm:$0xf]
    %v1270 = vld [vmem:[%s1 + $0x1350] sm:$0xf]
    %v1271 = vld [vmem:[%s1 + $0x1354] sm:$0xf]
    %v1272 = vld [vmem:[%s1 + $0x1358] sm:$0xf]
    %v1273 = vld [vmem:[%s1 + $0x135c] sm:$0xf]
    %v1274 = vld [vmem:[%s1 + $0x1360] sm:$0xf]
    %v1275 = vld [vmem:[%s1 + $0x1364] sm:$0xf]
    %v1276 = vld [vmem:[%s1 + $0x1368] sm:$0xf]
    %v1277 = vld [vmem:[%s1 + $0x136c] sm:$0xf]
    %v1278 = vld [vmem:[%s1 + $0x1370] sm:$0xf]
    %v1279 = vld [vmem:[%s1 + $0x1374] sm:$0xf]
    %v1280 = vld [vmem:[%s1 + $0x1378] sm:$0xf]
    %v1281 = vld [vmem:[%s1 + $0x137c] sm:$0xf]
    %v1282 = vld [vmem:[%s1 + $0x1380] sm:$0xf]
    %v1283 = vld [vmem:[%s1 + $0x1384] sm:$0xf]
    %v1284 = vld [vmem:[%s1 + $0x1388] sm:$0xf]
    %v1285 = vld [vmem:[%s1 + $0x138c] sm:$0xf]
    %v1286 = vld [vmem:[%s1 + $0x1390] sm:$0xf]
    %v1287 = vld [vmem:[%s1 + $0x1394] sm:$0xf]
    %v1288 = vld [vmem:[%s1 + $0x1398] sm:$0xf]
    %v1289 = vld [vmem:[%s1 + $0x139c] sm:$0xf]
    %v1290 = vld [vmem:[%s1 + $0x13a0] sm:$0xf]
    %v1291 = vld [vmem:[%s1 + $0x13a4] sm:$0xf]
    %v1292 = vld [vmem:[%s1 + $0x13a8] sm:$0xf]
    %v1293 = vld [vmem:[%s1 + $0x13ac] sm:$0xf]
    %v1294 = vld [vmem:[%s1 + $0x13b0] sm:$0xf]
    %v1295 = vld [vmem:[%s1 + $0x13b4] sm:$0xf]
    %v1296 = vld [vmem:[%s1 + $0x13b8] sm:$0xf]
    %v1297 = vld [vmem:[%s1 + $0x13bc] sm:$0xf]
    %v1298 = vld [vmem:[%s1 + $0x13c0] sm:$0xf]
    %v1299 = vld [vmem:[%s1 + $0x13c4] sm:$0xf]
    %v1300 = vld [vmem:[%s1 + $0x13c8] sm:$0xf]
    %v1301 = vld [vmem:[%s1 + $0x13cc] sm:$0xf]
    %v1302 = vld [vmem:[%s1 + $0x13d0] sm:$0xf]
    %v1303 = vld [vmem:[%s1 + $0x13d4] sm:$0xf]
    %v1304 = vld [vmem:[%s1 + $0x13d8] sm:$0xf]
    %v1305 = vld [vmem:[%s1 + $0x13dc] sm:$0xf]
    %v1306 = vld [vmem:[%s1 + $0x13e0] sm:$0xf]
    %v1307 = vld [vmem:[%s1 + $0x13e4] sm:$0xf]
    %v1308 = vld [vmem:[%s1 + $0x13e8] sm:$0xf]
    %v1309 = vld [vmem:[%s1 + $0x13ec] sm:$0xf]
    %v1310 = vld [vmem:[%s1 + $0x13f0] sm:$0xf]
    %v1311 = vld [vmem:[%s1 + $0x13f4] sm:$0xf]
    %v1312 = vld [vmem:[%s1 + $0x13f8] sm:$0xf]
    %v1313 = vld [vmem:[%s1 + $0x13fc] sm:$0xf]
    %v1314 = vld [vmem:[%s1 + $0x1400] sm:$0xf]
    %v1315 = vld [vmem:[%s1 + $0x1404] sm:$0xf]
    %v1316 = vld [vmem:[%s1 + $0x1408] sm:$0xf]
    %v1317 = vld [vmem:[%s1 + $0x140c] sm:$0xf]
    %v1318 = vld [vmem:[%s1 + $0x1410] sm:$0xf]
    %v1319 = vld [vmem:[%s1 + $0x1414] sm:$0xf]
    %v1320 = vld [vmem:[%s1 + $0x1418] sm:$0xf]
    %v1321 = vld [vmem:[%s1 + $0x141c] sm:$0xf]
    %v1322 = vld [vmem:[%s1 + $0x1420] sm:$0xf]
    %v1323 = vld [vmem:[%s1 + $0x1424] sm:$0xf]
    %v1324 = vld [vmem:[%s1 + $0x1428] sm:$0xf]
    %v1325 = vld [vmem:[%s1 + $0x142c] sm:$0xf]
    %v1326 = vld [vmem:[%s1 + $0x1430] sm:$0xf]
    %v1327 = vld [vmem:[%s1 + $0x1434] sm:$0xf]
    %v1328 = vld [vmem:[%s1 + $0x1438] sm:$0xf]
    %v1329 = vld [vmem:[%s1 + $0x143c] sm:$0xf]
    %v1341 = vcombine.high %v23, %v23
    %v1343 = vunpack.c.l.s4 1966171168
    %v1344 = vunpack.c.0.s8 %v1343
    %v1345 = vlaneseq
    %v1346 = vshrl.u32 %v1345, 7
    %v1347 = vsub.s32 %v1344, %v1346
    %v1348 = vrot.slane %v23, %v1347
    %v1350 = vunpack.c.l.s4 1966171168
    %v1351 = vunpack.c.0.s8 %v1350
    %v1352 = vlaneseq
    %v1353 = vshrl.u32 %v1352, 7
    %v1354 = vsub.s32 %v1351, %v1353
    %v1355 = vrot.slane %v1341, %v1354
    %v1356 = vcombine.high %v1348, %v1348
    %v1357 = vcombine.high %v1355, %v1355
    %v1359 = vunpack.c.l.s4 1966171168
    %v1360 = vunpack.c.0.s8 %v1359
    %v1361 = vlaneseq
    %v1362 = vshrl.u32 %v1361, 7
    %v1363 = vsub.s32 %v1360, %v1362
    %v1364 = vrot.slane %v1348, %v1363
    %v1366 = vunpack.c.l.s4 1966171168
    %v1367 = vunpack.c.0.s8 %v1366
    %v1368 = vlaneseq
    %v1369 = vshrl.u32 %v1368, 7
    %v1370 = vsub.s32 %v1367, %v1369
    %v1371 = vrot.slane %v1355, %v1370
    %v1373 = vunpack.c.l.s4 1966171168
    %v1374 = vunpack.c.0.s8 %v1373
    %v1375 = vlaneseq
    %v1376 = vshrl.u32 %v1375, 7
    %v1377 = vsub.s32 %v1374, %v1376
    %v1378 = vrot.slane %v1356, %v1377
    %v1380 = vunpack.c.l.s4 1966171168
    %v1381 = vunpack.c.0.s8 %v1380
    %v1382 = vlaneseq
    %v1383 = vshrl.u32 %v1382, 7
    %v1384 = vsub.s32 %v1381, %v1383
    %v1385 = vrot.slane %v1357, %v1384
    %v1386 = vcombine.high %v1364, %v1364
    %v1387 = vcombine.high %v1371, %v1371
    %v1388 = vcombine.high %v1378, %v1378
    %v1389 = vcombine.high %v1385, %v1385
    %v1390 = vcombine.high %v24, %v24
    %v1392 = vunpack.c.l.s4 1966171168
    %v1393 = vunpack.c.0.s8 %v1392
    %v1394 = vlaneseq
    %v1395 = vshrl.u32 %v1394, 7
    %v1396 = vsub.s32 %v1393, %v1395
    %v1397 = vrot.slane %v24, %v1396
    %v1399 = vunpack.c.l.s4 1966171168
    %v1400 = vunpack.c.0.s8 %v1399
    %v1401 = vlaneseq
    %v1402 = vshrl.u32 %v1401, 7
    %v1403 = vsub.s32 %v1400, %v1402
    %v1404 = vrot.slane %v1390, %v1403
    %v1405 = vcombine.high %v1397, %v1397
    %v1406 = vcombine.high %v1404, %v1404
    %v1408 = vunpack.c.l.s4 1966171168
    %v1409 = vunpack.c.0.s8 %v1408
    %v1410 = vlaneseq
    %v1411 = vshrl.u32 %v1410, 7
    %v1412 = vsub.s32 %v1409, %v1411
    %v1413 = vrot.slane %v1397, %v1412
    %v1415 = vunpack.c.l.s4 1966171168
    %v1416 = vunpack.c.0.s8 %v1415
    %v1417 = vlaneseq
    %v1418 = vshrl.u32 %v1417, 7
    %v1419 = vsub.s32 %v1416, %v1418
    %v1420 = vrot.slane %v1404, %v1419
    %v1422 = vunpack.c.l.s4 1966171168
    %v1423 = vunpack.c.0.s8 %v1422
    %v1424 = vlaneseq
    %v1425 = vshrl.u32 %v1424, 7
    %v1426 = vsub.s32 %v1423, %v1425
    %v1427 = vrot.slane %v1405, %v1426
    %v1429 = vunpack.c.l.s4 1966171168
    %v1430 = vunpack.c.0.s8 %v1429
    %v1431 = vlaneseq
    %v1432 = vshrl.u32 %v1431, 7
    %v1433 = vsub.s32 %v1430, %v1432
    %v1434 = vrot.slane %v1406, %v1433
    %v1435 = vcombine.high %v1413, %v1413
    %v1436 = vcombine.high %v1420, %v1420
    %v1437 = vcombine.high %v1427, %v1427
    %v1438 = vcombine.high %v1434, %v1434
    %v1439 = vcombine.high %v25, %v25
    %v1441 = vunpack.c.l.s4 1966171168
    %v1442 = vunpack.c.0.s8 %v1441
    %v1443 = vlaneseq
    %v1444 = vshrl.u32 %v1443, 7
    %v1445 = vsub.s32 %v1442, %v1444
    %v1446 = vrot.slane %v25, %v1445
    %v1448 = vunpack.c.l.s4 1966171168
    %v1449 = vunpack.c.0.s8 %v1448
    %v1450 = vlaneseq
    %v1451 = vshrl.u32 %v1450, 7
    %v1452 = vsub.s32 %v1449, %v1451
    %v1453 = vrot.slane %v1439, %v1452
    %v1454 = vcombine.high %v1446, %v1446
    %v1455 = vcombine.high %v1453, %v1453
    %v1457 = vunpack.c.l.s4 1966171168
    %v1458 = vunpack.c.0.s8 %v1457
    %v1459 = vlaneseq
    %v1460 = vshrl.u32 %v1459, 7
    %v1461 = vsub.s32 %v1458, %v1460
    %v1462 = vrot.slane %v1446, %v1461
    %v1464 = vunpack.c.l.s4 1966171168
    %v1465 = vunpack.c.0.s8 %v1464
    %v1466 = vlaneseq
    %v1467 = vshrl.u32 %v1466, 7
    %v1468 = vsub.s32 %v1465, %v1467
    %v1469 = vrot.slane %v1453, %v1468
    %v1471 = vunpack.c.l.s4 1966171168
    %v1472 = vunpack.c.0.s8 %v1471
    %v1473 = vlaneseq
    %v1474 = vshrl.u32 %v1473, 7
    %v1475 = vsub.s32 %v1472, %v1474
    %v1476 = vrot.slane %v1454, %v1475
    %v1478 = vunpack.c.l.s4 1966171168
    %v1479 = vunpack.c.0.s8 %v1478
    %v1480 = vlaneseq
    %v1481 = vshrl.u32 %v1480, 7
    %v1482 = vsub.s32 %v1479, %v1481
    %v1483 = vrot.slane %v1455, %v1482
    %v1484 = vcombine.high %v1462, %v1462
    %v1485 = vcombine.high %v1469, %v1469
    %v1486 = vcombine.high %v1476, %v1476
    %v1487 = vcombine.high %v1483, %v1483
    %v1488 = vcombine.high %v26, %v26
    %v1490 = vunpack.c.l.s4 1966171168
    %v1491 = vunpack.c.0.s8 %v1490
    %v1492 = vlaneseq
    %v1493 = vshrl.u32 %v1492, 7
    %v1494 = vsub.s32 %v1491, %v1493
    %v1495 = vrot.slane %v26, %v1494
    %v1497 = vunpack.c.l.s4 1966171168
    %v1498 = vunpack.c.0.s8 %v1497
    %v1499 = vlaneseq
    %v1500 = vshrl.u32 %v1499, 7
    %v1501 = vsub.s32 %v1498, %v1500
    %v1502 = vrot.slane %v1488, %v1501
    %v1503 = vcombine.high %v1495, %v1495
    %v1504 = vcombine.high %v1502, %v1502
    %v1506 = vunpack.c.l.s4 1966171168
    %v1507 = vunpack.c.0.s8 %v1506
    %v1508 = vlaneseq
    %v1509 = vshrl.u32 %v1508, 7
    %v1510 = vsub.s32 %v1507, %v1509
    %v1511 = vrot.slane %v1495, %v1510
    %v1513 = vunpack.c.l.s4 1966171168
    %v1514 = vunpack.c.0.s8 %v1513
    %v1515 = vlaneseq
    %v1516 = vshrl.u32 %v1515, 7
    %v1517 = vsub.s32 %v1514, %v1516
    %v1518 = vrot.slane %v1502, %v1517
    %v1520 = vunpack.c.l.s4 1966171168
    %v1521 = vunpack.c.0.s8 %v1520
    %v1522 = vlaneseq
    %v1523 = vshrl.u32 %v1522, 7
    %v1524 = vsub.s32 %v1521, %v1523
    %v1525 = vrot.slane %v1503, %v1524
    %v1527 = vunpack.c.l.s4 1966171168
    %v1528 = vunpack.c.0.s8 %v1527
    %v1529 = vlaneseq
    %v1530 = vshrl.u32 %v1529, 7
    %v1531 = vsub.s32 %v1528, %v1530
    %v1532 = vrot.slane %v1504, %v1531
    %v1533 = vcombine.high %v1511, %v1511
    %v1534 = vcombine.high %v1518, %v1518
    %v1535 = vcombine.high %v1525, %v1525
    %v1536 = vcombine.high %v1532, %v1532
    %v1537 = vcombine.high %v27, %v27
    %v1539 = vunpack.c.l.s4 1966171168
    %v1540 = vunpack.c.0.s8 %v1539
    %v1541 = vlaneseq
    %v1542 = vshrl.u32 %v1541, 7
    %v1543 = vsub.s32 %v1540, %v1542
    %v1544 = vrot.slane %v27, %v1543
    %v1546 = vunpack.c.l.s4 1966171168
    %v1547 = vunpack.c.0.s8 %v1546
    %v1548 = vlaneseq
    %v1549 = vshrl.u32 %v1548, 7
    %v1550 = vsub.s32 %v1547, %v1549
    %v1551 = vrot.slane %v1537, %v1550
    %v1552 = vcombine.high %v1544, %v1544
    %v1553 = vcombine.high %v1551, %v1551
    %v1555 = vunpack.c.l.s4 1966171168
    %v1556 = vunpack.c.0.s8 %v1555
    %v1557 = vlaneseq
    %v1558 = vshrl.u32 %v1557, 7
    %v1559 = vsub.s32 %v1556, %v1558
    %v1560 = vrot.slane %v1544, %v1559
    %v1562 = vunpack.c.l.s4 1966171168
    %v1563 = vunpack.c.0.s8 %v1562
    %v1564 = vlaneseq
    %v1565 = vshrl.u32 %v1564, 7
    %v1566 = vsub.s32 %v1563, %v1565
    %v1567 = vrot.slane %v1551, %v1566
    %v1569 = vunpack.c.l.s4 1966171168
    %v1570 = vunpack.c.0.s8 %v1569
    %v1571 = vlaneseq
    %v1572 = vshrl.u32 %v1571, 7
    %v1573 = vsub.s32 %v1570, %v1572
    %v1574 = vrot.slane %v1552, %v1573
    %v1576 = vunpack.c.l.s4 1966171168
    %v1577 = vunpack.c.0.s8 %v1576
    %v1578 = vlaneseq
    %v1579 = vshrl.u32 %v1578, 7
    %v1580 = vsub.s32 %v1577, %v1579
    %v1581 = vrot.slane %v1553, %v1580
    %v1582 = vcombine.high %v1560, %v1560
    %v1583 = vcombine.high %v1567, %v1567
    %v1584 = vcombine.high %v1574, %v1574
    %v1585 = vcombine.high %v1581, %v1581
    %v1586 = vcombine.high %v28, %v28
    %v1588 = vunpack.c.l.s4 1966171168
    %v1589 = vunpack.c.0.s8 %v1588
    %v1590 = vlaneseq
    %v1591 = vshrl.u32 %v1590, 7
    %v1592 = vsub.s32 %v1589, %v1591
    %v1593 = vrot.slane %v28, %v1592
    %v1595 = vunpack.c.l.s4 1966171168
    %v1596 = vunpack.c.0.s8 %v1595
    %v1597 = vlaneseq
    %v1598 = vshrl.u32 %v1597, 7
    %v1599 = vsub.s32 %v1596, %v1598
    %v1600 = vrot.slane %v1586, %v1599
    %v1601 = vcombine.high %v1593, %v1593
    %v1602 = vcombine.high %v1600, %v1600
    %v1604 = vunpack.c.l.s4 1966171168
    %v1605 = vunpack.c.0.s8 %v1604
    %v1606 = vlaneseq
    %v1607 = vshrl.u32 %v1606, 7
    %v1608 = vsub.s32 %v1605, %v1607
    %v1609 = vrot.slane %v1593, %v1608
    %v1611 = vunpack.c.l.s4 1966171168
    %v1612 = vunpack.c.0.s8 %v1611
    %v1613 = vlaneseq
    %v1614 = vshrl.u32 %v1613, 7
    %v1615 = vsub.s32 %v1612, %v1614
    %v1616 = vrot.slane %v1600, %v1615
    %v1618 = vunpack.c.l.s4 1966171168
    %v1619 = vunpack.c.0.s8 %v1618
    %v1620 = vlaneseq
    %v1621 = vshrl.u32 %v1620, 7
    %v1622 = vsub.s32 %v1619, %v1621
    %v1623 = vrot.slane %v1601, %v1622
    %v1625 = vunpack.c.l.s4 1966171168
    %v1626 = vunpack.c.0.s8 %v1625
    %v1627 = vlaneseq
    %v1628 = vshrl.u32 %v1627, 7
    %v1629 = vsub.s32 %v1626, %v1628
    %v1630 = vrot.slane %v1602, %v1629
    %v1631 = vcombine.high %v1609, %v1609
    %v1632 = vcombine.high %v1616, %v1616
    %v1633 = vcombine.high %v1623, %v1623
    %v1634 = vcombine.high %v1630, %v1630
    %v1635 = vcombine.high %v29, %v29
    %v1637 = vunpack.c.l.s4 1966171168
    %v1638 = vunpack.c.0.s8 %v1637
    %v1639 = vlaneseq
    %v1640 = vshrl.u32 %v1639, 7
    %v1641 = vsub.s32 %v1638, %v1640
    %v1642 = vrot.slane %v29, %v1641
    %v1644 = vunpack.c.l.s4 1966171168
    %v1645 = vunpack.c.0.s8 %v1644
    %v1646 = vlaneseq
    %v1647 = vshrl.u32 %v1646, 7
    %v1648 = vsub.s32 %v1645, %v1647
    %v1649 = vrot.slane %v1635, %v1648
    %v1650 = vcombine.high %v1642, %v1642
    %v1651 = vcombine.high %v1649, %v1649
    %v1653 = vunpack.c.l.s4 1966171168
    %v1654 = vunpack.c.0.s8 %v1653
    %v1655 = vlaneseq
    %v1656 = vshrl.u32 %v1655, 7
    %v1657 = vsub.s32 %v1654, %v1656
    %v1658 = vrot.slane %v1642, %v1657
    %v1660 = vunpack.c.l.s4 1966171168
    %v1661 = vunpack.c.0.s8 %v1660
    %v1662 = vlaneseq
    %v1663 = vshrl.u32 %v1662, 7
    %v1664 = vsub.s32 %v1661, %v1663
    %v1665 = vrot.slane %v1649, %v1664
    %v1667 = vunpack.c.l.s4 1966171168
    %v1668 = vunpack.c.0.s8 %v1667
    %v1669 = vlaneseq
    %v1670 = vshrl.u32 %v1669, 7
    %v1671 = vsub.s32 %v1668, %v1670
    %v1672 = vrot.slane %v1650, %v1671
    %v1674 = vunpack.c.l.s4 1966171168
    %v1675 = vunpack.c.0.s8 %v1674
    %v1676 = vlaneseq
    %v1677 = vshrl.u32 %v1676, 7
    %v1678 = vsub.s32 %v1675, %v1677
    %v1679 = vrot.slane %v1651, %v1678
    %v1680 = vcombine.high %v1658, %v1658
    %v1681 = vcombine.high %v1665, %v1665
    %v1682 = vcombine.high %v1672, %v1672
    %v1683 = vcombine.high %v1679, %v1679
    %v1684 = vcombine.high %v30, %v30
    %v1686 = vunpack.c.l.s4 1966171168
    %v1687 = vunpack.c.0.s8 %v1686
    %v1688 = vlaneseq
    %v1689 = vshrl.u32 %v1688, 7
    %v1690 = vsub.s32 %v1687, %v1689
    %v1691 = vrot.slane %v30, %v1690
    %v1693 = vunpack.c.l.s4 1966171168
    %v1694 = vunpack.c.0.s8 %v1693
    %v1695 = vlaneseq
    %v1696 = vshrl.u32 %v1695, 7
    %v1697 = vsub.s32 %v1694, %v1696
    %v1698 = vrot.slane %v1684, %v1697
    %v1699 = vcombine.high %v1691, %v1691
    %v1700 = vcombine.high %v1698, %v1698
    %v1702 = vunpack.c.l.s4 1966171168
    %v1703 = vunpack.c.0.s8 %v1702
    %v1704 = vlaneseq
    %v1705 = vshrl.u32 %v1704, 7
    %v1706 = vsub.s32 %v1703, %v1705
    %v1707 = vrot.slane %v1691, %v1706
    %v1709 = vunpack.c.l.s4 1966171168
    %v1710 = vunpack.c.0.s8 %v1709
    %v1711 = vlaneseq
    %v1712 = vshrl.u32 %v1711, 7
    %v1713 = vsub.s32 %v1710, %v1712
    %v1714 = vrot.slane %v1698, %v1713
    %v1716 = vunpack.c.l.s4 1966171168
    %v1717 = vunpack.c.0.s8 %v1716
    %v1718 = vlaneseq
    %v1719 = vshrl.u32 %v1718, 7
    %v1720 = vsub.s32 %v1717, %v1719
    %v1721 = vrot.slane %v1699, %v1720
    %v1723 = vunpack.c.l.s4 1966171168
    %v1724 = vunpack.c.0.s8 %v1723
    %v1725 = vlaneseq
    %v1726 = vshrl.u32 %v1725, 7
    %v1727 = vsub.s32 %v1724, %v1726
    %v1728 = vrot.slane %v1700, %v1727
    %v1729 = vcombine.high %v1707, %v1707
    %v1730 = vcombine.high %v1714, %v1714
    %v1731 = vcombine.high %v1721, %v1721
    %v1732 = vcombine.high %v1728, %v1728
    %v1733 = vcombine.high %v31, %v31
    %v1735 = vunpack.c.l.s4 1966171168
    %v1736 = vunpack.c.0.s8 %v1735
    %v1737 = vlaneseq
    %v1738 = vshrl.u32 %v1737, 7
    %v1739 = vsub.s32 %v1736, %v1738
    %v1740 = vrot.slane %v31, %v1739
    %v1742 = vunpack.c.l.s4 1966171168
    %v1743 = vunpack.c.0.s8 %v1742
    %v1744 = vlaneseq
    %v1745 = vshrl.u32 %v1744, 7
    %v1746 = vsub.s32 %v1743, %v1745
    %v1747 = vrot.slane %v1733, %v1746
    %v1748 = vcombine.high %v1740, %v1740
    %v1749 = vcombine.high %v1747, %v1747
    %v1751 = vunpack.c.l.s4 1966171168
    %v1752 = vunpack.c.0.s8 %v1751
    %v1753 = vlaneseq
    %v1754 = vshrl.u32 %v1753, 7
    %v1755 = vsub.s32 %v1752, %v1754
    %v1756 = vrot.slane %v1740, %v1755
    %v1758 = vunpack.c.l.s4 1966171168
    %v1759 = vunpack.c.0.s8 %v1758
    %v1760 = vlaneseq
    %v1761 = vshrl.u32 %v1760, 7
    %v1762 = vsub.s32 %v1759, %v1761
    %v1763 = vrot.slane %v1747, %v1762
    %v1765 = vunpack.c.l.s4 1966171168
    %v1766 = vunpack.c.0.s8 %v1765
    %v1767 = vlaneseq
    %v1768 = vshrl.u32 %v1767, 7
    %v1769 = vsub.s32 %v1766, %v1768
    %v1770 = vrot.slane %v1748, %v1769
    %v1772 = vunpack.c.l.s4 1966171168
    %v1773 = vunpack.c.0.s8 %v1772
    %v1774 = vlaneseq
    %v1775 = vshrl.u32 %v1774, 7
    %v1776 = vsub.s32 %v1773, %v1775
    %v1777 = vrot.slane %v1749, %v1776
    %v1778 = vcombine.high %v1756, %v1756
    %v1779 = vcombine.high %v1763, %v1763
    %v1780 = vcombine.high %v1770, %v1770
    %v1781 = vcombine.high %v1777, %v1777
    %v1782 = vcombine.high %v32, %v32
    %v1784 = vunpack.c.l.s4 1966171168
    %v1785 = vunpack.c.0.s8 %v1784
    %v1786 = vlaneseq
    %v1787 = vshrl.u32 %v1786, 7
    %v1788 = vsub.s32 %v1785, %v1787
    %v1789 = vrot.slane %v32, %v1788
    %v1791 = vunpack.c.l.s4 1966171168
    %v1792 = vunpack.c.0.s8 %v1791
    %v1793 = vlaneseq
    %v1794 = vshrl.u32 %v1793, 7
    %v1795 = vsub.s32 %v1792, %v1794
    %v1796 = vrot.slane %v1782, %v1795
    %v1797 = vcombine.high %v1789, %v1789
    %v1798 = vcombine.high %v1796, %v1796
    %v1800 = vunpack.c.l.s4 1966171168
    %v1801 = vunpack.c.0.s8 %v1800
    %v1802 = vlaneseq
    %v1803 = vshrl.u32 %v1802, 7
    %v1804 = vsub.s32 %v1801, %v1803
    %v1805 = vrot.slane %v1789, %v1804
    %v1807 = vunpack.c.l.s4 1966171168
    %v1808 = vunpack.c.0.s8 %v1807
    %v1809 = vlaneseq
    %v1810 = vshrl.u32 %v1809, 7
    %v1811 = vsub.s32 %v1808, %v1810
    %v1812 = vrot.slane %v1796, %v1811
    %v1814 = vunpack.c.l.s4 1966171168
    %v1815 = vunpack.c.0.s8 %v1814
    %v1816 = vlaneseq
    %v1817 = vshrl.u32 %v1816, 7
    %v1818 = vsub.s32 %v1815, %v1817
    %v1819 = vrot.slane %v1797, %v1818
    %v1821 = vunpack.c.l.s4 1966171168
    %v1822 = vunpack.c.0.s8 %v1821
    %v1823 = vlaneseq
    %v1824 = vshrl.u32 %v1823, 7
    %v1825 = vsub.s32 %v1822, %v1824
    %v1826 = vrot.slane %v1798, %v1825
    %v1827 = vcombine.high %v1805, %v1805
    %v1828 = vcombine.high %v1812, %v1812
    %v1829 = vcombine.high %v1819, %v1819
    %v1830 = vcombine.high %v1826, %v1826
    %v1832 = vunpack.c.l.s4 1966171168
    %v1833 = vunpack.c.0.s8 %v1832
    %v1834 = vlaneseq
    %v1835 = vshrl.u32 %v1834, 7
    %v1836 = vsub.s32 %v1833, %v1835
    %v1837 = vrot.slane %v33, %v1836
    %v1839 = vunpack.c.l.s4 1966171168
    %v1840 = vunpack.c.0.s8 %v1839
    %v1841 = vlaneseq
    %v1842 = vshrl.u32 %v1841, 7
    %v1843 = vsub.s32 %v1840, %v1842
    %v1844 = vrot.slane %v1837, %v1843
    %v3222 = vunpack.c.l.b16 %v34
    %v3223 = vunpack.c.l.b16 %v35
    %v3224 = vunpack.c.l.b16 %v36
    %v3225 = vunpack.c.l.b16 %v37
    %v3226 = vunpack.c.l.b16 %v38
    %v3227 = vunpack.c.l.b16 %v39
    %v3228 = vunpack.c.l.b16 %v40
    %v3229 = vunpack.c.l.b16 %v41
    %v3230 = vunpack.c.l.b16 %v42
    %v3231 = vunpack.c.l.b16 %v43
    %v3232 = vunpack.c.l.b16 %v44
    %v3233 = vunpack.c.l.b16 %v45
    %v3234 = vunpack.c.l.b16 %v46
    %v3235 = vunpack.c.l.b16 %v47
    %v3236 = vunpack.c.l.b16 %v48
    %v3237 = vunpack.c.l.b16 %v49
    %v3238 = vunpack.c.l.b16 %v50
    %v3239 = vunpack.c.l.b16 %v51
    %v3240 = vunpack.c.l.b16 %v52
    %v3241 = vunpack.c.l.b16 %v53
    %v3242 = vunpack.c.l.b16 %v54
    %v3243 = vunpack.c.l.b16 %v55
    %v3244 = vunpack.c.l.b16 %v56
    %v3245 = vunpack.c.l.b16 %v57
    %v3246 = vunpack.c.l.b16 %v58
    %v3247 = vunpack.c.l.b16 %v59
    %v3248 = vunpack.c.l.b16 %v60
    %v3249 = vunpack.c.l.b16 %v61
    %v3250 = vunpack.c.l.b16 %v62
    %v3251 = vunpack.c.l.b16 %v63
    %v3252 = vunpack.c.l.b16 %v64
    %v3253 = vunpack.c.l.b16 %v65
    %v3254 = vunpack.c.l.b16 %v66
    %v3255 = vunpack.c.l.b16 %v67
    %v3256 = vunpack.c.l.b16 %v68
    %v3257 = vunpack.c.l.b16 %v69
    %v3258 = vunpack.c.l.b16 %v70
    %v3259 = vunpack.c.l.b16 %v71
    %v3260 = vunpack.c.l.b16 %v72
    %v3261 = vunpack.c.l.b16 %v73
    %v3262 = vunpack.c.l.b16 %v74
    %v3263 = vunpack.c.l.b16 %v75
    %v3264 = vunpack.c.l.b16 %v76
    %v3265 = vunpack.c.l.b16 %v77
    %v3266 = vunpack.c.l.b16 %v78
    %v3267 = vunpack.c.l.b16 %v79
    %v3268 = vunpack.c.l.b16 %v80
    %v3269 = vunpack.c.l.b16 %v81
    %v3270 = vunpack.c.l.b16 %v82
    %v3271 = vunpack.c.l.b16 %v83
    %v3272 = vunpack.c.l.b16 %v84
    %v3273 = vunpack.c.l.b16 %v85
    %v3274 = vunpack.c.l.b16 %v86
    %v3275 = vunpack.c.l.b16 %v87
    %v3276 = vunpack.c.l.b16 %v88
    %v3277 = vunpack.c.l.b16 %v89
    %v3278 = vunpack.c.l.b16 %v90
    %v3279 = vunpack.c.l.b16 %v91
    %v3280 = vunpack.c.l.b16 %v92
    %v3281 = vunpack.c.l.b16 %v93
    %v3282 = vunpack.c.l.b16 %v94
    %v3283 = vunpack.c.l.b16 %v95
    %v3284 = vunpack.c.l.b16 %v96
    %v3285 = vunpack.c.l.b16 %v97
    %v3286 = vunpack.c.l.b16 %v98
    %v3287 = vunpack.c.l.b16 %v99
    %v3288 = vunpack.c.l.b16 %v100
    %v3289 = vunpack.c.l.b16 %v101
    %v3290 = vunpack.c.l.b16 %v102
    %v3291 = vunpack.c.l.b16 %v103
    %v3292 = vunpack.c.l.b16 %v104
    %v3293 = vunpack.c.l.b16 %v105
    %v3294 = vunpack.c.l.b16 %v106
    %v3295 = vunpack.c.l.b16 %v107
    %v3296 = vunpack.c.l.b16 %v108
    %v3297 = vunpack.c.l.b16 %v109
    %v3298 = vunpack.c.l.b16 %v110
    %v3299 = vunpack.c.l.b16 %v111
    %v3300 = vunpack.c.l.b16 %v112
    %v3301 = vunpack.c.l.b16 %v113
    %v3302 = vunpack.c.l.b16 %v114
    %v3303 = vunpack.c.l.b16 %v115
    %v3304 = vunpack.c.l.b16 %v116
    %v3305 = vunpack.c.l.b16 %v117
    %v3306 = vunpack.c.l.b16 %v118
    %v3307 = vunpack.c.l.b16 %v119
    %v3308 = vunpack.c.l.b16 %v120
    %v3309 = vunpack.c.l.b16 %v121
    %v3310 = vunpack.c.l.b16 %v122
    %v3311 = vunpack.c.l.b16 %v123
    %v3312 = vunpack.c.l.b16 %v124
    %v3313 = vunpack.c.l.b16 %v125
    %v3314 = vunpack.c.l.b16 %v126
    %v3315 = vunpack.c.l.b16 %v127
    %v3316 = vunpack.c.l.b16 %v128
    %v3317 = vunpack.c.l.b16 %v129
    %v3318 = vunpack.c.l.b16 %v130
    %v3319 = vunpack.c.l.b16 %v131
    %v3320 = vunpack.c.l.b16 %v132
    %v3321 = vunpack.c.l.b16 %v133
    %v3322 = vunpack.c.l.b16 %v134
    %v3323 = vunpack.c.l.b16 %v135
    %v3324 = vunpack.c.l.b16 %v136
    %v3325 = vunpack.c.l.b16 %v137
    %v3326 = vunpack.c.l.b16 %v138
    %v3327 = vunpack.c.l.b16 %v139
    %v3328 = vunpack.c.l.b16 %v140
    %v3329 = vunpack.c.l.b16 %v141
    %v3330 = vunpack.c.l.b16 %v142
    %v3331 = vunpack.c.l.b16 %v143
    %v3332 = vunpack.c.l.b16 %v144
    %v3333 = vunpack.c.l.b16 %v145
    %v3334 = vunpack.c.l.b16 %v146
    %v3335 = vunpack.c.l.b16 %v147
    %v3336 = vunpack.c.l.b16 %v148
    %v3337 = vunpack.c.l.b16 %v149
    %v3338 = vunpack.c.l.b16 %v150
    %v3339 = vunpack.c.l.b16 %v151
    %v3340 = vunpack.c.l.b16 %v152
    %v3341 = vunpack.c.l.b16 %v153
    %v3342 = vunpack.c.l.b16 %v154
    %v3343 = vunpack.c.l.b16 %v155
    %v3344 = vunpack.c.l.b16 %v156
    %v3345 = vunpack.c.l.b16 %v157
    %v3346 = vunpack.c.l.b16 %v158
    %v3347 = vunpack.c.l.b16 %v159
    %v3348 = vunpack.c.l.b16 %v160
    %v3349 = vunpack.c.l.b16 %v161
    %v3350 = vunpack.c.l.b16 %v162
    %v3351 = vunpack.c.l.b16 %v163
    %v3352 = vunpack.c.l.b16 %v164
    %v3353 = vunpack.c.l.b16 %v165
    %v3354 = vunpack.c.l.b16 %v166
    %v3355 = vunpack.c.l.b16 %v167
    %v3356 = vunpack.c.l.b16 %v168
    %v3357 = vunpack.c.l.b16 %v169
    %v3358 = vunpack.c.l.b16 %v170
    %v3359 = vunpack.c.l.b16 %v171
    %v3360 = vunpack.c.l.b16 %v172
    %v3361 = vunpack.c.l.b16 %v173
    %v3362 = vunpack.c.l.b16 %v174
    %v3363 = vunpack.c.l.b16 %v175
    %v3364 = vunpack.c.l.b16 %v176
    %v3365 = vunpack.c.l.b16 %v177
    %v3366 = vunpack.c.l.b16 %v178
    %v3367 = vunpack.c.l.b16 %v179
    %v3368 = vunpack.c.l.b16 %v180
    %v3369 = vunpack.c.l.b16 %v181
    %v3370 = vunpack.c.l.b16 %v182
    %v3371 = vunpack.c.l.b16 %v183
    %v3372 = vunpack.c.l.b16 %v184
    %v3373 = vunpack.c.l.b16 %v185
    %v3374 = vunpack.c.l.b16 %v186
    %v3375 = vunpack.c.l.b16 %v187
    %v3376 = vunpack.c.l.b16 %v188
    %v3377 = vunpack.c.l.b16 %v189
    %v3378 = vunpack.c.l.b16 %v190
    %v3379 = vunpack.c.l.b16 %v191
    %v3380 = vunpack.c.l.b16 %v192
    %v3381 = vunpack.c.l.b16 %v193
    %v3382 = vunpack.c.l.b16 %v194
    %v3383 = vunpack.c.l.b16 %v195
    %v3384 = vunpack.c.l.b16 %v196
    %v3385 = vunpack.c.l.b16 %v197
    %v3386 = vunpack.c.l.b16 %v198
    %v3387 = vunpack.c.l.b16 %v199
    %v3388 = vunpack.c.l.b16 %v200
    %v3389 = vunpack.c.l.b16 %v201
    %v3390 = vunpack.c.l.b16 %v202
    %v3391 = vunpack.c.l.b16 %v203
    %v3392 = vunpack.c.l.b16 %v204
    %v3393 = vunpack.c.l.b16 %v205
    %v3394 = vunpack.c.l.b16 %v206
    %v3395 = vunpack.c.l.b16 %v207
    %v3396 = vunpack.c.l.b16 %v208
    %v3397 = vunpack.c.l.b16 %v209
    %v3398 = vunpack.c.l.b16 %v210
    %v3399 = vunpack.c.l.b16 %v211
    %v3400 = vunpack.c.l.b16 %v212
    %v3401 = vunpack.c.l.b16 %v213
    %v3402 = vunpack.c.l.b16 %v214
    %v3403 = vunpack.c.l.b16 %v215
    %v3404 = vunpack.c.l.b16 %v216
    %v3405 = vunpack.c.l.b16 %v217
    %v3406 = vunpack.c.l.b16 %v218
    %v3407 = vunpack.c.l.b16 %v219
    %v3408 = vunpack.c.l.b16 %v220
    %v3409 = vunpack.c.l.b16 %v221
    %v3410 = vunpack.c.l.b16 %v222
    %v3411 = vunpack.c.l.b16 %v223
    %v3412 = vunpack.c.l.b16 %v224
    %v3413 = vunpack.c.l.b16 %v225
    %v3414 = vunpack.c.l.b16 %v226
    %v3415 = vunpack.c.l.b16 %v227
    %v3416 = vunpack.c.l.b16 %v228
    %v3417 = vunpack.c.l.b16 %v229
    %v3418 = vunpack.c.l.b16 %v230
    %v3419 = vunpack.c.l.b16 %v231
    %v3420 = vunpack.c.l.b16 %v232
    %v3421 = vunpack.c.l.b16 %v233
    %v3422 = vunpack.c.l.b16 %v234
    %v3423 = vunpack.c.l.b16 %v235
    %v3424 = vunpack.c.l.b16 %v236
    %v3425 = vunpack.c.l.b16 %v237
    %v3426 = vunpack.c.l.b16 %v238
    %v3427 = vunpack.c.l.b16 %v239
    %v3428 = vunpack.c.l.b16 %v240
    %v3429 = vunpack.c.l.b16 %v241
    %v3430 = vunpack.c.l.b16 %v242
    %v3431 = vunpack.c.l.b16 %v243
    %v3432 = vunpack.c.l.b16 %v244
    %v3433 = vunpack.c.l.b16 %v245
    %v3434 = vunpack.c.l.b16 %v246
    %v3435 = vunpack.c.l.b16 %v247
    %v3436 = vunpack.c.l.b16 %v248
    %v3437 = vunpack.c.l.b16 %v249
    %v3438 = vunpack.c.l.b16 %v250
    %v3439 = vunpack.c.l.b16 %v251
    %v3440 = vunpack.c.l.b16 %v252
    %v3441 = vunpack.c.l.b16 %v253
    %v3442 = vunpack.c.l.b16 %v254
    %v3443 = vunpack.c.l.b16 %v255
    %v3444 = vunpack.c.l.b16 %v256
    %v3445 = vunpack.c.l.b16 %v257
    %v3446 = vunpack.c.l.b16 %v258
    %v3447 = vunpack.c.l.b16 %v259
    %v3448 = vunpack.c.l.b16 %v260
    %v3449 = vunpack.c.l.b16 %v261
    %v3450 = vunpack.c.l.b16 %v262
    %v3451 = vunpack.c.l.b16 %v263
    %v3452 = vunpack.c.l.b16 %v264
    %v3453 = vunpack.c.l.b16 %v265
    %v3454 = vunpack.c.l.b16 %v266
    %v3455 = vunpack.c.l.b16 %v267
    %v3456 = vunpack.c.l.b16 %v268
    %v3457 = vunpack.c.l.b16 %v269
    %v3458 = vunpack.c.l.b16 %v270
    %v3459 = vunpack.c.l.b16 %v271
    %v3460 = vunpack.c.l.b16 %v272
    %v3461 = vunpack.c.l.b16 %v273
    %v3462 = vunpack.c.l.b16 %v274
    %v3463 = vunpack.c.l.b16 %v275
    %v3464 = vunpack.c.l.b16 %v276
    %v3465 = vunpack.c.l.b16 %v277
    %v3466 = vunpack.c.l.b16 %v278
    %v3467 = vunpack.c.l.b16 %v279
    %v3468 = vunpack.c.l.b16 %v280
    %v3469 = vunpack.c.l.b16 %v281
    %v3470 = vunpack.c.l.b16 %v282
    %v3471 = vunpack.c.l.b16 %v283
    %v3472 = vunpack.c.l.b16 %v284
    %v3473 = vunpack.c.l.b16 %v285
    %v3474 = vunpack.c.l.b16 %v286
    %v3475 = vunpack.c.l.b16 %v287
    %v3476 = vunpack.c.l.b16 %v288
    %v3477 = vunpack.c.l.b16 %v289
    %v3478 = vunpack.c.l.b16 %v290
    %v3479 = vunpack.c.l.b16 %v291
    %v3480 = vunpack.c.l.b16 %v292
    %v3481 = vunpack.c.l.b16 %v293
    %v3482 = vunpack.c.l.b16 %v294
    %v3483 = vunpack.c.l.b16 %v295
    %v3484 = vunpack.c.l.b16 %v296
    %v3485 = vunpack.c.l.b16 %v297
    %v3486 = vunpack.c.l.b16 %v298
    %v3487 = vunpack.c.l.b16 %v299
    %v3488 = vunpack.c.l.b16 %v300
    %v3489 = vunpack.c.l.b16 %v301
    %v3490 = vunpack.c.l.b16 %v302
    %v3491 = vunpack.c.l.b16 %v303
    %v3492 = vunpack.c.l.b16 %v304
    %v3493 = vunpack.c.l.b16 %v305
    %v3494 = vunpack.c.l.b16 %v306
    %v3495 = vunpack.c.l.b16 %v307
    %v3496 = vunpack.c.l.b16 %v308
    %v3497 = vunpack.c.l.b16 %v309
    %v3498 = vunpack.c.l.b16 %v310
    %v3499 = vunpack.c.l.b16 %v311
    %v3500 = vunpack.c.l.b16 %v312
    %v3501 = vunpack.c.l.b16 %v313
    %v3502 = vunpack.c.l.b16 %v314
    %v3503 = vunpack.c.l.b16 %v315
    %v3504 = vunpack.c.l.b16 %v316
    %v3505 = vunpack.c.l.b16 %v317
    %v3506 = vunpack.c.l.b16 %v318
    %v3507 = vunpack.c.l.b16 %v319
    %v3508 = vunpack.c.l.b16 %v320
    %v3509 = vunpack.c.l.b16 %v321
    %v3510 = vunpack.c.l.b16 %v322
    %v3511 = vunpack.c.l.b16 %v323
    %v3512 = vunpack.c.l.b16 %v324
    %v3513 = vunpack.c.l.b16 %v325
    %v3514 = vunpack.c.l.b16 %v326
    %v3515 = vunpack.c.l.b16 %v327
    %v3516 = vunpack.c.l.b16 %v328
    %v3517 = vunpack.c.l.b16 %v329
    %v3518 = vunpack.c.l.b16 %v330
    %v3519 = vunpack.c.l.b16 %v331
    %v3520 = vunpack.c.l.b16 %v332
    %v3521 = vunpack.c.l.b16 %v333
    %v3522 = vunpack.c.l.b16 %v334
    %v3523 = vunpack.c.l.b16 %v335
    %v3524 = vunpack.c.l.b16 %v336
    %v3525 = vunpack.c.l.b16 %v337
    %v3526 = vunpack.c.l.b16 %v338
    %v3527 = vunpack.c.l.b16 %v339
    %v3528 = vunpack.c.l.b16 %v340
    %v3529 = vunpack.c.l.b16 %v341
    %v3530 = vunpack.c.l.b16 %v342
    %v3531 = vunpack.c.l.b16 %v343
    %v3532 = vunpack.c.l.b16 %v344
    %v3533 = vunpack.c.l.b16 %v345
    %v3534 = vunpack.c.l.b16 %v346
    %v3535 = vunpack.c.l.b16 %v347
    %v3536 = vunpack.c.l.b16 %v348
    %v3537 = vunpack.c.l.b16 %v349
    %v3538 = vunpack.c.l.b16 %v350
    %v3539 = vunpack.c.l.b16 %v351
    %v3540 = vunpack.c.l.b16 %v352
    %v3541 = vunpack.c.l.b16 %v353
    %v3542 = vunpack.c.l.b16 %v354
    %v3543 = vunpack.c.l.b16 %v355
    %v3544 = vunpack.c.l.b16 %v356
    %v3545 = vunpack.c.l.b16 %v357
    %v3546 = vunpack.c.l.b16 %v358
    %v3547 = vunpack.c.l.b16 %v359
    %v3548 = vunpack.c.l.b16 %v360
    %v3549 = vunpack.c.l.b16 %v361
    %v3550 = vunpack.c.l.b16 %v362
    %v3551 = vunpack.c.l.b16 %v363
    %v3552 = vunpack.c.l.b16 %v364
    %v3553 = vunpack.c.l.b16 %v365
    %v3554 = vunpack.c.l.b16 %v366
    %v3555 = vunpack.c.l.b16 %v367
    %v3556 = vunpack.c.l.b16 %v368
    %v3557 = vunpack.c.l.b16 %v369
    %v3558 = vunpack.c.l.b16 %v370
    %v3559 = vunpack.c.l.b16 %v371
    %v3560 = vunpack.c.l.b16 %v372
    %v3561 = vunpack.c.l.b16 %v373
    %v3562 = vunpack.c.l.b16 %v374
    %v3563 = vunpack.c.l.b16 %v375
    %v3564 = vunpack.c.l.b16 %v376
    %v3565 = vunpack.c.l.b16 %v377
    %v3566 = vunpack.c.l.b16 %v378
    %v3567 = vunpack.c.l.b16 %v379
    %v3568 = vunpack.c.l.b16 %v380
    %v3569 = vunpack.c.l.b16 %v381
    %v3570 = vunpack.c.l.b16 %v382
    %v3571 = vunpack.c.l.b16 %v383
    %v3572 = vunpack.c.l.b16 %v384
    %v3573 = vunpack.c.l.b16 %v385
    %v3574 = vunpack.c.l.b16 %v386
    %v3575 = vunpack.c.l.b16 %v387
    %v3576 = vunpack.c.l.b16 %v388
    %v3577 = vunpack.c.l.b16 %v389
    %v3578 = vunpack.c.l.b16 %v390
    %v3579 = vunpack.c.l.b16 %v391
    %v3580 = vunpack.c.l.b16 %v392
    %v3581 = vunpack.c.l.b16 %v393
    %v3582 = vunpack.c.l.b16 %v394
    %v3583 = vunpack.c.l.b16 %v395
    %v3584 = vunpack.c.l.b16 %v396
    %v3585 = vunpack.c.l.b16 %v397
    %v3586 = vunpack.c.l.b16 %v398
    %v3587 = vunpack.c.l.b16 %v399
    %v3588 = vunpack.c.l.b16 %v400
    %v3589 = vunpack.c.l.b16 %v401
    %v3590 = vunpack.c.l.b16 %v402
    %v3591 = vunpack.c.l.b16 %v403
    %v3592 = vunpack.c.l.b16 %v404
    %v3593 = vunpack.c.l.b16 %v405
    %v3594 = vunpack.c.l.b16 %v406
    %v3595 = vunpack.c.l.b16 %v407
    %v3596 = vunpack.c.l.b16 %v408
    %v3597 = vunpack.c.l.b16 %v409
    %v3598 = vunpack.c.l.b16 %v410
    %v3599 = vunpack.c.l.b16 %v411
    %v3600 = vunpack.c.l.b16 %v412
    %v3601 = vunpack.c.l.b16 %v413
    %v3602 = vunpack.c.l.b16 %v414
    %v3603 = vunpack.c.l.b16 %v415
    %v3604 = vunpack.c.l.b16 %v416
    %v3605 = vunpack.c.l.b16 %v417
    %v3606 = vunpack.c.l.b16 %v418
    %v3607 = vunpack.c.l.b16 %v419
    %v3608 = vunpack.c.l.b16 %v420
    %v3609 = vunpack.c.l.b16 %v421
    %v3610 = vunpack.c.l.b16 %v422
    %v3611 = vunpack.c.l.b16 %v423
    %v3612 = vunpack.c.l.b16 %v424
    %v3613 = vunpack.c.l.b16 %v425
    %v3614 = vunpack.c.l.b16 %v426
    %v3615 = vunpack.c.l.b16 %v427
    %v3616 = vunpack.c.l.b16 %v428
    %v3617 = vunpack.c.l.b16 %v429
    %v3618 = vunpack.c.l.b16 %v430
    %v3619 = vunpack.c.l.b16 %v431
    %v3620 = vunpack.c.l.b16 %v432
    %v3621 = vunpack.c.l.b16 %v433
    %v3622 = vunpack.c.l.b16 %v434
    %v3623 = vunpack.c.l.b16 %v435
    %v3624 = vunpack.c.l.b16 %v436
    %v3625 = vunpack.c.l.b16 %v437
    %v3626 = vunpack.c.l.b16 %v438
    %v3627 = vunpack.c.l.b16 %v439
    %v3628 = vunpack.c.l.b16 %v440
    %v3629 = vunpack.c.l.b16 %v441
    %v3630 = vunpack.c.l.b16 %v442
    %v3631 = vunpack.c.l.b16 %v443
    %v3632 = vunpack.c.l.b16 %v444
    %v3633 = vunpack.c.l.b16 %v445
    %v3634 = vunpack.c.l.b16 %v446
    %v3635 = vunpack.c.l.b16 %v447
    %v3636 = vunpack.c.l.b16 %v448
    %v3637 = vunpack.c.l.b16 %v449
    %v3638 = vunpack.c.l.b16 %v450
    %v3639 = vunpack.c.l.b16 %v451
    %v3640 = vunpack.c.l.b16 %v452
    %v3641 = vunpack.c.l.b16 %v453
    %v3642 = vunpack.c.l.b16 %v454
    %v3643 = vunpack.c.l.b16 %v455
    %v3644 = vunpack.c.l.b16 %v456
    %v3645 = vunpack.c.l.b16 %v457
    %v3646 = vunpack.c.l.b16 %v458
    %v3647 = vunpack.c.l.b16 %v459
    %v3648 = vunpack.c.l.b16 %v460
    %v3649 = vunpack.c.l.b16 %v461
    %v3650 = vunpack.c.l.b16 %v462
    %v3651 = vunpack.c.l.b16 %v463
    %v3652 = vunpack.c.l.b16 %v464
    %v3653 = vunpack.c.l.b16 %v465
    %v3654 = vunpack.c.l.b16 %v466
    %v3655 = vunpack.c.l.b16 %v467
    %v3656 = vunpack.c.l.b16 %v468
    %v3657 = vunpack.c.l.b16 %v469
    %v3658 = vunpack.c.l.b16 %v470
    %v3659 = vunpack.c.l.b16 %v471
    %v3660 = vunpack.c.l.b16 %v472
    %v3661 = vunpack.c.l.b16 %v473
    %v3662 = vunpack.c.l.b16 %v474
    %v3663 = vunpack.c.l.b16 %v475
    %v3664 = vunpack.c.l.b16 %v476
    %v3665 = vunpack.c.l.b16 %v477
    %v3666 = vunpack.c.l.b16 %v478
    %v3667 = vunpack.c.l.b16 %v479
    %v3668 = vunpack.c.l.b16 %v480
    %v3669 = vunpack.c.l.b16 %v481
    %v3670 = vunpack.c.l.b16 %v482
    %v3671 = vunpack.c.l.b16 %v483
    %v3672 = vunpack.c.l.b16 %v484
    %v3673 = vunpack.c.l.b16 %v485
    %v3674 = vunpack.c.l.b16 %v486
    %v3675 = vunpack.c.l.b16 %v487
    %v3676 = vunpack.c.l.b16 %v488
    %v3677 = vunpack.c.l.b16 %v489
    %v3678 = vunpack.c.l.b16 %v490
    %v3679 = vunpack.c.l.b16 %v491
    %v3680 = vunpack.c.l.b16 %v492
    %v3681 = vunpack.c.l.b16 %v493
    %v3682 = vunpack.c.l.b16 %v494
    %v3683 = vunpack.c.l.b16 %v495
    %v3684 = vunpack.c.l.b16 %v496
    %v3685 = vunpack.c.l.b16 %v497
    %v3686 = vunpack.c.l.b16 %v498
    %v3687 = vunpack.c.l.b16 %v499
    %v3688 = vunpack.c.l.b16 %v500
    %v3689 = vunpack.c.l.b16 %v501
    %v3690 = vunpack.c.l.b16 %v502
    %v3691 = vunpack.c.l.b16 %v503
    %v3692 = vunpack.c.l.b16 %v504
    %v3693 = vunpack.c.l.b16 %v505
    %v3694 = vunpack.c.l.b16 %v506
    %v3695 = vunpack.c.l.b16 %v507
    %v3696 = vunpack.c.l.b16 %v508
    %v3697 = vunpack.c.l.b16 %v509
    %v3698 = vunpack.c.l.b16 %v510
    %v3699 = vunpack.c.l.b16 %v511
    %v3700 = vunpack.c.l.b16 %v512
    %v3701 = vunpack.c.l.b16 %v513
    %v3702 = vunpack.c.l.b16 %v514
    %v3703 = vunpack.c.l.b16 %v515
    %v3704 = vunpack.c.l.b16 %v516
    %v3705 = vunpack.c.l.b16 %v517
    %v3706 = vunpack.c.l.b16 %v518
    %v3707 = vunpack.c.l.b16 %v519
    %v3708 = vunpack.c.l.b16 %v520
    %v3709 = vunpack.c.l.b16 %v521
    %v3710 = vunpack.c.l.b16 %v522
    %v3711 = vunpack.c.l.b16 %v523
    %v3712 = vunpack.c.l.b16 %v524
    %v3713 = vunpack.c.l.b16 %v525
    %v3714 = vunpack.c.l.b16 %v526
    %v3715 = vunpack.c.l.b16 %v527
    %v3716 = vunpack.c.l.b16 %v528
    %v3717 = vunpack.c.l.b16 %v529
    %v3718 = vunpack.c.l.b16 %v530
    %v3719 = vunpack.c.l.b16 %v531
    %v3720 = vunpack.c.l.b16 %v532
    %v3721 = vunpack.c.l.b16 %v533
    %v3722 = vunpack.c.l.b16 %v534
    %v3723 = vunpack.c.l.b16 %v535
    %v3724 = vunpack.c.l.b16 %v536
    %v3725 = vunpack.c.l.b16 %v537
    %v3726 = vunpack.c.l.b16 %v538
    %v3727 = vunpack.c.l.b16 %v539
    %v3728 = vunpack.c.l.b16 %v540
    %v3729 = vunpack.c.l.b16 %v541
    %v3730 = vunpack.c.l.b16 %v542
    %v3731 = vunpack.c.l.b16 %v543
    %v3732 = vunpack.c.l.b16 %v544
    %v3733 = vunpack.c.l.b16 %v545
    %v3734 = vunpack.c.l.b16 %v546
    %v3735 = vunpack.c.l.b16 %v547
    %v3736 = vunpack.c.l.b16 %v548
    %v3737 = vunpack.c.l.b16 %v549
    %v3738 = vunpack.c.l.b16 %v550
    %v3739 = vunpack.c.l.b16 %v551
    %v3740 = vunpack.c.l.b16 %v552
    %v3741 = vunpack.c.l.b16 %v553
    %v3742 = vunpack.c.l.b16 %v554
    %v3743 = vunpack.c.l.b16 %v555
    %v3744 = vunpack.c.l.b16 %v556
    %v3745 = vunpack.c.l.b16 %v557
    %v3746 = vunpack.c.l.b16 %v558
    %v3747 = vunpack.c.l.b16 %v559
    %v3748 = vunpack.c.l.b16 %v560
    %v3749 = vunpack.c.l.b16 %v561
    %v3750 = vunpack.c.l.b16 %v562
    %v3751 = vunpack.c.l.b16 %v563
    %v3752 = vunpack.c.l.b16 %v564
    %v3753 = vunpack.c.l.b16 %v565
    %v3754 = vunpack.c.l.b16 %v566
    %v3755 = vunpack.c.l.b16 %v567
    %v3756 = vunpack.c.l.b16 %v568
    %v3757 = vunpack.c.l.b16 %v569
    %v3758 = vunpack.c.l.b16 %v570
    %v3759 = vunpack.c.l.b16 %v571
    %v3760 = vunpack.c.l.b16 %v572
    %v3761 = vunpack.c.l.b16 %v573
    %v3762 = vunpack.c.l.b16 %v574
    %v3763 = vunpack.c.l.b16 %v575
    %v3764 = vunpack.c.l.b16 %v576
    %v3765 = vunpack.c.l.b16 %v577
    %v3766 = vunpack.c.l.b16 %v578
    %v3767 = vunpack.c.l.b16 %v579
    %v3768 = vunpack.c.l.b16 %v580
    %v3769 = vunpack.c.l.b16 %v581
    %v3770 = vunpack.c.l.b16 %v582
    %v3771 = vunpack.c.l.b16 %v583
    %v3772 = vunpack.c.l.b16 %v584
    %v3773 = vunpack.c.l.b16 %v585
    %v3774 = vunpack.c.l.b16 %v586
    %v3775 = vunpack.c.l.b16 %v587
    %v3776 = vunpack.c.l.b16 %v588
    %v3777 = vunpack.c.l.b16 %v589
    %v3778 = vunpack.c.l.b16 %v590
    %v3779 = vunpack.c.l.b16 %v591
    %v3780 = vunpack.c.l.b16 %v592
    %v3781 = vunpack.c.l.b16 %v593
    %v3782 = vunpack.c.l.b16 %v594
    %v3783 = vunpack.c.l.b16 %v595
    %v3784 = vunpack.c.l.b16 %v596
    %v3785 = vunpack.c.l.b16 %v597
    %v3786 = vunpack.c.l.b16 %v598
    %v3787 = vunpack.c.l.b16 %v599
    %v3788 = vunpack.c.l.b16 %v600
    %v3789 = vunpack.c.l.b16 %v601
    %v3790 = vunpack.c.l.b16 %v602
    %v3791 = vunpack.c.l.b16 %v603
    %v3792 = vunpack.c.l.b16 %v604
    %v3793 = vunpack.c.l.b16 %v605
    %v3794 = vunpack.c.l.b16 %v606
    %v3795 = vunpack.c.l.b16 %v607
    %v3796 = vunpack.c.l.b16 %v608
    %v3797 = vunpack.c.l.b16 %v609
    %v3798 = vunpack.c.l.b16 %v610
    %v3799 = vunpack.c.l.b16 %v611
    %v3800 = vunpack.c.l.b16 %v612
    %v3801 = vunpack.c.l.b16 %v613
    %v3802 = vunpack.c.l.b16 %v614
    %v3803 = vunpack.c.l.b16 %v615
    %v3804 = vunpack.c.l.b16 %v616
    %v3805 = vunpack.c.l.b16 %v617
    %v3806 = vunpack.c.l.b16 %v618
    %v3807 = vunpack.c.l.b16 %v619
    %v3808 = vunpack.c.l.b16 %v620
    %v3809 = vunpack.c.l.b16 %v621
    %v3810 = vunpack.c.l.b16 %v622
    %v3811 = vunpack.c.l.b16 %v623
    %v3812 = vunpack.c.l.b16 %v624
    %v3813 = vunpack.c.l.b16 %v625
    %v3814 = vunpack.c.l.b16 %v626
    %v3815 = vunpack.c.l.b16 %v627
    %v3816 = vunpack.c.l.b16 %v628
    %v3817 = vunpack.c.l.b16 %v629
    %v3818 = vunpack.c.l.b16 %v630
    %v3819 = vunpack.c.l.b16 %v631
    %v3820 = vunpack.c.l.b16 %v632
    %v3821 = vunpack.c.l.b16 %v633
    %v3822 = vunpack.c.l.b16 %v634
    %v3823 = vunpack.c.l.b16 %v635
    %v3824 = vunpack.c.l.b16 %v636
    %v3825 = vunpack.c.l.b16 %v637
    %v3826 = vunpack.c.l.b16 %v638
    %v3827 = vunpack.c.l.b16 %v639
    %v3828 = vunpack.c.l.b16 %v640
    %v3829 = vunpack.c.l.b16 %v641
    %v3830 = vunpack.c.l.b16 %v642
    %v3831 = vunpack.c.l.b16 %v643
    %v3832 = vunpack.c.l.b16 %v644
    %v3833 = vunpack.c.l.b16 %v645
    %v3834 = vunpack.c.l.b16 %v646
    %v3835 = vunpack.c.l.b16 %v647
    %v3836 = vunpack.c.l.b16 %v648
    %v3837 = vunpack.c.l.b16 %v649
    %v3838 = vunpack.c.l.b16 %v650
    %v3839 = vunpack.c.l.b16 %v651
    %v3840 = vunpack.c.l.b16 %v652
    %v3841 = vunpack.c.l.b16 %v653
    %v3842 = vunpack.c.l.b16 %v654
    %v3843 = vunpack.c.l.b16 %v655
    %v3844 = vunpack.c.l.b16 %v656
    %v3845 = vunpack.c.l.b16 %v657
    %v3846 = vunpack.c.l.b16 %v658
    %v3847 = vunpack.c.l.b16 %v659
    %v3848 = vunpack.c.l.b16 %v660
    %v3849 = vunpack.c.l.b16 %v661
    %v3850 = vunpack.c.l.b16 %v662
    %v3851 = vunpack.c.l.b16 %v663
    %v3852 = vunpack.c.l.b16 %v664
    %v3853 = vunpack.c.l.b16 %v665
    %v3854 = vunpack.c.l.b16 %v666
    %v3855 = vunpack.c.l.b16 %v667
    %v3856 = vunpack.c.l.b16 %v668
    %v3857 = vunpack.c.l.b16 %v669
    %v3858 = vunpack.c.l.b16 %v670
    %v3859 = vunpack.c.l.b16 %v671
    %v3860 = vunpack.c.l.b16 %v672
    %v3861 = vunpack.c.l.b16 %v673
    %v3862 = vunpack.c.l.b16 %v674
    %v3863 = vunpack.c.l.b16 %v675
    %v3864 = vunpack.c.l.b16 %v676
    %v3865 = vunpack.c.l.b16 %v677
    %v3866 = vunpack.c.l.b16 %v678
    %v3867 = vunpack.c.l.b16 %v679
    %v3868 = vunpack.c.l.b16 %v680
    %v3869 = vunpack.c.l.b16 %v681
    %v3870 = vunpack.c.l.b16 %v682
    %v3871 = vunpack.c.l.b16 %v683
    %v3872 = vunpack.c.l.b16 %v684
    %v3873 = vunpack.c.l.b16 %v685
    %v3874 = vunpack.c.l.b16 %v686
    %v3875 = vunpack.c.l.b16 %v687
    %v3876 = vunpack.c.l.b16 %v688
    %v3877 = vunpack.c.l.b16 %v689
    %v3878 = vunpack.c.l.b16 %v690
    %v3879 = vunpack.c.l.b16 %v691
    %v3880 = vunpack.c.l.b16 %v692
    %v3881 = vunpack.c.l.b16 %v693
    %v3882 = vunpack.c.l.b16 %v694
    %v3883 = vunpack.c.l.b16 %v695
    %v3884 = vunpack.c.l.b16 %v696
    %v3885 = vunpack.c.l.b16 %v697
    %v3886 = vunpack.c.l.b16 %v698
    %v3887 = vunpack.c.l.b16 %v699
    %v3888 = vunpack.c.l.b16 %v700
    %v3889 = vunpack.c.l.b16 %v701
    %v3890 = vunpack.c.l.b16 %v702
    %v3891 = vunpack.c.l.b16 %v703
    %v3892 = vunpack.c.l.b16 %v704
    %v3893 = vunpack.c.l.b16 %v705
    %v3894 = vunpack.c.l.b16 %v706
    %v3895 = vunpack.c.l.b16 %v707
    %v3896 = vunpack.c.l.b16 %v708
    %v3897 = vunpack.c.l.b16 %v709
    %v3898 = vunpack.c.l.b16 %v710
    %v3899 = vunpack.c.l.b16 %v711
    %v3900 = vunpack.c.l.b16 %v712
    %v3901 = vunpack.c.l.b16 %v713
    %v3902 = vunpack.c.l.b16 %v714
    %v3903 = vunpack.c.l.b16 %v715
    %v3904 = vunpack.c.l.b16 %v716
    %v3905 = vunpack.c.l.b16 %v717
    %v3906 = vunpack.c.l.b16 %v718
    %v3907 = vunpack.c.l.b16 %v719
    %v3908 = vunpack.c.l.b16 %v720
    %v3909 = vunpack.c.l.b16 %v721
    %v3910 = vunpack.c.l.b16 %v722
    %v3911 = vunpack.c.l.b16 %v723
    %v3912 = vunpack.c.l.b16 %v724
    %v3913 = vunpack.c.l.b16 %v725
    %v3914 = vunpack.c.l.b16 %v726
    %v3915 = vunpack.c.l.b16 %v727
    %v3916 = vunpack.c.l.b16 %v728
    %v3917 = vunpack.c.l.b16 %v729
    %v3918 = vunpack.c.l.b16 %v730
    %v3919 = vunpack.c.l.b16 %v731
    %v3920 = vunpack.c.l.b16 %v732
    %v3921 = vunpack.c.l.b16 %v733
    %v3922 = vunpack.c.l.b16 %v734
    %v3923 = vunpack.c.l.b16 %v735
    %v3924 = vunpack.c.l.b16 %v736
    %v3925 = vunpack.c.l.b16 %v737
    %v3926 = vunpack.c.l.b16 %v738
    %v3927 = vunpack.c.l.b16 %v739
    %v3928 = vunpack.c.l.b16 %v740
    %v3929 = vunpack.c.l.b16 %v741
    %v3930 = vunpack.c.l.b16 %v742
    %v3931 = vunpack.c.l.b16 %v743
    %v3932 = vunpack.c.l.b16 %v744
    %v3933 = vunpack.c.l.b16 %v745
    %v3934 = vunpack.c.l.b16 %v746
    %v3935 = vunpack.c.l.b16 %v747
    %v3936 = vunpack.c.l.b16 %v748
    %v3937 = vunpack.c.l.b16 %v749
    %v3938 = vunpack.c.l.b16 %v750
    %v3939 = vunpack.c.l.b16 %v751
    %v3940 = vunpack.c.l.b16 %v752
    %v3941 = vunpack.c.l.b16 %v753
    %v3942 = vunpack.c.l.b16 %v754
    %v3943 = vunpack.c.l.b16 %v755
    %v3944 = vunpack.c.l.b16 %v756
    %v3945 = vunpack.c.l.b16 %v757
    %v3946 = vunpack.c.l.b16 %v758
    %v3947 = vunpack.c.l.b16 %v759
    %v3948 = vunpack.c.l.b16 %v760
    %v3949 = vunpack.c.l.b16 %v761
    %v3950 = vunpack.c.l.b16 %v762
    %v3951 = vunpack.c.l.b16 %v763
    %v3952 = vunpack.c.l.b16 %v764
    %v3953 = vunpack.c.l.b16 %v765
    %v3954 = vunpack.c.l.b16 %v766
    %v3955 = vunpack.c.l.b16 %v767
    %v3956 = vunpack.c.l.b16 %v768
    %v3957 = vunpack.c.l.b16 %v769
    %v3958 = vunpack.c.l.b16 %v770
    %v3959 = vunpack.c.l.b16 %v771
    %v3960 = vunpack.c.l.b16 %v772
    %v3961 = vunpack.c.l.b16 %v773
    %v3962 = vunpack.c.l.b16 %v774
    %v3963 = vunpack.c.l.b16 %v775
    %v3964 = vunpack.c.l.b16 %v776
    %v3965 = vunpack.c.l.b16 %v777
    %v3966 = vunpack.c.l.b16 %v778
    %v3967 = vunpack.c.l.b16 %v779
    %v3968 = vunpack.c.l.b16 %v780
    %v3969 = vunpack.c.l.b16 %v781
    %v3970 = vunpack.c.l.b16 %v782
    %v3971 = vunpack.c.l.b16 %v783
    %v3972 = vunpack.c.l.b16 %v784
    %v3973 = vunpack.c.l.b16 %v785
    %v3974 = vunpack.c.l.b16 %v786
    %v3975 = vunpack.c.l.b16 %v787
    %v3976 = vunpack.c.l.b16 %v788
    %v3977 = vunpack.c.l.b16 %v789
    %v3978 = vunpack.c.l.b16 %v790
    %v3979 = vunpack.c.l.b16 %v791
    %v3980 = vunpack.c.l.b16 %v792
    %v3981 = vunpack.c.l.b16 %v793
    %v3982 = vunpack.c.l.b16 %v794
    %v3983 = vunpack.c.l.b16 %v795
    %v3984 = vunpack.c.l.b16 %v796
    %v3985 = vunpack.c.l.b16 %v797
    %v3986 = vunpack.c.l.b16 %v798
    %v3987 = vunpack.c.l.b16 %v799
    %v3988 = vunpack.c.l.b16 %v800
    %v3989 = vunpack.c.l.b16 %v801
    %v3990 = vunpack.c.l.b16 %v802
    %v3991 = vunpack.c.l.b16 %v803
    %v3992 = vunpack.c.l.b16 %v804
    %v3993 = vunpack.c.l.b16 %v805
    %v3994 = vunpack.c.l.b16 %v806
    %v3995 = vunpack.c.l.b16 %v807
    %v3996 = vunpack.c.l.b16 %v808
    %v3997 = vunpack.c.l.b16 %v809
    %v3998 = vunpack.c.l.b16 %v810
    %v3999 = vunpack.c.l.b16 %v811
    %v4000 = vunpack.c.l.b16 %v812
    %v4001 = vunpack.c.l.b16 %v813
    %v4002 = vunpack.c.l.b16 %v814
    %v4003 = vunpack.c.l.b16 %v815
    %v4004 = vunpack.c.l.b16 %v816
    %v4005 = vunpack.c.l.b16 %v817
    %v4006 = vunpack.c.l.b16 %v818
    %v4007 = vunpack.c.l.b16 %v819
    %v4008 = vunpack.c.l.b16 %v820
    %v4009 = vunpack.c.l.b16 %v821
    %v4010 = vunpack.c.l.b16 %v822
    %v4011 = vunpack.c.l.b16 %v823
    %v4012 = vunpack.c.l.b16 %v824
    %v4013 = vunpack.c.l.b16 %v825
    %v4014 = vunpack.c.l.b16 %v826
    %v4015 = vunpack.c.l.b16 %v827
    %v4016 = vunpack.c.l.b16 %v828
    %v4017 = vunpack.c.l.b16 %v829
    %v4018 = vunpack.c.l.b16 %v830
    %v4019 = vunpack.c.l.b16 %v831
    %v4020 = vunpack.c.l.b16 %v832
    %v4021 = vunpack.c.l.b16 %v833
    %v4022 = vunpack.c.l.b16 %v834
    %v4023 = vunpack.c.l.b16 %v835
    %v4024 = vunpack.c.l.b16 %v836
    %v4025 = vunpack.c.l.b16 %v837
    %v4026 = vunpack.c.l.b16 %v838
    %v4027 = vunpack.c.l.b16 %v839
    %v4028 = vunpack.c.l.b16 %v840
    %v4029 = vunpack.c.l.b16 %v841
    %v4030 = vunpack.c.l.b16 %v842
    %v4031 = vunpack.c.l.b16 %v843
    %v4032 = vunpack.c.l.b16 %v844
    %v4033 = vunpack.c.l.b16 %v845
    %v4034 = vunpack.c.l.b16 %v846
    %v4035 = vunpack.c.l.b16 %v847
    %v4036 = vunpack.c.l.b16 %v848
    %v4037 = vunpack.c.l.b16 %v849
    %v4038 = vunpack.c.l.b16 %v850
    %v4039 = vunpack.c.l.b16 %v851
    %v4040 = vunpack.c.l.b16 %v852
    %v4041 = vunpack.c.l.b16 %v853
    %v4042 = vunpack.c.l.b16 %v854
    %v4043 = vunpack.c.l.b16 %v855
    %v4044 = vunpack.c.l.b16 %v856
    %v4045 = vunpack.c.l.b16 %v857
    %v4046 = vunpack.c.l.b16 %v858
    %v4047 = vunpack.c.l.b16 %v859
    %v4048 = vunpack.c.l.b16 %v860
    %v4049 = vunpack.c.l.b16 %v861
    %v4050 = vunpack.c.l.b16 %v862
    %v4051 = vunpack.c.l.b16 %v863
    %v4052 = vunpack.c.l.b16 %v864
    %v4053 = vunpack.c.l.b16 %v865
    %v4054 = vunpack.c.l.b16 %v866
    %v4055 = vunpack.c.l.b16 %v867
    %v4056 = vunpack.c.l.b16 %v868
    %v4057 = vunpack.c.l.b16 %v869
    %v4058 = vunpack.c.l.b16 %v870
    %v4059 = vunpack.c.l.b16 %v871
    %v4060 = vunpack.c.l.b16 %v872
    %v4061 = vunpack.c.l.b16 %v873
    %v4062 = vunpack.c.l.b16 %v874
    %v4063 = vunpack.c.l.b16 %v875
    %v4064 = vunpack.c.l.b16 %v876
    %v4065 = vunpack.c.l.b16 %v877
    %v4066 = vunpack.c.l.b16 %v878
    %v4067 = vunpack.c.l.b16 %v879
    %v4068 = vunpack.c.l.b16 %v880
    %v4069 = vunpack.c.l.b16 %v881
    %v4070 = vunpack.c.l.b16 %v882
    %v4071 = vunpack.c.l.b16 %v883
    %v4072 = vunpack.c.l.b16 %v884
    %v4073 = vunpack.c.l.b16 %v885
    %v4074 = vunpack.c.l.b16 %v886
    %v4075 = vunpack.c.l.b16 %v887
    %v4076 = vunpack.c.l.b16 %v888
    %v4077 = vunpack.c.l.b16 %v889
    %v4078 = vunpack.c.l.b16 %v890
    %v4079 = vunpack.c.l.b16 %v891
    %v4080 = vunpack.c.l.b16 %v892
    %v4081 = vunpack.c.l.b16 %v893
    %v4082 = vunpack.c.l.b16 %v894
    %v4083 = vunpack.c.l.b16 %v895
    %v4084 = vunpack.c.l.b16 %v896
    %v4085 = vunpack.c.l.b16 %v897
    %v4086 = vunpack.c.l.b16 %v898
    %v4087 = vunpack.c.l.b16 %v899
    %v4088 = vunpack.c.l.b16 %v900
    %v4089 = vunpack.c.l.b16 %v901
    %v4090 = vunpack.c.l.b16 %v902
    %v4091 = vunpack.c.l.b16 %v903
    %v4092 = vunpack.c.l.b16 %v904
    %v4093 = vunpack.c.l.b16 %v905
    %v4094 = vunpack.c.l.b16 %v906
    %v4095 = vunpack.c.l.b16 %v907
    %v4096 = vunpack.c.l.b16 %v908
    %v4097 = vunpack.c.l.b16 %v909
    %v4098 = vunpack.c.l.b16 %v910
    %v4099 = vunpack.c.l.b16 %v911
    %v4100 = vunpack.c.l.b16 %v912
    %v4101 = vunpack.c.l.b16 %v913
    %v4102 = vunpack.c.l.b16 %v914
    %v4103 = vunpack.c.l.b16 %v915
    %v4104 = vunpack.c.l.b16 %v916
    %v4105 = vunpack.c.l.b16 %v917
    %v4106 = vunpack.c.l.b16 %v918
    %v4107 = vunpack.c.l.b16 %v919
    %v4108 = vunpack.c.l.b16 %v920
    %v4109 = vunpack.c.l.b16 %v921
    %v4110 = vunpack.c.l.b16 %v922
    %v4111 = vunpack.c.l.b16 %v923
    %v4112 = vunpack.c.l.b16 %v924
    %v4113 = vunpack.c.l.b16 %v925
    %v4114 = vunpack.c.l.b16 %v926
    %v4115 = vunpack.c.l.b16 %v927
    %v4116 = vunpack.c.l.b16 %v928
    %v4117 = vunpack.c.l.b16 %v929
    %v4118 = vunpack.c.l.b16 %v930
    %v4119 = vunpack.c.l.b16 %v931
    %v4120 = vunpack.c.l.b16 %v932
    %v4121 = vunpack.c.l.b16 %v933
    %v4122 = vunpack.c.l.b16 %v934
    %v4123 = vunpack.c.l.b16 %v935
    %v4124 = vunpack.c.l.b16 %v936
    %v4125 = vunpack.c.l.b16 %v937
    %v4126 = vunpack.c.l.b16 %v938
    %v4127 = vunpack.c.l.b16 %v939
    %v4128 = vunpack.c.l.b16 %v940
    %v4129 = vunpack.c.l.b16 %v941
    %v4130 = vunpack.c.l.b16 %v942
    %v4131 = vunpack.c.l.b16 %v943
    %v4132 = vunpack.c.l.b16 %v944
    %v4133 = vunpack.c.l.b16 %v945
    %v4134 = vunpack.c.l.b16 %v946
    %v4135 = vunpack.c.l.b16 %v947
    %v4136 = vunpack.c.l.b16 %v948
    %v4137 = vunpack.c.l.b16 %v949
    %v4138 = vunpack.c.l.b16 %v950
    %v4139 = vunpack.c.l.b16 %v951
    %v4140 = vunpack.c.l.b16 %v952
    %v4141 = vunpack.c.l.b16 %v953
    %v4142 = vunpack.c.l.b16 %v954
    %v4143 = vunpack.c.l.b16 %v955
    %v4144 = vunpack.c.l.b16 %v956
    %v4145 = vunpack.c.l.b16 %v957
    %v4146 = vunpack.c.l.b16 %v958
    %v4147 = vunpack.c.l.b16 %v959
    %v4148 = vunpack.c.l.b16 %v960
    %v4149 = vunpack.c.l.b16 %v961
    %v4150 = vunpack.c.l.b16 %v962
    %v4151 = vunpack.c.l.b16 %v963
    %v4152 = vunpack.c.l.b16 %v964
    %v4153 = vunpack.c.l.b16 %v965
    %v4154 = vunpack.c.l.b16 %v966
    %v4155 = vunpack.c.l.b16 %v967
    %v4156 = vunpack.c.l.b16 %v968
    %v4157 = vunpack.c.l.b16 %v969
    %v4158 = vunpack.c.l.b16 %v970
    %v4159 = vunpack.c.l.b16 %v971
    %v4160 = vunpack.c.l.b16 %v972
    %v4161 = vunpack.c.l.b16 %v973
    %v4162 = vunpack.c.l.b16 %v974
    %v4163 = vunpack.c.l.b16 %v975
    %v4164 = vunpack.c.l.b16 %v976
    %v4165 = vunpack.c.l.b16 %v977
    %v4166 = vunpack.c.l.b16 %v978
    %v4167 = vunpack.c.l.b16 %v979
    %v4168 = vunpack.c.l.b16 %v980
    %v4169 = vunpack.c.l.b16 %v981
    %v4170 = vunpack.c.l.b16 %v982
    %v4171 = vunpack.c.l.b16 %v983
    %v4172 = vunpack.c.l.b16 %v984
    %v4173 = vunpack.c.l.b16 %v985
    %v4174 = vunpack.c.l.b16 %v986
    %v4175 = vunpack.c.l.b16 %v987
    %v4176 = vunpack.c.l.b16 %v988
    %v4177 = vunpack.c.l.b16 %v989
    %v4178 = vunpack.c.l.b16 %v990
    %v4179 = vunpack.c.l.b16 %v991
    %v4180 = vunpack.c.l.b16 %v992
    %v4181 = vunpack.c.l.b16 %v993
    %v4182 = vunpack.c.l.b16 %v994
    %v4183 = vunpack.c.l.b16 %v995
    %v4184 = vunpack.c.l.b16 %v996
    %v4185 = vunpack.c.l.b16 %v997
    %v4186 = vunpack.c.l.b16 %v998
    %v4187 = vunpack.c.l.b16 %v999
    %v4188 = vunpack.c.l.b16 %v1000
    %v4189 = vunpack.c.l.b16 %v1001
    %v4190 = vunpack.c.l.b16 %v1002
    %v4191 = vunpack.c.l.b16 %v1003
    %v4192 = vunpack.c.l.b16 %v1004
    %v4193 = vunpack.c.l.b16 %v1005
    %v4194 = vunpack.c.l.b16 %v1006
    %v4195 = vunpack.c.l.b16 %v1007
    %v4196 = vunpack.c.l.b16 %v1008
    %v4197 = vunpack.c.l.b16 %v1009
    %v4198 = vunpack.c.l.b16 %v1010
    %v4199 = vunpack.c.l.b16 %v1011
    %v4200 = vunpack.c.l.b16 %v1012
    %v4201 = vunpack.c.l.b16 %v1013
    %v4202 = vunpack.c.l.b16 %v1014
    %v4203 = vunpack.c.l.b16 %v1015
    %v4204 = vunpack.c.l.b16 %v1016
    %v4205 = vunpack.c.l.b16 %v1017
    %v4206 = vunpack.c.l.b16 %v1018
    %v4207 = vunpack.c.l.b16 %v1019
    %v4208 = vunpack.c.l.b16 %v1020
    %v4209 = vunpack.c.l.b16 %v1021
    %v4210 = vunpack.c.l.b16 %v1022
    %v4211 = vunpack.c.l.b16 %v1023
    %v4212 = vunpack.c.l.b16 %v1024
    %v4213 = vunpack.c.l.b16 %v1025
    %v4214 = vunpack.c.l.b16 %v1026
    %v4215 = vunpack.c.l.b16 %v1027
    %v4216 = vunpack.c.l.b16 %v1028
    %v4217 = vunpack.c.l.b16 %v1029
    %v4218 = vunpack.c.l.b16 %v1030
    %v4219 = vunpack.c.l.b16 %v1031
    %v4220 = vunpack.c.l.b16 %v1032
    %v4221 = vunpack.c.l.b16 %v1033
    %v4222 = vunpack.c.l.b16 %v1034
    %v4223 = vunpack.c.l.b16 %v1035
    %v4224 = vunpack.c.l.b16 %v1036
    %v4225 = vunpack.c.l.b16 %v1037
    %v4226 = vunpack.c.l.b16 %v1038
    %v4227 = vunpack.c.l.b16 %v1039
    %v4228 = vunpack.c.l.b16 %v1040
    %v4229 = vunpack.c.l.b16 %v1041
    %v4230 = vunpack.c.l.b16 %v1042
    %v4231 = vunpack.c.l.b16 %v1043
    %v4232 = vunpack.c.l.b16 %v1044
    %v4233 = vunpack.c.l.b16 %v1045
    %v4234 = vunpack.c.l.b16 %v1046
    %v4235 = vunpack.c.l.b16 %v1047
    %v4236 = vunpack.c.l.b16 %v1048
    %v4237 = vunpack.c.l.b16 %v1049
    %v4238 = vunpack.c.l.b16 %v1050
    %v4239 = vunpack.c.l.b16 %v1051
    %v4240 = vunpack.c.l.b16 %v1052
    %v4241 = vunpack.c.l.b16 %v1053
    %v4242 = vunpack.c.l.b16 %v1054
    %v4243 = vunpack.c.l.b16 %v1055
    %v4244 = vunpack.c.l.b16 %v1056
    %v4245 = vunpack.c.l.b16 %v1057
    %v4246 = vunpack.c.l.b16 %v1058
    %v4247 = vunpack.c.l.b16 %v1059
    %v4248 = vunpack.c.l.b16 %v1060
    %v4249 = vunpack.c.l.b16 %v1061
    %v4250 = vunpack.c.l.b16 %v1062
    %v4251 = vunpack.c.l.b16 %v1063
    %v4252 = vunpack.c.l.b16 %v1064
    %v4253 = vunpack.c.l.b16 %v1065
    %v4254 = vunpack.c.l.b16 %v1066
    %v4255 = vunpack.c.l.b16 %v1067
    %v4256 = vunpack.c.l.b16 %v1068
    %v4257 = vunpack.c.l.b16 %v1069
    %v4258 = vunpack.c.l.b16 %v1070
    %v4259 = vunpack.c.l.b16 %v1071
    %v4260 = vunpack.c.l.b16 %v1072
    %v4261 = vunpack.c.l.b16 %v1073
    %v4262 = vunpack.c.l.b16 %v1074
    %v4263 = vunpack.c.l.b16 %v1075
    %v4264 = vunpack.c.l.b16 %v1076
    %v4265 = vunpack.c.l.b16 %v1077
    %v4266 = vunpack.c.l.b16 %v1078
    %v4267 = vunpack.c.l.b16 %v1079
    %v4268 = vunpack.c.l.b16 %v1080
    %v4269 = vunpack.c.l.b16 %v1081
    %v4270 = vunpack.c.l.b16 %v1082
    %v4271 = vunpack.c.l.b16 %v1083
    %v4272 = vunpack.c.l.b16 %v1084
    %v4273 = vunpack.c.l.b16 %v1085
    %v4274 = vunpack.c.l.b16 %v1086
    %v4275 = vunpack.c.l.b16 %v1087
    %v4276 = vunpack.c.l.b16 %v1088
    %v4277 = vunpack.c.l.b16 %v1089
    %v4278 = vunpack.c.l.b16 %v1090
    %v4279 = vunpack.c.l.b16 %v1091
    %v4280 = vunpack.c.l.b16 %v1092
    %v4281 = vunpack.c.l.b16 %v1093
    %v4282 = vunpack.c.l.b16 %v1094
    %v4283 = vunpack.c.l.b16 %v1095
    %v4284 = vunpack.c.l.b16 %v1096
    %v4285 = vunpack.c.l.b16 %v1097
    %v4286 = vunpack.c.l.b16 %v1098
    %v4287 = vunpack.c.l.b16 %v1099
    %v4288 = vunpack.c.l.b16 %v1100
    %v4289 = vunpack.c.l.b16 %v1101
    %v4290 = vunpack.c.l.b16 %v1102
    %v4291 = vunpack.c.l.b16 %v1103
    %v4292 = vunpack.c.l.b16 %v1104
    %v4293 = vunpack.c.l.b16 %v1105
    %v4294 = vunpack.c.l.b16 %v1106
    %v4295 = vunpack.c.l.b16 %v1107
    %v4296 = vunpack.c.l.b16 %v1108
    %v4297 = vunpack.c.l.b16 %v1109
    %v4298 = vunpack.c.l.b16 %v1110
    %v4299 = vunpack.c.l.b16 %v1111
    %v4300 = vunpack.c.l.b16 %v1112
    %v4301 = vunpack.c.l.b16 %v1113
    %v4302 = vunpack.c.l.b16 %v1114
    %v4303 = vunpack.c.l.b16 %v1115
    %v4304 = vunpack.c.l.b16 %v1116
    %v4305 = vunpack.c.l.b16 %v1117
    %v4306 = vunpack.c.l.b16 %v1118
    %v4307 = vunpack.c.l.b16 %v1119
    %v4308 = vunpack.c.l.b16 %v1120
    %v4309 = vunpack.c.l.b16 %v1121
    %v4310 = vunpack.c.l.b16 %v1122
    %v4311 = vunpack.c.l.b16 %v1123
    %v4312 = vunpack.c.l.b16 %v1124
    %v4313 = vunpack.c.l.b16 %v1125
    %v4314 = vunpack.c.l.b16 %v1126
    %v4315 = vunpack.c.l.b16 %v1127
    %v4316 = vunpack.c.l.b16 %v1128
    %v4317 = vunpack.c.l.b16 %v1129
    %v4318 = vunpack.c.l.b16 %v1130
    %v4319 = vunpack.c.l.b16 %v1131
    %v4320 = vunpack.c.l.b16 %v1132
    %v4321 = vunpack.c.l.b16 %v1133
    %v4322 = vunpack.c.l.b16 %v1134
    %v4323 = vunpack.c.l.b16 %v1135
    %v4324 = vunpack.c.l.b16 %v1136
    %v4325 = vunpack.c.l.b16 %v1137
    %v4326 = vunpack.c.l.b16 %v1138
    %v4327 = vunpack.c.l.b16 %v1139
    %v4328 = vunpack.c.l.b16 %v1140
    %v4329 = vunpack.c.l.b16 %v1141
    %v4330 = vunpack.c.l.b16 %v1142
    %v4331 = vunpack.c.l.b16 %v1143
    %v4332 = vunpack.c.l.b16 %v1144
    %v4333 = vunpack.c.l.b16 %v1145
    %v4334 = vunpack.c.l.b16 %v1146
    %v4335 = vunpack.c.l.b16 %v1147
    %v4336 = vunpack.c.l.b16 %v1148
    %v4337 = vunpack.c.l.b16 %v1149
    %v4338 = vunpack.c.l.b16 %v1150
    %v4339 = vunpack.c.l.b16 %v1151
    %v4340 = vunpack.c.l.b16 %v1152
    %v4341 = vunpack.c.l.b16 %v1153
    %v4342 = vunpack.c.l.b16 %v1154
    %v4343 = vunpack.c.l.b16 %v1155
    %v4344 = vunpack.c.l.b16 %v1156
    %v4345 = vunpack.c.l.b16 %v1157
    %v4346 = vunpack.c.l.b16 %v1158
    %v4347 = vunpack.c.l.b16 %v1159
    %v4348 = vunpack.c.l.b16 %v1160
    %v4349 = vunpack.c.l.b16 %v1161
    %v4350 = vunpack.c.l.b16 %v1162
    %v4351 = vunpack.c.l.b16 %v1163
    %v4352 = vunpack.c.l.b16 %v1164
    %v4353 = vunpack.c.l.b16 %v1165
    %v4354 = vunpack.c.l.b16 %v1166
    %v4355 = vunpack.c.l.b16 %v1167
    %v4356 = vunpack.c.l.b16 %v1168
    %v4357 = vunpack.c.l.b16 %v1169
    %v4358 = vunpack.c.l.b16 %v1170
    %v4359 = vunpack.c.l.b16 %v1171
    %v4360 = vunpack.c.l.b16 %v1172
    %v4361 = vunpack.c.l.b16 %v1173
    %v4362 = vunpack.c.l.b16 %v1174
    %v4363 = vunpack.c.l.b16 %v1175
    %v4364 = vunpack.c.l.b16 %v1176
    %v4365 = vunpack.c.l.b16 %v1177
    %v4366 = vunpack.c.l.b16 %v1178
    %v4367 = vunpack.c.l.b16 %v1179
    %v4368 = vunpack.c.l.b16 %v1180
    %v4369 = vunpack.c.l.b16 %v1181
    %v4370 = vunpack.c.l.b16 %v1182
    %v4371 = vunpack.c.l.b16 %v1183
    %v4372 = vunpack.c.l.b16 %v1184
    %v4373 = vunpack.c.l.b16 %v1185
    %v4374 = vunpack.c.l.b16 %v1186
    %v4375 = vunpack.c.l.b16 %v1187
    %v4376 = vunpack.c.l.b16 %v1188
    %v4377 = vunpack.c.l.b16 %v1189
    %v4378 = vunpack.c.l.b16 %v1190
    %v4379 = vunpack.c.l.b16 %v1191
    %v4380 = vunpack.c.l.b16 %v1192
    %v4381 = vunpack.c.l.b16 %v1193
    %v4382 = vunpack.c.l.b16 %v1194
    %v4383 = vunpack.c.l.b16 %v1195
    %v4384 = vunpack.c.l.b16 %v1196
    %v4385 = vunpack.c.l.b16 %v1197
    %v4386 = vunpack.c.l.b16 %v1198
    %v4387 = vunpack.c.l.b16 %v1199
    %v4388 = vunpack.c.l.b16 %v1200
    %v4389 = vunpack.c.l.b16 %v1201
    %v4390 = vunpack.c.l.b16 %v1202
    %v4391 = vunpack.c.l.b16 %v1203
    %v4392 = vunpack.c.l.b16 %v1204
    %v4393 = vunpack.c.l.b16 %v1205
    %v4394 = vunpack.c.l.b16 %v1206
    %v4395 = vunpack.c.l.b16 %v1207
    %v4396 = vunpack.c.l.b16 %v1208
    %v4397 = vunpack.c.l.b16 %v1209
    %v4398 = vunpack.c.l.b16 %v1210
    %v4399 = vunpack.c.l.b16 %v1211
    %v4400 = vunpack.c.l.b16 %v1212
    %v4401 = vunpack.c.l.b16 %v1213
    %v4402 = vunpack.c.l.b16 %v1214
    %v4403 = vunpack.c.l.b16 %v1215
    %v4404 = vunpack.c.l.b16 %v1216
    %v4405 = vunpack.c.l.b16 %v1217
    %v4406 = vunpack.c.l.b16 %v1218
    %v4407 = vunpack.c.l.b16 %v1219
    %v4408 = vunpack.c.l.b16 %v1220
    %v4409 = vunpack.c.l.b16 %v1221
    %v4410 = vunpack.c.l.b16 %v1222
    %v4411 = vunpack.c.l.b16 %v1223
    %v4412 = vunpack.c.l.b16 %v1224
    %v4413 = vunpack.c.l.b16 %v1225
    %v4414 = vunpack.c.l.b16 %v1226
    %v4415 = vunpack.c.l.b16 %v1227
    %v4416 = vunpack.c.l.b16 %v1228
    %v4417 = vunpack.c.l.b16 %v1229
    %v4418 = vunpack.c.l.b16 %v1230
    %v4419 = vunpack.c.l.b16 %v1231
    %v4420 = vunpack.c.l.b16 %v1232
    %v4421 = vunpack.c.l.b16 %v1233
    %v4422 = vunpack.c.l.b16 %v1234
    %v4423 = vunpack.c.l.b16 %v1235
    %v4424 = vunpack.c.l.b16 %v1236
    %v4425 = vunpack.c.l.b16 %v1237
    %v4426 = vunpack.c.l.b16 %v1238
    %v4427 = vunpack.c.l.b16 %v1239
    %v4428 = vunpack.c.l.b16 %v1240
    %v4429 = vunpack.c.l.b16 %v1241
    %v4430 = vunpack.c.l.b16 %v1242
    %v4431 = vunpack.c.l.b16 %v1243
    %v4432 = vunpack.c.l.b16 %v1244
    %v4433 = vunpack.c.l.b16 %v1245
    %v4434 = vunpack.c.l.b16 %v1246
    %v4435 = vunpack.c.l.b16 %v1247
    %v4436 = vunpack.c.l.b16 %v1248
    %v4437 = vunpack.c.l.b16 %v1249
    %v4438 = vunpack.c.l.b16 %v1250
    %v4439 = vunpack.c.l.b16 %v1251
    %v4440 = vunpack.c.l.b16 %v1252
    %v4441 = vunpack.c.l.b16 %v1253
    %v4442 = vunpack.c.l.b16 %v1254
    %v4443 = vunpack.c.l.b16 %v1255
    %v4444 = vunpack.c.l.b16 %v1256
    %v4445 = vunpack.c.l.b16 %v1257
    %v4446 = vunpack.c.l.b16 %v1258
    %v4447 = vunpack.c.l.b16 %v1259
    %v4448 = vunpack.c.l.b16 %v1260
    %v4449 = vunpack.c.l.b16 %v1261
    %v4450 = vunpack.c.l.b16 %v1262
    %v4451 = vunpack.c.l.b16 %v1263
    %v4452 = vunpack.c.l.b16 %v1264
    %v4453 = vunpack.c.l.b16 %v1265
    %v4454 = vunpack.c.l.b16 %v1266
    %v4455 = vunpack.c.l.b16 %v1267
    %v4456 = vunpack.c.l.b16 %v1268
    %v4457 = vunpack.c.l.b16 %v1269
    %v4458 = vunpack.c.l.b16 %v1270
    %v4459 = vunpack.c.l.b16 %v1271
    %v4460 = vunpack.c.l.b16 %v1272
    %v4461 = vunpack.c.l.b16 %v1273
    %v4462 = vunpack.c.l.b16 %v1274
    %v4463 = vunpack.c.l.b16 %v1275
    %v4464 = vunpack.c.l.b16 %v1276
    %v4465 = vunpack.c.l.b16 %v1277
    %v4466 = vunpack.c.l.b16 %v1278
    %v4467 = vunpack.c.l.b16 %v1279
    %v4468 = vunpack.c.l.b16 %v1280
    %v4469 = vunpack.c.l.b16 %v1281
    %v4470 = vunpack.c.l.b16 %v1282
    %v4471 = vunpack.c.l.b16 %v1283
    %v4472 = vunpack.c.l.b16 %v1284
    %v4473 = vunpack.c.l.b16 %v1285
    %v4474 = vunpack.c.l.b16 %v1286
    %v4475 = vunpack.c.l.b16 %v1287
    %v4476 = vunpack.c.l.b16 %v1288
    %v4477 = vunpack.c.l.b16 %v1289
    %v4478 = vunpack.c.l.b16 %v1290
    %v4479 = vunpack.c.l.b16 %v1291
    %v4480 = vunpack.c.l.b16 %v1292
    %v4481 = vunpack.c.l.b16 %v1293
    %v4482 = vunpack.c.l.b16 %v1294
    %v4483 = vunpack.c.l.b16 %v1295
    %v4484 = vunpack.c.l.b16 %v1296
    %v4485 = vunpack.c.l.b16 %v1297
    %v4486 = vunpack.c.l.b16 %v1298
    %v4487 = vunpack.c.l.b16 %v1299
    %v4488 = vunpack.c.l.b16 %v1300
    %v4489 = vunpack.c.l.b16 %v1301
    %v4490 = vunpack.c.l.b16 %v1302
    %v4491 = vunpack.c.l.b16 %v1303
    %v4492 = vunpack.c.l.b16 %v1304
    %v4493 = vunpack.c.l.b16 %v1305
    %v4494 = vunpack.c.l.b16 %v1306
    %v4495 = vunpack.c.l.b16 %v1307
    %v4496 = vunpack.c.l.b16 %v1308
    %v4497 = vunpack.c.l.b16 %v1309
    %v4498 = vunpack.c.l.b16 %v1310
    %v4499 = vunpack.c.l.b16 %v1311
    %v4500 = vunpack.c.l.b16 %v1312
    %v4501 = vunpack.c.l.b16 %v1313
    %v4502 = vunpack.c.l.b16 %v1314
    %v4503 = vunpack.c.l.b16 %v1315
    %v4504 = vunpack.c.l.b16 %v1316
    %v4505 = vunpack.c.l.b16 %v1317
    %v4506 = vunpack.c.l.b16 %v1318
    %v4507 = vunpack.c.l.b16 %v1319
    %v4508 = vunpack.c.l.b16 %v1320
    %v4509 = vunpack.c.l.b16 %v1321
    %v4510 = vunpack.c.l.b16 %v1322
    %v4511 = vunpack.c.l.b16 %v1323
    %v4512 = vunpack.c.l.b16 %v1324
    %v4513 = vunpack.c.l.b16 %v1325
    %v4514 = vunpack.c.l.b16 %v1326
    %v4515 = vunpack.c.l.b16 %v1327
    %v4516 = vunpack.c.l.b16 %v1328
    %v4517 = vunpack.c.l.b16 %v1329
    %v4518 = vpack.c.b16 %v3223, %v3222
    %v4519 = vpack.c.b16 %v3225, %v3224
    %v4520 = vpack.c.b16 %v3227, %v3226
    %v4521 = vpack.c.b16 %v3229, %v3228
    %v4522 = vpack.c.b16 %v3231, %v3230
    %v4523 = vpack.c.b16 %v3233, %v3232
    %v4524 = vpack.c.b16 %v3235, %v3234
    %v4525 = vpack.c.b16 %v3237, %v3236
    %v4526 = vpack.c.b16 %v3239, %v3238
    %v4527 = vpack.c.b16 %v3241, %v3240
    %v4528 = vpack.c.b16 %v3243, %v3242
    %v4529 = vpack.c.b16 %v3245, %v3244
    %v4530 = vpack.c.b16 %v3247, %v3246
    %v4531 = vpack.c.b16 %v3249, %v3248
    %v4532 = vpack.c.b16 %v3251, %v3250
    %v4533 = vpack.c.b16 %v3253, %v3252
    %v4534 = vpack.c.b16 %v3255, %v3254
    %v4535 = vpack.c.b16 %v3257, %v3256
    %v4536 = vpack.c.b16 %v3259, %v3258
    %v4537 = vpack.c.b16 %v3261, %v3260
    %v4538 = vpack.c.b16 %v3263, %v3262
    %v4539 = vpack.c.b16 %v3265, %v3264
    %v4540 = vpack.c.b16 %v3267, %v3266
    %v4541 = vpack.c.b16 %v3269, %v3268
    %v4542 = vpack.c.b16 %v3271, %v3270
    %v4543 = vpack.c.b16 %v3273, %v3272
    %v4544 = vpack.c.b16 %v3275, %v3274
    %v4545 = vpack.c.b16 %v3277, %v3276
    %v4546 = vpack.c.b16 %v3279, %v3278
    %v4547 = vpack.c.b16 %v3281, %v3280
    %v4548 = vpack.c.b16 %v3283, %v3282
    %v4549 = vpack.c.b16 %v3285, %v3284
    %v4550 = vpack.c.b16 %v3287, %v3286
    %v4551 = vpack.c.b16 %v3289, %v3288
    %v4552 = vpack.c.b16 %v3291, %v3290
    %v4553 = vpack.c.b16 %v3293, %v3292
    %v4554 = vpack.c.b16 %v3295, %v3294
    %v4555 = vpack.c.b16 %v3297, %v3296
    %v4556 = vpack.c.b16 %v3299, %v3298
    %v4557 = vpack.c.b16 %v3301, %v3300
    %v4558 = vpack.c.b16 %v3303, %v3302
    %v4559 = vpack.c.b16 %v3305, %v3304
    %v4560 = vpack.c.b16 %v3307, %v3306
    %v4561 = vpack.c.b16 %v3309, %v3308
    %v4562 = vpack.c.b16 %v3311, %v3310
    %v4563 = vpack.c.b16 %v3313, %v3312
    %v4564 = vpack.c.b16 %v3315, %v3314
    %v4565 = vpack.c.b16 %v3317, %v3316
    %v4566 = vpack.c.b16 %v3319, %v3318
    %v4567 = vpack.c.b16 %v3321, %v3320
    %v4568 = vpack.c.b16 %v3323, %v3322
    %v4569 = vpack.c.b16 %v3325, %v3324
    %v4570 = vpack.c.b16 %v3327, %v3326
    %v4571 = vpack.c.b16 %v3329, %v3328
    %v4572 = vpack.c.b16 %v3331, %v3330
    %v4573 = vpack.c.b16 %v3333, %v3332
    %v4574 = vpack.c.b16 %v3335, %v3334
    %v4575 = vpack.c.b16 %v3337, %v3336
    %v4576 = vpack.c.b16 %v3339, %v3338
    %v4577 = vpack.c.b16 %v3341, %v3340
    %v4578 = vpack.c.b16 %v3343, %v3342
    %v4579 = vpack.c.b16 %v3345, %v3344
    %v4580 = vpack.c.b16 %v3347, %v3346
    %v4581 = vpack.c.b16 %v3349, %v3348
    %v4582 = vpack.c.b16 %v3351, %v3350
    %v4583 = vpack.c.b16 %v3353, %v3352
    %v4584 = vpack.c.b16 %v3355, %v3354
    %v4585 = vpack.c.b16 %v3357, %v3356
    %v4586 = vpack.c.b16 %v3359, %v3358
    %v4587 = vpack.c.b16 %v3361, %v3360
    %v4588 = vpack.c.b16 %v3363, %v3362
    %v4589 = vpack.c.b16 %v3365, %v3364
    %v4590 = vpack.c.b16 %v3367, %v3366
    %v4591 = vpack.c.b16 %v3369, %v3368
    %v4592 = vpack.c.b16 %v3371, %v3370
    %v4593 = vpack.c.b16 %v3373, %v3372
    %v4594 = vpack.c.b16 %v3375, %v3374
    %v4595 = vpack.c.b16 %v3377, %v3376
    %v4596 = vpack.c.b16 %v3379, %v3378
    %v4597 = vpack.c.b16 %v3381, %v3380
    %v4598 = vpack.c.b16 %v3383, %v3382
    %v4599 = vpack.c.b16 %v3385, %v3384
    %v4600 = vpack.c.b16 %v3387, %v3386
    %v4601 = vpack.c.b16 %v3389, %v3388
    %v4602 = vpack.c.b16 %v3391, %v3390
    %v4603 = vpack.c.b16 %v3393, %v3392
    %v4604 = vpack.c.b16 %v3395, %v3394
    %v4605 = vpack.c.b16 %v3397, %v3396
    %v4606 = vpack.c.b16 %v3399, %v3398
    %v4607 = vpack.c.b16 %v3401, %v3400
    %v4608 = vpack.c.b16 %v3403, %v3402
    %v4609 = vpack.c.b16 %v3405, %v3404
    %v4610 = vpack.c.b16 %v3407, %v3406
    %v4611 = vpack.c.b16 %v3409, %v3408
    %v4612 = vpack.c.b16 %v3411, %v3410
    %v4613 = vpack.c.b16 %v3413, %v3412
    %v4614 = vpack.c.b16 %v3415, %v3414
    %v4615 = vpack.c.b16 %v3417, %v3416
    %v4616 = vpack.c.b16 %v3419, %v3418
    %v4617 = vpack.c.b16 %v3421, %v3420
    %v4618 = vpack.c.b16 %v3423, %v3422
    %v4619 = vpack.c.b16 %v3425, %v3424
    %v4620 = vpack.c.b16 %v3427, %v3426
    %v4621 = vpack.c.b16 %v3429, %v3428
    %v4622 = vpack.c.b16 %v3431, %v3430
    %v4623 = vpack.c.b16 %v3433, %v3432
    %v4624 = vpack.c.b16 %v3435, %v3434
    %v4625 = vpack.c.b16 %v3437, %v3436
    %v4626 = vpack.c.b16 %v3439, %v3438
    %v4627 = vpack.c.b16 %v3441, %v3440
    %v4628 = vpack.c.b16 %v3443, %v3442
    %v4629 = vpack.c.b16 %v3445, %v3444
    %v4630 = vpack.c.b16 %v3447, %v3446
    %v4631 = vpack.c.b16 %v3449, %v3448
    %v4632 = vpack.c.b16 %v3451, %v3450
    %v4633 = vpack.c.b16 %v3453, %v3452
    %v4634 = vpack.c.b16 %v3455, %v3454
    %v4635 = vpack.c.b16 %v3457, %v3456
    %v4636 = vpack.c.b16 %v3459, %v3458
    %v4637 = vpack.c.b16 %v3461, %v3460
    %v4638 = vpack.c.b16 %v3463, %v3462
    %v4639 = vpack.c.b16 %v3465, %v3464
    %v4640 = vpack.c.b16 %v3467, %v3466
    %v4641 = vpack.c.b16 %v3469, %v3468
    %v4642 = vpack.c.b16 %v3471, %v3470
    %v4643 = vpack.c.b16 %v3473, %v3472
    %v4644 = vpack.c.b16 %v3475, %v3474
    %v4645 = vpack.c.b16 %v3477, %v3476
    %v4646 = vpack.c.b16 %v3479, %v3478
    %v4647 = vpack.c.b16 %v3481, %v3480
    %v4648 = vpack.c.b16 %v3483, %v3482
    %v4649 = vpack.c.b16 %v3485, %v3484
    %v4650 = vpack.c.b16 %v3487, %v3486
    %v4651 = vpack.c.b16 %v3489, %v3488
    %v4652 = vpack.c.b16 %v3491, %v3490
    %v4653 = vpack.c.b16 %v3493, %v3492
    %v4654 = vpack.c.b16 %v3495, %v3494
    %v4655 = vpack.c.b16 %v3497, %v3496
    %v4656 = vpack.c.b16 %v3499, %v3498
    %v4657 = vpack.c.b16 %v3501, %v3500
    %v4658 = vpack.c.b16 %v3503, %v3502
    %v4659 = vpack.c.b16 %v3505, %v3504
    %v4660 = vpack.c.b16 %v3507, %v3506
    %v4661 = vpack.c.b16 %v3509, %v3508
    %v4662 = vpack.c.b16 %v3511, %v3510
    %v4663 = vpack.c.b16 %v3513, %v3512
    %v4664 = vpack.c.b16 %v3515, %v3514
    %v4665 = vpack.c.b16 %v3517, %v3516
    %v4666 = vpack.c.b16 %v3519, %v3518
    %v4667 = vpack.c.b16 %v3521, %v3520
    %v4668 = vpack.c.b16 %v3523, %v3522
    %v4669 = vpack.c.b16 %v3525, %v3524
    %v4670 = vpack.c.b16 %v3527, %v3526
    %v4671 = vpack.c.b16 %v3529, %v3528
    %v4672 = vpack.c.b16 %v3531, %v3530
    %v4673 = vpack.c.b16 %v3533, %v3532
    %v4674 = vpack.c.b16 %v3535, %v3534
    %v4675 = vpack.c.b16 %v3537, %v3536
    %v4676 = vpack.c.b16 %v3539, %v3538
    %v4677 = vpack.c.b16 %v3541, %v3540
    %v4678 = vpack.c.b16 %v3543, %v3542
    %v4679 = vpack.c.b16 %v3545, %v3544
    %v4680 = vpack.c.b16 %v3547, %v3546
    %v4681 = vpack.c.b16 %v3549, %v3548
    %v4682 = vpack.c.b16 %v3551, %v3550
    %v4683 = vpack.c.b16 %v3553, %v3552
    %v4684 = vpack.c.b16 %v3555, %v3554
    %v4685 = vpack.c.b16 %v3557, %v3556
    %v4686 = vpack.c.b16 %v3559, %v3558
    %v4687 = vpack.c.b16 %v3561, %v3560
    %v4688 = vpack.c.b16 %v3563, %v3562
    %v4689 = vpack.c.b16 %v3565, %v3564
    %v4690 = vpack.c.b16 %v3567, %v3566
    %v4691 = vpack.c.b16 %v3569, %v3568
    %v4692 = vpack.c.b16 %v3571, %v3570
    %v4693 = vpack.c.b16 %v3573, %v3572
    %v4694 = vpack.c.b16 %v3575, %v3574
    %v4695 = vpack.c.b16 %v3577, %v3576
    %v4696 = vpack.c.b16 %v3579, %v3578
    %v4697 = vpack.c.b16 %v3581, %v3580
    %v4698 = vpack.c.b16 %v3583, %v3582
    %v4699 = vpack.c.b16 %v3585, %v3584
    %v4700 = vpack.c.b16 %v3587, %v3586
    %v4701 = vpack.c.b16 %v3589, %v3588
    %v4702 = vpack.c.b16 %v3591, %v3590
    %v4703 = vpack.c.b16 %v3593, %v3592
    %v4704 = vpack.c.b16 %v3595, %v3594
    %v4705 = vpack.c.b16 %v3597, %v3596
    %v4706 = vpack.c.b16 %v3599, %v3598
    %v4707 = vpack.c.b16 %v3601, %v3600
    %v4708 = vpack.c.b16 %v3603, %v3602
    %v4709 = vpack.c.b16 %v3605, %v3604
    %v4710 = vpack.c.b16 %v3607, %v3606
    %v4711 = vpack.c.b16 %v3609, %v3608
    %v4712 = vpack.c.b16 %v3611, %v3610
    %v4713 = vpack.c.b16 %v3613, %v3612
    %v4714 = vpack.c.b16 %v3615, %v3614
    %v4715 = vpack.c.b16 %v3617, %v3616
    %v4716 = vpack.c.b16 %v3619, %v3618
    %v4717 = vpack.c.b16 %v3621, %v3620
    %v4718 = vpack.c.b16 %v3623, %v3622
    %v4719 = vpack.c.b16 %v3625, %v3624
    %v4720 = vpack.c.b16 %v3627, %v3626
    %v4721 = vpack.c.b16 %v3629, %v3628
    %v4722 = vpack.c.b16 %v3631, %v3630
    %v4723 = vpack.c.b16 %v3633, %v3632
    %v4724 = vpack.c.b16 %v3635, %v3634
    %v4725 = vpack.c.b16 %v3637, %v3636
    %v4726 = vpack.c.b16 %v3639, %v3638
    %v4727 = vpack.c.b16 %v3641, %v3640
    %v4728 = vpack.c.b16 %v3643, %v3642
    %v4729 = vpack.c.b16 %v3645, %v3644
    %v4730 = vpack.c.b16 %v3647, %v3646
    %v4731 = vpack.c.b16 %v3649, %v3648
    %v4732 = vpack.c.b16 %v3651, %v3650
    %v4733 = vpack.c.b16 %v3653, %v3652
    %v4734 = vpack.c.b16 %v3655, %v3654
    %v4735 = vpack.c.b16 %v3657, %v3656
    %v4736 = vpack.c.b16 %v3659, %v3658
    %v4737 = vpack.c.b16 %v3661, %v3660
    %v4738 = vpack.c.b16 %v3663, %v3662
    %v4739 = vpack.c.b16 %v3665, %v3664
    %v4740 = vpack.c.b16 %v3667, %v3666
    %v4741 = vpack.c.b16 %v3669, %v3668
    %v4742 = vpack.c.b16 %v3671, %v3670
    %v4743 = vpack.c.b16 %v3673, %v3672
    %v4744 = vpack.c.b16 %v3675, %v3674
    %v4745 = vpack.c.b16 %v3677, %v3676
    %v4746 = vpack.c.b16 %v3679, %v3678
    %v4747 = vpack.c.b16 %v3681, %v3680
    %v4748 = vpack.c.b16 %v3683, %v3682
    %v4749 = vpack.c.b16 %v3685, %v3684
    %v4750 = vpack.c.b16 %v3687, %v3686
    %v4751 = vpack.c.b16 %v3689, %v3688
    %v4752 = vpack.c.b16 %v3691, %v3690
    %v4753 = vpack.c.b16 %v3693, %v3692
    %v4754 = vpack.c.b16 %v3695, %v3694
    %v4755 = vpack.c.b16 %v3697, %v3696
    %v4756 = vpack.c.b16 %v3699, %v3698
    %v4757 = vpack.c.b16 %v3701, %v3700
    %v4758 = vpack.c.b16 %v3703, %v3702
    %v4759 = vpack.c.b16 %v3705, %v3704
    %v4760 = vpack.c.b16 %v3707, %v3706
    %v4761 = vpack.c.b16 %v3709, %v3708
    %v4762 = vpack.c.b16 %v3711, %v3710
    %v4763 = vpack.c.b16 %v3713, %v3712
    %v4764 = vpack.c.b16 %v3715, %v3714
    %v4765 = vpack.c.b16 %v3717, %v3716
    %v4766 = vpack.c.b16 %v3719, %v3718
    %v4767 = vpack.c.b16 %v3721, %v3720
    %v4768 = vpack.c.b16 %v3723, %v3722
    %v4769 = vpack.c.b16 %v3725, %v3724
    %v4770 = vpack.c.b16 %v3727, %v3726
    %v4771 = vpack.c.b16 %v3729, %v3728
    %v4772 = vpack.c.b16 %v3731, %v3730
    %v4773 = vpack.c.b16 %v3733, %v3732
    %v4774 = vpack.c.b16 %v3735, %v3734
    %v4775 = vpack.c.b16 %v3737, %v3736
    %v4776 = vpack.c.b16 %v3739, %v3738
    %v4777 = vpack.c.b16 %v3741, %v3740
    %v4778 = vpack.c.b16 %v3743, %v3742
    %v4779 = vpack.c.b16 %v3745, %v3744
    %v4780 = vpack.c.b16 %v3747, %v3746
    %v4781 = vpack.c.b16 %v3749, %v3748
    %v4782 = vpack.c.b16 %v3751, %v3750
    %v4783 = vpack.c.b16 %v3753, %v3752
    %v4784 = vpack.c.b16 %v3755, %v3754
    %v4785 = vpack.c.b16 %v3757, %v3756
    %v4786 = vpack.c.b16 %v3759, %v3758
    %v4787 = vpack.c.b16 %v3761, %v3760
    %v4788 = vpack.c.b16 %v3763, %v3762
    %v4789 = vpack.c.b16 %v3765, %v3764
    %v4790 = vpack.c.b16 %v3767, %v3766
    %v4791 = vpack.c.b16 %v3769, %v3768
    %v4792 = vpack.c.b16 %v3771, %v3770
    %v4793 = vpack.c.b16 %v3773, %v3772
    %v4794 = vpack.c.b16 %v3775, %v3774
    %v4795 = vpack.c.b16 %v3777, %v3776
    %v4796 = vpack.c.b16 %v3779, %v3778
    %v4797 = vpack.c.b16 %v3781, %v3780
    %v4798 = vpack.c.b16 %v3783, %v3782
    %v4799 = vpack.c.b16 %v3785, %v3784
    %v4800 = vpack.c.b16 %v3787, %v3786
    %v4801 = vpack.c.b16 %v3789, %v3788
    %v4802 = vpack.c.b16 %v3791, %v3790
    %v4803 = vpack.c.b16 %v3793, %v3792
    %v4804 = vpack.c.b16 %v3795, %v3794
    %v4805 = vpack.c.b16 %v3797, %v3796
    %v4806 = vpack.c.b16 %v3799, %v3798
    %v4807 = vpack.c.b16 %v3801, %v3800
    %v4808 = vpack.c.b16 %v3803, %v3802
    %v4809 = vpack.c.b16 %v3805, %v3804
    %v4810 = vpack.c.b16 %v3807, %v3806
    %v4811 = vpack.c.b16 %v3809, %v3808
    %v4812 = vpack.c.b16 %v3811, %v3810
    %v4813 = vpack.c.b16 %v3813, %v3812
    %v4814 = vpack.c.b16 %v3815, %v3814
    %v4815 = vpack.c.b16 %v3817, %v3816
    %v4816 = vpack.c.b16 %v3819, %v3818
    %v4817 = vpack.c.b16 %v3821, %v3820
    %v4818 = vpack.c.b16 %v3823, %v3822
    %v4819 = vpack.c.b16 %v3825, %v3824
    %v4820 = vpack.c.b16 %v3827, %v3826
    %v4821 = vpack.c.b16 %v3829, %v3828
    %v4822 = vpack.c.b16 %v3831, %v3830
    %v4823 = vpack.c.b16 %v3833, %v3832
    %v4824 = vpack.c.b16 %v3835, %v3834
    %v4825 = vpack.c.b16 %v3837, %v3836
    %v4826 = vpack.c.b16 %v3839, %v3838
    %v4827 = vpack.c.b16 %v3841, %v3840
    %v4828 = vpack.c.b16 %v3843, %v3842
    %v4829 = vpack.c.b16 %v3845, %v3844
    %v4830 = vpack.c.b16 %v3847, %v3846
    %v4831 = vpack.c.b16 %v3849, %v3848
    %v4832 = vpack.c.b16 %v3851, %v3850
    %v4833 = vpack.c.b16 %v3853, %v3852
    %v4834 = vpack.c.b16 %v3855, %v3854
    %v4835 = vpack.c.b16 %v3857, %v3856
    %v4836 = vpack.c.b16 %v3859, %v3858
    %v4837 = vpack.c.b16 %v3861, %v3860
    %v4838 = vpack.c.b16 %v3863, %v3862
    %v4839 = vpack.c.b16 %v3865, %v3864
    %v4840 = vpack.c.b16 %v3867, %v3866
    %v4841 = vpack.c.b16 %v3869, %v3868
    %v4842 = vpack.c.b16 %v3871, %v3870
    %v4843 = vpack.c.b16 %v3873, %v3872
    %v4844 = vpack.c.b16 %v3875, %v3874
    %v4845 = vpack.c.b16 %v3877, %v3876
    %v4846 = vpack.c.b16 %v3879, %v3878
    %v4847 = vpack.c.b16 %v3881, %v3880
    %v4848 = vpack.c.b16 %v3883, %v3882
    %v4849 = vpack.c.b16 %v3885, %v3884
    %v4850 = vpack.c.b16 %v3887, %v3886
    %v4851 = vpack.c.b16 %v3889, %v3888
    %v4852 = vpack.c.b16 %v3891, %v3890
    %v4853 = vpack.c.b16 %v3893, %v3892
    %v4854 = vpack.c.b16 %v3895, %v3894
    %v4855 = vpack.c.b16 %v3897, %v3896
    %v4856 = vpack.c.b16 %v3899, %v3898
    %v4857 = vpack.c.b16 %v3901, %v3900
    %v4858 = vpack.c.b16 %v3903, %v3902
    %v4859 = vpack.c.b16 %v3905, %v3904
    %v4860 = vpack.c.b16 %v3907, %v3906
    %v4861 = vpack.c.b16 %v3909, %v3908
    %v4862 = vpack.c.b16 %v3911, %v3910
    %v4863 = vpack.c.b16 %v3913, %v3912
    %v4864 = vpack.c.b16 %v3915, %v3914
    %v4865 = vpack.c.b16 %v3917, %v3916
    %v4866 = vpack.c.b16 %v3919, %v3918
    %v4867 = vpack.c.b16 %v3921, %v3920
    %v4868 = vpack.c.b16 %v3923, %v3922
    %v4869 = vpack.c.b16 %v3925, %v3924
    %v4870 = vpack.c.b16 %v3927, %v3926
    %v4871 = vpack.c.b16 %v3929, %v3928
    %v4872 = vpack.c.b16 %v3931, %v3930
    %v4873 = vpack.c.b16 %v3933, %v3932
    %v4874 = vpack.c.b16 %v3935, %v3934
    %v4875 = vpack.c.b16 %v3937, %v3936
    %v4876 = vpack.c.b16 %v3939, %v3938
    %v4877 = vpack.c.b16 %v3941, %v3940
    %v4878 = vpack.c.b16 %v3943, %v3942
    %v4879 = vpack.c.b16 %v3945, %v3944
    %v4880 = vpack.c.b16 %v3947, %v3946
    %v4881 = vpack.c.b16 %v3949, %v3948
    %v4882 = vpack.c.b16 %v3951, %v3950
    %v4883 = vpack.c.b16 %v3953, %v3952
    %v4884 = vpack.c.b16 %v3955, %v3954
    %v4885 = vpack.c.b16 %v3957, %v3956
    %v4886 = vpack.c.b16 %v3959, %v3958
    %v4887 = vpack.c.b16 %v3961, %v3960
    %v4888 = vpack.c.b16 %v3963, %v3962
    %v4889 = vpack.c.b16 %v3965, %v3964
    %v4890 = vpack.c.b16 %v3967, %v3966
    %v4891 = vpack.c.b16 %v3969, %v3968
    %v4892 = vpack.c.b16 %v3971, %v3970
    %v4893 = vpack.c.b16 %v3973, %v3972
    %v4894 = vpack.c.b16 %v3975, %v3974
    %v4895 = vpack.c.b16 %v3977, %v3976
    %v4896 = vpack.c.b16 %v3979, %v3978
    %v4897 = vpack.c.b16 %v3981, %v3980
    %v4898 = vpack.c.b16 %v3983, %v3982
    %v4899 = vpack.c.b16 %v3985, %v3984
    %v4900 = vpack.c.b16 %v3987, %v3986
    %v4901 = vpack.c.b16 %v3989, %v3988
    %v4902 = vpack.c.b16 %v3991, %v3990
    %v4903 = vpack.c.b16 %v3993, %v3992
    %v4904 = vpack.c.b16 %v3995, %v3994
    %v4905 = vpack.c.b16 %v3997, %v3996
    %v4906 = vpack.c.b16 %v3999, %v3998
    %v4907 = vpack.c.b16 %v4001, %v4000
    %v4908 = vpack.c.b16 %v4003, %v4002
    %v4909 = vpack.c.b16 %v4005, %v4004
    %v4910 = vpack.c.b16 %v4007, %v4006
    %v4911 = vpack.c.b16 %v4009, %v4008
    %v4912 = vpack.c.b16 %v4011, %v4010
    %v4913 = vpack.c.b16 %v4013, %v4012
    %v4914 = vpack.c.b16 %v4015, %v4014
    %v4915 = vpack.c.b16 %v4017, %v4016
    %v4916 = vpack.c.b16 %v4019, %v4018
    %v4917 = vpack.c.b16 %v4021, %v4020
    %v4918 = vpack.c.b16 %v4023, %v4022
    %v4919 = vpack.c.b16 %v4025, %v4024
    %v4920 = vpack.c.b16 %v4027, %v4026
    %v4921 = vpack.c.b16 %v4029, %v4028
    %v4922 = vpack.c.b16 %v4031, %v4030
    %v4923 = vpack.c.b16 %v4033, %v4032
    %v4924 = vpack.c.b16 %v4035, %v4034
    %v4925 = vpack.c.b16 %v4037, %v4036
    %v4926 = vpack.c.b16 %v4039, %v4038
    %v4927 = vpack.c.b16 %v4041, %v4040
    %v4928 = vpack.c.b16 %v4043, %v4042
    %v4929 = vpack.c.b16 %v4045, %v4044
    %v4930 = vpack.c.b16 %v4047, %v4046
    %v4931 = vpack.c.b16 %v4049, %v4048
    %v4932 = vpack.c.b16 %v4051, %v4050
    %v4933 = vpack.c.b16 %v4053, %v4052
    %v4934 = vpack.c.b16 %v4055, %v4054
    %v4935 = vpack.c.b16 %v4057, %v4056
    %v4936 = vpack.c.b16 %v4059, %v4058
    %v4937 = vpack.c.b16 %v4061, %v4060
    %v4938 = vpack.c.b16 %v4063, %v4062
    %v4939 = vpack.c.b16 %v4065, %v4064
    %v4940 = vpack.c.b16 %v4067, %v4066
    %v4941 = vpack.c.b16 %v4069, %v4068
    %v4942 = vpack.c.b16 %v4071, %v4070
    %v4943 = vpack.c.b16 %v4073, %v4072
    %v4944 = vpack.c.b16 %v4075, %v4074
    %v4945 = vpack.c.b16 %v4077, %v4076
    %v4946 = vpack.c.b16 %v4079, %v4078
    %v4947 = vpack.c.b16 %v4081, %v4080
    %v4948 = vpack.c.b16 %v4083, %v4082
    %v4949 = vpack.c.b16 %v4085, %v4084
    %v4950 = vpack.c.b16 %v4087, %v4086
    %v4951 = vpack.c.b16 %v4089, %v4088
    %v4952 = vpack.c.b16 %v4091, %v4090
    %v4953 = vpack.c.b16 %v4093, %v4092
    %v4954 = vpack.c.b16 %v4095, %v4094
    %v4955 = vpack.c.b16 %v4097, %v4096
    %v4956 = vpack.c.b16 %v4099, %v4098
    %v4957 = vpack.c.b16 %v4101, %v4100
    %v4958 = vpack.c.b16 %v4103, %v4102
    %v4959 = vpack.c.b16 %v4105, %v4104
    %v4960 = vpack.c.b16 %v4107, %v4106
    %v4961 = vpack.c.b16 %v4109, %v4108
    %v4962 = vpack.c.b16 %v4111, %v4110
    %v4963 = vpack.c.b16 %v4113, %v4112
    %v4964 = vpack.c.b16 %v4115, %v4114
    %v4965 = vpack.c.b16 %v4117, %v4116
    %v4966 = vpack.c.b16 %v4119, %v4118
    %v4967 = vpack.c.b16 %v4121, %v4120
    %v4968 = vpack.c.b16 %v4123, %v4122
    %v4969 = vpack.c.b16 %v4125, %v4124
    %v4970 = vpack.c.b16 %v4127, %v4126
    %v4971 = vpack.c.b16 %v4129, %v4128
    %v4972 = vpack.c.b16 %v4131, %v4130
    %v4973 = vpack.c.b16 %v4133, %v4132
    %v4974 = vpack.c.b16 %v4135, %v4134
    %v4975 = vpack.c.b16 %v4137, %v4136
    %v4976 = vpack.c.b16 %v4139, %v4138
    %v4977 = vpack.c.b16 %v4141, %v4140
    %v4978 = vpack.c.b16 %v4143, %v4142
    %v4979 = vpack.c.b16 %v4145, %v4144
    %v4980 = vpack.c.b16 %v4147, %v4146
    %v4981 = vpack.c.b16 %v4149, %v4148
    %v4982 = vpack.c.b16 %v4151, %v4150
    %v4983 = vpack.c.b16 %v4153, %v4152
    %v4984 = vpack.c.b16 %v4155, %v4154
    %v4985 = vpack.c.b16 %v4157, %v4156
    %v4986 = vpack.c.b16 %v4159, %v4158
    %v4987 = vpack.c.b16 %v4161, %v4160
    %v4988 = vpack.c.b16 %v4163, %v4162
    %v4989 = vpack.c.b16 %v4165, %v4164
    %v4990 = vpack.c.b16 %v4167, %v4166
    %v4991 = vpack.c.b16 %v4169, %v4168
    %v4992 = vpack.c.b16 %v4171, %v4170
    %v4993 = vpack.c.b16 %v4173, %v4172
    %v4994 = vpack.c.b16 %v4175, %v4174
    %v4995 = vpack.c.b16 %v4177, %v4176
    %v4996 = vpack.c.b16 %v4179, %v4178
    %v4997 = vpack.c.b16 %v4181, %v4180
    %v4998 = vpack.c.b16 %v4183, %v4182
    %v4999 = vpack.c.b16 %v4185, %v4184
    %v5000 = vpack.c.b16 %v4187, %v4186
    %v5001 = vpack.c.b16 %v4189, %v4188
    %v5002 = vpack.c.b16 %v4191, %v4190
    %v5003 = vpack.c.b16 %v4193, %v4192
    %v5004 = vpack.c.b16 %v4195, %v4194
    %v5005 = vpack.c.b16 %v4197, %v4196
    %v5006 = vpack.c.b16 %v4199, %v4198
    %v5007 = vpack.c.b16 %v4201, %v4200
    %v5008 = vpack.c.b16 %v4203, %v4202
    %v5009 = vpack.c.b16 %v4205, %v4204
    %v5010 = vpack.c.b16 %v4207, %v4206
    %v5011 = vpack.c.b16 %v4209, %v4208
    %v5012 = vpack.c.b16 %v4211, %v4210
    %v5013 = vpack.c.b16 %v4213, %v4212
    %v5014 = vpack.c.b16 %v4215, %v4214
    %v5015 = vpack.c.b16 %v4217, %v4216
    %v5016 = vpack.c.b16 %v4219, %v4218
    %v5017 = vpack.c.b16 %v4221, %v4220
    %v5018 = vpack.c.b16 %v4223, %v4222
    %v5019 = vpack.c.b16 %v4225, %v4224
    %v5020 = vpack.c.b16 %v4227, %v4226
    %v5021 = vpack.c.b16 %v4229, %v4228
    %v5022 = vpack.c.b16 %v4231, %v4230
    %v5023 = vpack.c.b16 %v4233, %v4232
    %v5024 = vpack.c.b16 %v4235, %v4234
    %v5025 = vpack.c.b16 %v4237, %v4236
    %v5026 = vpack.c.b16 %v4239, %v4238
    %v5027 = vpack.c.b16 %v4241, %v4240
    %v5028 = vpack.c.b16 %v4243, %v4242
    %v5029 = vpack.c.b16 %v4245, %v4244
    %v5030 = vpack.c.b16 %v4247, %v4246
    %v5031 = vpack.c.b16 %v4249, %v4248
    %v5032 = vpack.c.b16 %v4251, %v4250
    %v5033 = vpack.c.b16 %v4253, %v4252
    %v5034 = vpack.c.b16 %v4255, %v4254
    %v5035 = vpack.c.b16 %v4257, %v4256
    %v5036 = vpack.c.b16 %v4259, %v4258
    %v5037 = vpack.c.b16 %v4261, %v4260
    %v5038 = vpack.c.b16 %v4263, %v4262
    %v5039 = vpack.c.b16 %v4265, %v4264
    %v5040 = vpack.c.b16 %v4267, %v4266
    %v5041 = vpack.c.b16 %v4269, %v4268
    %v5042 = vpack.c.b16 %v4271, %v4270
    %v5043 = vpack.c.b16 %v4273, %v4272
    %v5044 = vpack.c.b16 %v4275, %v4274
    %v5045 = vpack.c.b16 %v4277, %v4276
    %v5046 = vpack.c.b16 %v4279, %v4278
    %v5047 = vpack.c.b16 %v4281, %v4280
    %v5048 = vpack.c.b16 %v4283, %v4282
    %v5049 = vpack.c.b16 %v4285, %v4284
    %v5050 = vpack.c.b16 %v4287, %v4286
    %v5051 = vpack.c.b16 %v4289, %v4288
    %v5052 = vpack.c.b16 %v4291, %v4290
    %v5053 = vpack.c.b16 %v4293, %v4292
    %v5054 = vpack.c.b16 %v4295, %v4294
    %v5055 = vpack.c.b16 %v4297, %v4296
    %v5056 = vpack.c.b16 %v4299, %v4298
    %v5057 = vpack.c.b16 %v4301, %v4300
    %v5058 = vpack.c.b16 %v4303, %v4302
    %v5059 = vpack.c.b16 %v4305, %v4304
    %v5060 = vpack.c.b16 %v4307, %v4306
    %v5061 = vpack.c.b16 %v4309, %v4308
    %v5062 = vpack.c.b16 %v4311, %v4310
    %v5063 = vpack.c.b16 %v4313, %v4312
    %v5064 = vpack.c.b16 %v4315, %v4314
    %v5065 = vpack.c.b16 %v4317, %v4316
    %v5066 = vpack.c.b16 %v4319, %v4318
    %v5067 = vpack.c.b16 %v4321, %v4320
    %v5068 = vpack.c.b16 %v4323, %v4322
    %v5069 = vpack.c.b16 %v4325, %v4324
    %v5070 = vpack.c.b16 %v4327, %v4326
    %v5071 = vpack.c.b16 %v4329, %v4328
    %v5072 = vpack.c.b16 %v4331, %v4330
    %v5073 = vpack.c.b16 %v4333, %v4332
    %v5074 = vpack.c.b16 %v4335, %v4334
    %v5075 = vpack.c.b16 %v4337, %v4336
    %v5076 = vpack.c.b16 %v4339, %v4338
    %v5077 = vpack.c.b16 %v4341, %v4340
    %v5078 = vpack.c.b16 %v4343, %v4342
    %v5079 = vpack.c.b16 %v4345, %v4344
    %v5080 = vpack.c.b16 %v4347, %v4346
    %v5081 = vpack.c.b16 %v4349, %v4348
    %v5082 = vpack.c.b16 %v4351, %v4350
    %v5083 = vpack.c.b16 %v4353, %v4352
    %v5084 = vpack.c.b16 %v4355, %v4354
    %v5085 = vpack.c.b16 %v4357, %v4356
    %v5086 = vpack.c.b16 %v4359, %v4358
    %v5087 = vpack.c.b16 %v4361, %v4360
    %v5088 = vpack.c.b16 %v4363, %v4362
    %v5089 = vpack.c.b16 %v4365, %v4364
    %v5090 = vpack.c.b16 %v4367, %v4366
    %v5091 = vpack.c.b16 %v4369, %v4368
    %v5092 = vpack.c.b16 %v4371, %v4370
    %v5093 = vpack.c.b16 %v4373, %v4372
    %v5094 = vpack.c.b16 %v4375, %v4374
    %v5095 = vpack.c.b16 %v4377, %v4376
    %v5096 = vpack.c.b16 %v4379, %v4378
    %v5097 = vpack.c.b16 %v4381, %v4380
    %v5098 = vpack.c.b16 %v4383, %v4382
    %v5099 = vpack.c.b16 %v4385, %v4384
    %v5100 = vpack.c.b16 %v4387, %v4386
    %v5101 = vpack.c.b16 %v4389, %v4388
    %v5102 = vpack.c.b16 %v4391, %v4390
    %v5103 = vpack.c.b16 %v4393, %v4392
    %v5104 = vpack.c.b16 %v4395, %v4394
    %v5105 = vpack.c.b16 %v4397, %v4396
    %v5106 = vpack.c.b16 %v4399, %v4398
    %v5107 = vpack.c.b16 %v4401, %v4400
    %v5108 = vpack.c.b16 %v4403, %v4402
    %v5109 = vpack.c.b16 %v4405, %v4404
    %v5110 = vpack.c.b16 %v4407, %v4406
    %v5111 = vpack.c.b16 %v4409, %v4408
    %v5112 = vpack.c.b16 %v4411, %v4410
    %v5113 = vpack.c.b16 %v4413, %v4412
    %v5114 = vpack.c.b16 %v4415, %v4414
    %v5115 = vpack.c.b16 %v4417, %v4416
    %v5116 = vpack.c.b16 %v4419, %v4418
    %v5117 = vpack.c.b16 %v4421, %v4420
    %v5118 = vpack.c.b16 %v4423, %v4422
    %v5119 = vpack.c.b16 %v4425, %v4424
    %v5120 = vpack.c.b16 %v4427, %v4426
    %v5121 = vpack.c.b16 %v4429, %v4428
    %v5122 = vpack.c.b16 %v4431, %v4430
    %v5123 = vpack.c.b16 %v4433, %v4432
    %v5124 = vpack.c.b16 %v4435, %v4434
    %v5125 = vpack.c.b16 %v4437, %v4436
    %v5126 = vpack.c.b16 %v4439, %v4438
    %v5127 = vpack.c.b16 %v4441, %v4440
    %v5128 = vpack.c.b16 %v4443, %v4442
    %v5129 = vpack.c.b16 %v4445, %v4444
    %v5130 = vpack.c.b16 %v4447, %v4446
    %v5131 = vpack.c.b16 %v4449, %v4448
    %v5132 = vpack.c.b16 %v4451, %v4450
    %v5133 = vpack.c.b16 %v4453, %v4452
    %v5134 = vpack.c.b16 %v4455, %v4454
    %v5135 = vpack.c.b16 %v4457, %v4456
    %v5136 = vpack.c.b16 %v4459, %v4458
    %v5137 = vpack.c.b16 %v4461, %v4460
    %v5138 = vpack.c.b16 %v4463, %v4462
    %v5139 = vpack.c.b16 %v4465, %v4464
    %v5140 = vpack.c.b16 %v4467, %v4466
    %v5141 = vpack.c.b16 %v4469, %v4468
    %v5142 = vpack.c.b16 %v4471, %v4470
    %v5143 = vpack.c.b16 %v4473, %v4472
    %v5144 = vpack.c.b16 %v4475, %v4474
    %v5145 = vpack.c.b16 %v4477, %v4476
    %v5146 = vpack.c.b16 %v4479, %v4478
    %v5147 = vpack.c.b16 %v4481, %v4480
    %v5148 = vpack.c.b16 %v4483, %v4482
    %v5149 = vpack.c.b16 %v4485, %v4484
    %v5150 = vpack.c.b16 %v4487, %v4486
    %v5151 = vpack.c.b16 %v4489, %v4488
    %v5152 = vpack.c.b16 %v4491, %v4490
    %v5153 = vpack.c.b16 %v4493, %v4492
    %v5154 = vpack.c.b16 %v4495, %v4494
    %v5155 = vpack.c.b16 %v4497, %v4496
    %v5156 = vpack.c.b16 %v4499, %v4498
    %v5157 = vpack.c.b16 %v4501, %v4500
    %v5158 = vpack.c.b16 %v4503, %v4502
    %v5159 = vpack.c.b16 %v4505, %v4504
    %v5160 = vpack.c.b16 %v4507, %v4506
    %v5161 = vpack.c.b16 %v4509, %v4508
    %v5162 = vpack.c.b16 %v4511, %v4510
    %v5163 = vpack.c.b16 %v4513, %v4512
    %v5164 = vpack.c.b16 %v4515, %v4514
    %v5165 = vpack.c.b16 %v4517, %v4516
    %5814 = vmatprep.subr.bf16.mxu0 0
    %5815 = vmatpush1.bf16.msra.mxu0 %v4525
    %5816 = vmatprep.subr.bf16.mxu0 0
    %5817 = vmatpush1.bf16.msra.mxu0 %v4524
    %5818 = vmatprep.subr.bf16.mxu0 0
    %5819 = vmatpush1.bf16.msra.mxu0 %v4523
    %5820 = vmatprep.subr.bf16.mxu0 0
    %5821 = vmatpush1.bf16.msra.mxu0 %v4522
    %5822 = vmatprep.subr.bf16.mxu0 0
    %5823 = vmatpush1.bf16.msra.mxu0 %v4521
    %5824 = vmatprep.subr.bf16.mxu0 0
    %5825 = vmatpush1.bf16.msra.mxu0 %v4520
    %5826 = vmatprep.subr.bf16.mxu0 0
    %5827 = vmatpush1.bf16.msra.mxu0 %v4519
    %5828 = vmatprep.subr.bf16.mxu0 0
    %5829 = vmatpush1.bf16.msra.mxu0 %v4518
    %5830 = vmatprep.subr.bf16.mxu0 0
    %5831 = vmatpush2.bf16.msra.mxu0 %v4533
    %5832 = vmatprep.subr.bf16.mxu0 0
    %5833 = vmatpush2.bf16.msra.mxu0 %v4532
    %5834 = vmatprep.subr.bf16.mxu0 0
    %5835 = vmatpush2.bf16.msra.mxu0 %v4531
    %5836 = vmatprep.subr.bf16.mxu0 0
    %5837 = vmatpush2.bf16.msra.mxu0 %v4530
    %5838 = vmatprep.subr.bf16.mxu0 0
    %5839 = vmatpush2.bf16.msra.mxu0 %v4529
    %5840 = vmatprep.subr.bf16.mxu0 0
    %5841 = vmatpush2.bf16.msra.mxu0 %v4528
    %5842 = vmatprep.subr.bf16.mxu0 0
    %5843 = vmatpush2.bf16.msra.mxu0 %v4527
    %5844 = vmatprep.subr.bf16.mxu0 0
    %5845 = vmatpush2.bf16.msra.mxu0 %v4526
    %5846 = vmatprep.mubr.bf16.mxu0 %v1378
    %5847 = vmatmul.mubr.bf16.gmra.mxu0 %v1364
    %v5848 = vpop.f32.mrf.mxu0
    %v5849 = vadd.f32 0.0, %v5848
    %v5850 = vpop.f32.mrf.mxu0
    %v5851 = vpop.f32.mrf.mxu0
    %v5852 = vpop.f32.mrf.mxu0
    %5853 = vdwg.mxu0
    %5854 = vmatprep.subr.bf16.mxu0 0
    %5855 = vmatpush1.bf16.msra.mxu0 %v4541
    %5856 = vmatprep.subr.bf16.mxu0 0
    %5857 = vmatpush1.bf16.msra.mxu0 %v4540
    %5858 = vmatprep.subr.bf16.mxu0 0
    %5859 = vmatpush1.bf16.msra.mxu0 %v4539
    %5860 = vmatprep.subr.bf16.mxu0 0
    %5861 = vmatpush1.bf16.msra.mxu0 %v4538
    %5862 = vmatprep.subr.bf16.mxu0 0
    %5863 = vmatpush1.bf16.msra.mxu0 %v4537
    %5864 = vmatprep.subr.bf16.mxu0 0
    %5865 = vmatpush1.bf16.msra.mxu0 %v4536
    %5866 = vmatprep.subr.bf16.mxu0 0
    %5867 = vmatpush1.bf16.msra.mxu0 %v4535
    %5868 = vmatprep.subr.bf16.mxu0 0
    %5869 = vmatpush1.bf16.msra.mxu0 %v4534
    %5870 = vmatprep.subr.bf16.mxu0 0
    %5871 = vmatpush2.bf16.msra.mxu0 %v4549
    %5872 = vmatprep.subr.bf16.mxu0 0
    %5873 = vmatpush2.bf16.msra.mxu0 %v4548
    %5874 = vmatprep.subr.bf16.mxu0 0
    %5875 = vmatpush2.bf16.msra.mxu0 %v4547
    %5876 = vmatprep.subr.bf16.mxu0 0
    %5877 = vmatpush2.bf16.msra.mxu0 %v4546
    %5878 = vmatprep.subr.bf16.mxu0 0
    %5879 = vmatpush2.bf16.msra.mxu0 %v4545
    %5880 = vmatprep.subr.bf16.mxu0 0
    %5881 = vmatpush2.bf16.msra.mxu0 %v4544
    %5882 = vmatprep.subr.bf16.mxu0 0
    %5883 = vmatpush2.bf16.msra.mxu0 %v4543
    %5884 = vmatprep.subr.bf16.mxu0 0
    %5885 = vmatpush2.bf16.msra.mxu0 %v4542
    %5886 = vmatprep.mubr.bf16.mxu0 %v1388
    %5887 = vmatmul.mubr.bf16.gmra.mxu0 %v1386
    %v5888 = vpop.f32.mrf.mxu0
    %v5889 = vadd.f32 %v5849, %v5888
    %v5890 = vpop.f32.mrf.mxu0
    %v5891 = vpop.f32.mrf.mxu0
    %v5892 = vpop.f32.mrf.mxu0
    %5893 = vdwg.mxu0
    %5894 = vmatprep.subr.bf16.mxu0 0
    %5895 = vmatpush1.bf16.msra.mxu0 %v4557
    %5896 = vmatprep.subr.bf16.mxu0 0
    %5897 = vmatpush1.bf16.msra.mxu0 %v4556
    %5898 = vmatprep.subr.bf16.mxu0 0
    %5899 = vmatpush1.bf16.msra.mxu0 %v4555
    %5900 = vmatprep.subr.bf16.mxu0 0
    %5901 = vmatpush1.bf16.msra.mxu0 %v4554
    %5902 = vmatprep.subr.bf16.mxu0 0
    %5903 = vmatpush1.bf16.msra.mxu0 %v4553
    %5904 = vmatprep.subr.bf16.mxu0 0
    %5905 = vmatpush1.bf16.msra.mxu0 %v4552
    %5906 = vmatprep.subr.bf16.mxu0 0
    %5907 = vmatpush1.bf16.msra.mxu0 %v4551
    %5908 = vmatprep.subr.bf16.mxu0 0
    %5909 = vmatpush1.bf16.msra.mxu0 %v4550
    %5910 = vmatprep.subr.bf16.mxu0 0
    %5911 = vmatpush2.bf16.msra.mxu0 %v4565
    %5912 = vmatprep.subr.bf16.mxu0 0
    %5913 = vmatpush2.bf16.msra.mxu0 %v4564
    %5914 = vmatprep.subr.bf16.mxu0 0
    %5915 = vmatpush2.bf16.msra.mxu0 %v4563
    %5916 = vmatprep.subr.bf16.mxu0 0
    %5917 = vmatpush2.bf16.msra.mxu0 %v4562
    %5918 = vmatprep.subr.bf16.mxu0 0
    %5919 = vmatpush2.bf16.msra.mxu0 %v4561
    %5920 = vmatprep.subr.bf16.mxu0 0
    %5921 = vmatpush2.bf16.msra.mxu0 %v4560
    %5922 = vmatprep.subr.bf16.mxu0 0
    %5923 = vmatpush2.bf16.msra.mxu0 %v4559
    %5924 = vmatprep.subr.bf16.mxu0 0
    %5925 = vmatpush2.bf16.msra.mxu0 %v4558
    %5926 = vmatprep.mubr.bf16.mxu0 %v1385
    %5927 = vmatmul.mubr.bf16.gmra.mxu0 %v1371
    %v5928 = vpop.f32.mrf.mxu0
    %v5929 = vadd.f32 %v5889, %v5928
    %v5930 = vpop.f32.mrf.mxu0
    %v5931 = vpop.f32.mrf.mxu0
    %v5932 = vpop.f32.mrf.mxu0
    %5933 = vdwg.mxu0
    %5934 = vmatprep.subr.bf16.mxu0 0
    %5935 = vmatpush1.bf16.msra.mxu0 %v4573
    %5936 = vmatprep.subr.bf16.mxu0 0
    %5937 = vmatpush1.bf16.msra.mxu0 %v4572
    %5938 = vmatprep.subr.bf16.mxu0 0
    %5939 = vmatpush1.bf16.msra.mxu0 %v4571
    %5940 = vmatprep.subr.bf16.mxu0 0
    %5941 = vmatpush1.bf16.msra.mxu0 %v4570
    %5942 = vmatprep.subr.bf16.mxu0 0
    %5943 = vmatpush1.bf16.msra.mxu0 %v4569
    %5944 = vmatprep.subr.bf16.mxu0 0
    %5945 = vmatpush1.bf16.msra.mxu0 %v4568
    %5946 = vmatprep.subr.bf16.mxu0 0
    %5947 = vmatpush1.bf16.msra.mxu0 %v4567
    %5948 = vmatprep.subr.bf16.mxu0 0
    %5949 = vmatpush1.bf16.msra.mxu0 %v4566
    %5950 = vmatprep.subr.bf16.mxu0 0
    %5951 = vmatpush2.bf16.msra.mxu0 %v4581
    %5952 = vmatprep.subr.bf16.mxu0 0
    %5953 = vmatpush2.bf16.msra.mxu0 %v4580
    %5954 = vmatprep.subr.bf16.mxu0 0
    %5955 = vmatpush2.bf16.msra.mxu0 %v4579
    %5956 = vmatprep.subr.bf16.mxu0 0
    %5957 = vmatpush2.bf16.msra.mxu0 %v4578
    %5958 = vmatprep.subr.bf16.mxu0 0
    %5959 = vmatpush2.bf16.msra.mxu0 %v4577
    %5960 = vmatprep.subr.bf16.mxu0 0
    %5961 = vmatpush2.bf16.msra.mxu0 %v4576
    %5962 = vmatprep.subr.bf16.mxu0 0
    %5963 = vmatpush2.bf16.msra.mxu0 %v4575
    %5964 = vmatprep.subr.bf16.mxu0 0
    %5965 = vmatpush2.bf16.msra.mxu0 %v4574
    %5966 = vmatprep.mubr.bf16.mxu0 %v1389
    %5967 = vmatmul.mubr.bf16.gmra.mxu0 %v1387
    %v5968 = vpop.f32.mrf.mxu0
    %v5969 = vadd.f32 %v5929, %v5968
    %v5970 = vpop.f32.mrf.mxu0
    %v5971 = vpop.f32.mrf.mxu0
    %v5972 = vpop.f32.mrf.mxu0
    %5973 = vdwg.mxu0
    %5974 = vmatprep.subr.bf16.mxu0 0
    %5975 = vmatpush1.bf16.msra.mxu0 %v4589
    %5976 = vmatprep.subr.bf16.mxu0 0
    %5977 = vmatpush1.bf16.msra.mxu0 %v4588
    %5978 = vmatprep.subr.bf16.mxu0 0
    %5979 = vmatpush1.bf16.msra.mxu0 %v4587
    %5980 = vmatprep.subr.bf16.mxu0 0
    %5981 = vmatpush1.bf16.msra.mxu0 %v4586
    %5982 = vmatprep.subr.bf16.mxu0 0
    %5983 = vmatpush1.bf16.msra.mxu0 %v4585
    %5984 = vmatprep.subr.bf16.mxu0 0
    %5985 = vmatpush1.bf16.msra.mxu0 %v4584
    %5986 = vmatprep.subr.bf16.mxu0 0
    %5987 = vmatpush1.bf16.msra.mxu0 %v4583
    %5988 = vmatprep.subr.bf16.mxu0 0
    %5989 = vmatpush1.bf16.msra.mxu0 %v4582
    %5990 = vmatprep.subr.bf16.mxu0 0
    %5991 = vmatpush2.bf16.msra.mxu0 %v4597
    %5992 = vmatprep.subr.bf16.mxu0 0
    %5993 = vmatpush2.bf16.msra.mxu0 %v4596
    %5994 = vmatprep.subr.bf16.mxu0 0
    %5995 = vmatpush2.bf16.msra.mxu0 %v4595
    %5996 = vmatprep.subr.bf16.mxu0 0
    %5997 = vmatpush2.bf16.msra.mxu0 %v4594
    %5998 = vmatprep.subr.bf16.mxu0 0
    %5999 = vmatpush2.bf16.msra.mxu0 %v4593
    %6000 = vmatprep.subr.bf16.mxu0 0
    %6001 = vmatpush2.bf16.msra.mxu0 %v4592
    %6002 = vmatprep.subr.bf16.mxu0 0
    %6003 = vmatpush2.bf16.msra.mxu0 %v4591
    %6004 = vmatprep.subr.bf16.mxu0 0
    %6005 = vmatpush2.bf16.msra.mxu0 %v4590
    %6006 = vmatprep.mubr.bf16.mxu0 %v1427
    %6007 = vmatmul.mubr.bf16.gmra.mxu0 %v1413
    %v6008 = vpop.f32.mrf.mxu0
    %v6009 = vadd.f32 %v5969, %v6008
    %v6010 = vpop.f32.mrf.mxu0
    %v6011 = vpop.f32.mrf.mxu0
    %v6012 = vpop.f32.mrf.mxu0
    %6013 = vdwg.mxu0
    %6014 = vmatprep.subr.bf16.mxu0 0
    %6015 = vmatpush1.bf16.msra.mxu0 %v4605
    %6016 = vmatprep.subr.bf16.mxu0 0
    %6017 = vmatpush1.bf16.msra.mxu0 %v4604
    %6018 = vmatprep.subr.bf16.mxu0 0
    %6019 = vmatpush1.bf16.msra.mxu0 %v4603
    %6020 = vmatprep.subr.bf16.mxu0 0
    %6021 = vmatpush1.bf16.msra.mxu0 %v4602
    %6022 = vmatprep.subr.bf16.mxu0 0
    %6023 = vmatpush1.bf16.msra.mxu0 %v4601
    %6024 = vmatprep.subr.bf16.mxu0 0
    %6025 = vmatpush1.bf16.msra.mxu0 %v4600
    %6026 = vmatprep.subr.bf16.mxu0 0
    %6027 = vmatpush1.bf16.msra.mxu0 %v4599
    %6028 = vmatprep.subr.bf16.mxu0 0
    %6029 = vmatpush1.bf16.msra.mxu0 %v4598
    %6030 = vmatprep.subr.bf16.mxu0 0
    %6031 = vmatpush2.bf16.msra.mxu0 %v4613
    %6032 = vmatprep.subr.bf16.mxu0 0
    %6033 = vmatpush2.bf16.msra.mxu0 %v4612
    %6034 = vmatprep.subr.bf16.mxu0 0
    %6035 = vmatpush2.bf16.msra.mxu0 %v4611
    %6036 = vmatprep.subr.bf16.mxu0 0
    %6037 = vmatpush2.bf16.msra.mxu0 %v4610
    %6038 = vmatprep.subr.bf16.mxu0 0
    %6039 = vmatpush2.bf16.msra.mxu0 %v4609
    %6040 = vmatprep.subr.bf16.mxu0 0
    %6041 = vmatpush2.bf16.msra.mxu0 %v4608
    %6042 = vmatprep.subr.bf16.mxu0 0
    %6043 = vmatpush2.bf16.msra.mxu0 %v4607
    %6044 = vmatprep.subr.bf16.mxu0 0
    %6045 = vmatpush2.bf16.msra.mxu0 %v4606
    %6046 = vmatprep.mubr.bf16.mxu0 %v1437
    %6047 = vmatmul.mubr.bf16.gmra.mxu0 %v1435
    %v6048 = vpop.f32.mrf.mxu0
    %v6049 = vadd.f32 %v6009, %v6048
    %v6050 = vpop.f32.mrf.mxu0
    %v6051 = vpop.f32.mrf.mxu0
    %v6052 = vpop.f32.mrf.mxu0
    %6053 = vdwg.mxu0
    %6054 = vmatprep.subr.bf16.mxu0 0
    %6055 = vmatpush1.bf16.msra.mxu0 %v4621
    %6056 = vmatprep.subr.bf16.mxu0 0
    %6057 = vmatpush1.bf16.msra.mxu0 %v4620
    %6058 = vmatprep.subr.bf16.mxu0 0
    %6059 = vmatpush1.bf16.msra.mxu0 %v4619
    %6060 = vmatprep.subr.bf16.mxu0 0
    %6061 = vmatpush1.bf16.msra.mxu0 %v4618
    %6062 = vmatprep.subr.bf16.mxu0 0
    %6063 = vmatpush1.bf16.msra.mxu0 %v4617
    %6064 = vmatprep.subr.bf16.mxu0 0
    %6065 = vmatpush1.bf16.msra.mxu0 %v4616
    %6066 = vmatprep.subr.bf16.mxu0 0
    %6067 = vmatpush1.bf16.msra.mxu0 %v4615
    %6068 = vmatprep.subr.bf16.mxu0 0
    %6069 = vmatpush1.bf16.msra.mxu0 %v4614
    %6070 = vmatprep.subr.bf16.mxu0 0
    %6071 = vmatpush2.bf16.msra.mxu0 %v4629
    %6072 = vmatprep.subr.bf16.mxu0 0
    %6073 = vmatpush2.bf16.msra.mxu0 %v4628
    %6074 = vmatprep.subr.bf16.mxu0 0
    %6075 = vmatpush2.bf16.msra.mxu0 %v4627
    %6076 = vmatprep.subr.bf16.mxu0 0
    %6077 = vmatpush2.bf16.msra.mxu0 %v4626
    %6078 = vmatprep.subr.bf16.mxu0 0
    %6079 = vmatpush2.bf16.msra.mxu0 %v4625
    %6080 = vmatprep.subr.bf16.mxu0 0
    %6081 = vmatpush2.bf16.msra.mxu0 %v4624
    %6082 = vmatprep.subr.bf16.mxu0 0
    %6083 = vmatpush2.bf16.msra.mxu0 %v4623
    %6084 = vmatprep.subr.bf16.mxu0 0
    %6085 = vmatpush2.bf16.msra.mxu0 %v4622
    %6086 = vmatprep.mubr.bf16.mxu0 %v1434
    %6087 = vmatmul.mubr.bf16.gmra.mxu0 %v1420
    %v6088 = vpop.f32.mrf.mxu0
    %v6089 = vadd.f32 %v6049, %v6088
    %v6090 = vpop.f32.mrf.mxu0
    %v6091 = vpop.f32.mrf.mxu0
    %v6092 = vpop.f32.mrf.mxu0
    %6093 = vdwg.mxu0
    %6094 = vmatprep.subr.bf16.mxu0 0
    %6095 = vmatpush1.bf16.msra.mxu0 %v4637
    %6096 = vmatprep.subr.bf16.mxu0 0
    %6097 = vmatpush1.bf16.msra.mxu0 %v4636
    %6098 = vmatprep.subr.bf16.mxu0 0
    %6099 = vmatpush1.bf16.msra.mxu0 %v4635
    %6100 = vmatprep.subr.bf16.mxu0 0
    %6101 = vmatpush1.bf16.msra.mxu0 %v4634
    %6102 = vmatprep.subr.bf16.mxu0 0
    %6103 = vmatpush1.bf16.msra.mxu0 %v4633
    %6104 = vmatprep.subr.bf16.mxu0 0
    %6105 = vmatpush1.bf16.msra.mxu0 %v4632
    %6106 = vmatprep.subr.bf16.mxu0 0
    %6107 = vmatpush1.bf16.msra.mxu0 %v4631
    %6108 = vmatprep.subr.bf16.mxu0 0
    %6109 = vmatpush1.bf16.msra.mxu0 %v4630
    %6110 = vmatprep.subr.bf16.mxu0 0
    %6111 = vmatpush2.bf16.msra.mxu0 %v4645
    %6112 = vmatprep.subr.bf16.mxu0 0
    %6113 = vmatpush2.bf16.msra.mxu0 %v4644
    %6114 = vmatprep.subr.bf16.mxu0 0
    %6115 = vmatpush2.bf16.msra.mxu0 %v4643
    %6116 = vmatprep.subr.bf16.mxu0 0
    %6117 = vmatpush2.bf16.msra.mxu0 %v4642
    %6118 = vmatprep.subr.bf16.mxu0 0
    %6119 = vmatpush2.bf16.msra.mxu0 %v4641
    %6120 = vmatprep.subr.bf16.mxu0 0
    %6121 = vmatpush2.bf16.msra.mxu0 %v4640
    %6122 = vmatprep.subr.bf16.mxu0 0
    %6123 = vmatpush2.bf16.msra.mxu0 %v4639
    %6124 = vmatprep.subr.bf16.mxu0 0
    %6125 = vmatpush2.bf16.msra.mxu0 %v4638
    %6126 = vmatprep.mubr.bf16.mxu0 %v1438
    %6127 = vmatmul.mubr.bf16.gmra.mxu0 %v1436
    %v6128 = vpop.f32.mrf.mxu0
    %v6129 = vadd.f32 %v6089, %v6128
    %v6130 = vpop.f32.mrf.mxu0
    %v6131 = vpop.f32.mrf.mxu0
    %v6132 = vpop.f32.mrf.mxu0
    %6133 = vdwg.mxu0
    %6134 = vmatprep.subr.bf16.mxu0 0
    %6135 = vmatpush1.bf16.msra.mxu0 %v4653
    %6136 = vmatprep.subr.bf16.mxu0 0
    %6137 = vmatpush1.bf16.msra.mxu0 %v4652
    %6138 = vmatprep.subr.bf16.mxu0 0
    %6139 = vmatpush1.bf16.msra.mxu0 %v4651
    %6140 = vmatprep.subr.bf16.mxu0 0
    %6141 = vmatpush1.bf16.msra.mxu0 %v4650
    %6142 = vmatprep.subr.bf16.mxu0 0
    %6143 = vmatpush1.bf16.msra.mxu0 %v4649
    %6144 = vmatprep.subr.bf16.mxu0 0
    %6145 = vmatpush1.bf16.msra.mxu0 %v4648
    %6146 = vmatprep.subr.bf16.mxu0 0
    %6147 = vmatpush1.bf16.msra.mxu0 %v4647
    %6148 = vmatprep.subr.bf16.mxu0 0
    %6149 = vmatpush1.bf16.msra.mxu0 %v4646
    %6150 = vmatprep.subr.bf16.mxu0 0
    %6151 = vmatpush2.bf16.msra.mxu0 %v4661
    %6152 = vmatprep.subr.bf16.mxu0 0
    %6153 = vmatpush2.bf16.msra.mxu0 %v4660
    %6154 = vmatprep.subr.bf16.mxu0 0
    %6155 = vmatpush2.bf16.msra.mxu0 %v4659
    %6156 = vmatprep.subr.bf16.mxu0 0
    %6157 = vmatpush2.bf16.msra.mxu0 %v4658
    %6158 = vmatprep.subr.bf16.mxu0 0
    %6159 = vmatpush2.bf16.msra.mxu0 %v4657
    %6160 = vmatprep.subr.bf16.mxu0 0
    %6161 = vmatpush2.bf16.msra.mxu0 %v4656
    %6162 = vmatprep.subr.bf16.mxu0 0
    %6163 = vmatpush2.bf16.msra.mxu0 %v4655
    %6164 = vmatprep.subr.bf16.mxu0 0
    %6165 = vmatpush2.bf16.msra.mxu0 %v4654
    %6166 = vmatprep.mubr.bf16.mxu0 %v1476
    %6167 = vmatmul.mubr.bf16.gmra.mxu0 %v1462
    %v6168 = vpop.f32.mrf.mxu0
    %v6169 = vadd.f32 %v6129, %v6168
    %v6170 = vpop.f32.mrf.mxu0
    %v6171 = vpop.f32.mrf.mxu0
    %v6172 = vpop.f32.mrf.mxu0
    %6173 = vdwg.mxu0
    %6174 = vmatprep.subr.bf16.mxu0 0
    %6175 = vmatpush1.bf16.msra.mxu0 %v4669
    %6176 = vmatprep.subr.bf16.mxu0 0
    %6177 = vmatpush1.bf16.msra.mxu0 %v4668
    %6178 = vmatprep.subr.bf16.mxu0 0
    %6179 = vmatpush1.bf16.msra.mxu0 %v4667
    %6180 = vmatprep.subr.bf16.mxu0 0
    %6181 = vmatpush1.bf16.msra.mxu0 %v4666
    %6182 = vmatprep.subr.bf16.mxu0 0
    %6183 = vmatpush1.bf16.msra.mxu0 %v4665
    %6184 = vmatprep.subr.bf16.mxu0 0
    %6185 = vmatpush1.bf16.msra.mxu0 %v4664
    %6186 = vmatprep.subr.bf16.mxu0 0
    %6187 = vmatpush1.bf16.msra.mxu0 %v4663
    %6188 = vmatprep.subr.bf16.mxu0 0
    %6189 = vmatpush1.bf16.msra.mxu0 %v4662
    %6190 = vmatprep.subr.bf16.mxu0 0
    %6191 = vmatpush2.bf16.msra.mxu0 %v4677
    %6192 = vmatprep.subr.bf16.mxu0 0
    %6193 = vmatpush2.bf16.msra.mxu0 %v4676
    %6194 = vmatprep.subr.bf16.mxu0 0
    %6195 = vmatpush2.bf16.msra.mxu0 %v4675
    %6196 = vmatprep.subr.bf16.mxu0 0
    %6197 = vmatpush2.bf16.msra.mxu0 %v4674
    %6198 = vmatprep.subr.bf16.mxu0 0
    %6199 = vmatpush2.bf16.msra.mxu0 %v4673
    %6200 = vmatprep.subr.bf16.mxu0 0
    %6201 = vmatpush2.bf16.msra.mxu0 %v4672
    %6202 = vmatprep.subr.bf16.mxu0 0
    %6203 = vmatpush2.bf16.msra.mxu0 %v4671
    %6204 = vmatprep.subr.bf16.mxu0 0
    %6205 = vmatpush2.bf16.msra.mxu0 %v4670
    %6206 = vmatprep.mubr.bf16.mxu0 %v1486
    %6207 = vmatmul.mubr.bf16.gmra.mxu0 %v1484
    %v6208 = vpop.f32.mrf.mxu0
    %v6209 = vadd.f32 %v6169, %v6208
    %v6210 = vpop.f32.mrf.mxu0
    %v6211 = vpop.f32.mrf.mxu0
    %v6212 = vpop.f32.mrf.mxu0
    %6213 = vdwg.mxu0
    %6214 = vmatprep.subr.bf16.mxu0 0
    %6215 = vmatpush1.bf16.msra.mxu0 %v4685
    %6216 = vmatprep.subr.bf16.mxu0 0
    %6217 = vmatpush1.bf16.msra.mxu0 %v4684
    %6218 = vmatprep.subr.bf16.mxu0 0
    %6219 = vmatpush1.bf16.msra.mxu0 %v4683
    %6220 = vmatprep.subr.bf16.mxu0 0
    %6221 = vmatpush1.bf16.msra.mxu0 %v4682
    %6222 = vmatprep.subr.bf16.mxu0 0
    %6223 = vmatpush1.bf16.msra.mxu0 %v4681
    %6224 = vmatprep.subr.bf16.mxu0 0
    %6225 = vmatpush1.bf16.msra.mxu0 %v4680
    %6226 = vmatprep.subr.bf16.mxu0 0
    %6227 = vmatpush1.bf16.msra.mxu0 %v4679
    %6228 = vmatprep.subr.bf16.mxu0 0
    %6229 = vmatpush1.bf16.msra.mxu0 %v4678
    %6230 = vmatprep.subr.bf16.mxu0 0
    %6231 = vmatpush2.bf16.msra.mxu0 %v4693
    %6232 = vmatprep.subr.bf16.mxu0 0
    %6233 = vmatpush2.bf16.msra.mxu0 %v4692
    %6234 = vmatprep.subr.bf16.mxu0 0
    %6235 = vmatpush2.bf16.msra.mxu0 %v4691
    %6236 = vmatprep.subr.bf16.mxu0 0
    %6237 = vmatpush2.bf16.msra.mxu0 %v4690
    %6238 = vmatprep.subr.bf16.mxu0 0
    %6239 = vmatpush2.bf16.msra.mxu0 %v4689
    %6240 = vmatprep.subr.bf16.mxu0 0
    %6241 = vmatpush2.bf16.msra.mxu0 %v4688
    %6242 = vmatprep.subr.bf16.mxu0 0
    %6243 = vmatpush2.bf16.msra.mxu0 %v4687
    %6244 = vmatprep.subr.bf16.mxu0 0
    %6245 = vmatpush2.bf16.msra.mxu0 %v4686
    %6246 = vmatprep.mubr.bf16.mxu0 %v1483
    %6247 = vmatmul.mubr.bf16.gmra.mxu0 %v1469
    %v6248 = vpop.f32.mrf.mxu0
    %v6249 = vadd.f32 %v6209, %v6248
    %v6250 = vpop.f32.mrf.mxu0
    %v6251 = vpop.f32.mrf.mxu0
    %v6252 = vpop.f32.mrf.mxu0
    %6253 = vdwg.mxu0
    %6254 = vmatprep.subr.bf16.mxu0 0
    %6255 = vmatpush1.bf16.msra.mxu0 %v4701
    %6256 = vmatprep.subr.bf16.mxu0 0
    %6257 = vmatpush1.bf16.msra.mxu0 %v4700
    %6258 = vmatprep.subr.bf16.mxu0 0
    %6259 = vmatpush1.bf16.msra.mxu0 %v4699
    %6260 = vmatprep.subr.bf16.mxu0 0
    %6261 = vmatpush1.bf16.msra.mxu0 %v4698
    %6262 = vmatprep.subr.bf16.mxu0 0
    %6263 = vmatpush1.bf16.msra.mxu0 %v4697
    %6264 = vmatprep.subr.bf16.mxu0 0
    %6265 = vmatpush1.bf16.msra.mxu0 %v4696
    %6266 = vmatprep.subr.bf16.mxu0 0
    %6267 = vmatpush1.bf16.msra.mxu0 %v4695
    %6268 = vmatprep.subr.bf16.mxu0 0
    %6269 = vmatpush1.bf16.msra.mxu0 %v4694
    %6270 = vmatprep.subr.bf16.mxu0 0
    %6271 = vmatpush2.bf16.msra.mxu0 %v4709
    %6272 = vmatprep.subr.bf16.mxu0 0
    %6273 = vmatpush2.bf16.msra.mxu0 %v4708
    %6274 = vmatprep.subr.bf16.mxu0 0
    %6275 = vmatpush2.bf16.msra.mxu0 %v4707
    %6276 = vmatprep.subr.bf16.mxu0 0
    %6277 = vmatpush2.bf16.msra.mxu0 %v4706
    %6278 = vmatprep.subr.bf16.mxu0 0
    %6279 = vmatpush2.bf16.msra.mxu0 %v4705
    %6280 = vmatprep.subr.bf16.mxu0 0
    %6281 = vmatpush2.bf16.msra.mxu0 %v4704
    %6282 = vmatprep.subr.bf16.mxu0 0
    %6283 = vmatpush2.bf16.msra.mxu0 %v4703
    %6284 = vmatprep.subr.bf16.mxu0 0
    %6285 = vmatpush2.bf16.msra.mxu0 %v4702
    %6286 = vmatprep.mubr.bf16.mxu0 %v1487
    %6287 = vmatmul.mubr.bf16.gmra.mxu0 %v1485
    %v6288 = vpop.f32.mrf.mxu0
    %v6289 = vadd.f32 %v6249, %v6288
    %v6290 = vpop.f32.mrf.mxu0
    %v6291 = vpop.f32.mrf.mxu0
    %v6292 = vpop.f32.mrf.mxu0
    %6293 = vdwg.mxu0
    %6294 = vmatprep.subr.bf16.mxu0 0
    %6295 = vmatpush1.bf16.msra.mxu0 %v4717
    %6296 = vmatprep.subr.bf16.mxu0 0
    %6297 = vmatpush1.bf16.msra.mxu0 %v4716
    %6298 = vmatprep.subr.bf16.mxu0 0
    %6299 = vmatpush1.bf16.msra.mxu0 %v4715
    %6300 = vmatprep.subr.bf16.mxu0 0
    %6301 = vmatpush1.bf16.msra.mxu0 %v4714
    %6302 = vmatprep.subr.bf16.mxu0 0
    %6303 = vmatpush1.bf16.msra.mxu0 %v4713
    %6304 = vmatprep.subr.bf16.mxu0 0
    %6305 = vmatpush1.bf16.msra.mxu0 %v4712
    %6306 = vmatprep.subr.bf16.mxu0 0
    %6307 = vmatpush1.bf16.msra.mxu0 %v4711
    %6308 = vmatprep.subr.bf16.mxu0 0
    %6309 = vmatpush1.bf16.msra.mxu0 %v4710
    %6310 = vmatprep.subr.bf16.mxu0 0
    %6311 = vmatpush2.bf16.msra.mxu0 %v4725
    %6312 = vmatprep.subr.bf16.mxu0 0
    %6313 = vmatpush2.bf16.msra.mxu0 %v4724
    %6314 = vmatprep.subr.bf16.mxu0 0
    %6315 = vmatpush2.bf16.msra.mxu0 %v4723
    %6316 = vmatprep.subr.bf16.mxu0 0
    %6317 = vmatpush2.bf16.msra.mxu0 %v4722
    %6318 = vmatprep.subr.bf16.mxu0 0
    %6319 = vmatpush2.bf16.msra.mxu0 %v4721
    %6320 = vmatprep.subr.bf16.mxu0 0
    %6321 = vmatpush2.bf16.msra.mxu0 %v4720
    %6322 = vmatprep.subr.bf16.mxu0 0
    %6323 = vmatpush2.bf16.msra.mxu0 %v4719
    %6324 = vmatprep.subr.bf16.mxu0 0
    %6325 = vmatpush2.bf16.msra.mxu0 %v4718
    %6326 = vmatprep.mubr.bf16.mxu0 %v1525
    %6327 = vmatmul.mubr.bf16.gmra.mxu0 %v1511
    %v6328 = vpop.f32.mrf.mxu0
    %v6329 = vadd.f32 %v6289, %v6328
    %v6330 = vpop.f32.mrf.mxu0
    %v6331 = vpop.f32.mrf.mxu0
    %v6332 = vpop.f32.mrf.mxu0
    %6333 = vdwg.mxu0
    %6334 = vmatprep.subr.bf16.mxu0 0
    %6335 = vmatpush1.bf16.msra.mxu0 %v4733
    %6336 = vmatprep.subr.bf16.mxu0 0
    %6337 = vmatpush1.bf16.msra.mxu0 %v4732
    %6338 = vmatprep.subr.bf16.mxu0 0
    %6339 = vmatpush1.bf16.msra.mxu0 %v4731
    %6340 = vmatprep.subr.bf16.mxu0 0
    %6341 = vmatpush1.bf16.msra.mxu0 %v4730
    %6342 = vmatprep.subr.bf16.mxu0 0
    %6343 = vmatpush1.bf16.msra.mxu0 %v4729
    %6344 = vmatprep.subr.bf16.mxu0 0
    %6345 = vmatpush1.bf16.msra.mxu0 %v4728
    %6346 = vmatprep.subr.bf16.mxu0 0
    %6347 = vmatpush1.bf16.msra.mxu0 %v4727
    %6348 = vmatprep.subr.bf16.mxu0 0
    %6349 = vmatpush1.bf16.msra.mxu0 %v4726
    %6350 = vmatprep.subr.bf16.mxu0 0
    %6351 = vmatpush2.bf16.msra.mxu0 %v4741
    %6352 = vmatprep.subr.bf16.mxu0 0
    %6353 = vmatpush2.bf16.msra.mxu0 %v4740
    %6354 = vmatprep.subr.bf16.mxu0 0
    %6355 = vmatpush2.bf16.msra.mxu0 %v4739
    %6356 = vmatprep.subr.bf16.mxu0 0
    %6357 = vmatpush2.bf16.msra.mxu0 %v4738
    %6358 = vmatprep.subr.bf16.mxu0 0
    %6359 = vmatpush2.bf16.msra.mxu0 %v4737
    %6360 = vmatprep.subr.bf16.mxu0 0
    %6361 = vmatpush2.bf16.msra.mxu0 %v4736
    %6362 = vmatprep.subr.bf16.mxu0 0
    %6363 = vmatpush2.bf16.msra.mxu0 %v4735
    %6364 = vmatprep.subr.bf16.mxu0 0
    %6365 = vmatpush2.bf16.msra.mxu0 %v4734
    %6366 = vmatprep.mubr.bf16.mxu0 %v1535
    %6367 = vmatmul.mubr.bf16.gmra.mxu0 %v1533
    %v6368 = vpop.f32.mrf.mxu0
    %v6369 = vadd.f32 %v6329, %v6368
    %v6370 = vpop.f32.mrf.mxu0
    %v6371 = vpop.f32.mrf.mxu0
    %v6372 = vpop.f32.mrf.mxu0
    %6373 = vdwg.mxu0
    %6374 = vmatprep.subr.bf16.mxu0 0
    %6375 = vmatpush1.bf16.msra.mxu0 %v4749
    %6376 = vmatprep.subr.bf16.mxu0 0
    %6377 = vmatpush1.bf16.msra.mxu0 %v4748
    %6378 = vmatprep.subr.bf16.mxu0 0
    %6379 = vmatpush1.bf16.msra.mxu0 %v4747
    %6380 = vmatprep.subr.bf16.mxu0 0
    %6381 = vmatpush1.bf16.msra.mxu0 %v4746
    %6382 = vmatprep.subr.bf16.mxu0 0
    %6383 = vmatpush1.bf16.msra.mxu0 %v4745
    %6384 = vmatprep.subr.bf16.mxu0 0
    %6385 = vmatpush1.bf16.msra.mxu0 %v4744
    %6386 = vmatprep.subr.bf16.mxu0 0
    %6387 = vmatpush1.bf16.msra.mxu0 %v4743
    %6388 = vmatprep.subr.bf16.mxu0 0
    %6389 = vmatpush1.bf16.msra.mxu0 %v4742
    %6390 = vmatprep.subr.bf16.mxu0 0
    %6391 = vmatpush2.bf16.msra.mxu0 %v4757
    %6392 = vmatprep.subr.bf16.mxu0 0
    %6393 = vmatpush2.bf16.msra.mxu0 %v4756
    %6394 = vmatprep.subr.bf16.mxu0 0
    %6395 = vmatpush2.bf16.msra.mxu0 %v4755
    %6396 = vmatprep.subr.bf16.mxu0 0
    %6397 = vmatpush2.bf16.msra.mxu0 %v4754
    %6398 = vmatprep.subr.bf16.mxu0 0
    %6399 = vmatpush2.bf16.msra.mxu0 %v4753
    %6400 = vmatprep.subr.bf16.mxu0 0
    %6401 = vmatpush2.bf16.msra.mxu0 %v4752
    %6402 = vmatprep.subr.bf16.mxu0 0
    %6403 = vmatpush2.bf16.msra.mxu0 %v4751
    %6404 = vmatprep.subr.bf16.mxu0 0
    %6405 = vmatpush2.bf16.msra.mxu0 %v4750
    %6406 = vmatprep.mubr.bf16.mxu0 %v1532
    %6407 = vmatmul.mubr.bf16.gmra.mxu0 %v1518
    %v6408 = vpop.f32.mrf.mxu0
    %v6409 = vadd.f32 %v6369, %v6408
    %v6410 = vpop.f32.mrf.mxu0
    %v6411 = vpop.f32.mrf.mxu0
    %v6412 = vpop.f32.mrf.mxu0
    %6413 = vdwg.mxu0
    %6414 = vmatprep.subr.bf16.mxu0 0
    %6415 = vmatpush1.bf16.msra.mxu0 %v4765
    %6416 = vmatprep.subr.bf16.mxu0 0
    %6417 = vmatpush1.bf16.msra.mxu0 %v4764
    %6418 = vmatprep.subr.bf16.mxu0 0
    %6419 = vmatpush1.bf16.msra.mxu0 %v4763
    %6420 = vmatprep.subr.bf16.mxu0 0
    %6421 = vmatpush1.bf16.msra.mxu0 %v4762
    %6422 = vmatprep.subr.bf16.mxu0 0
    %6423 = vmatpush1.bf16.msra.mxu0 %v4761
    %6424 = vmatprep.subr.bf16.mxu0 0
    %6425 = vmatpush1.bf16.msra.mxu0 %v4760
    %6426 = vmatprep.subr.bf16.mxu0 0
    %6427 = vmatpush1.bf16.msra.mxu0 %v4759
    %6428 = vmatprep.subr.bf16.mxu0 0
    %6429 = vmatpush1.bf16.msra.mxu0 %v4758
    %6430 = vmatprep.subr.bf16.mxu0 0
    %6431 = vmatpush2.bf16.msra.mxu0 %v4773
    %6432 = vmatprep.subr.bf16.mxu0 0
    %6433 = vmatpush2.bf16.msra.mxu0 %v4772
    %6434 = vmatprep.subr.bf16.mxu0 0
    %6435 = vmatpush2.bf16.msra.mxu0 %v4771
    %6436 = vmatprep.subr.bf16.mxu0 0
    %6437 = vmatpush2.bf16.msra.mxu0 %v4770
    %6438 = vmatprep.subr.bf16.mxu0 0
    %6439 = vmatpush2.bf16.msra.mxu0 %v4769
    %6440 = vmatprep.subr.bf16.mxu0 0
    %6441 = vmatpush2.bf16.msra.mxu0 %v4768
    %6442 = vmatprep.subr.bf16.mxu0 0
    %6443 = vmatpush2.bf16.msra.mxu0 %v4767
    %6444 = vmatprep.subr.bf16.mxu0 0
    %6445 = vmatpush2.bf16.msra.mxu0 %v4766
    %6446 = vmatprep.mubr.bf16.mxu0 %v1536
    %6447 = vmatmul.mubr.bf16.gmra.mxu0 %v1534
    %v6448 = vpop.f32.mrf.mxu0
    %v6449 = vadd.f32 %v6409, %v6448
    %v6450 = vpop.f32.mrf.mxu0
    %v6451 = vpop.f32.mrf.mxu0
    %v6452 = vpop.f32.mrf.mxu0
    %6453 = vdwg.mxu0
    %6454 = vmatprep.subr.bf16.mxu0 0
    %6455 = vmatpush1.bf16.msra.mxu0 %v4781
    %6456 = vmatprep.subr.bf16.mxu0 0
    %6457 = vmatpush1.bf16.msra.mxu0 %v4780
    %6458 = vmatprep.subr.bf16.mxu0 0
    %6459 = vmatpush1.bf16.msra.mxu0 %v4779
    %6460 = vmatprep.subr.bf16.mxu0 0
    %6461 = vmatpush1.bf16.msra.mxu0 %v4778
    %6462 = vmatprep.subr.bf16.mxu0 0
    %6463 = vmatpush1.bf16.msra.mxu0 %v4777
    %6464 = vmatprep.subr.bf16.mxu0 0
    %6465 = vmatpush1.bf16.msra.mxu0 %v4776
    %6466 = vmatprep.subr.bf16.mxu0 0
    %6467 = vmatpush1.bf16.msra.mxu0 %v4775
    %6468 = vmatprep.subr.bf16.mxu0 0
    %6469 = vmatpush1.bf16.msra.mxu0 %v4774
    %6470 = vmatprep.subr.bf16.mxu0 0
    %6471 = vmatpush2.bf16.msra.mxu0 %v4789
    %6472 = vmatprep.subr.bf16.mxu0 0
    %6473 = vmatpush2.bf16.msra.mxu0 %v4788
    %6474 = vmatprep.subr.bf16.mxu0 0
    %6475 = vmatpush2.bf16.msra.mxu0 %v4787
    %6476 = vmatprep.subr.bf16.mxu0 0
    %6477 = vmatpush2.bf16.msra.mxu0 %v4786
    %6478 = vmatprep.subr.bf16.mxu0 0
    %6479 = vmatpush2.bf16.msra.mxu0 %v4785
    %6480 = vmatprep.subr.bf16.mxu0 0
    %6481 = vmatpush2.bf16.msra.mxu0 %v4784
    %6482 = vmatprep.subr.bf16.mxu0 0
    %6483 = vmatpush2.bf16.msra.mxu0 %v4783
    %6484 = vmatprep.subr.bf16.mxu0 0
    %6485 = vmatpush2.bf16.msra.mxu0 %v4782
    %6486 = vmatprep.mubr.bf16.mxu0 %v1574
    %6487 = vmatmul.mubr.bf16.gmra.mxu0 %v1560
    %v6488 = vpop.f32.mrf.mxu0
    %v6489 = vadd.f32 %v6449, %v6488
    %v6490 = vpop.f32.mrf.mxu0
    %v6491 = vpop.f32.mrf.mxu0
    %v6492 = vpop.f32.mrf.mxu0
    %6493 = vdwg.mxu0
    %6494 = vmatprep.subr.bf16.mxu0 0
    %6495 = vmatpush1.bf16.msra.mxu0 %v4797
    %6496 = vmatprep.subr.bf16.mxu0 0
    %6497 = vmatpush1.bf16.msra.mxu0 %v4796
    %6498 = vmatprep.subr.bf16.mxu0 0
    %6499 = vmatpush1.bf16.msra.mxu0 %v4795
    %6500 = vmatprep.subr.bf16.mxu0 0
    %6501 = vmatpush1.bf16.msra.mxu0 %v4794
    %6502 = vmatprep.subr.bf16.mxu0 0
    %6503 = vmatpush1.bf16.msra.mxu0 %v4793
    %6504 = vmatprep.subr.bf16.mxu0 0
    %6505 = vmatpush1.bf16.msra.mxu0 %v4792
    %6506 = vmatprep.subr.bf16.mxu0 0
    %6507 = vmatpush1.bf16.msra.mxu0 %v4791
    %6508 = vmatprep.subr.bf16.mxu0 0
    %6509 = vmatpush1.bf16.msra.mxu0 %v4790
    %6510 = vmatprep.subr.bf16.mxu0 0
    %6511 = vmatpush2.bf16.msra.mxu0 %v4805
    %6512 = vmatprep.subr.bf16.mxu0 0
    %6513 = vmatpush2.bf16.msra.mxu0 %v4804
    %6514 = vmatprep.subr.bf16.mxu0 0
    %6515 = vmatpush2.bf16.msra.mxu0 %v4803
    %6516 = vmatprep.subr.bf16.mxu0 0
    %6517 = vmatpush2.bf16.msra.mxu0 %v4802
    %6518 = vmatprep.subr.bf16.mxu0 0
    %6519 = vmatpush2.bf16.msra.mxu0 %v4801
    %6520 = vmatprep.subr.bf16.mxu0 0
    %6521 = vmatpush2.bf16.msra.mxu0 %v4800
    %6522 = vmatprep.subr.bf16.mxu0 0
    %6523 = vmatpush2.bf16.msra.mxu0 %v4799
    %6524 = vmatprep.subr.bf16.mxu0 0
    %6525 = vmatpush2.bf16.msra.mxu0 %v4798
    %6526 = vmatprep.mubr.bf16.mxu0 %v1584
    %6527 = vmatmul.mubr.bf16.gmra.mxu0 %v1582
    %v6528 = vpop.f32.mrf.mxu0
    %v6529 = vadd.f32 %v6489, %v6528
    %v6530 = vpop.f32.mrf.mxu0
    %v6531 = vpop.f32.mrf.mxu0
    %v6532 = vpop.f32.mrf.mxu0
    %6533 = vdwg.mxu0
    %6534 = vmatprep.subr.bf16.mxu0 0
    %6535 = vmatpush1.bf16.msra.mxu0 %v4813
    %6536 = vmatprep.subr.bf16.mxu0 0
    %6537 = vmatpush1.bf16.msra.mxu0 %v4812
    %6538 = vmatprep.subr.bf16.mxu0 0
    %6539 = vmatpush1.bf16.msra.mxu0 %v4811
    %6540 = vmatprep.subr.bf16.mxu0 0
    %6541 = vmatpush1.bf16.msra.mxu0 %v4810
    %6542 = vmatprep.subr.bf16.mxu0 0
    %6543 = vmatpush1.bf16.msra.mxu0 %v4809
    %6544 = vmatprep.subr.bf16.mxu0 0
    %6545 = vmatpush1.bf16.msra.mxu0 %v4808
    %6546 = vmatprep.subr.bf16.mxu0 0
    %6547 = vmatpush1.bf16.msra.mxu0 %v4807
    %6548 = vmatprep.subr.bf16.mxu0 0
    %6549 = vmatpush1.bf16.msra.mxu0 %v4806
    %6550 = vmatprep.subr.bf16.mxu0 0
    %6551 = vmatpush2.bf16.msra.mxu0 %v4821
    %6552 = vmatprep.subr.bf16.mxu0 0
    %6553 = vmatpush2.bf16.msra.mxu0 %v4820
    %6554 = vmatprep.subr.bf16.mxu0 0
    %6555 = vmatpush2.bf16.msra.mxu0 %v4819
    %6556 = vmatprep.subr.bf16.mxu0 0
    %6557 = vmatpush2.bf16.msra.mxu0 %v4818
    %6558 = vmatprep.subr.bf16.mxu0 0
    %6559 = vmatpush2.bf16.msra.mxu0 %v4817
    %6560 = vmatprep.subr.bf16.mxu0 0
    %6561 = vmatpush2.bf16.msra.mxu0 %v4816
    %6562 = vmatprep.subr.bf16.mxu0 0
    %6563 = vmatpush2.bf16.msra.mxu0 %v4815
    %6564 = vmatprep.subr.bf16.mxu0 0
    %6565 = vmatpush2.bf16.msra.mxu0 %v4814
    %6566 = vmatprep.mubr.bf16.mxu0 %v1581
    %6567 = vmatmul.mubr.bf16.gmra.mxu0 %v1567
    %v6568 = vpop.f32.mrf.mxu0
    %v6569 = vadd.f32 %v6529, %v6568
    %v6570 = vpop.f32.mrf.mxu0
    %v6571 = vpop.f32.mrf.mxu0
    %v6572 = vpop.f32.mrf.mxu0
    %6573 = vdwg.mxu0
    %6574 = vmatprep.subr.bf16.mxu0 0
    %6575 = vmatpush1.bf16.msra.mxu0 %v4829
    %6576 = vmatprep.subr.bf16.mxu0 0
    %6577 = vmatpush1.bf16.msra.mxu0 %v4828
    %6578 = vmatprep.subr.bf16.mxu0 0
    %6579 = vmatpush1.bf16.msra.mxu0 %v4827
    %6580 = vmatprep.subr.bf16.mxu0 0
    %6581 = vmatpush1.bf16.msra.mxu0 %v4826
    %6582 = vmatprep.subr.bf16.mxu0 0
    %6583 = vmatpush1.bf16.msra.mxu0 %v4825
    %6584 = vmatprep.subr.bf16.mxu0 0
    %6585 = vmatpush1.bf16.msra.mxu0 %v4824
    %6586 = vmatprep.subr.bf16.mxu0 0
    %6587 = vmatpush1.bf16.msra.mxu0 %v4823
    %6588 = vmatprep.subr.bf16.mxu0 0
    %6589 = vmatpush1.bf16.msra.mxu0 %v4822
    %6590 = vmatprep.subr.bf16.mxu0 0
    %6591 = vmatpush2.bf16.msra.mxu0 %v4837
    %6592 = vmatprep.subr.bf16.mxu0 0
    %6593 = vmatpush2.bf16.msra.mxu0 %v4836
    %6594 = vmatprep.subr.bf16.mxu0 0
    %6595 = vmatpush2.bf16.msra.mxu0 %v4835
    %6596 = vmatprep.subr.bf16.mxu0 0
    %6597 = vmatpush2.bf16.msra.mxu0 %v4834
    %6598 = vmatprep.subr.bf16.mxu0 0
    %6599 = vmatpush2.bf16.msra.mxu0 %v4833
    %6600 = vmatprep.subr.bf16.mxu0 0
    %6601 = vmatpush2.bf16.msra.mxu0 %v4832
    %6602 = vmatprep.subr.bf16.mxu0 0
    %6603 = vmatpush2.bf16.msra.mxu0 %v4831
    %6604 = vmatprep.subr.bf16.mxu0 0
    %6605 = vmatpush2.bf16.msra.mxu0 %v4830
    %6606 = vmatprep.mubr.bf16.mxu0 %v1585
    %6607 = vmatmul.mubr.bf16.gmra.mxu0 %v1583
    %v6608 = vpop.f32.mrf.mxu0
    %v6609 = vadd.f32 %v6569, %v6608
    %v6610 = vpop.f32.mrf.mxu0
    %v6611 = vpop.f32.mrf.mxu0
    %v6612 = vpop.f32.mrf.mxu0
    %6613 = vdwg.mxu0
    %6614 = vmatprep.subr.bf16.mxu0 0
    %6615 = vmatpush1.bf16.msra.mxu0 %v4845
    %6616 = vmatprep.subr.bf16.mxu0 0
    %6617 = vmatpush1.bf16.msra.mxu0 %v4844
    %6618 = vmatprep.subr.bf16.mxu0 0
    %6619 = vmatpush1.bf16.msra.mxu0 %v4843
    %6620 = vmatprep.subr.bf16.mxu0 0
    %6621 = vmatpush1.bf16.msra.mxu0 %v4842
    %6622 = vmatprep.subr.bf16.mxu0 0
    %6623 = vmatpush1.bf16.msra.mxu0 %v4841
    %6624 = vmatprep.subr.bf16.mxu0 0
    %6625 = vmatpush1.bf16.msra.mxu0 %v4840
    %6626 = vmatprep.subr.bf16.mxu0 0
    %6627 = vmatpush1.bf16.msra.mxu0 %v4839
    %6628 = vmatprep.subr.bf16.mxu0 0
    %6629 = vmatpush1.bf16.msra.mxu0 %v4838
    %6630 = vmatprep.subr.bf16.mxu0 0
    %6631 = vmatpush2.bf16.msra.mxu0 %v4853
    %6632 = vmatprep.subr.bf16.mxu0 0
    %6633 = vmatpush2.bf16.msra.mxu0 %v4852
    %6634 = vmatprep.subr.bf16.mxu0 0
    %6635 = vmatpush2.bf16.msra.mxu0 %v4851
    %6636 = vmatprep.subr.bf16.mxu0 0
    %6637 = vmatpush2.bf16.msra.mxu0 %v4850
    %6638 = vmatprep.subr.bf16.mxu0 0
    %6639 = vmatpush2.bf16.msra.mxu0 %v4849
    %6640 = vmatprep.subr.bf16.mxu0 0
    %6641 = vmatpush2.bf16.msra.mxu0 %v4848
    %6642 = vmatprep.subr.bf16.mxu0 0
    %6643 = vmatpush2.bf16.msra.mxu0 %v4847
    %6644 = vmatprep.subr.bf16.mxu0 0
    %6645 = vmatpush2.bf16.msra.mxu0 %v4846
    %6646 = vmatprep.mubr.bf16.mxu0 %v1623
    %6647 = vmatmul.mubr.bf16.gmra.mxu0 %v1609
    %v6648 = vpop.f32.mrf.mxu0
    %v6649 = vadd.f32 %v6609, %v6648
    %v6650 = vpop.f32.mrf.mxu0
    %v6651 = vpop.f32.mrf.mxu0
    %v6652 = vpop.f32.mrf.mxu0
    %6653 = vdwg.mxu0
    %6654 = vmatprep.subr.bf16.mxu0 0
    %6655 = vmatpush1.bf16.msra.mxu0 %v4861
    %6656 = vmatprep.subr.bf16.mxu0 0
    %6657 = vmatpush1.bf16.msra.mxu0 %v4860
    %6658 = vmatprep.subr.bf16.mxu0 0
    %6659 = vmatpush1.bf16.msra.mxu0 %v4859
    %6660 = vmatprep.subr.bf16.mxu0 0
    %6661 = vmatpush1.bf16.msra.mxu0 %v4858
    %6662 = vmatprep.subr.bf16.mxu0 0
    %6663 = vmatpush1.bf16.msra.mxu0 %v4857
    %6664 = vmatprep.subr.bf16.mxu0 0
    %6665 = vmatpush1.bf16.msra.mxu0 %v4856
    %6666 = vmatprep.subr.bf16.mxu0 0
    %6667 = vmatpush1.bf16.msra.mxu0 %v4855
    %6668 = vmatprep.subr.bf16.mxu0 0
    %6669 = vmatpush1.bf16.msra.mxu0 %v4854
    %6670 = vmatprep.subr.bf16.mxu0 0
    %6671 = vmatpush2.bf16.msra.mxu0 %v4869
    %6672 = vmatprep.subr.bf16.mxu0 0
    %6673 = vmatpush2.bf16.msra.mxu0 %v4868
    %6674 = vmatprep.subr.bf16.mxu0 0
    %6675 = vmatpush2.bf16.msra.mxu0 %v4867
    %6676 = vmatprep.subr.bf16.mxu0 0
    %6677 = vmatpush2.bf16.msra.mxu0 %v4866
    %6678 = vmatprep.subr.bf16.mxu0 0
    %6679 = vmatpush2.bf16.msra.mxu0 %v4865
    %6680 = vmatprep.subr.bf16.mxu0 0
    %6681 = vmatpush2.bf16.msra.mxu0 %v4864
    %6682 = vmatprep.subr.bf16.mxu0 0
    %6683 = vmatpush2.bf16.msra.mxu0 %v4863
    %6684 = vmatprep.subr.bf16.mxu0 0
    %6685 = vmatpush2.bf16.msra.mxu0 %v4862
    %6686 = vmatprep.mubr.bf16.mxu0 %v1633
    %6687 = vmatmul.mubr.bf16.gmra.mxu0 %v1631
    %v6688 = vpop.f32.mrf.mxu0
    %v6689 = vadd.f32 %v6649, %v6688
    %v6690 = vpop.f32.mrf.mxu0
    %v6691 = vpop.f32.mrf.mxu0
    %v6692 = vpop.f32.mrf.mxu0
    %6693 = vdwg.mxu0
    %6694 = vmatprep.subr.bf16.mxu0 0
    %6695 = vmatpush1.bf16.msra.mxu0 %v4877
    %6696 = vmatprep.subr.bf16.mxu0 0
    %6697 = vmatpush1.bf16.msra.mxu0 %v4876
    %6698 = vmatprep.subr.bf16.mxu0 0
    %6699 = vmatpush1.bf16.msra.mxu0 %v4875
    %6700 = vmatprep.subr.bf16.mxu0 0
    %6701 = vmatpush1.bf16.msra.mxu0 %v4874
    %6702 = vmatprep.subr.bf16.mxu0 0
    %6703 = vmatpush1.bf16.msra.mxu0 %v4873
    %6704 = vmatprep.subr.bf16.mxu0 0
    %6705 = vmatpush1.bf16.msra.mxu0 %v4872
    %6706 = vmatprep.subr.bf16.mxu0 0
    %6707 = vmatpush1.bf16.msra.mxu0 %v4871
    %6708 = vmatprep.subr.bf16.mxu0 0
    %6709 = vmatpush1.bf16.msra.mxu0 %v4870
    %6710 = vmatprep.subr.bf16.mxu0 0
    %6711 = vmatpush2.bf16.msra.mxu0 %v4885
    %6712 = vmatprep.subr.bf16.mxu0 0
    %6713 = vmatpush2.bf16.msra.mxu0 %v4884
    %6714 = vmatprep.subr.bf16.mxu0 0
    %6715 = vmatpush2.bf16.msra.mxu0 %v4883
    %6716 = vmatprep.subr.bf16.mxu0 0
    %6717 = vmatpush2.bf16.msra.mxu0 %v4882
    %6718 = vmatprep.subr.bf16.mxu0 0
    %6719 = vmatpush2.bf16.msra.mxu0 %v4881
    %6720 = vmatprep.subr.bf16.mxu0 0
    %6721 = vmatpush2.bf16.msra.mxu0 %v4880
    %6722 = vmatprep.subr.bf16.mxu0 0
    %6723 = vmatpush2.bf16.msra.mxu0 %v4879
    %6724 = vmatprep.subr.bf16.mxu0 0
    %6725 = vmatpush2.bf16.msra.mxu0 %v4878
    %6726 = vmatprep.mubr.bf16.mxu0 %v1630
    %6727 = vmatmul.mubr.bf16.gmra.mxu0 %v1616
    %v6728 = vpop.f32.mrf.mxu0
    %v6729 = vadd.f32 %v6689, %v6728
    %v6730 = vpop.f32.mrf.mxu0
    %v6731 = vpop.f32.mrf.mxu0
    %v6732 = vpop.f32.mrf.mxu0
    %6733 = vdwg.mxu0
    %6734 = vmatprep.subr.bf16.mxu0 0
    %6735 = vmatpush1.bf16.msra.mxu0 %v4893
    %6736 = vmatprep.subr.bf16.mxu0 0
    %6737 = vmatpush1.bf16.msra.mxu0 %v4892
    %6738 = vmatprep.subr.bf16.mxu0 0
    %6739 = vmatpush1.bf16.msra.mxu0 %v4891
    %6740 = vmatprep.subr.bf16.mxu0 0
    %6741 = vmatpush1.bf16.msra.mxu0 %v4890
    %6742 = vmatprep.subr.bf16.mxu0 0
    %6743 = vmatpush1.bf16.msra.mxu0 %v4889
    %6744 = vmatprep.subr.bf16.mxu0 0
    %6745 = vmatpush1.bf16.msra.mxu0 %v4888
    %6746 = vmatprep.subr.bf16.mxu0 0
    %6747 = vmatpush1.bf16.msra.mxu0 %v4887
    %6748 = vmatprep.subr.bf16.mxu0 0
    %6749 = vmatpush1.bf16.msra.mxu0 %v4886
    %6750 = vmatprep.subr.bf16.mxu0 0
    %6751 = vmatpush2.bf16.msra.mxu0 %v4901
    %6752 = vmatprep.subr.bf16.mxu0 0
    %6753 = vmatpush2.bf16.msra.mxu0 %v4900
    %6754 = vmatprep.subr.bf16.mxu0 0
    %6755 = vmatpush2.bf16.msra.mxu0 %v4899
    %6756 = vmatprep.subr.bf16.mxu0 0
    %6757 = vmatpush2.bf16.msra.mxu0 %v4898
    %6758 = vmatprep.subr.bf16.mxu0 0
    %6759 = vmatpush2.bf16.msra.mxu0 %v4897
    %6760 = vmatprep.subr.bf16.mxu0 0
    %6761 = vmatpush2.bf16.msra.mxu0 %v4896
    %6762 = vmatprep.subr.bf16.mxu0 0
    %6763 = vmatpush2.bf16.msra.mxu0 %v4895
    %6764 = vmatprep.subr.bf16.mxu0 0
    %6765 = vmatpush2.bf16.msra.mxu0 %v4894
    %6766 = vmatprep.mubr.bf16.mxu0 %v1634
    %6767 = vmatmul.mubr.bf16.gmra.mxu0 %v1632
    %v6768 = vpop.f32.mrf.mxu0
    %v6769 = vadd.f32 %v6729, %v6768
    %v6770 = vpop.f32.mrf.mxu0
    %v6771 = vpop.f32.mrf.mxu0
    %v6772 = vpop.f32.mrf.mxu0
    %6773 = vdwg.mxu0
    %6774 = vmatprep.subr.bf16.mxu0 0
    %6775 = vmatpush1.bf16.msra.mxu0 %v4909
    %6776 = vmatprep.subr.bf16.mxu0 0
    %6777 = vmatpush1.bf16.msra.mxu0 %v4908
    %6778 = vmatprep.subr.bf16.mxu0 0
    %6779 = vmatpush1.bf16.msra.mxu0 %v4907
    %6780 = vmatprep.subr.bf16.mxu0 0
    %6781 = vmatpush1.bf16.msra.mxu0 %v4906
    %6782 = vmatprep.subr.bf16.mxu0 0
    %6783 = vmatpush1.bf16.msra.mxu0 %v4905
    %6784 = vmatprep.subr.bf16.mxu0 0
    %6785 = vmatpush1.bf16.msra.mxu0 %v4904
    %6786 = vmatprep.subr.bf16.mxu0 0
    %6787 = vmatpush1.bf16.msra.mxu0 %v4903
    %6788 = vmatprep.subr.bf16.mxu0 0
    %6789 = vmatpush1.bf16.msra.mxu0 %v4902
    %6790 = vmatprep.subr.bf16.mxu0 0
    %6791 = vmatpush2.bf16.msra.mxu0 %v4917
    %6792 = vmatprep.subr.bf16.mxu0 0
    %6793 = vmatpush2.bf16.msra.mxu0 %v4916
    %6794 = vmatprep.subr.bf16.mxu0 0
    %6795 = vmatpush2.bf16.msra.mxu0 %v4915
    %6796 = vmatprep.subr.bf16.mxu0 0
    %6797 = vmatpush2.bf16.msra.mxu0 %v4914
    %6798 = vmatprep.subr.bf16.mxu0 0
    %6799 = vmatpush2.bf16.msra.mxu0 %v4913
    %6800 = vmatprep.subr.bf16.mxu0 0
    %6801 = vmatpush2.bf16.msra.mxu0 %v4912
    %6802 = vmatprep.subr.bf16.mxu0 0
    %6803 = vmatpush2.bf16.msra.mxu0 %v4911
    %6804 = vmatprep.subr.bf16.mxu0 0
    %6805 = vmatpush2.bf16.msra.mxu0 %v4910
    %6806 = vmatprep.mubr.bf16.mxu0 %v1672
    %6807 = vmatmul.mubr.bf16.gmra.mxu0 %v1658
    %v6808 = vpop.f32.mrf.mxu0
    %v6809 = vadd.f32 %v6769, %v6808
    %v6810 = vpop.f32.mrf.mxu0
    %v6811 = vpop.f32.mrf.mxu0
    %v6812 = vpop.f32.mrf.mxu0
    %6813 = vdwg.mxu0
    %6814 = vmatprep.subr.bf16.mxu0 0
    %6815 = vmatpush1.bf16.msra.mxu0 %v4925
    %6816 = vmatprep.subr.bf16.mxu0 0
    %6817 = vmatpush1.bf16.msra.mxu0 %v4924
    %6818 = vmatprep.subr.bf16.mxu0 0
    %6819 = vmatpush1.bf16.msra.mxu0 %v4923
    %6820 = vmatprep.subr.bf16.mxu0 0
    %6821 = vmatpush1.bf16.msra.mxu0 %v4922
    %6822 = vmatprep.subr.bf16.mxu0 0
    %6823 = vmatpush1.bf16.msra.mxu0 %v4921
    %6824 = vmatprep.subr.bf16.mxu0 0
    %6825 = vmatpush1.bf16.msra.mxu0 %v4920
    %6826 = vmatprep.subr.bf16.mxu0 0
    %6827 = vmatpush1.bf16.msra.mxu0 %v4919
    %6828 = vmatprep.subr.bf16.mxu0 0
    %6829 = vmatpush1.bf16.msra.mxu0 %v4918
    %6830 = vmatprep.subr.bf16.mxu0 0
    %6831 = vmatpush2.bf16.msra.mxu0 %v4933
    %6832 = vmatprep.subr.bf16.mxu0 0
    %6833 = vmatpush2.bf16.msra.mxu0 %v4932
    %6834 = vmatprep.subr.bf16.mxu0 0
    %6835 = vmatpush2.bf16.msra.mxu0 %v4931
    %6836 = vmatprep.subr.bf16.mxu0 0
    %6837 = vmatpush2.bf16.msra.mxu0 %v4930
    %6838 = vmatprep.subr.bf16.mxu0 0
    %6839 = vmatpush2.bf16.msra.mxu0 %v4929
    %6840 = vmatprep.subr.bf16.mxu0 0
    %6841 = vmatpush2.bf16.msra.mxu0 %v4928
    %6842 = vmatprep.subr.bf16.mxu0 0
    %6843 = vmatpush2.bf16.msra.mxu0 %v4927
    %6844 = vmatprep.subr.bf16.mxu0 0
    %6845 = vmatpush2.bf16.msra.mxu0 %v4926
    %6846 = vmatprep.mubr.bf16.mxu0 %v1682
    %6847 = vmatmul.mubr.bf16.gmra.mxu0 %v1680
    %v6848 = vpop.f32.mrf.mxu0
    %v6849 = vadd.f32 %v6809, %v6848
    %v6850 = vpop.f32.mrf.mxu0
    %v6851 = vpop.f32.mrf.mxu0
    %v6852 = vpop.f32.mrf.mxu0
    %6853 = vdwg.mxu0
    %6854 = vmatprep.subr.bf16.mxu0 0
    %6855 = vmatpush1.bf16.msra.mxu0 %v4941
    %6856 = vmatprep.subr.bf16.mxu0 0
    %6857 = vmatpush1.bf16.msra.mxu0 %v4940
    %6858 = vmatprep.subr.bf16.mxu0 0
    %6859 = vmatpush1.bf16.msra.mxu0 %v4939
    %6860 = vmatprep.subr.bf16.mxu0 0
    %6861 = vmatpush1.bf16.msra.mxu0 %v4938
    %6862 = vmatprep.subr.bf16.mxu0 0
    %6863 = vmatpush1.bf16.msra.mxu0 %v4937
    %6864 = vmatprep.subr.bf16.mxu0 0
    %6865 = vmatpush1.bf16.msra.mxu0 %v4936
    %6866 = vmatprep.subr.bf16.mxu0 0
    %6867 = vmatpush1.bf16.msra.mxu0 %v4935
    %6868 = vmatprep.subr.bf16.mxu0 0
    %6869 = vmatpush1.bf16.msra.mxu0 %v4934
    %6870 = vmatprep.subr.bf16.mxu0 0
    %6871 = vmatpush2.bf16.msra.mxu0 %v4949
    %6872 = vmatprep.subr.bf16.mxu0 0
    %6873 = vmatpush2.bf16.msra.mxu0 %v4948
    %6874 = vmatprep.subr.bf16.mxu0 0
    %6875 = vmatpush2.bf16.msra.mxu0 %v4947
    %6876 = vmatprep.subr.bf16.mxu0 0
    %6877 = vmatpush2.bf16.msra.mxu0 %v4946
    %6878 = vmatprep.subr.bf16.mxu0 0
    %6879 = vmatpush2.bf16.msra.mxu0 %v4945
    %6880 = vmatprep.subr.bf16.mxu0 0
    %6881 = vmatpush2.bf16.msra.mxu0 %v4944
    %6882 = vmatprep.subr.bf16.mxu0 0
    %6883 = vmatpush2.bf16.msra.mxu0 %v4943
    %6884 = vmatprep.subr.bf16.mxu0 0
    %6885 = vmatpush2.bf16.msra.mxu0 %v4942
    %6886 = vmatprep.mubr.bf16.mxu0 %v1679
    %6887 = vmatmul.mubr.bf16.gmra.mxu0 %v1665
    %v6888 = vpop.f32.mrf.mxu0
    %v6889 = vadd.f32 %v6849, %v6888
    %v6890 = vpop.f32.mrf.mxu0
    %v6891 = vpop.f32.mrf.mxu0
    %v6892 = vpop.f32.mrf.mxu0
    %6893 = vdwg.mxu0
    %6894 = vmatprep.subr.bf16.mxu0 0
    %6895 = vmatpush1.bf16.msra.mxu0 %v4957
    %6896 = vmatprep.subr.bf16.mxu0 0
    %6897 = vmatpush1.bf16.msra.mxu0 %v4956
    %6898 = vmatprep.subr.bf16.mxu0 0
    %6899 = vmatpush1.bf16.msra.mxu0 %v4955
    %6900 = vmatprep.subr.bf16.mxu0 0
    %6901 = vmatpush1.bf16.msra.mxu0 %v4954
    %6902 = vmatprep.subr.bf16.mxu0 0
    %6903 = vmatpush1.bf16.msra.mxu0 %v4953
    %6904 = vmatprep.subr.bf16.mxu0 0
    %6905 = vmatpush1.bf16.msra.mxu0 %v4952
    %6906 = vmatprep.subr.bf16.mxu0 0
    %6907 = vmatpush1.bf16.msra.mxu0 %v4951
    %6908 = vmatprep.subr.bf16.mxu0 0
    %6909 = vmatpush1.bf16.msra.mxu0 %v4950
    %6910 = vmatprep.subr.bf16.mxu0 0
    %6911 = vmatpush2.bf16.msra.mxu0 %v4965
    %6912 = vmatprep.subr.bf16.mxu0 0
    %6913 = vmatpush2.bf16.msra.mxu0 %v4964
    %6914 = vmatprep.subr.bf16.mxu0 0
    %6915 = vmatpush2.bf16.msra.mxu0 %v4963
    %6916 = vmatprep.subr.bf16.mxu0 0
    %6917 = vmatpush2.bf16.msra.mxu0 %v4962
    %6918 = vmatprep.subr.bf16.mxu0 0
    %6919 = vmatpush2.bf16.msra.mxu0 %v4961
    %6920 = vmatprep.subr.bf16.mxu0 0
    %6921 = vmatpush2.bf16.msra.mxu0 %v4960
    %6922 = vmatprep.subr.bf16.mxu0 0
    %6923 = vmatpush2.bf16.msra.mxu0 %v4959
    %6924 = vmatprep.subr.bf16.mxu0 0
    %6925 = vmatpush2.bf16.msra.mxu0 %v4958
    %6926 = vmatprep.mubr.bf16.mxu0 %v1683
    %6927 = vmatmul.mubr.bf16.gmra.mxu0 %v1681
    %v6928 = vpop.f32.mrf.mxu0
    %v6929 = vadd.f32 %v6889, %v6928
    %v6930 = vpop.f32.mrf.mxu0
    %v6931 = vpop.f32.mrf.mxu0
    %v6932 = vpop.f32.mrf.mxu0
    %6933 = vdwg.mxu0
    %6934 = vmatprep.subr.bf16.mxu0 0
    %6935 = vmatpush1.bf16.msra.mxu0 %v4973
    %6936 = vmatprep.subr.bf16.mxu0 0
    %6937 = vmatpush1.bf16.msra.mxu0 %v4972
    %6938 = vmatprep.subr.bf16.mxu0 0
    %6939 = vmatpush1.bf16.msra.mxu0 %v4971
    %6940 = vmatprep.subr.bf16.mxu0 0
    %6941 = vmatpush1.bf16.msra.mxu0 %v4970
    %6942 = vmatprep.subr.bf16.mxu0 0
    %6943 = vmatpush1.bf16.msra.mxu0 %v4969
    %6944 = vmatprep.subr.bf16.mxu0 0
    %6945 = vmatpush1.bf16.msra.mxu0 %v4968
    %6946 = vmatprep.subr.bf16.mxu0 0
    %6947 = vmatpush1.bf16.msra.mxu0 %v4967
    %6948 = vmatprep.subr.bf16.mxu0 0
    %6949 = vmatpush1.bf16.msra.mxu0 %v4966
    %6950 = vmatprep.subr.bf16.mxu0 0
    %6951 = vmatpush2.bf16.msra.mxu0 %v4981
    %6952 = vmatprep.subr.bf16.mxu0 0
    %6953 = vmatpush2.bf16.msra.mxu0 %v4980
    %6954 = vmatprep.subr.bf16.mxu0 0
    %6955 = vmatpush2.bf16.msra.mxu0 %v4979
    %6956 = vmatprep.subr.bf16.mxu0 0
    %6957 = vmatpush2.bf16.msra.mxu0 %v4978
    %6958 = vmatprep.subr.bf16.mxu0 0
    %6959 = vmatpush2.bf16.msra.mxu0 %v4977
    %6960 = vmatprep.subr.bf16.mxu0 0
    %6961 = vmatpush2.bf16.msra.mxu0 %v4976
    %6962 = vmatprep.subr.bf16.mxu0 0
    %6963 = vmatpush2.bf16.msra.mxu0 %v4975
    %6964 = vmatprep.subr.bf16.mxu0 0
    %6965 = vmatpush2.bf16.msra.mxu0 %v4974
    %6966 = vmatprep.mubr.bf16.mxu0 %v1721
    %6967 = vmatmul.mubr.bf16.gmra.mxu0 %v1707
    %v6968 = vpop.f32.mrf.mxu0
    %v6969 = vadd.f32 %v6929, %v6968
    %v6970 = vpop.f32.mrf.mxu0
    %v6971 = vpop.f32.mrf.mxu0
    %v6972 = vpop.f32.mrf.mxu0
    %6973 = vdwg.mxu0
    %6974 = vmatprep.subr.bf16.mxu0 0
    %6975 = vmatpush1.bf16.msra.mxu0 %v4989
    %6976 = vmatprep.subr.bf16.mxu0 0
    %6977 = vmatpush1.bf16.msra.mxu0 %v4988
    %6978 = vmatprep.subr.bf16.mxu0 0
    %6979 = vmatpush1.bf16.msra.mxu0 %v4987
    %6980 = vmatprep.subr.bf16.mxu0 0
    %6981 = vmatpush1.bf16.msra.mxu0 %v4986
    %6982 = vmatprep.subr.bf16.mxu0 0
    %6983 = vmatpush1.bf16.msra.mxu0 %v4985
    %6984 = vmatprep.subr.bf16.mxu0 0
    %6985 = vmatpush1.bf16.msra.mxu0 %v4984
    %6986 = vmatprep.subr.bf16.mxu0 0
    %6987 = vmatpush1.bf16.msra.mxu0 %v4983
    %6988 = vmatprep.subr.bf16.mxu0 0
    %6989 = vmatpush1.bf16.msra.mxu0 %v4982
    %6990 = vmatprep.subr.bf16.mxu0 0
    %6991 = vmatpush2.bf16.msra.mxu0 %v4997
    %6992 = vmatprep.subr.bf16.mxu0 0
    %6993 = vmatpush2.bf16.msra.mxu0 %v4996
    %6994 = vmatprep.subr.bf16.mxu0 0
    %6995 = vmatpush2.bf16.msra.mxu0 %v4995
    %6996 = vmatprep.subr.bf16.mxu0 0
    %6997 = vmatpush2.bf16.msra.mxu0 %v4994
    %6998 = vmatprep.subr.bf16.mxu0 0
    %6999 = vmatpush2.bf16.msra.mxu0 %v4993
    %7000 = vmatprep.subr.bf16.mxu0 0
    %7001 = vmatpush2.bf16.msra.mxu0 %v4992
    %7002 = vmatprep.subr.bf16.mxu0 0
    %7003 = vmatpush2.bf16.msra.mxu0 %v4991
    %7004 = vmatprep.subr.bf16.mxu0 0
    %7005 = vmatpush2.bf16.msra.mxu0 %v4990
    %7006 = vmatprep.mubr.bf16.mxu0 %v1731
    %7007 = vmatmul.mubr.bf16.gmra.mxu0 %v1729
    %v7008 = vpop.f32.mrf.mxu0
    %v7009 = vadd.f32 %v6969, %v7008
    %v7010 = vpop.f32.mrf.mxu0
    %v7011 = vpop.f32.mrf.mxu0
    %v7012 = vpop.f32.mrf.mxu0
    %7013 = vdwg.mxu0
    %7014 = vmatprep.subr.bf16.mxu0 0
    %7015 = vmatpush1.bf16.msra.mxu0 %v5005
    %7016 = vmatprep.subr.bf16.mxu0 0
    %7017 = vmatpush1.bf16.msra.mxu0 %v5004
    %7018 = vmatprep.subr.bf16.mxu0 0
    %7019 = vmatpush1.bf16.msra.mxu0 %v5003
    %7020 = vmatprep.subr.bf16.mxu0 0
    %7021 = vmatpush1.bf16.msra.mxu0 %v5002
    %7022 = vmatprep.subr.bf16.mxu0 0
    %7023 = vmatpush1.bf16.msra.mxu0 %v5001
    %7024 = vmatprep.subr.bf16.mxu0 0
    %7025 = vmatpush1.bf16.msra.mxu0 %v5000
    %7026 = vmatprep.subr.bf16.mxu0 0
    %7027 = vmatpush1.bf16.msra.mxu0 %v4999
    %7028 = vmatprep.subr.bf16.mxu0 0
    %7029 = vmatpush1.bf16.msra.mxu0 %v4998
    %7030 = vmatprep.subr.bf16.mxu0 0
    %7031 = vmatpush2.bf16.msra.mxu0 %v5013
    %7032 = vmatprep.subr.bf16.mxu0 0
    %7033 = vmatpush2.bf16.msra.mxu0 %v5012
    %7034 = vmatprep.subr.bf16.mxu0 0
    %7035 = vmatpush2.bf16.msra.mxu0 %v5011
    %7036 = vmatprep.subr.bf16.mxu0 0
    %7037 = vmatpush2.bf16.msra.mxu0 %v5010
    %7038 = vmatprep.subr.bf16.mxu0 0
    %7039 = vmatpush2.bf16.msra.mxu0 %v5009
    %7040 = vmatprep.subr.bf16.mxu0 0
    %7041 = vmatpush2.bf16.msra.mxu0 %v5008
    %7042 = vmatprep.subr.bf16.mxu0 0
    %7043 = vmatpush2.bf16.msra.mxu0 %v5007
    %7044 = vmatprep.subr.bf16.mxu0 0
    %7045 = vmatpush2.bf16.msra.mxu0 %v5006
    %7046 = vmatprep.mubr.bf16.mxu0 %v1728
    %7047 = vmatmul.mubr.bf16.gmra.mxu0 %v1714
    %v7048 = vpop.f32.mrf.mxu0
    %v7049 = vadd.f32 %v7009, %v7048
    %v7050 = vpop.f32.mrf.mxu0
    %v7051 = vpop.f32.mrf.mxu0
    %v7052 = vpop.f32.mrf.mxu0
    %7053 = vdwg.mxu0
    %7054 = vmatprep.subr.bf16.mxu0 0
    %7055 = vmatpush1.bf16.msra.mxu0 %v5021
    %7056 = vmatprep.subr.bf16.mxu0 0
    %7057 = vmatpush1.bf16.msra.mxu0 %v5020
    %7058 = vmatprep.subr.bf16.mxu0 0
    %7059 = vmatpush1.bf16.msra.mxu0 %v5019
    %7060 = vmatprep.subr.bf16.mxu0 0
    %7061 = vmatpush1.bf16.msra.mxu0 %v5018
    %7062 = vmatprep.subr.bf16.mxu0 0
    %7063 = vmatpush1.bf16.msra.mxu0 %v5017
    %7064 = vmatprep.subr.bf16.mxu0 0
    %7065 = vmatpush1.bf16.msra.mxu0 %v5016
    %7066 = vmatprep.subr.bf16.mxu0 0
    %7067 = vmatpush1.bf16.msra.mxu0 %v5015
    %7068 = vmatprep.subr.bf16.mxu0 0
    %7069 = vmatpush1.bf16.msra.mxu0 %v5014
    %7070 = vmatprep.subr.bf16.mxu0 0
    %7071 = vmatpush2.bf16.msra.mxu0 %v5029
    %7072 = vmatprep.subr.bf16.mxu0 0
    %7073 = vmatpush2.bf16.msra.mxu0 %v5028
    %7074 = vmatprep.subr.bf16.mxu0 0
    %7075 = vmatpush2.bf16.msra.mxu0 %v5027
    %7076 = vmatprep.subr.bf16.mxu0 0
    %7077 = vmatpush2.bf16.msra.mxu0 %v5026
    %7078 = vmatprep.subr.bf16.mxu0 0
    %7079 = vmatpush2.bf16.msra.mxu0 %v5025
    %7080 = vmatprep.subr.bf16.mxu0 0
    %7081 = vmatpush2.bf16.msra.mxu0 %v5024
    %7082 = vmatprep.subr.bf16.mxu0 0
    %7083 = vmatpush2.bf16.msra.mxu0 %v5023
    %7084 = vmatprep.subr.bf16.mxu0 0
    %7085 = vmatpush2.bf16.msra.mxu0 %v5022
    %7086 = vmatprep.mubr.bf16.mxu0 %v1732
    %7087 = vmatmul.mubr.bf16.gmra.mxu0 %v1730
    %v7088 = vpop.f32.mrf.mxu0
    %v7089 = vadd.f32 %v7049, %v7088
    %v7090 = vpop.f32.mrf.mxu0
    %v7091 = vpop.f32.mrf.mxu0
    %v7092 = vpop.f32.mrf.mxu0
    %7093 = vdwg.mxu0
    %7094 = vmatprep.subr.bf16.mxu0 0
    %7095 = vmatpush1.bf16.msra.mxu0 %v5037
    %7096 = vmatprep.subr.bf16.mxu0 0
    %7097 = vmatpush1.bf16.msra.mxu0 %v5036
    %7098 = vmatprep.subr.bf16.mxu0 0
    %7099 = vmatpush1.bf16.msra.mxu0 %v5035
    %7100 = vmatprep.subr.bf16.mxu0 0
    %7101 = vmatpush1.bf16.msra.mxu0 %v5034
    %7102 = vmatprep.subr.bf16.mxu0 0
    %7103 = vmatpush1.bf16.msra.mxu0 %v5033
    %7104 = vmatprep.subr.bf16.mxu0 0
    %7105 = vmatpush1.bf16.msra.mxu0 %v5032
    %7106 = vmatprep.subr.bf16.mxu0 0
    %7107 = vmatpush1.bf16.msra.mxu0 %v5031
    %7108 = vmatprep.subr.bf16.mxu0 0
    %7109 = vmatpush1.bf16.msra.mxu0 %v5030
    %7110 = vmatprep.subr.bf16.mxu0 0
    %7111 = vmatpush2.bf16.msra.mxu0 %v5045
    %7112 = vmatprep.subr.bf16.mxu0 0
    %7113 = vmatpush2.bf16.msra.mxu0 %v5044
    %7114 = vmatprep.subr.bf16.mxu0 0
    %7115 = vmatpush2.bf16.msra.mxu0 %v5043
    %7116 = vmatprep.subr.bf16.mxu0 0
    %7117 = vmatpush2.bf16.msra.mxu0 %v5042
    %7118 = vmatprep.subr.bf16.mxu0 0
    %7119 = vmatpush2.bf16.msra.mxu0 %v5041
    %7120 = vmatprep.subr.bf16.mxu0 0
    %7121 = vmatpush2.bf16.msra.mxu0 %v5040
    %7122 = vmatprep.subr.bf16.mxu0 0
    %7123 = vmatpush2.bf16.msra.mxu0 %v5039
    %7124 = vmatprep.subr.bf16.mxu0 0
    %7125 = vmatpush2.bf16.msra.mxu0 %v5038
    %7126 = vmatprep.mubr.bf16.mxu0 %v1770
    %7127 = vmatmul.mubr.bf16.gmra.mxu0 %v1756
    %v7128 = vpop.f32.mrf.mxu0
    %v7129 = vadd.f32 %v7089, %v7128
    %v7130 = vpop.f32.mrf.mxu0
    %v7131 = vpop.f32.mrf.mxu0
    %v7132 = vpop.f32.mrf.mxu0
    %7133 = vdwg.mxu0
    %7134 = vmatprep.subr.bf16.mxu0 0
    %7135 = vmatpush1.bf16.msra.mxu0 %v5053
    %7136 = vmatprep.subr.bf16.mxu0 0
    %7137 = vmatpush1.bf16.msra.mxu0 %v5052
    %7138 = vmatprep.subr.bf16.mxu0 0
    %7139 = vmatpush1.bf16.msra.mxu0 %v5051
    %7140 = vmatprep.subr.bf16.mxu0 0
    %7141 = vmatpush1.bf16.msra.mxu0 %v5050
    %7142 = vmatprep.subr.bf16.mxu0 0
    %7143 = vmatpush1.bf16.msra.mxu0 %v5049
    %7144 = vmatprep.subr.bf16.mxu0 0
    %7145 = vmatpush1.bf16.msra.mxu0 %v5048
    %7146 = vmatprep.subr.bf16.mxu0 0
    %7147 = vmatpush1.bf16.msra.mxu0 %v5047
    %7148 = vmatprep.subr.bf16.mxu0 0
    %7149 = vmatpush1.bf16.msra.mxu0 %v5046
    %7150 = vmatprep.subr.bf16.mxu0 0
    %7151 = vmatpush2.bf16.msra.mxu0 %v5061
    %7152 = vmatprep.subr.bf16.mxu0 0
    %7153 = vmatpush2.bf16.msra.mxu0 %v5060
    %7154 = vmatprep.subr.bf16.mxu0 0
    %7155 = vmatpush2.bf16.msra.mxu0 %v5059
    %7156 = vmatprep.subr.bf16.mxu0 0
    %7157 = vmatpush2.bf16.msra.mxu0 %v5058
    %7158 = vmatprep.subr.bf16.mxu0 0
    %7159 = vmatpush2.bf16.msra.mxu0 %v5057
    %7160 = vmatprep.subr.bf16.mxu0 0
    %7161 = vmatpush2.bf16.msra.mxu0 %v5056
    %7162 = vmatprep.subr.bf16.mxu0 0
    %7163 = vmatpush2.bf16.msra.mxu0 %v5055
    %7164 = vmatprep.subr.bf16.mxu0 0
    %7165 = vmatpush2.bf16.msra.mxu0 %v5054
    %7166 = vmatprep.mubr.bf16.mxu0 %v1780
    %7167 = vmatmul.mubr.bf16.gmra.mxu0 %v1778
    %v7168 = vpop.f32.mrf.mxu0
    %v7169 = vadd.f32 %v7129, %v7168
    %v7170 = vpop.f32.mrf.mxu0
    %v7171 = vpop.f32.mrf.mxu0
    %v7172 = vpop.f32.mrf.mxu0
    %7173 = vdwg.mxu0
    %7174 = vmatprep.subr.bf16.mxu0 0
    %7175 = vmatpush1.bf16.msra.mxu0 %v5069
    %7176 = vmatprep.subr.bf16.mxu0 0
    %7177 = vmatpush1.bf16.msra.mxu0 %v5068
    %7178 = vmatprep.subr.bf16.mxu0 0
    %7179 = vmatpush1.bf16.msra.mxu0 %v5067
    %7180 = vmatprep.subr.bf16.mxu0 0
    %7181 = vmatpush1.bf16.msra.mxu0 %v5066
    %7182 = vmatprep.subr.bf16.mxu0 0
    %7183 = vmatpush1.bf16.msra.mxu0 %v5065
    %7184 = vmatprep.subr.bf16.mxu0 0
    %7185 = vmatpush1.bf16.msra.mxu0 %v5064
    %7186 = vmatprep.subr.bf16.mxu0 0
    %7187 = vmatpush1.bf16.msra.mxu0 %v5063
    %7188 = vmatprep.subr.bf16.mxu0 0
    %7189 = vmatpush1.bf16.msra.mxu0 %v5062
    %7190 = vmatprep.subr.bf16.mxu0 0
    %7191 = vmatpush2.bf16.msra.mxu0 %v5077
    %7192 = vmatprep.subr.bf16.mxu0 0
    %7193 = vmatpush2.bf16.msra.mxu0 %v5076
    %7194 = vmatprep.subr.bf16.mxu0 0
    %7195 = vmatpush2.bf16.msra.mxu0 %v5075
    %7196 = vmatprep.subr.bf16.mxu0 0
    %7197 = vmatpush2.bf16.msra.mxu0 %v5074
    %7198 = vmatprep.subr.bf16.mxu0 0
    %7199 = vmatpush2.bf16.msra.mxu0 %v5073
    %7200 = vmatprep.subr.bf16.mxu0 0
    %7201 = vmatpush2.bf16.msra.mxu0 %v5072
    %7202 = vmatprep.subr.bf16.mxu0 0
    %7203 = vmatpush2.bf16.msra.mxu0 %v5071
    %7204 = vmatprep.subr.bf16.mxu0 0
    %7205 = vmatpush2.bf16.msra.mxu0 %v5070
    %7206 = vmatprep.mubr.bf16.mxu0 %v1777
    %7207 = vmatmul.mubr.bf16.gmra.mxu0 %v1763
    %v7208 = vpop.f32.mrf.mxu0
    %v7209 = vadd.f32 %v7169, %v7208
    %v7210 = vpop.f32.mrf.mxu0
    %v7211 = vpop.f32.mrf.mxu0
    %v7212 = vpop.f32.mrf.mxu0
    %7213 = vdwg.mxu0
    %7214 = vmatprep.subr.bf16.mxu0 0
    %7215 = vmatpush1.bf16.msra.mxu0 %v5085
    %7216 = vmatprep.subr.bf16.mxu0 0
    %7217 = vmatpush1.bf16.msra.mxu0 %v5084
    %7218 = vmatprep.subr.bf16.mxu0 0
    %7219 = vmatpush1.bf16.msra.mxu0 %v5083
    %7220 = vmatprep.subr.bf16.mxu0 0
    %7221 = vmatpush1.bf16.msra.mxu0 %v5082
    %7222 = vmatprep.subr.bf16.mxu0 0
    %7223 = vmatpush1.bf16.msra.mxu0 %v5081
    %7224 = vmatprep.subr.bf16.mxu0 0
    %7225 = vmatpush1.bf16.msra.mxu0 %v5080
    %7226 = vmatprep.subr.bf16.mxu0 0
    %7227 = vmatpush1.bf16.msra.mxu0 %v5079
    %7228 = vmatprep.subr.bf16.mxu0 0
    %7229 = vmatpush1.bf16.msra.mxu0 %v5078
    %7230 = vmatprep.subr.bf16.mxu0 0
    %7231 = vmatpush2.bf16.msra.mxu0 %v5093
    %7232 = vmatprep.subr.bf16.mxu0 0
    %7233 = vmatpush2.bf16.msra.mxu0 %v5092
    %7234 = vmatprep.subr.bf16.mxu0 0
    %7235 = vmatpush2.bf16.msra.mxu0 %v5091
    %7236 = vmatprep.subr.bf16.mxu0 0
    %7237 = vmatpush2.bf16.msra.mxu0 %v5090
    %7238 = vmatprep.subr.bf16.mxu0 0
    %7239 = vmatpush2.bf16.msra.mxu0 %v5089
    %7240 = vmatprep.subr.bf16.mxu0 0
    %7241 = vmatpush2.bf16.msra.mxu0 %v5088
    %7242 = vmatprep.subr.bf16.mxu0 0
    %7243 = vmatpush2.bf16.msra.mxu0 %v5087
    %7244 = vmatprep.subr.bf16.mxu0 0
    %7245 = vmatpush2.bf16.msra.mxu0 %v5086
    %7246 = vmatprep.mubr.bf16.mxu0 %v1781
    %7247 = vmatmul.mubr.bf16.gmra.mxu0 %v1779
    %v7248 = vpop.f32.mrf.mxu0
    %v7249 = vadd.f32 %v7209, %v7248
    %v7250 = vpop.f32.mrf.mxu0
    %v7251 = vpop.f32.mrf.mxu0
    %v7252 = vpop.f32.mrf.mxu0
    %7253 = vdwg.mxu0
    %7254 = vmatprep.subr.bf16.mxu0 0
    %7255 = vmatpush1.bf16.msra.mxu0 %v5101
    %7256 = vmatprep.subr.bf16.mxu0 0
    %7257 = vmatpush1.bf16.msra.mxu0 %v5100
    %7258 = vmatprep.subr.bf16.mxu0 0
    %7259 = vmatpush1.bf16.msra.mxu0 %v5099
    %7260 = vmatprep.subr.bf16.mxu0 0
    %7261 = vmatpush1.bf16.msra.mxu0 %v5098
    %7262 = vmatprep.subr.bf16.mxu0 0
    %7263 = vmatpush1.bf16.msra.mxu0 %v5097
    %7264 = vmatprep.subr.bf16.mxu0 0
    %7265 = vmatpush1.bf16.msra.mxu0 %v5096
    %7266 = vmatprep.subr.bf16.mxu0 0
    %7267 = vmatpush1.bf16.msra.mxu0 %v5095
    %7268 = vmatprep.subr.bf16.mxu0 0
    %7269 = vmatpush1.bf16.msra.mxu0 %v5094
    %7270 = vmatprep.subr.bf16.mxu0 0
    %7271 = vmatpush2.bf16.msra.mxu0 %v5109
    %7272 = vmatprep.subr.bf16.mxu0 0
    %7273 = vmatpush2.bf16.msra.mxu0 %v5108
    %7274 = vmatprep.subr.bf16.mxu0 0
    %7275 = vmatpush2.bf16.msra.mxu0 %v5107
    %7276 = vmatprep.subr.bf16.mxu0 0
    %7277 = vmatpush2.bf16.msra.mxu0 %v5106
    %7278 = vmatprep.subr.bf16.mxu0 0
    %7279 = vmatpush2.bf16.msra.mxu0 %v5105
    %7280 = vmatprep.subr.bf16.mxu0 0
    %7281 = vmatpush2.bf16.msra.mxu0 %v5104
    %7282 = vmatprep.subr.bf16.mxu0 0
    %7283 = vmatpush2.bf16.msra.mxu0 %v5103
    %7284 = vmatprep.subr.bf16.mxu0 0
    %7285 = vmatpush2.bf16.msra.mxu0 %v5102
    %7286 = vmatprep.mubr.bf16.mxu0 %v1819
    %7287 = vmatmul.mubr.bf16.gmra.mxu0 %v1805
    %v7288 = vpop.f32.mrf.mxu0
    %v7289 = vadd.f32 %v7249, %v7288
    %v7290 = vpop.f32.mrf.mxu0
    %v7291 = vpop.f32.mrf.mxu0
    %v7292 = vpop.f32.mrf.mxu0
    %7293 = vdwg.mxu0
    %7294 = vmatprep.subr.bf16.mxu0 0
    %7295 = vmatpush1.bf16.msra.mxu0 %v5117
    %7296 = vmatprep.subr.bf16.mxu0 0
    %7297 = vmatpush1.bf16.msra.mxu0 %v5116
    %7298 = vmatprep.subr.bf16.mxu0 0
    %7299 = vmatpush1.bf16.msra.mxu0 %v5115
    %7300 = vmatprep.subr.bf16.mxu0 0
    %7301 = vmatpush1.bf16.msra.mxu0 %v5114
    %7302 = vmatprep.subr.bf16.mxu0 0
    %7303 = vmatpush1.bf16.msra.mxu0 %v5113
    %7304 = vmatprep.subr.bf16.mxu0 0
    %7305 = vmatpush1.bf16.msra.mxu0 %v5112
    %7306 = vmatprep.subr.bf16.mxu0 0
    %7307 = vmatpush1.bf16.msra.mxu0 %v5111
    %7308 = vmatprep.subr.bf16.mxu0 0
    %7309 = vmatpush1.bf16.msra.mxu0 %v5110
    %7310 = vmatprep.subr.bf16.mxu0 0
    %7311 = vmatpush2.bf16.msra.mxu0 %v5125
    %7312 = vmatprep.subr.bf16.mxu0 0
    %7313 = vmatpush2.bf16.msra.mxu0 %v5124
    %7314 = vmatprep.subr.bf16.mxu0 0
    %7315 = vmatpush2.bf16.msra.mxu0 %v5123
    %7316 = vmatprep.subr.bf16.mxu0 0
    %7317 = vmatpush2.bf16.msra.mxu0 %v5122
    %7318 = vmatprep.subr.bf16.mxu0 0
    %7319 = vmatpush2.bf16.msra.mxu0 %v5121
    %7320 = vmatprep.subr.bf16.mxu0 0
    %7321 = vmatpush2.bf16.msra.mxu0 %v5120
    %7322 = vmatprep.subr.bf16.mxu0 0
    %7323 = vmatpush2.bf16.msra.mxu0 %v5119
    %7324 = vmatprep.subr.bf16.mxu0 0
    %7325 = vmatpush2.bf16.msra.mxu0 %v5118
    %7326 = vmatprep.mubr.bf16.mxu0 %v1829
    %7327 = vmatmul.mubr.bf16.gmra.mxu0 %v1827
    %v7328 = vpop.f32.mrf.mxu0
    %v7329 = vadd.f32 %v7289, %v7328
    %v7330 = vpop.f32.mrf.mxu0
    %v7331 = vpop.f32.mrf.mxu0
    %v7332 = vpop.f32.mrf.mxu0
    %7333 = vdwg.mxu0
    %7334 = vmatprep.subr.bf16.mxu0 0
    %7335 = vmatpush1.bf16.msra.mxu0 %v5133
    %7336 = vmatprep.subr.bf16.mxu0 0
    %7337 = vmatpush1.bf16.msra.mxu0 %v5132
    %7338 = vmatprep.subr.bf16.mxu0 0
    %7339 = vmatpush1.bf16.msra.mxu0 %v5131
    %7340 = vmatprep.subr.bf16.mxu0 0
    %7341 = vmatpush1.bf16.msra.mxu0 %v5130
    %7342 = vmatprep.subr.bf16.mxu0 0
    %7343 = vmatpush1.bf16.msra.mxu0 %v5129
    %7344 = vmatprep.subr.bf16.mxu0 0
    %7345 = vmatpush1.bf16.msra.mxu0 %v5128
    %7346 = vmatprep.subr.bf16.mxu0 0
    %7347 = vmatpush1.bf16.msra.mxu0 %v5127
    %7348 = vmatprep.subr.bf16.mxu0 0
    %7349 = vmatpush1.bf16.msra.mxu0 %v5126
    %7350 = vmatprep.subr.bf16.mxu0 0
    %7351 = vmatpush2.bf16.msra.mxu0 %v5141
    %7352 = vmatprep.subr.bf16.mxu0 0
    %7353 = vmatpush2.bf16.msra.mxu0 %v5140
    %7354 = vmatprep.subr.bf16.mxu0 0
    %7355 = vmatpush2.bf16.msra.mxu0 %v5139
    %7356 = vmatprep.subr.bf16.mxu0 0
    %7357 = vmatpush2.bf16.msra.mxu0 %v5138
    %7358 = vmatprep.subr.bf16.mxu0 0
    %7359 = vmatpush2.bf16.msra.mxu0 %v5137
    %7360 = vmatprep.subr.bf16.mxu0 0
    %7361 = vmatpush2.bf16.msra.mxu0 %v5136
    %7362 = vmatprep.subr.bf16.mxu0 0
    %7363 = vmatpush2.bf16.msra.mxu0 %v5135
    %7364 = vmatprep.subr.bf16.mxu0 0
    %7365 = vmatpush2.bf16.msra.mxu0 %v5134
    %7366 = vmatprep.mubr.bf16.mxu0 %v1826
    %7367 = vmatmul.mubr.bf16.gmra.mxu0 %v1812
    %v7368 = vpop.f32.mrf.mxu0
    %v7369 = vadd.f32 %v7329, %v7368
    %v7370 = vpop.f32.mrf.mxu0
    %v7371 = vpop.f32.mrf.mxu0
    %v7372 = vpop.f32.mrf.mxu0
    %7373 = vdwg.mxu0
    %7374 = vmatprep.subr.bf16.mxu0 0
    %7375 = vmatpush1.bf16.msra.mxu0 %v5149
    %7376 = vmatprep.subr.bf16.mxu0 0
    %7377 = vmatpush1.bf16.msra.mxu0 %v5148
    %7378 = vmatprep.subr.bf16.mxu0 0
    %7379 = vmatpush1.bf16.msra.mxu0 %v5147
    %7380 = vmatprep.subr.bf16.mxu0 0
    %7381 = vmatpush1.bf16.msra.mxu0 %v5146
    %7382 = vmatprep.subr.bf16.mxu0 0
    %7383 = vmatpush1.bf16.msra.mxu0 %v5145
    %7384 = vmatprep.subr.bf16.mxu0 0
    %7385 = vmatpush1.bf16.msra.mxu0 %v5144
    %7386 = vmatprep.subr.bf16.mxu0 0
    %7387 = vmatpush1.bf16.msra.mxu0 %v5143
    %7388 = vmatprep.subr.bf16.mxu0 0
    %7389 = vmatpush1.bf16.msra.mxu0 %v5142
    %7390 = vmatprep.subr.bf16.mxu0 0
    %7391 = vmatpush2.bf16.msra.mxu0 %v5157
    %7392 = vmatprep.subr.bf16.mxu0 0
    %7393 = vmatpush2.bf16.msra.mxu0 %v5156
    %7394 = vmatprep.subr.bf16.mxu0 0
    %7395 = vmatpush2.bf16.msra.mxu0 %v5155
    %7396 = vmatprep.subr.bf16.mxu0 0
    %7397 = vmatpush2.bf16.msra.mxu0 %v5154
    %7398 = vmatprep.subr.bf16.mxu0 0
    %7399 = vmatpush2.bf16.msra.mxu0 %v5153
    %7400 = vmatprep.subr.bf16.mxu0 0
    %7401 = vmatpush2.bf16.msra.mxu0 %v5152
    %7402 = vmatprep.subr.bf16.mxu0 0
    %7403 = vmatpush2.bf16.msra.mxu0 %v5151
    %7404 = vmatprep.subr.bf16.mxu0 0
    %7405 = vmatpush2.bf16.msra.mxu0 %v5150
    %7406 = vmatprep.mubr.bf16.mxu0 %v1830
    %7407 = vmatmul.mubr.bf16.gmra.mxu0 %v1828
    %v7408 = vpop.f32.mrf.mxu0
    %v7409 = vadd.f32 %v7369, %v7408
    %v7410 = vpop.f32.mrf.mxu0
    %v7411 = vpop.f32.mrf.mxu0
    %v7412 = vpop.f32.mrf.mxu0
    %7413 = vdwg.mxu0
    %7414 = vmatprep.subr.bf16.mxu0 0
    %7415 = vmatpush1.bf16.msra.mxu0 %v5165
    %7416 = vmatprep.subr.bf16.mxu0 0
    %7417 = vmatpush1.bf16.msra.mxu0 %v5164
    %7418 = vmatprep.subr.bf16.mxu0 0
    %7419 = vmatpush1.bf16.msra.mxu0 %v5163
    %7420 = vmatprep.subr.bf16.mxu0 0
    %7421 = vmatpush1.bf16.msra.mxu0 %v5162
    %7422 = vmatprep.subr.bf16.mxu0 0
    %7423 = vmatpush1.bf16.msra.mxu0 %v5161
    %7424 = vmatprep.subr.bf16.mxu0 0
    %7425 = vmatpush1.bf16.msra.mxu0 %v5160
    %7426 = vmatprep.subr.bf16.mxu0 0
    %7427 = vmatpush1.bf16.msra.mxu0 %v5159
    %7428 = vmatprep.subr.bf16.mxu0 0
    %7429 = vmatpush1.bf16.msra.mxu0 %v5158
    %7430 = vmatprep.subr.bf16.mxu0 0
    %7431 = vmatpush2.bf16.msra.mxu0 0
    %7432 = vmatprep.subr.bf16.mxu0 0
    %7433 = vmatpush2.bf16.msra.mxu0 0
    %7434 = vmatprep.subr.bf16.mxu0 0
    %7435 = vmatpush2.bf16.msra.mxu0 0
    %7436 = vmatprep.subr.bf16.mxu0 0
    %7437 = vmatpush2.bf16.msra.mxu0 0
    %7438 = vmatprep.subr.bf16.mxu0 0
    %7439 = vmatpush2.bf16.msra.mxu0 0
    %7440 = vmatprep.subr.bf16.mxu0 0
    %7441 = vmatpush2.bf16.msra.mxu0 0
    %7442 = vmatprep.subr.bf16.mxu0 0
    %7443 = vmatpush2.bf16.msra.mxu0 0
    %7444 = vmatprep.subr.bf16.mxu0 0
    %7445 = vmatpush2.bf16.msra.mxu0 0
    %7446 = vmatprep.mubr.bf16.mxu0 0
    %7447 = vmatmul.mubr.bf16.gmra.mxu0 %v1844
    %v7448 = vpop.f32.mrf.mxu0
    %v7449 = vadd.f32 %v7409, %v7448
    %v7450 = vpop.f32.mrf.mxu0
    %v7451 = vpop.f32.mrf.mxu0
    %v7452 = vpop.f32.mrf.mxu0
    %7453 = vdwg.mxu0
    %v7454 = vadd.f32 %v22, %v7449
    %vm7455 = vcmask 41984
    %7456 = vst.msk [vmem:[#allocation2] sm:$0x3] %vm7455, %v7454
    // Predicated region
    $region18: #{brain_cnn_forward.7} parent=1 // pred_check
      %p7457 = pneg %p16
    $region19: #{brain_cnn_forward.7} parent=1 // pred_check_branch
      %7459 = sbr.rel (%p7457) target = $region21
    $region20: #{brain_cnn_forward.7} parent=1 // pred_region
      %v7460 = vld [vmem:[#allocation2] sm:$0x3]
      %v7461 = vld [vmem:[%s2] sm:$0x1]
      %v7463 = vlaneseq
      %v7464 = vshrl.u32 %v7463, 7
      %v7465 = vsub.s32 0, %v7464
      %v7466 = vrot.slane %v7461, %v7465
      %v7468 = vadd.f32 %v7460, %v7466
      %7469 = vst.msk [vmem:[#allocation3] sm:$0x3] %vm7455, %v7468
    $region21: #{brain_cnn_forward.7} parent=1 // pred_fallthru
      _
    // Predicated region
    $region22: #{brain_cnn_forward.7} parent=1 // pred_check
      _
    $region23: #{brain_cnn_forward.7} parent=1 // pred_check_branch
      %7471 = sbr.rel (0) target = $region25
    $region24: #{brain_cnn_forward.7} parent=1 // pred_region
      %s7473 = ssub.s32 32, 32
      %7474 = vsyncadd [#allocation4], %s7473
      %s7476 = sshll.u32 [#allocation3], 4
      %s7477 = int_to_ptr.vmem [resolvable:$true] %s7476
      %7479 = dma.vmem_to_hbm [thread:$0]  %s7477, 32, %s3, [#allocation4]
    $region25: #{brain_cnn_forward.7} parent=1 // pred_fallthru
      _
    // Predicated region
    $region26: #{brain_cnn_forward.7} parent=1 // pred_check
      _
    $region27: #{brain_cnn_forward.7} parent=1 // pred_check_branch
      %7481 = sbr.rel (0) target = $region29
    $region28: #{brain_cnn_forward.7} parent=1 // pred_region
      %7482 = dma.done [#allocation4], 32
    $region29: #{brain_cnn_forward.7} parent=1 // pred_fallthru
      _
    %7483 = vsyncpa [#allocation4], 1

</llo_original>
